<compile_context>
chip_gen: v7x
topology: tpu7x:2x2x1
jax: 0.10.0
libtpu: 0.0.40
codegen_flags: <defaults>
</compile_context>

<pallas_src>
import functools

import numpy as np
import jax
import jax.numpy as jnp
from jax import lax
from jax.experimental import pallas as pl
from jax.experimental.pallas import tpu as pltpu


def _round_up(x, m):
    return (x + m - 1) // m * m


# ----------------------------------------------------------------------------
# Host-side geometry constants (deterministic, numpy)
# ----------------------------------------------------------------------------
def _build_geometry(D2, D3):
    # branch 1, stage 1: Conv2d(k=1, stride=2, padding=6)
    H1 = (D2 + 2 * 6 - 1) // 2 + 1
    W1 = (D3 + 2 * 6 - 1) // 2 + 1
    # stage 2 (k=10, padding=(5,6)) must reproduce (D2, D3) so the two branch
    # outputs can be concatenated -- this pins the valid spatial sizes.
    assert H1 + 1 == D2 and W1 + 3 == D3, "unsupported spatial size for BasicBlock"

    # Common row-padded width used for every activation / padded buffer.
    W = _round_up(max(W1 + 2 * 6, D3 + 2), 32)
    L = D2 * W                       # flat (row-padded) pixel count

    nry = -(-D2 // 2)                # stride-2 real rows  (0,2,4,...)
    nrx = -(-D3 // 2)                # stride-2 real cols

    NS1 = 9 * W + L                  # dx-stack window length, 10x10 conv
    NP1 = NS1 + W                    # pad1 scratch length (max read NS1+8)
    NS2 = 2 * W + L                  # dx-stack window length, 3x3 conv
    NP2 = NS2 + W                    # pad2 scratch length (max read NS2+1)

    # interior mask for pad1: 1 wherever conv1_0's (H1 x W1) output lives
    # inside the (5,6)-zero-padded input of the 10x10 conv.
    mask1 = np.zeros((1, NP1), np.float32)
    for y in range(H1):
        base = (5 + y) * W + 6
        mask1[0, base:base + W1] = 1.0

    # real-pixel column mask for the row-padded (D2, W) layout
    maskc = np.zeros((1, L), np.float32)
    for r in range(D2):
        maskc[0, r * W:r * W + D3] = 1.0

    return dict(W=W, L=L, H1=H1, W1=W1, nry=nry, nrx=nrx,
                NS1=NS1, NP1=NP1, NS2=NS2, NP2=NP2,
                mask1=jnp.asarray(mask1), maskc=jnp.asarray(maskc))


# ----------------------------------------------------------------------------
# Fused BasicBlock kernel (one grid step == one batch element)
# ----------------------------------------------------------------------------
def _basic_block_kernel(x_ref, xs_ref,
                        wx1_ref, wp1_ref, b11_ref, w10_ref, b12_ref,
                        wx2_ref, wp2_ref, b21_ref, w9_ref, b22_ref,
                        w31_ref, w32_ref, b3_ref,
                        mask1_ref, maskc_ref,
                        out_ref,
                        pad1_sc, stack1_sc, pad2_sc, stack2_sc,
                        *, C, n1, n2, n3, W, L, NS1, NP2, NS2, nry, nrx):
    f32 = jnp.float32
    x = x_ref[0]                      # (C, L)        row-padded NCHW pixels
    xs = xs_ref[0]                    # (C, nry*nrx)  stride-2 sub-grid of x
    colmask = maskc_ref[...]          # (1, L)        1.0 on real pixels

    # global max-pool over the real pixels only (padding columns are zero)
    pooled = jnp.max(jnp.where(colmask > 0.0, x, jnp.float32(-3e38)),
                     axis=1, keepdims=True)                       # (C, 1)

    # ---- branch 1: conv1_0 (1x1, stride 2, pad 6), real taps only ----------
    # pool_and_inject fused as a rank-1 add: Wp @ max(x) is (n1, 1).
    pb1 = jnp.dot(wp1_ref[...], pooled, preferred_element_type=f32) + b11_ref[...]
    z1 = jnp.maximum(
        jnp.dot(wx1_ref[...], xs, preferred_element_type=f32) + pb1, 0.0)

    # zero-padded input of the 10x10 conv:
    #   relu(b11) on conv1_0's interior, z1 at the stride-2 real taps, 0 else.
    rb11 = jnp.maximum(b11_ref[...], 0.0)                         # (n1, 1)
    pad1_sc[...] = rb11 * mask1_ref[...]
    for i in range(nry):
        dst = (5 + 3 + i) * W + (6 + 3)          # real taps start at (3, 3)
        pad1_sc[:, dst:dst + nrx] = z1[:, i * nrx:(i + 1) * nrx]

    # dx-stack (10 shifted copies) -> one K = 10*n1 matmul per dy
    for d in range(10):
        stack1_sc[d * n1:(d + 1) * n1, :] = pad1_sc[:, d:d + NS1]
    acc1 = None
    for dy in range(10):
        part = jnp.dot(w10_ref[dy], stack1_sc[:, dy * W:dy * W + L],
                       preferred_element_type=f32)
        acc1 = part if acc1 is None else acc1 + part
    h1f = jnp.maximum(acc1 + b12_ref[...], 0.0)                   # (n1, L)

    # ---- branch 2: conv2_0 (1x1) on the row-padded layout ------------------
    pb2 = jnp.dot(wp2_ref[...], pooled, preferred_element_type=f32) + b21_ref[...]
    # bias/pooled term masked to real columns so the padding columns stay 0
    h2a = jnp.maximum(
        jnp.dot(wx2_ref[...], x, preferred_element_type=f32) + pb2 * colmask,
        0.0)                                                      # (n2, L)

    # zero-padded input of the 3x3 conv: one dense placement at offset W+1
    pad2_sc[...] = jnp.zeros((n2, NP2), f32)
    pad2_sc[:, W + 1:W + 1 + L] = h2a
    for d in range(3):
        stack2_sc[d * n2:(d + 1) * n2, :] = pad2_sc[:, d:d + NS2]
    acc2 = None
    for dy in range(3):
        part = jnp.dot(w9_ref[dy], stack2_sc[:, dy * W:dy * W + L],
                       preferred_element_type=f32)
        acc2 = part if acc2 is None else acc2 + part
    h2f = jnp.maximum(acc2 + b22_ref[...], 0.0)                   # (n2, L)

    # ---- conv3 (1x1) with the h1/h2 concat fused via weight-column split ---
    h = (jnp.dot(w31_ref[...], h1f, preferred_element_type=f32)
         + jnp.dot(w32_ref[...], h2f, preferred_element_type=f32)
         + b3_ref[...])
    h = jnp.maximum(h, 0.0)                                       # (n3, L)

    # final concat([conv3(...), inputs]) along channels
    out_ref[0, 0:n3, :] = h
    out_ref[0, n3:n3 + C, :] = x


def make_basic_block(in_shape, n1, n2, n3):
    """Returns forward(params, x_nchw) -> (B, n3 + C, D2, D3)."""
    C, D2, D3 = in_shape
    g = _build_geometry(D2, D3)
    W, L = g["W"], g["L"]
    nry, nrx = g["nry"], g["nrx"]

    kernel = functools.partial(
        _basic_block_kernel, C=C, n1=n1, n2=n2, n3=n3, W=W, L=L,
        NS1=g["NS1"], NP2=g["NP2"], NS2=g["NS2"], nry=nry, nrx=nrx)

    def forward(params, x_nchw):
        B = x_nchw.shape[0]
        xf = x_nchw.astype(jnp.float32)
        # layout plumbing (no compute): row-padded pixels + stride-2 sub-grid
        x_pw = jnp.pad(xf, ((0, 0), (0, 0), (0, 0), (0, W - D3))).reshape(B, C, L)
        x_str = xf[:, :, ::2, ::2].reshape(B, C, nry * nrx)

        # split / repack the PyTorch-layout weights for the fused kernel.
        # pool_and_inject order is [pooled, x] -> cols [:C] act on pooled.
        w11 = params["conv1_0_w"][:, :, 0, 0]                 # (n1, 2C)
        w21 = params["conv2_0_w"][:, :, 0, 0]                 # (n2, 2C)
        w3 = params["conv3_0_w"][:, :, 0, 0]                  # (n3, n1+n2)
        # (O, I, KH, KW) -> (KH, O, KW*I), lane-dense per-dy weight blocks
        w10r = jnp.transpose(params["conv1_2_w"], (2, 0, 3, 1)).reshape(10, n1, 10 * n1)
        w9r = jnp.transpose(params["conv2_2_w"], (2, 0, 3, 1)).reshape(3, n2, 3 * n2)
        consts = [
            w11[:, C:], w11[:, :C], params["conv1_0_b"][:, None],
            w10r, params["conv1_2_b"][:, None],
            w21[:, C:], w21[:, :C], params["conv2_0_b"][:, None],
            w9r, params["conv2_2_b"][:, None],
            w3[:, :n1], w3[:, n1:], params["conv3_0_b"][:, None],
            g["mask1"], g["maskc"],
        ]

        def full_spec(a):
            return pl.BlockSpec(a.shape, lambda b, nd=a.ndim: (0,) * nd)

        flops = 2 * B * (n1 * C * nry * nrx + n2 * C * L
                         + 10 * (10 * n1) * n1 * L + 3 * (3 * n2) * n2 * L
                         + n3 * (n1 + n2) * L)
        bytes_accessed = 4 * (B * (C * L + C * nry * nrx + (n3 + C) * L)
                              + sum(int(np.prod(a.shape)) for a in consts))

        out = pl.pallas_call(
            kernel,
            out_shape=jax.ShapeDtypeStruct((B, n3 + C, L), jnp.float32),
            grid_spec=pltpu.PrefetchScalarGridSpec(
                num_scalar_prefetch=0,
                grid=(B,),
                in_specs=[pl.BlockSpec((1, C, L), lambda b: (b, 0, 0)),
                          pl.BlockSpec((1, C, nry * nrx), lambda b: (b, 0, 0))]
                + [full_spec(a) for a in consts],
                out_specs=pl.BlockSpec((1, n3 + C, L), lambda b: (b, 0, 0)),
                scratch_shapes=[
                    pltpu.VMEM((n1, g["NP1"]), jnp.float32),
                    pltpu.VMEM((10 * n1, g["NS1"]), jnp.float32),
                    pltpu.VMEM((n2, g["NP2"]), jnp.float32),
                    pltpu.VMEM((3 * n2, g["NS2"]), jnp.float32),
                ]),
            compiler_params=pltpu.CompilerParams(
                dimension_semantics=("parallel",)),
            cost_estimate=pl.CostEstimate(
                flops=flops, transcendentals=0, bytes_accessed=bytes_accessed),
        )(x_pw, x_str, *consts)

        return out.reshape(B, n3 + C, D2, W)[:, :, :, :D3]

    return forward


# ----------------------------------------------------------------------------
# Deterministic parameters and a pure-JAX reference of the PyTorch module
# ----------------------------------------------------------------------------
def init_params(key, in_shape, n1, n2, n3):
    C = in_shape[0]
    ks = jax.random.split(key, 10)
    w = lambda k, s: 0.05 * jax.random.normal(k, s, dtype=jnp.float32)
    return dict(
        conv1_0_w=w(ks[0], (n1, 2 * C, 1, 1)), conv1_0_b=w(ks[1], (n1,)),
        conv1_2_w=w(ks[2], (n1, n1, 10, 10)), conv1_2_b=w(ks[3], (n1,)),
        conv2_0_w=w(ks[4], (n2, 2 * C, 1, 1)), conv2_0_b=w(ks[5], (n2,)),
        conv2_2_w=w(ks[6], (n2, n2, 3, 3)), conv2_2_b=w(ks[7], (n2,)),
        conv3_0_w=w(ks[8], (n3, n1 + n2, 1, 1)), conv3_0_b=w(ks[9], (n3,)),
    )


def basic_block_reference(params, x):
    hi = lax.Precision.HIGHEST

    def conv(v, w, b, stride=1, padding=((0, 0), (0, 0))):
        y = lax.conv_general_dilated(
            v, w, window_strides=(stride, stride), padding=padding,
            dimension_numbers=("NCHW", "OIHW", "NCHW"), precision=hi)
        return y + b[None, :, None, None]

    pooled = jnp.max(x, axis=(2, 3), keepdims=True)
    xc = jnp.concatenate([jnp.broadcast_to(pooled, x.shape), x], axis=1)
    h1 = jax.nn.relu(conv(xc, params["conv1_0_w"], params["conv1_0_b"],
                          stride=2, padding=((6, 6), (6, 6))))
    h1 = jax.nn.relu(conv(h1, params["conv1_2_w"], params["conv1_2_b"],
                          padding=((5, 5), (6, 6))))
    h2 = jax.nn.relu(conv(xc, params["conv2_0_w"], params["conv2_0_b"]))
    h2 = jax.nn.relu(conv(h2, params["conv2_2_w"], params["conv2_2_b"],
                          padding=((1, 1), (1, 1))))
    h = jax.nn.relu(conv(jnp.concatenate([h1, h2], axis=1),
                         params["conv3_0_w"], params["conv3_0_b"]))
    return jnp.concatenate([h, x], axis=1)


# ----------------------------------------------------------------------------
if __name__ == "__main__":
    # MiniPacman-style BasicBlock: (C, 15, 19) is the canonical small spatial
    # size for which the two conv branches produce matching output shapes.
    in_shape = (64, 15, 19)
    n1, n2, n3 = 16, 32, 64
    batch = 2

    key = jax.random.PRNGKey(0)
    kp, kx = jax.random.split(key)
    params = init_params(kp, in_shape, n1, n2, n3)
    x = jax.random.normal(kx, (batch,) + in_shape, dtype=jnp.float32)

    forward = jax.jit(make_basic_block(in_shape, n1, n2, n3))
    out = forward(params, x)
    jax.block_until_ready(out)
    assert out.shape == (batch, n3 + in_shape[0], in_shape[1], in_shape[2])

    ref = jax.jit(basic_block_reference)(params, x)
    jax.block_until_ready(ref)
    max_err = float(jnp.max(jnp.abs(out - ref)))
    assert max_err < 2e-2, f"mismatch vs reference: max abs err {max_err}"
    print("KERNEL_OK")
</pallas_src>

<mosaic_0001>
module attributes {stable_mosaic.version = 11 : i64} {
  func.func @_basic_block_kernel(%arg0: i32, %arg1: memref<1x64x480xf32, #tpu.memory_space<vmem>>, %arg2: memref<1x64x80xf32, #tpu.memory_space<vmem>>, %arg3: memref<16x64xf32, #tpu.memory_space<vmem>>, %arg4: memref<16x64xf32, #tpu.memory_space<vmem>>, %arg5: memref<16x1xf32, #tpu.memory_space<vmem>>, %arg6: memref<10x16x160xf32, #tpu.memory_space<vmem>>, %arg7: memref<16x1xf32, #tpu.memory_space<vmem>>, %arg8: memref<32x64xf32, #tpu.memory_space<vmem>>, %arg9: memref<32x64xf32, #tpu.memory_space<vmem>>, %arg10: memref<32x1xf32, #tpu.memory_space<vmem>>, %arg11: memref<3x32x96xf32, #tpu.memory_space<vmem>>, %arg12: memref<32x1xf32, #tpu.memory_space<vmem>>, %arg13: memref<64x16xf32, #tpu.memory_space<vmem>>, %arg14: memref<64x32xf32, #tpu.memory_space<vmem>>, %arg15: memref<64x1xf32, #tpu.memory_space<vmem>>, %arg16: memref<1x800xf32, #tpu.memory_space<vmem>>, %arg17: memref<1x480xf32, #tpu.memory_space<vmem>>, %arg18: memref<1x128x480xf32, #tpu.memory_space<vmem>>, %arg19: memref<16x800xf32, #tpu.memory_space<vmem>>, %arg20: memref<160x768xf32, #tpu.memory_space<vmem>>, %arg21: memref<32x576xf32, #tpu.memory_space<vmem>>, %arg22: memref<96x544xf32, #tpu.memory_space<vmem>>) attributes {dimension_semantics = [#tpu.dimension_semantics<parallel>], iteration_bounds = array<i64: 2>, scalar_prefetch = 0 : i64, scratch_operands = 4 : i64, tpu.core_type = #tpu.core_type<tc>, window_params = [{transform_indices = @transform_0, window_bounds = array<i64: 1, 64, 480>}, {transform_indices = @transform_1, window_bounds = array<i64: 1, 64, 80>}, {pipeline_mode = #tpu.pipeline_mode<synchronous>, transform_indices = @transform_2, window_bounds = array<i64: 16, 64>}, {pipeline_mode = #tpu.pipeline_mode<synchronous>, transform_indices = @transform_3, window_bounds = array<i64: 16, 64>}, {pipeline_mode = #tpu.pipeline_mode<synchronous>, transform_indices = @transform_4, window_bounds = array<i64: 16, 1>}, {pipeline_mode = #tpu.pipeline_mode<synchronous>, transform_indices = @transform_5, window_bounds = array<i64: 10, 16, 160>}, {pipeline_mode = #tpu.pipeline_mode<synchronous>, transform_indices = @transform_6, window_bounds = array<i64: 16, 1>}, {pipeline_mode = #tpu.pipeline_mode<synchronous>, transform_indices = @transform_7, window_bounds = array<i64: 32, 64>}, {pipeline_mode = #tpu.pipeline_mode<synchronous>, transform_indices = @transform_8, window_bounds = array<i64: 32, 64>}, {pipeline_mode = #tpu.pipeline_mode<synchronous>, transform_indices = @transform_9, window_bounds = array<i64: 32, 1>}, {pipeline_mode = #tpu.pipeline_mode<synchronous>, transform_indices = @transform_10, window_bounds = array<i64: 3, 32, 96>}, {pipeline_mode = #tpu.pipeline_mode<synchronous>, transform_indices = @transform_11, window_bounds = array<i64: 32, 1>}, {pipeline_mode = #tpu.pipeline_mode<synchronous>, transform_indices = @transform_12, window_bounds = array<i64: 64, 16>}, {pipeline_mode = #tpu.pipeline_mode<synchronous>, transform_indices = @transform_13, window_bounds = array<i64: 64, 32>}, {pipeline_mode = #tpu.pipeline_mode<synchronous>, transform_indices = @transform_14, window_bounds = array<i64: 64, 1>}, {pipeline_mode = #tpu.pipeline_mode<synchronous>, transform_indices = @transform_15, window_bounds = array<i64: 1, 800>}, {pipeline_mode = #tpu.pipeline_mode<synchronous>, transform_indices = @transform_16, window_bounds = array<i64: 1, 480>}, {transform_indices = @transform_17, window_bounds = array<i64: 1, 128, 480>}]} {
    %c0 = arith.constant 0 : index
    %c0_0 = arith.constant 0 : index
    %c0_1 = arith.constant 0 : index
    %0 = vector.load %arg1[%c0, %c0_0, %c0_1] : memref<1x64x480xf32, #tpu.memory_space<vmem>>, vector<1x64x480xf32>
    %1 = vector.shape_cast %0 : vector<1x64x480xf32> to vector<64x480xf32>
    %c0_2 = arith.constant 0 : index
    %c0_3 = arith.constant 0 : index
    %c0_4 = arith.constant 0 : index
    %2 = vector.load %arg2[%c0_2, %c0_3, %c0_4] : memref<1x64x80xf32, #tpu.memory_space<vmem>>, vector<1x64x80xf32>
    %3 = vector.shape_cast %2 : vector<1x64x80xf32> to vector<64x80xf32>
    %c0_5 = arith.constant 0 : index
    %c0_6 = arith.constant 0 : index
    %4 = vector.load %arg17[%c0_5, %c0_6] : memref<1x480xf32, #tpu.memory_space<vmem>>, vector<1x480xf32>
    %cst = arith.constant 0.000000e+00 : f32
    %5 = vector.broadcast %cst : f32 to vector<1x480xf32>
    %6 = arith.cmpf ogt, %4, %5 : vector<1x480xf32>
    %cst_7 = arith.constant -3.000000e+38 : f32
    %7 = vector.shape_cast %6 : vector<1x480xi1> to vector<1x480xi1>
    %8 = vector.broadcast %7 : vector<1x480xi1> to vector<64x480xi1>
    %9 = vector.broadcast %cst_7 : f32 to vector<64x480xf32>
    %10 = arith.select %8, %1, %9 : vector<64x480xi1>, vector<64x480xf32>
    %cst_8 = arith.constant dense<0xFF800000> : vector<64xf32>
    %11 = vector.multi_reduction <maximumf>, %10, %cst_8 [1] : vector<64x480xf32> to vector<64xf32>
    %12 = vector.shape_cast %11 : vector<64xf32> to vector<64x1xf32>
    %c0_9 = arith.constant 0 : index
    %c0_10 = arith.constant 0 : index
    %13 = vector.load %arg4[%c0_9, %c0_10] : memref<16x64xf32, #tpu.memory_space<vmem>>, vector<16x64xf32>
    %cst_11 = arith.constant dense<0.000000e+00> : vector<16x1xf32>
    %14 = tpu.matmul %13, %12, %cst_11 {dimension_numbers = #tpu.dot_dimension_numbers<[1], [0], [0], [1], [0, 0, 1, 1], [], []>} : vector<16x64xf32>, vector<64x1xf32>, vector<16x1xf32> -> vector<16x1xf32>
    %c0_12 = arith.constant 0 : index
    %c0_13 = arith.constant 0 : index
    %15 = vector.load %arg5[%c0_12, %c0_13] : memref<16x1xf32, #tpu.memory_space<vmem>>, vector<16x1xf32>
    %16 = arith.addf %14, %15 : vector<16x1xf32>
    %c0_14 = arith.constant 0 : index
    %c0_15 = arith.constant 0 : index
    %17 = vector.load %arg3[%c0_14, %c0_15] : memref<16x64xf32, #tpu.memory_space<vmem>>, vector<16x64xf32>
    %cst_16 = arith.constant dense<0.000000e+00> : vector<16x80xf32>
    %18 = tpu.matmul %17, %3, %cst_16 {dimension_numbers = #tpu.dot_dimension_numbers<[1], [0], [0], [1], [0, 0, 1, 1], [], []>} : vector<16x64xf32>, vector<64x80xf32>, vector<16x80xf32> -> vector<16x80xf32>
    %19 = vector.broadcast %16 : vector<16x1xf32> to vector<16x80xf32>
    %20 = arith.addf %18, %19 : vector<16x80xf32>
    %cst_17 = arith.constant 0.000000e+00 : f32
    %21 = vector.broadcast %cst_17 : f32 to vector<16x80xf32>
    %22 = arith.maximumf %20, %21 : vector<16x80xf32>
    %c0_18 = arith.constant 0 : index
    %c0_19 = arith.constant 0 : index
    %23 = vector.load %arg5[%c0_18, %c0_19] : memref<16x1xf32, #tpu.memory_space<vmem>>, vector<16x1xf32>
    %cst_20 = arith.constant 0.000000e+00 : f32
    %24 = vector.broadcast %cst_20 : f32 to vector<16x1xf32>
    %25 = arith.maximumf %23, %24 : vector<16x1xf32>
    %c0_21 = arith.constant 0 : index
    %c0_22 = arith.constant 0 : index
    %26 = vector.load %arg16[%c0_21, %c0_22] : memref<1x800xf32, #tpu.memory_space<vmem>>, vector<1x800xf32>
    %27 = vector.broadcast %25 : vector<16x1xf32> to vector<16x800xf32>
    %28 = vector.broadcast %26 : vector<1x800xf32> to vector<16x800xf32>
    %29 = arith.mulf %27, %28 : vector<16x800xf32>
    %c0_23 = arith.constant 0 : index
    %c0_24 = arith.constant 0 : index
    %30 = vector.load %arg19[%c0_23, %c0_24] : memref<16x800xf32, #tpu.memory_space<vmem>>, vector<16x800xf32>
    tpu.vector_store %arg19[%c0_23, %c0_24], %29 {strides = array<i32>} : memref<16x800xf32, #tpu.memory_space<vmem>>, vector<16x800xf32>,
    %31 = vector.extract_strided_slice %22 {offsets = [0, 0], sizes = [16, 10], strides = [1, 1]} : vector<16x80xf32> to vector<16x10xf32>
    %c0_25 = arith.constant 0 : index
    %c265 = arith.constant 265 : index
    %32 = vector.load %arg19[%c0_25, %c265] : memref<16x800xf32, #tpu.memory_space<vmem>>, vector<16x10xf32>
    tpu.vector_store %arg19[%c0_25, %c265], %31 {strides = array<i32>} : memref<16x800xf32, #tpu.memory_space<vmem>>, vector<16x10xf32>,
    %33 = vector.extract_strided_slice %22 {offsets = [0, 10], sizes = [16, 10], strides = [1, 1]} : vector<16x80xf32> to vector<16x10xf32>
    %c0_26 = arith.constant 0 : index
    %c297 = arith.constant 297 : index
    %34 = vector.load %arg19[%c0_26, %c297] : memref<16x800xf32, #tpu.memory_space<vmem>>, vector<16x10xf32>
    tpu.vector_store %arg19[%c0_26, %c297], %33 {strides = array<i32>} : memref<16x800xf32, #tpu.memory_space<vmem>>, vector<16x10xf32>,
    %35 = vector.extract_strided_slice %22 {offsets = [0, 20], sizes = [16, 10], strides = [1, 1]} : vector<16x80xf32> to vector<16x10xf32>
    %c0_27 = arith.constant 0 : index
    %c329 = arith.constant 329 : index
    %36 = vector.load %arg19[%c0_27, %c329] : memref<16x800xf32, #tpu.memory_space<vmem>>, vector<16x10xf32>
    tpu.vector_store %arg19[%c0_27, %c329], %35 {strides = array<i32>} : memref<16x800xf32, #tpu.memory_space<vmem>>, vector<16x10xf32>,
    %37 = vector.extract_strided_slice %22 {offsets = [0, 30], sizes = [16, 10], strides = [1, 1]} : vector<16x80xf32> to vector<16x10xf32>
    %c0_28 = arith.constant 0 : index
    %c361 = arith.constant 361 : index
    %38 = vector.load %arg19[%c0_28, %c361] : memref<16x800xf32, #tpu.memory_space<vmem>>, vector<16x10xf32>
    tpu.vector_store %arg19[%c0_28, %c361], %37 {strides = array<i32>} : memref<16x800xf32, #tpu.memory_space<vmem>>, vector<16x10xf32>,
    %39 = vector.extract_strided_slice %22 {offsets = [0, 40], sizes = [16, 10], strides = [1, 1]} : vector<16x80xf32> to vector<16x10xf32>
    %c0_29 = arith.constant 0 : index
    %c393 = arith.constant 393 : index
    %40 = vector.load %arg19[%c0_29, %c393] : memref<16x800xf32, #tpu.memory_space<vmem>>, vector<16x10xf32>
    tpu.vector_store %arg19[%c0_29, %c393], %39 {strides = array<i32>} : memref<16x800xf32, #tpu.memory_space<vmem>>, vector<16x10xf32>,
    %41 = vector.extract_strided_slice %22 {offsets = [0, 50], sizes = [16, 10], strides = [1, 1]} : vector<16x80xf32> to vector<16x10xf32>
    %c0_30 = arith.constant 0 : index
    %c425 = arith.constant 425 : index
    %42 = vector.load %arg19[%c0_30, %c425] : memref<16x800xf32, #tpu.memory_space<vmem>>, vector<16x10xf32>
    tpu.vector_store %arg19[%c0_30, %c425], %41 {strides = array<i32>} : memref<16x800xf32, #tpu.memory_space<vmem>>, vector<16x10xf32>,
    %43 = vector.extract_strided_slice %22 {offsets = [0, 60], sizes = [16, 10], strides = [1, 1]} : vector<16x80xf32> to vector<16x10xf32>
    %c0_31 = arith.constant 0 : index
    %c457 = arith.constant 457 : index
    %44 = vector.load %arg19[%c0_31, %c457] : memref<16x800xf32, #tpu.memory_space<vmem>>, vector<16x10xf32>
    tpu.vector_store %arg19[%c0_31, %c457], %43 {strides = array<i32>} : memref<16x800xf32, #tpu.memory_space<vmem>>, vector<16x10xf32>,
    %45 = vector.extract_strided_slice %22 {offsets = [0, 70], sizes = [16, 10], strides = [1, 1]} : vector<16x80xf32> to vector<16x10xf32>
    %c0_32 = arith.constant 0 : index
    %c489 = arith.constant 489 : index
    %46 = vector.load %arg19[%c0_32, %c489] : memref<16x800xf32, #tpu.memory_space<vmem>>, vector<16x10xf32>
    tpu.vector_store %arg19[%c0_32, %c489], %45 {strides = array<i32>} : memref<16x800xf32, #tpu.memory_space<vmem>>, vector<16x10xf32>,
    %c0_33 = arith.constant 0 : index
    %c0_34 = arith.constant 0 : index
    %47 = vector.load %arg19[%c0_33, %c0_34] : memref<16x800xf32, #tpu.memory_space<vmem>>, vector<16x768xf32>
    %c0_35 = arith.constant 0 : index
    %c0_36 = arith.constant 0 : index
    %48 = vector.load %arg20[%c0_35, %c0_36] : memref<160x768xf32, #tpu.memory_space<vmem>>, vector<16x768xf32>
    tpu.vector_store %arg20[%c0_35, %c0_36], %47 {strides = array<i32>} : memref<160x768xf32, #tpu.memory_space<vmem>>, vector<16x768xf32>,
    %c0_37 = arith.constant 0 : index
    %c1 = arith.constant 1 : index
    %49 = vector.load %arg19[%c0_37, %c1] : memref<16x800xf32, #tpu.memory_space<vmem>>, vector<16x768xf32>
    %c16 = arith.constant 16 : index
    %c0_38 = arith.constant 0 : index
    %50 = vector.load %arg20[%c16, %c0_38] : memref<160x768xf32, #tpu.memory_space<vmem>>, vector<16x768xf32>
    tpu.vector_store %arg20[%c16, %c0_38], %49 {strides = array<i32>} : memref<160x768xf32, #tpu.memory_space<vmem>>, vector<16x768xf32>,
    %c0_39 = arith.constant 0 : index
    %c2 = arith.constant 2 : index
    %51 = vector.load %arg19[%c0_39, %c2] : memref<16x800xf32, #tpu.memory_space<vmem>>, vector<16x768xf32>
    %c32 = arith.constant 32 : index
    %c0_40 = arith.constant 0 : index
    %52 = vector.load %arg20[%c32, %c0_40] : memref<160x768xf32, #tpu.memory_space<vmem>>, vector<16x768xf32>
    tpu.vector_store %arg20[%c32, %c0_40], %51 {strides = array<i32>} : memref<160x768xf32, #tpu.memory_space<vmem>>, vector<16x768xf32>,
    %c0_41 = arith.constant 0 : index
    %c3 = arith.constant 3 : index
    %53 = vector.load %arg19[%c0_41, %c3] : memref<16x800xf32, #tpu.memory_space<vmem>>, vector<16x768xf32>
    %c48 = arith.constant 48 : index
    %c0_42 = arith.constant 0 : index
    %54 = vector.load %arg20[%c48, %c0_42] : memref<160x768xf32, #tpu.memory_space<vmem>>, vector<16x768xf32>
    tpu.vector_store %arg20[%c48, %c0_42], %53 {strides = array<i32>} : memref<160x768xf32, #tpu.memory_space<vmem>>, vector<16x768xf32>,
    %c0_43 = arith.constant 0 : index
    %c4 = arith.constant 4 : index
    %55 = vector.load %arg19[%c0_43, %c4] : memref<16x800xf32, #tpu.memory_space<vmem>>, vector<16x768xf32>
    %c64 = arith.constant 64 : index
    %c0_44 = arith.constant 0 : index
    %56 = vector.load %arg20[%c64, %c0_44] : memref<160x768xf32, #tpu.memory_space<vmem>>, vector<16x768xf32>
    tpu.vector_store %arg20[%c64, %c0_44], %55 {strides = array<i32>} : memref<160x768xf32, #tpu.memory_space<vmem>>, vector<16x768xf32>,
    %c0_45 = arith.constant 0 : index
    %c5 = arith.constant 5 : index
    %57 = vector.load %arg19[%c0_45, %c5] : memref<16x800xf32, #tpu.memory_space<vmem>>, vector<16x768xf32>
    %c80 = arith.constant 80 : index
    %c0_46 = arith.constant 0 : index
    %58 = vector.load %arg20[%c80, %c0_46] : memref<160x768xf32, #tpu.memory_space<vmem>>, vector<16x768xf32>
    tpu.vector_store %arg20[%c80, %c0_46], %57 {strides = array<i32>} : memref<160x768xf32, #tpu.memory_space<vmem>>, vector<16x768xf32>,
    %c0_47 = arith.constant 0 : index
    %c6 = arith.constant 6 : index
    %59 = vector.load %arg19[%c0_47, %c6] : memref<16x800xf32, #tpu.memory_space<vmem>>, vector<16x768xf32>
    %c96 = arith.constant 96 : index
    %c0_48 = arith.constant 0 : index
    %60 = vector.load %arg20[%c96, %c0_48] : memref<160x768xf32, #tpu.memory_space<vmem>>, vector<16x768xf32>
    tpu.vector_store %arg20[%c96, %c0_48], %59 {strides = array<i32>} : memref<160x768xf32, #tpu.memory_space<vmem>>, vector<16x768xf32>,
    %c0_49 = arith.constant 0 : index
    %c7 = arith.constant 7 : index
    %61 = vector.load %arg19[%c0_49, %c7] : memref<16x800xf32, #tpu.memory_space<vmem>>, vector<16x768xf32>
    %c112 = arith.constant 112 : index
    %c0_50 = arith.constant 0 : index
    %62 = vector.load %arg20[%c112, %c0_50] : memref<160x768xf32, #tpu.memory_space<vmem>>, vector<16x768xf32>
    tpu.vector_store %arg20[%c112, %c0_50], %61 {strides = array<i32>} : memref<160x768xf32, #tpu.memory_space<vmem>>, vector<16x768xf32>,
    %c0_51 = arith.constant 0 : index
    %c8 = arith.constant 8 : index
    %63 = vector.load %arg19[%c0_51, %c8] : memref<16x800xf32, #tpu.memory_space<vmem>>, vector<16x768xf32>
    %c128 = arith.constant 128 : index
    %c0_52 = arith.constant 0 : index
    %64 = vector.load %arg20[%c128, %c0_52] : memref<160x768xf32, #tpu.memory_space<vmem>>, vector<16x768xf32>
    tpu.vector_store %arg20[%c128, %c0_52], %63 {strides = array<i32>} : memref<160x768xf32, #tpu.memory_space<vmem>>, vector<16x768xf32>,
    %c0_53 = arith.constant 0 : index
    %c9 = arith.constant 9 : index
    %65 = vector.load %arg19[%c0_53, %c9] : memref<16x800xf32, #tpu.memory_space<vmem>>, vector<16x768xf32>
    %c144 = arith.constant 144 : index
    %c0_54 = arith.constant 0 : index
    %66 = vector.load %arg20[%c144, %c0_54] : memref<160x768xf32, #tpu.memory_space<vmem>>, vector<16x768xf32>
    tpu.vector_store %arg20[%c144, %c0_54], %65 {strides = array<i32>} : memref<160x768xf32, #tpu.memory_space<vmem>>, vector<16x768xf32>,
    %c0_55 = arith.constant 0 : index
    %c0_56 = arith.constant 0 : index
    %c0_57 = arith.constant 0 : index
    %67 = vector.load %arg6[%c0_55, %c0_56, %c0_57] : memref<10x16x160xf32, #tpu.memory_space<vmem>>, vector<1x16x160xf32>
    %68 = vector.shape_cast %67 : vector<1x16x160xf32> to vector<16x160xf32>
    %c0_58 = arith.constant 0 : index
    %c0_59 = arith.constant 0 : index
    %69 = vector.load %arg20[%c0_58, %c0_59] : memref<160x768xf32, #tpu.memory_space<vmem>>, vector<160x480xf32>
    %cst_60 = arith.constant dense<0.000000e+00> : vector<16x480xf32>
    %70 = tpu.matmul %68, %69, %cst_60 {dimension_numbers = #tpu.dot_dimension_numbers<[1], [0], [0], [1], [0, 0, 1, 1], [], []>} : vector<16x160xf32>, vector<160x480xf32>, vector<16x480xf32> -> vector<16x480xf32>
    %c1_61 = arith.constant 1 : index
    %c0_62 = arith.constant 0 : index
    %c0_63 = arith.constant 0 : index
    %71 = vector.load %arg6[%c1_61, %c0_62, %c0_63] : memref<10x16x160xf32, #tpu.memory_space<vmem>>, vector<1x16x160xf32>
    %72 = vector.shape_cast %71 : vector<1x16x160xf32> to vector<16x160xf32>
    %c0_64 = arith.constant 0 : index
    %c32_65 = arith.constant 32 : index
    %73 = vector.load %arg20[%c0_64, %c32_65] : memref<160x768xf32, #tpu.memory_space<vmem>>, vector<160x480xf32>
    %cst_66 = arith.constant dense<0.000000e+00> : vector<16x480xf32>
    %74 = tpu.matmul %72, %73, %cst_66 {dimension_numbers = #tpu.dot_dimension_numbers<[1], [0], [0], [1], [0, 0, 1, 1], [], []>} : vector<16x160xf32>, vector<160x480xf32>, vector<16x480xf32> -> vector<16x480xf32>
    %75 = arith.addf %70, %74 : vector<16x480xf32>
    %c2_67 = arith.constant 2 : index
    %c0_68 = arith.constant 0 : index
    %c0_69 = arith.constant 0 : index
    %76 = vector.load %arg6[%c2_67, %c0_68, %c0_69] : memref<10x16x160xf32, #tpu.memory_space<vmem>>, vector<1x16x160xf32>
    %77 = vector.shape_cast %76 : vector<1x16x160xf32> to vector<16x160xf32>
    %c0_70 = arith.constant 0 : index
    %c64_71 = arith.constant 64 : index
    %78 = vector.load %arg20[%c0_70, %c64_71] : memref<160x768xf32, #tpu.memory_space<vmem>>, vector<160x480xf32>
    %cst_72 = arith.constant dense<0.000000e+00> : vector<16x480xf32>
    %79 = tpu.matmul %77, %78, %cst_72 {dimension_numbers = #tpu.dot_dimension_numbers<[1], [0], [0], [1], [0, 0, 1, 1], [], []>} : vector<16x160xf32>, vector<160x480xf32>, vector<16x480xf32> -> vector<16x480xf32>
    %80 = arith.addf %75, %79 : vector<16x480xf32>
    %c3_73 = arith.constant 3 : index
    %c0_74 = arith.constant 0 : index
    %c0_75 = arith.constant 0 : index
    %81 = vector.load %arg6[%c3_73, %c0_74, %c0_75] : memref<10x16x160xf32, #tpu.memory_space<vmem>>, vector<1x16x160xf32>
    %82 = vector.shape_cast %81 : vector<1x16x160xf32> to vector<16x160xf32>
    %c0_76 = arith.constant 0 : index
    %c96_77 = arith.constant 96 : index
    %83 = vector.load %arg20[%c0_76, %c96_77] : memref<160x768xf32, #tpu.memory_space<vmem>>, vector<160x480xf32>
    %cst_78 = arith.constant dense<0.000000e+00> : vector<16x480xf32>
    %84 = tpu.matmul %82, %83, %cst_78 {dimension_numbers = #tpu.dot_dimension_numbers<[1], [0], [0], [1], [0, 0, 1, 1], [], []>} : vector<16x160xf32>, vector<160x480xf32>, vector<16x480xf32> -> vector<16x480xf32>
    %85 = arith.addf %80, %84 : vector<16x480xf32>
    %c4_79 = arith.constant 4 : index
    %c0_80 = arith.constant 0 : index
    %c0_81 = arith.constant 0 : index
    %86 = vector.load %arg6[%c4_79, %c0_80, %c0_81] : memref<10x16x160xf32, #tpu.memory_space<vmem>>, vector<1x16x160xf32>
    %87 = vector.shape_cast %86 : vector<1x16x160xf32> to vector<16x160xf32>
    %c0_82 = arith.constant 0 : index
    %c128_83 = arith.constant 128 : index
    %88 = vector.load %arg20[%c0_82, %c128_83] : memref<160x768xf32, #tpu.memory_space<vmem>>, vector<160x480xf32>
    %cst_84 = arith.constant dense<0.000000e+00> : vector<16x480xf32>
    %89 = tpu.matmul %87, %88, %cst_84 {dimension_numbers = #tpu.dot_dimension_numbers<[1], [0], [0], [1], [0, 0, 1, 1], [], []>} : vector<16x160xf32>, vector<160x480xf32>, vector<16x480xf32> -> vector<16x480xf32>
    %90 = arith.addf %85, %89 : vector<16x480xf32>
    %c5_85 = arith.constant 5 : index
    %c0_86 = arith.constant 0 : index
    %c0_87 = arith.constant 0 : index
    %91 = vector.load %arg6[%c5_85, %c0_86, %c0_87] : memref<10x16x160xf32, #tpu.memory_space<vmem>>, vector<1x16x160xf32>
    %92 = vector.shape_cast %91 : vector<1x16x160xf32> to vector<16x160xf32>
    %c0_88 = arith.constant 0 : index
    %c160 = arith.constant 160 : index
    %93 = vector.load %arg20[%c0_88, %c160] : memref<160x768xf32, #tpu.memory_space<vmem>>, vector<160x480xf32>
    %cst_89 = arith.constant dense<0.000000e+00> : vector<16x480xf32>
    %94 = tpu.matmul %92, %93, %cst_89 {dimension_numbers = #tpu.dot_dimension_numbers<[1], [0], [0], [1], [0, 0, 1, 1], [], []>} : vector<16x160xf32>, vector<160x480xf32>, vector<16x480xf32> -> vector<16x480xf32>
    %95 = arith.addf %90, %94 : vector<16x480xf32>
    %c6_90 = arith.constant 6 : index
    %c0_91 = arith.constant 0 : index
    %c0_92 = arith.constant 0 : index
    %96 = vector.load %arg6[%c6_90, %c0_91, %c0_92] : memref<10x16x160xf32, #tpu.memory_space<vmem>>, vector<1x16x160xf32>
    %97 = vector.shape_cast %96 : vector<1x16x160xf32> to vector<16x160xf32>
    %c0_93 = arith.constant 0 : index
    %c192 = arith.constant 192 : index
    %98 = vector.load %arg20[%c0_93, %c192] : memref<160x768xf32, #tpu.memory_space<vmem>>, vector<160x480xf32>
    %cst_94 = arith.constant dense<0.000000e+00> : vector<16x480xf32>
    %99 = tpu.matmul %97, %98, %cst_94 {dimension_numbers = #tpu.dot_dimension_numbers<[1], [0], [0], [1], [0, 0, 1, 1], [], []>} : vector<16x160xf32>, vector<160x480xf32>, vector<16x480xf32> -> vector<16x480xf32>
    %100 = arith.addf %95, %99 : vector<16x480xf32>
    %c7_95 = arith.constant 7 : index
    %c0_96 = arith.constant 0 : index
    %c0_97 = arith.constant 0 : index
    %101 = vector.load %arg6[%c7_95, %c0_96, %c0_97] : memref<10x16x160xf32, #tpu.memory_space<vmem>>, vector<1x16x160xf32>
    %102 = vector.shape_cast %101 : vector<1x16x160xf32> to vector<16x160xf32>
    %c0_98 = arith.constant 0 : index
    %c224 = arith.constant 224 : index
    %103 = vector.load %arg20[%c0_98, %c224] : memref<160x768xf32, #tpu.memory_space<vmem>>, vector<160x480xf32>
    %cst_99 = arith.constant dense<0.000000e+00> : vector<16x480xf32>
    %104 = tpu.matmul %102, %103, %cst_99 {dimension_numbers = #tpu.dot_dimension_numbers<[1], [0], [0], [1], [0, 0, 1, 1], [], []>} : vector<16x160xf32>, vector<160x480xf32>, vector<16x480xf32> -> vector<16x480xf32>
    %105 = arith.addf %100, %104 : vector<16x480xf32>
    %c8_100 = arith.constant 8 : index
    %c0_101 = arith.constant 0 : index
    %c0_102 = arith.constant 0 : index
    %106 = vector.load %arg6[%c8_100, %c0_101, %c0_102] : memref<10x16x160xf32, #tpu.memory_space<vmem>>, vector<1x16x160xf32>
    %107 = vector.shape_cast %106 : vector<1x16x160xf32> to vector<16x160xf32>
    %c0_103 = arith.constant 0 : index
    %c256 = arith.constant 256 : index
    %108 = vector.load %arg20[%c0_103, %c256] : memref<160x768xf32, #tpu.memory_space<vmem>>, vector<160x480xf32>
    %cst_104 = arith.constant dense<0.000000e+00> : vector<16x480xf32>
    %109 = tpu.matmul %107, %108, %cst_104 {dimension_numbers = #tpu.dot_dimension_numbers<[1], [0], [0], [1], [0, 0, 1, 1], [], []>} : vector<16x160xf32>, vector<160x480xf32>, vector<16x480xf32> -> vector<16x480xf32>
    %110 = arith.addf %105, %109 : vector<16x480xf32>
    %c9_105 = arith.constant 9 : index
    %c0_106 = arith.constant 0 : index
    %c0_107 = arith.constant 0 : index
    %111 = vector.load %arg6[%c9_105, %c0_106, %c0_107] : memref<10x16x160xf32, #tpu.memory_space<vmem>>, vector<1x16x160xf32>
    %112 = vector.shape_cast %111 : vector<1x16x160xf32> to vector<16x160xf32>
    %c0_108 = arith.constant 0 : index
    %c288 = arith.constant 288 : index
    %113 = vector.load %arg20[%c0_108, %c288] : memref<160x768xf32, #tpu.memory_space<vmem>>, vector<160x480xf32>
    %cst_109 = arith.constant dense<0.000000e+00> : vector<16x480xf32>
    %114 = tpu.matmul %112, %113, %cst_109 {dimension_numbers = #tpu.dot_dimension_numbers<[1], [0], [0], [1], [0, 0, 1, 1], [], []>} : vector<16x160xf32>, vector<160x480xf32>, vector<16x480xf32> -> vector<16x480xf32>
    %115 = arith.addf %110, %114 : vector<16x480xf32>
    %c0_110 = arith.constant 0 : index
    %c0_111 = arith.constant 0 : index
    %116 = vector.load %arg7[%c0_110, %c0_111] : memref<16x1xf32, #tpu.memory_space<vmem>>, vector<16x1xf32>
    %117 = vector.broadcast %116 : vector<16x1xf32> to vector<16x480xf32>
    %118 = arith.addf %115, %117 : vector<16x480xf32>
    %cst_112 = arith.constant 0.000000e+00 : f32
    %119 = vector.broadcast %cst_112 : f32 to vector<16x480xf32>
    %120 = arith.maximumf %118, %119 : vector<16x480xf32>
    %c0_113 = arith.constant 0 : index
    %c0_114 = arith.constant 0 : index
    %121 = vector.load %arg9[%c0_113, %c0_114] : memref<32x64xf32, #tpu.memory_space<vmem>>, vector<32x64xf32>
    %cst_115 = arith.constant dense<0.000000e+00> : vector<32x1xf32>
    %122 = tpu.matmul %121, %12, %cst_115 {dimension_numbers = #tpu.dot_dimension_numbers<[1], [0], [0], [1], [0, 0, 1, 1], [], []>} : vector<32x64xf32>, vector<64x1xf32>, vector<32x1xf32> -> vector<32x1xf32>
    %c0_116 = arith.constant 0 : index
    %c0_117 = arith.constant 0 : index
    %123 = vector.load %arg10[%c0_116, %c0_117] : memref<32x1xf32, #tpu.memory_space<vmem>>, vector<32x1xf32>
    %124 = arith.addf %122, %123 : vector<32x1xf32>
    %c0_118 = arith.constant 0 : index
    %c0_119 = arith.constant 0 : index
    %125 = vector.load %arg8[%c0_118, %c0_119] : memref<32x64xf32, #tpu.memory_space<vmem>>, vector<32x64xf32>
    %cst_120 = arith.constant dense<0.000000e+00> : vector<32x480xf32>
    %126 = tpu.matmul %125, %1, %cst_120 {dimension_numbers = #tpu.dot_dimension_numbers<[1], [0], [0], [1], [0, 0, 1, 1], [], []>} : vector<32x64xf32>, vector<64x480xf32>, vector<32x480xf32> -> vector<32x480xf32>
    %127 = vector.broadcast %124 : vector<32x1xf32> to vector<32x480xf32>
    %128 = vector.broadcast %4 : vector<1x480xf32> to vector<32x480xf32>
    %129 = arith.mulf %127, %128 : vector<32x480xf32>
    %130 = arith.addf %126, %129 : vector<32x480xf32>
    %cst_121 = arith.constant 0.000000e+00 : f32
    %131 = vector.broadcast %cst_121 : f32 to vector<32x480xf32>
    %132 = arith.maximumf %130, %131 : vector<32x480xf32>
    %cst_122 = arith.constant 0.000000e+00 : f32
    %133 = vector.broadcast %cst_122 : f32 to vector<32x576xf32>
    %c0_123 = arith.constant 0 : index
    %c0_124 = arith.constant 0 : index
    %134 = vector.load %arg21[%c0_123, %c0_124] : memref<32x576xf32, #tpu.memory_space<vmem>>, vector<32x576xf32>
    tpu.vector_store %arg21[%c0_123, %c0_124], %133 {strides = array<i32>} : memref<32x576xf32, #tpu.memory_space<vmem>>, vector<32x576xf32>,
    %c0_125 = arith.constant 0 : index
    %c33 = arith.constant 33 : index
    %135 = vector.load %arg21[%c0_125, %c33] : memref<32x576xf32, #tpu.memory_space<vmem>>, vector<32x480xf32>
    tpu.vector_store %arg21[%c0_125, %c33], %132 {strides = array<i32>} : memref<32x576xf32, #tpu.memory_space<vmem>>, vector<32x480xf32>,
    %c0_126 = arith.constant 0 : index
    %c0_127 = arith.constant 0 : index
    %136 = vector.load %arg21[%c0_126, %c0_127] : memref<32x576xf32, #tpu.memory_space<vmem>>, vector<32x544xf32>
    %c0_128 = arith.constant 0 : index
    %c0_129 = arith.constant 0 : index
    %137 = vector.load %arg22[%c0_128, %c0_129] : memref<96x544xf32, #tpu.memory_space<vmem>>, vector<32x544xf32>
    tpu.vector_store %arg22[%c0_128, %c0_129], %136 {strides = array<i32>} : memref<96x544xf32, #tpu.memory_space<vmem>>, vector<32x544xf32>,
    %c0_130 = arith.constant 0 : index
    %c1_131 = arith.constant 1 : index
    %138 = vector.load %arg21[%c0_130, %c1_131] : memref<32x576xf32, #tpu.memory_space<vmem>>, vector<32x544xf32>
    %c32_132 = arith.constant 32 : index
    %c0_133 = arith.constant 0 : index
    %139 = vector.load %arg22[%c32_132, %c0_133] : memref<96x544xf32, #tpu.memory_space<vmem>>, vector<32x544xf32>
    tpu.vector_store %arg22[%c32_132, %c0_133], %138 {strides = array<i32>} : memref<96x544xf32, #tpu.memory_space<vmem>>, vector<32x544xf32>,
    %c0_134 = arith.constant 0 : index
    %c2_135 = arith.constant 2 : index
    %140 = vector.load %arg21[%c0_134, %c2_135] : memref<32x576xf32, #tpu.memory_space<vmem>>, vector<32x544xf32>
    %c64_136 = arith.constant 64 : index
    %c0_137 = arith.constant 0 : index
    %141 = vector.load %arg22[%c64_136, %c0_137] : memref<96x544xf32, #tpu.memory_space<vmem>>, vector<32x544xf32>
    tpu.vector_store %arg22[%c64_136, %c0_137], %140 {strides = array<i32>} : memref<96x544xf32, #tpu.memory_space<vmem>>, vector<32x544xf32>,
    %c0_138 = arith.constant 0 : index
    %c0_139 = arith.constant 0 : index
    %c0_140 = arith.constant 0 : index
    %142 = vector.load %arg11[%c0_138, %c0_139, %c0_140] : memref<3x32x96xf32, #tpu.memory_space<vmem>>, vector<1x32x96xf32>
    %143 = vector.shape_cast %142 : vector<1x32x96xf32> to vector<32x96xf32>
    %c0_141 = arith.constant 0 : index
    %c0_142 = arith.constant 0 : index
    %144 = vector.load %arg22[%c0_141, %c0_142] : memref<96x544xf32, #tpu.memory_space<vmem>>, vector<96x480xf32>
    %cst_143 = arith.constant dense<0.000000e+00> : vector<32x480xf32>
    %145 = tpu.matmul %143, %144, %cst_143 {dimension_numbers = #tpu.dot_dimension_numbers<[1], [0], [0], [1], [0, 0, 1, 1], [], []>} : vector<32x96xf32>, vector<96x480xf32>, vector<32x480xf32> -> vector<32x480xf32>
    %c1_144 = arith.constant 1 : index
    %c0_145 = arith.constant 0 : index
    %c0_146 = arith.constant 0 : index
    %146 = vector.load %arg11[%c1_144, %c0_145, %c0_146] : memref<3x32x96xf32, #tpu.memory_space<vmem>>, vector<1x32x96xf32>
    %147 = vector.shape_cast %146 : vector<1x32x96xf32> to vector<32x96xf32>
    %c0_147 = arith.constant 0 : index
    %c32_148 = arith.constant 32 : index
    %148 = vector.load %arg22[%c0_147, %c32_148] : memref<96x544xf32, #tpu.memory_space<vmem>>, vector<96x480xf32>
    %cst_149 = arith.constant dense<0.000000e+00> : vector<32x480xf32>
    %149 = tpu.matmul %147, %148, %cst_149 {dimension_numbers = #tpu.dot_dimension_numbers<[1], [0], [0], [1], [0, 0, 1, 1], [], []>} : vector<32x96xf32>, vector<96x480xf32>, vector<32x480xf32> -> vector<32x480xf32>
    %150 = arith.addf %145, %149 : vector<32x480xf32>
    %c2_150 = arith.constant 2 : index
    %c0_151 = arith.constant 0 : index
    %c0_152 = arith.constant 0 : index
    %151 = vector.load %arg11[%c2_150, %c0_151, %c0_152] : memref<3x32x96xf32, #tpu.memory_space<vmem>>, vector<1x32x96xf32>
    %152 = vector.shape_cast %151 : vector<1x32x96xf32> to vector<32x96xf32>
    %c0_153 = arith.constant 0 : index
    %c64_154 = arith.constant 64 : index
    %153 = vector.load %arg22[%c0_153, %c64_154] : memref<96x544xf32, #tpu.memory_space<vmem>>, vector<96x480xf32>
    %cst_155 = arith.constant dense<0.000000e+00> : vector<32x480xf32>
    %154 = tpu.matmul %152, %153, %cst_155 {dimension_numbers = #tpu.dot_dimension_numbers<[1], [0], [0], [1], [0, 0, 1, 1], [], []>} : vector<32x96xf32>, vector<96x480xf32>, vector<32x480xf32> -> vector<32x480xf32>
    %155 = arith.addf %150, %154 : vector<32x480xf32>
    %c0_156 = arith.constant 0 : index
    %c0_157 = arith.constant 0 : index
    %156 = vector.load %arg12[%c0_156, %c0_157] : memref<32x1xf32, #tpu.memory_space<vmem>>, vector<32x1xf32>
    %157 = vector.broadcast %156 : vector<32x1xf32> to vector<32x480xf32>
    %158 = arith.addf %155, %157 : vector<32x480xf32>
    %cst_158 = arith.constant 0.000000e+00 : f32
    %159 = vector.broadcast %cst_158 : f32 to vector<32x480xf32>
    %160 = arith.maximumf %158, %159 : vector<32x480xf32>
    %c0_159 = arith.constant 0 : index
    %c0_160 = arith.constant 0 : index
    %161 = vector.load %arg13[%c0_159, %c0_160] : memref<64x16xf32, #tpu.memory_space<vmem>>, vector<64x16xf32>
    %cst_161 = arith.constant dense<0.000000e+00> : vector<64x480xf32>
    %162 = tpu.matmul %161, %120, %cst_161 {dimension_numbers = #tpu.dot_dimension_numbers<[1], [0], [0], [1], [0, 0, 1, 1], [], []>} : vector<64x16xf32>, vector<16x480xf32>, vector<64x480xf32> -> vector<64x480xf32>
    %c0_162 = arith.constant 0 : index
    %c0_163 = arith.constant 0 : index
    %163 = vector.load %arg14[%c0_162, %c0_163] : memref<64x32xf32, #tpu.memory_space<vmem>>, vector<64x32xf32>
    %cst_164 = arith.constant dense<0.000000e+00> : vector<64x480xf32>
    %164 = tpu.matmul %163, %160, %cst_164 {dimension_numbers = #tpu.dot_dimension_numbers<[1], [0], [0], [1], [0, 0, 1, 1], [], []>} : vector<64x32xf32>, vector<32x480xf32>, vector<64x480xf32> -> vector<64x480xf32>
    %165 = arith.addf %162, %164 : vector<64x480xf32>
    %c0_165 = arith.constant 0 : index
    %c0_166 = arith.constant 0 : index
    %166 = vector.load %arg15[%c0_165, %c0_166] : memref<64x1xf32, #tpu.memory_space<vmem>>, vector<64x1xf32>
    %167 = vector.broadcast %166 : vector<64x1xf32> to vector<64x480xf32>
    %168 = arith.addf %165, %167 : vector<64x480xf32>
    %cst_167 = arith.constant 0.000000e+00 : f32
    %169 = vector.broadcast %cst_167 : f32 to vector<64x480xf32>
    %170 = arith.maximumf %168, %169 : vector<64x480xf32>
    %c0_168 = arith.constant 0 : index
    %c0_169 = arith.constant 0 : index
    %c0_170 = arith.constant 0 : index
    %171 = vector.load %arg18[%c0_168, %c0_169, %c0_170] : memref<1x128x480xf32, #tpu.memory_space<vmem>>, vector<1x64x480xf32>
    %172 = vector.shape_cast %171 : vector<1x64x480xf32> to vector<64x480xf32>
    %173 = vector.shape_cast %170 : vector<64x480xf32> to vector<1x64x480xf32>
    tpu.vector_store %arg18[%c0_168, %c0_169, %c0_170], %173 {strides = array<i32>} : memref<1x128x480xf32, #tpu.memory_space<vmem>>, vector<1x64x480xf32>,
    %c0_171 = arith.constant 0 : index
    %c64_172 = arith.constant 64 : index
    %c0_173 = arith.constant 0 : index
    %174 = vector.load %arg18[%c0_171, %c64_172, %c0_173] : memref<1x128x480xf32, #tpu.memory_space<vmem>>, vector<1x64x480xf32>
    %175 = vector.shape_cast %174 : vector<1x64x480xf32> to vector<64x480xf32>
    %176 = vector.shape_cast %1 : vector<64x480xf32> to vector<1x64x480xf32>
    tpu.vector_store %arg18[%c0_171, %c64_172, %c0_173], %176 {strides = array<i32>} : memref<1x128x480xf32, #tpu.memory_space<vmem>>, vector<1x64x480xf32>,
    return
  }
  func.func @transform_0(%arg0: i32) -> (i32, i32, i32) {
    %c0_i32 = arith.constant 0 : i32
    %c0_i32_0 = arith.constant 0 : i32
    %c0_i32_1 = arith.constant 0 : i32
    return %arg0, %c0_i32, %c0_i32_0 : i32, i32, i32
  }
  func.func @transform_1(%arg0: i32) -> (i32, i32, i32) {
    %c0_i32 = arith.constant 0 : i32
    %c0_i32_0 = arith.constant 0 : i32
    %c0_i32_1 = arith.constant 0 : i32
    return %arg0, %c0_i32, %c0_i32_0 : i32, i32, i32
  }
  func.func @transform_2(%arg0: i32) -> (i32, i32) {
    %c0_i32 = arith.constant 0 : i32
    %c0_i32_0 = arith.constant 0 : i32
    %c0_i32_1 = arith.constant 0 : i32
    return %c0_i32, %c0_i32_0 : i32, i32
  }
  func.func @transform_3(%arg0: i32) -> (i32, i32) {
    %c0_i32 = arith.constant 0 : i32
    %c0_i32_0 = arith.constant 0 : i32
    %c0_i32_1 = arith.constant 0 : i32
    return %c0_i32, %c0_i32_0 : i32, i32
  }
  func.func @transform_4(%arg0: i32) -> (i32, i32) {
    %c0_i32 = arith.constant 0 : i32
    %c0_i32_0 = arith.constant 0 : i32
    %c0_i32_1 = arith.constant 0 : i32
    return %c0_i32, %c0_i32_0 : i32, i32
  }
  func.func @transform_5(%arg0: i32) -> (i32, i32, i32) {
    %c0_i32 = arith.constant 0 : i32
    %c0_i32_0 = arith.constant 0 : i32
    %c0_i32_1 = arith.constant 0 : i32
    %c0_i32_2 = arith.constant 0 : i32
    return %c0_i32, %c0_i32_0, %c0_i32_1 : i32, i32, i32
  }
  func.func @transform_6(%arg0: i32) -> (i32, i32) {
    %c0_i32 = arith.constant 0 : i32
    %c0_i32_0 = arith.constant 0 : i32
    %c0_i32_1 = arith.constant 0 : i32
    return %c0_i32, %c0_i32_0 : i32, i32
  }
  func.func @transform_7(%arg0: i32) -> (i32, i32) {
    %c0_i32 = arith.constant 0 : i32
    %c0_i32_0 = arith.constant 0 : i32
    %c0_i32_1 = arith.constant 0 : i32
    return %c0_i32, %c0_i32_0 : i32, i32
  }
  func.func @transform_8(%arg0: i32) -> (i32, i32) {
    %c0_i32 = arith.constant 0 : i32
    %c0_i32_0 = arith.constant 0 : i32
    %c0_i32_1 = arith.constant 0 : i32
    return %c0_i32, %c0_i32_0 : i32, i32
  }
  func.func @transform_9(%arg0: i32) -> (i32, i32) {
    %c0_i32 = arith.constant 0 : i32
    %c0_i32_0 = arith.constant 0 : i32
    %c0_i32_1 = arith.constant 0 : i32
    return %c0_i32, %c0_i32_0 : i32, i32
  }
  func.func @transform_10(%arg0: i32) -> (i32, i32, i32) {
    %c0_i32 = arith.constant 0 : i32
    %c0_i32_0 = arith.constant 0 : i32
    %c0_i32_1 = arith.constant 0 : i32
    %c0_i32_2 = arith.constant 0 : i32
    return %c0_i32, %c0_i32_0, %c0_i32_1 : i32, i32, i32
  }
  func.func @transform_11(%arg0: i32) -> (i32, i32) {
    %c0_i32 = arith.constant 0 : i32
    %c0_i32_0 = arith.constant 0 : i32
    %c0_i32_1 = arith.constant 0 : i32
    return %c0_i32, %c0_i32_0 : i32, i32
  }
  func.func @transform_12(%arg0: i32) -> (i32, i32) {
    %c0_i32 = arith.constant 0 : i32
    %c0_i32_0 = arith.constant 0 : i32
    %c0_i32_1 = arith.constant 0 : i32
    return %c0_i32, %c0_i32_0 : i32, i32
  }
  func.func @transform_13(%arg0: i32) -> (i32, i32) {
    %c0_i32 = arith.constant 0 : i32
    %c0_i32_0 = arith.constant 0 : i32
    %c0_i32_1 = arith.constant 0 : i32
    return %c0_i32, %c0_i32_0 : i32, i32
  }
  func.func @transform_14(%arg0: i32) -> (i32, i32) {
    %c0_i32 = arith.constant 0 : i32
    %c0_i32_0 = arith.constant 0 : i32
    %c0_i32_1 = arith.constant 0 : i32
    return %c0_i32, %c0_i32_0 : i32, i32
  }
  func.func @transform_15(%arg0: i32) -> (i32, i32) {
    %c0_i32 = arith.constant 0 : i32
    %c0_i32_0 = arith.constant 0 : i32
    %c0_i32_1 = arith.constant 0 : i32
    return %c0_i32, %c0_i32_0 : i32, i32
  }
  func.func @transform_16(%arg0: i32) -> (i32, i32) {
    %c0_i32 = arith.constant 0 : i32
    %c0_i32_0 = arith.constant 0 : i32
    %c0_i32_1 = arith.constant 0 : i32
    return %c0_i32, %c0_i32_0 : i32, i32
  }
  func.func @transform_17(%arg0: i32) -> (i32, i32, i32) {
    %c0_i32 = arith.constant 0 : i32
    %c0_i32_0 = arith.constant 0 : i32
    %c0_i32_1 = arith.constant 0 : i32
    return %arg0, %c0_i32, %c0_i32_0 : i32, i32, i32
  }
}

</mosaic_0001>

<llo_original>
// kernel: forward.1
$region0: #{forward.1}
  #allocation0 [shape = 'u32[]', space=smem, size = 0x4, offset = 0x4, fixed_abs, tag = 'smem constant byte address 0x4 - core index']
  #allocation1 [shape = 'u32[144,128]{1,0:T(1,128)}', space=vmem, size = 0x12000, scoped, tag = 'internal scratch']
  #allocation2 [shape = 'f32[16,800]{1,0:T(8,128)}', space=vmem, size = 0xe000, scoped, tag = 'scratch operand']
  #allocation3 [shape = 'f32[160,768]{1,0:T(8,128)}', space=vmem, size = 0x78000, scoped, tag = 'scratch operand']
  #allocation4 [shape = 'f32[32,576]{1,0:T(8,128)}', space=vmem, size = 0x14000, scoped, tag = 'scratch operand']
  #allocation5 [shape = 'f32[96,544]{1,0:T(8,128)}', space=vmem, size = 0x3c000, scoped, tag = 'scratch operand']
  %s0 = inlined_call_operand.vmem [shape: f32[2,64,480], index: 0, kind: input, shape index: {}]
  %s1 = inlined_call_operand.vmem [shape: f32[2,64,80], index: 1, kind: input, shape index: {}]
  %s2 = inlined_call_operand.vmem [shape: f32[16,64], index: 2, kind: input, shape index: {}]
  %s3 = inlined_call_operand.vmem [shape: f32[16,64], index: 3, kind: input, shape index: {}]
  %s4 = inlined_call_operand.vmem [shape: f32[16,1], index: 4, kind: input, shape index: {}]
  %s5 = inlined_call_operand.vmem [shape: f32[10,16,160], index: 5, kind: input, shape index: {}]
  %s6 = inlined_call_operand.vmem [shape: f32[16,1], index: 6, kind: input, shape index: {}]
  %s7 = inlined_call_operand.vmem [shape: f32[32,64], index: 7, kind: input, shape index: {}]
  %s8 = inlined_call_operand.vmem [shape: f32[32,64], index: 8, kind: input, shape index: {}]
  %s9 = inlined_call_operand.vmem [shape: f32[32,1], index: 9, kind: input, shape index: {}]
  %s10 = inlined_call_operand.vmem [shape: f32[3,32,96], index: 10, kind: input, shape index: {}]
  %s11 = inlined_call_operand.vmem [shape: f32[32,1], index: 11, kind: input, shape index: {}]
  %s12 = inlined_call_operand.vmem [shape: f32[64,16], index: 12, kind: input, shape index: {}]
  %s13 = inlined_call_operand.vmem [shape: f32[64,32], index: 13, kind: input, shape index: {}]
  %s14 = inlined_call_operand.vmem [shape: f32[64,1], index: 14, kind: input, shape index: {}]
  %s15 = inlined_call_operand.vmem [shape: f32[1,800], index: 15, kind: input, shape index: {}]
  %s16 = inlined_call_operand.vmem [shape: f32[1,480], index: 16, kind: input, shape index: {}]
  %s17 = inlined_call_operand.vmem [shape: f32[2,128,480], index: 17, kind: output, shape index: {}]
  %s18 = sld [smem:[#allocation0]]
  $region101: #{forward.1} parent=0
    _
  %s20 = ssub.s32 1, %s18
  %s21 = scalar_select 0, %s20, %s18
  loop: start=0, step=1, limit=4
  $region2: #{forward.1} parent=0 // loop_pre_header
    _
  $region3: #{forward.1} parent=0 // loop_header
    %s23 = sphi 0, %s27
    %p24 = scmp.ge.s32.totalorder %s23, 4
    %s33 = sphi 0, %s35
    %s36 = sphi 0, %s33
    %s37 = sphi 0, %s36
    %s53 = sphi 0, %s37
    %s59 = sphi 0, %s61
    %s62 = sphi 0, %s59
    %s63 = sphi 0, %s62
    %s79 = sphi 0, %s63
    %s83 = sphi 0, %s83
    %s85 = sphi 0, %s83
    %s86 = sphi 0, %s85
    %s100 = sphi 0, %s86
    %s104 = sphi 0, %s104
    %s106 = sphi 0, %s104
    %s107 = sphi 0, %s106
    %s121 = sphi 0, %s107
    %s125 = sphi 0, %s125
    %s127 = sphi 0, %s125
    %s128 = sphi 0, %s127
    %s142 = sphi 0, %s128
    %s146 = sphi 0, %s146
    %s148 = sphi 0, %s146
    %s149 = sphi 0, %s148
    %s163 = sphi 0, %s149
    %s167 = sphi 0, %s167
    %s169 = sphi 0, %s167
    %s170 = sphi 0, %s169
    %s184 = sphi 0, %s170
    %s188 = sphi 0, %s188
    %s190 = sphi 0, %s188
    %s191 = sphi 0, %s190
    %s205 = sphi 0, %s191
    %s209 = sphi 0, %s209
    %s211 = sphi 0, %s209
    %s212 = sphi 0, %s211
    %s226 = sphi 0, %s212
    %s230 = sphi 0, %s230
    %s232 = sphi 0, %s230
    %s233 = sphi 0, %s232
    %s247 = sphi 0, %s233
    %s251 = sphi 0, %s251
    %s253 = sphi 0, %s251
    %s254 = sphi 0, %s253
    %s268 = sphi 0, %s254
    %s272 = sphi 0, %s272
    %s274 = sphi 0, %s272
    %s275 = sphi 0, %s274
    %s289 = sphi 0, %s275
    %s293 = sphi 0, %s293
    %s295 = sphi 0, %s293
    %s296 = sphi 0, %s295
    %s310 = sphi 0, %s296
    %s314 = sphi 0, %s314
    %s316 = sphi 0, %s314
    %s317 = sphi 0, %s316
    %s331 = sphi 0, %s317
    %s335 = sphi 0, %s335
    %s337 = sphi 0, %s335
    %s338 = sphi 0, %s337
    %s352 = sphi 0, %s338
    %s356 = sphi 0, %s356
    %s358 = sphi 0, %s356
    %s359 = sphi 0, %s358
    %s373 = sphi 0, %s359
    %s377 = sphi 0, %s377
    %s379 = sphi 0, %s377
    %s380 = sphi 0, %s379
    %s394 = sphi 0, %s380
    %s400 = sphi 0, %s402
    %s403 = sphi 0, %s400
    %s404 = sphi 0, %s403
    %s420 = sphi 0, %s404
  $region4: #{forward.1} parent=0 // loop_header_branch
    %26 = sbr.rel (%p24) target = $region8
  $region5: #{forward.1} parent=0 // loop_body
    %s28 = ssub.s32 %s23, 1
    %s29 = ssub.s32 %s23, 2
    %s30 = sadd.s32 %s23, 1
    %s31 = ssub.s32 %s23, %s30
    %p32 = scmp.eq.s32.totalorder %s31, 0
    %s34 = sadd.s32 %s33, 1
    %s35 = scalar_select %p32, %s33, %s34
    %p38 = pneg %p32
    %p39 = scmp.eq.s32.totalorder %s23, 1
    %p40 = por %p38, %p39
    %p41 = scmp.ne.s32.totalorder %s33, %s36
    %p42 = scmp.eq.s32.totalorder %s23, 0
    %p43 = por %p41, %p42
    %p44 = scmp.ne.s32.totalorder %s33, %s36
    %p45 = scmp.eq.s32.totalorder %s28, 1
    %p46 = por %p44, %p45
    %p47 = scmp.ne.s32.totalorder %s36, %s37
    %p48 = scmp.eq.s32.totalorder %s28, 0
    %p49 = por %p47, %p48
    %p50 = scmp.ne.s32.totalorder %s36, %s37
    %p51 = scmp.eq.s32.totalorder %s29, 1
    %p52 = por %p50, %p51
    %p54 = scmp.ne.s32.totalorder %s37, %s53
    %p55 = scmp.eq.s32.totalorder %s29, 0
    %p56 = por %p54, %p55
    %s57 = ssub.s32 %s23, %s30
    %p58 = scmp.eq.s32.totalorder %s57, 0
    %s60 = sadd.s32 %s59, 1
    %s61 = scalar_select %p58, %s59, %s60
    %p64 = pneg %p58
    %p65 = scmp.eq.s32.totalorder %s23, 1
    %p66 = por %p64, %p65
    %p67 = scmp.ne.s32.totalorder %s59, %s62
    %p68 = scmp.eq.s32.totalorder %s23, 0
    %p69 = por %p67, %p68
    %p70 = scmp.ne.s32.totalorder %s59, %s62
    %p71 = scmp.eq.s32.totalorder %s28, 1
    %p72 = por %p70, %p71
    %p73 = scmp.ne.s32.totalorder %s62, %s63
    %p74 = scmp.eq.s32.totalorder %s28, 0
    %p75 = por %p73, %p74
    %p76 = scmp.ne.s32.totalorder %s62, %s63
    %p77 = scmp.eq.s32.totalorder %s29, 1
    %p78 = por %p76, %p77
    %p80 = scmp.ne.s32.totalorder %s63, %s79
    %p81 = scmp.eq.s32.totalorder %s29, 0
    %p82 = por %p80, %p81
    %s84 = sadd.s32 %s83, 1
    %p87 = scmp.eq.s32.totalorder %s23, 1
    %p88 = scmp.ne.s32.totalorder %s83, %s85
    %p89 = scmp.eq.s32.totalorder %s23, 0
    %p90 = por %p88, %p89
    %p91 = scmp.ne.s32.totalorder %s83, %s85
    %p92 = scmp.eq.s32.totalorder %s28, 1
    %p93 = por %p91, %p92
    %p94 = scmp.ne.s32.totalorder %s85, %s86
    %p95 = scmp.eq.s32.totalorder %s28, 0
    %p96 = por %p94, %p95
    %p97 = scmp.ne.s32.totalorder %s85, %s86
    %p98 = scmp.eq.s32.totalorder %s29, 1
    %p99 = por %p97, %p98
    %p101 = scmp.ne.s32.totalorder %s86, %s100
    %p102 = scmp.eq.s32.totalorder %s29, 0
    %p103 = por %p101, %p102
    %s105 = sadd.s32 %s104, 1
    %p108 = scmp.eq.s32.totalorder %s23, 1
    %p109 = scmp.ne.s32.totalorder %s104, %s106
    %p110 = scmp.eq.s32.totalorder %s23, 0
    %p111 = por %p109, %p110
    %p112 = scmp.ne.s32.totalorder %s104, %s106
    %p113 = scmp.eq.s32.totalorder %s28, 1
    %p114 = por %p112, %p113
    %p115 = scmp.ne.s32.totalorder %s106, %s107
    %p116 = scmp.eq.s32.totalorder %s28, 0
    %p117 = por %p115, %p116
    %p118 = scmp.ne.s32.totalorder %s106, %s107
    %p119 = scmp.eq.s32.totalorder %s29, 1
    %p120 = por %p118, %p119
    %p122 = scmp.ne.s32.totalorder %s107, %s121
    %p123 = scmp.eq.s32.totalorder %s29, 0
    %p124 = por %p122, %p123
    %s126 = sadd.s32 %s125, 1
    %p129 = scmp.eq.s32.totalorder %s23, 1
    %p130 = scmp.ne.s32.totalorder %s125, %s127
    %p131 = scmp.eq.s32.totalorder %s23, 0
    %p132 = por %p130, %p131
    %p133 = scmp.ne.s32.totalorder %s125, %s127
    %p134 = scmp.eq.s32.totalorder %s28, 1
    %p135 = por %p133, %p134
    %p136 = scmp.ne.s32.totalorder %s127, %s128
    %p137 = scmp.eq.s32.totalorder %s28, 0
    %p138 = por %p136, %p137
    %p139 = scmp.ne.s32.totalorder %s127, %s128
    %p140 = scmp.eq.s32.totalorder %s29, 1
    %p141 = por %p139, %p140
    %p143 = scmp.ne.s32.totalorder %s128, %s142
    %p144 = scmp.eq.s32.totalorder %s29, 0
    %p145 = por %p143, %p144
    %s147 = sadd.s32 %s146, 1
    %p150 = scmp.eq.s32.totalorder %s23, 1
    %p151 = scmp.ne.s32.totalorder %s146, %s148
    %p152 = scmp.eq.s32.totalorder %s23, 0
    %p153 = por %p151, %p152
    %p154 = scmp.ne.s32.totalorder %s146, %s148
    %p155 = scmp.eq.s32.totalorder %s28, 1
    %p156 = por %p154, %p155
    %p157 = scmp.ne.s32.totalorder %s148, %s149
    %p158 = scmp.eq.s32.totalorder %s28, 0
    %p159 = por %p157, %p158
    %p160 = scmp.ne.s32.totalorder %s148, %s149
    %p161 = scmp.eq.s32.totalorder %s29, 1
    %p162 = por %p160, %p161
    %p164 = scmp.ne.s32.totalorder %s149, %s163
    %p165 = scmp.eq.s32.totalorder %s29, 0
    %p166 = por %p164, %p165
    %s168 = sadd.s32 %s167, 1
    %p171 = scmp.eq.s32.totalorder %s23, 1
    %p172 = scmp.ne.s32.totalorder %s167, %s169
    %p173 = scmp.eq.s32.totalorder %s23, 0
    %p174 = por %p172, %p173
    %p175 = scmp.ne.s32.totalorder %s167, %s169
    %p176 = scmp.eq.s32.totalorder %s28, 1
    %p177 = por %p175, %p176
    %p178 = scmp.ne.s32.totalorder %s169, %s170
    %p179 = scmp.eq.s32.totalorder %s28, 0
    %p180 = por %p178, %p179
    %p181 = scmp.ne.s32.totalorder %s169, %s170
    %p182 = scmp.eq.s32.totalorder %s29, 1
    %p183 = por %p181, %p182
    %p185 = scmp.ne.s32.totalorder %s170, %s184
    %p186 = scmp.eq.s32.totalorder %s29, 0
    %p187 = por %p185, %p186
    %s189 = sadd.s32 %s188, 1
    %p192 = scmp.eq.s32.totalorder %s23, 1
    %p193 = scmp.ne.s32.totalorder %s188, %s190
    %p194 = scmp.eq.s32.totalorder %s23, 0
    %p195 = por %p193, %p194
    %p196 = scmp.ne.s32.totalorder %s188, %s190
    %p197 = scmp.eq.s32.totalorder %s28, 1
    %p198 = por %p196, %p197
    %p199 = scmp.ne.s32.totalorder %s190, %s191
    %p200 = scmp.eq.s32.totalorder %s28, 0
    %p201 = por %p199, %p200
    %p202 = scmp.ne.s32.totalorder %s190, %s191
    %p203 = scmp.eq.s32.totalorder %s29, 1
    %p204 = por %p202, %p203
    %p206 = scmp.ne.s32.totalorder %s191, %s205
    %p207 = scmp.eq.s32.totalorder %s29, 0
    %p208 = por %p206, %p207
    %s210 = sadd.s32 %s209, 1
    %p213 = scmp.eq.s32.totalorder %s23, 1
    %p214 = scmp.ne.s32.totalorder %s209, %s211
    %p215 = scmp.eq.s32.totalorder %s23, 0
    %p216 = por %p214, %p215
    %p217 = scmp.ne.s32.totalorder %s209, %s211
    %p218 = scmp.eq.s32.totalorder %s28, 1
    %p219 = por %p217, %p218
    %p220 = scmp.ne.s32.totalorder %s211, %s212
    %p221 = scmp.eq.s32.totalorder %s28, 0
    %p222 = por %p220, %p221
    %p223 = scmp.ne.s32.totalorder %s211, %s212
    %p224 = scmp.eq.s32.totalorder %s29, 1
    %p225 = por %p223, %p224
    %p227 = scmp.ne.s32.totalorder %s212, %s226
    %p228 = scmp.eq.s32.totalorder %s29, 0
    %p229 = por %p227, %p228
    %s231 = sadd.s32 %s230, 1
    %p234 = scmp.eq.s32.totalorder %s23, 1
    %p235 = scmp.ne.s32.totalorder %s230, %s232
    %p236 = scmp.eq.s32.totalorder %s23, 0
    %p237 = por %p235, %p236
    %p238 = scmp.ne.s32.totalorder %s230, %s232
    %p239 = scmp.eq.s32.totalorder %s28, 1
    %p240 = por %p238, %p239
    %p241 = scmp.ne.s32.totalorder %s232, %s233
    %p242 = scmp.eq.s32.totalorder %s28, 0
    %p243 = por %p241, %p242
    %p244 = scmp.ne.s32.totalorder %s232, %s233
    %p245 = scmp.eq.s32.totalorder %s29, 1
    %p246 = por %p244, %p245
    %p248 = scmp.ne.s32.totalorder %s233, %s247
    %p249 = scmp.eq.s32.totalorder %s29, 0
    %p250 = por %p248, %p249
    %s252 = sadd.s32 %s251, 1
    %p255 = scmp.eq.s32.totalorder %s23, 1
    %p256 = scmp.ne.s32.totalorder %s251, %s253
    %p257 = scmp.eq.s32.totalorder %s23, 0
    %p258 = por %p256, %p257
    %p259 = scmp.ne.s32.totalorder %s251, %s253
    %p260 = scmp.eq.s32.totalorder %s28, 1
    %p261 = por %p259, %p260
    %p262 = scmp.ne.s32.totalorder %s253, %s254
    %p263 = scmp.eq.s32.totalorder %s28, 0
    %p264 = por %p262, %p263
    %p265 = scmp.ne.s32.totalorder %s253, %s254
    %p266 = scmp.eq.s32.totalorder %s29, 1
    %p267 = por %p265, %p266
    %p269 = scmp.ne.s32.totalorder %s254, %s268
    %p270 = scmp.eq.s32.totalorder %s29, 0
    %p271 = por %p269, %p270
    %s273 = sadd.s32 %s272, 1
    %p276 = scmp.eq.s32.totalorder %s23, 1
    %p277 = scmp.ne.s32.totalorder %s272, %s274
    %p278 = scmp.eq.s32.totalorder %s23, 0
    %p279 = por %p277, %p278
    %p280 = scmp.ne.s32.totalorder %s272, %s274
    %p281 = scmp.eq.s32.totalorder %s28, 1
    %p282 = por %p280, %p281
    %p283 = scmp.ne.s32.totalorder %s274, %s275
    %p284 = scmp.eq.s32.totalorder %s28, 0
    %p285 = por %p283, %p284
    %p286 = scmp.ne.s32.totalorder %s274, %s275
    %p287 = scmp.eq.s32.totalorder %s29, 1
    %p288 = por %p286, %p287
    %p290 = scmp.ne.s32.totalorder %s275, %s289
    %p291 = scmp.eq.s32.totalorder %s29, 0
    %p292 = por %p290, %p291
    %s294 = sadd.s32 %s293, 1
    %p297 = scmp.eq.s32.totalorder %s23, 1
    %p298 = scmp.ne.s32.totalorder %s293, %s295
    %p299 = scmp.eq.s32.totalorder %s23, 0
    %p300 = por %p298, %p299
    %p301 = scmp.ne.s32.totalorder %s293, %s295
    %p302 = scmp.eq.s32.totalorder %s28, 1
    %p303 = por %p301, %p302
    %p304 = scmp.ne.s32.totalorder %s295, %s296
    %p305 = scmp.eq.s32.totalorder %s28, 0
    %p306 = por %p304, %p305
    %p307 = scmp.ne.s32.totalorder %s295, %s296
    %p308 = scmp.eq.s32.totalorder %s29, 1
    %p309 = por %p307, %p308
    %p311 = scmp.ne.s32.totalorder %s296, %s310
    %p312 = scmp.eq.s32.totalorder %s29, 0
    %p313 = por %p311, %p312
    %s315 = sadd.s32 %s314, 1
    %p318 = scmp.eq.s32.totalorder %s23, 1
    %p319 = scmp.ne.s32.totalorder %s314, %s316
    %p320 = scmp.eq.s32.totalorder %s23, 0
    %p321 = por %p319, %p320
    %p322 = scmp.ne.s32.totalorder %s314, %s316
    %p323 = scmp.eq.s32.totalorder %s28, 1
    %p324 = por %p322, %p323
    %p325 = scmp.ne.s32.totalorder %s316, %s317
    %p326 = scmp.eq.s32.totalorder %s28, 0
    %p327 = por %p325, %p326
    %p328 = scmp.ne.s32.totalorder %s316, %s317
    %p329 = scmp.eq.s32.totalorder %s29, 1
    %p330 = por %p328, %p329
    %p332 = scmp.ne.s32.totalorder %s317, %s331
    %p333 = scmp.eq.s32.totalorder %s29, 0
    %p334 = por %p332, %p333
    %s336 = sadd.s32 %s335, 1
    %p339 = scmp.eq.s32.totalorder %s23, 1
    %p340 = scmp.ne.s32.totalorder %s335, %s337
    %p341 = scmp.eq.s32.totalorder %s23, 0
    %p342 = por %p340, %p341
    %p343 = scmp.ne.s32.totalorder %s335, %s337
    %p344 = scmp.eq.s32.totalorder %s28, 1
    %p345 = por %p343, %p344
    %p346 = scmp.ne.s32.totalorder %s337, %s338
    %p347 = scmp.eq.s32.totalorder %s28, 0
    %p348 = por %p346, %p347
    %p349 = scmp.ne.s32.totalorder %s337, %s338
    %p350 = scmp.eq.s32.totalorder %s29, 1
    %p351 = por %p349, %p350
    %p353 = scmp.ne.s32.totalorder %s338, %s352
    %p354 = scmp.eq.s32.totalorder %s29, 0
    %p355 = por %p353, %p354
    %s357 = sadd.s32 %s356, 1
    %p360 = scmp.eq.s32.totalorder %s23, 1
    %p361 = scmp.ne.s32.totalorder %s356, %s358
    %p362 = scmp.eq.s32.totalorder %s23, 0
    %p363 = por %p361, %p362
    %p364 = scmp.ne.s32.totalorder %s356, %s358
    %p365 = scmp.eq.s32.totalorder %s28, 1
    %p366 = por %p364, %p365
    %p367 = scmp.ne.s32.totalorder %s358, %s359
    %p368 = scmp.eq.s32.totalorder %s28, 0
    %p369 = por %p367, %p368
    %p370 = scmp.ne.s32.totalorder %s358, %s359
    %p371 = scmp.eq.s32.totalorder %s29, 1
    %p372 = por %p370, %p371
    %p374 = scmp.ne.s32.totalorder %s359, %s373
    %p375 = scmp.eq.s32.totalorder %s29, 0
    %p376 = por %p374, %p375
    %s378 = sadd.s32 %s377, 1
    %p381 = scmp.eq.s32.totalorder %s23, 1
    %p382 = scmp.ne.s32.totalorder %s377, %s379
    %p383 = scmp.eq.s32.totalorder %s23, 0
    %p384 = por %p382, %p383
    %p385 = scmp.ne.s32.totalorder %s377, %s379
    %p386 = scmp.eq.s32.totalorder %s28, 1
    %p387 = por %p385, %p386
    %p388 = scmp.ne.s32.totalorder %s379, %s380
    %p389 = scmp.eq.s32.totalorder %s28, 0
    %p390 = por %p388, %p389
    %p391 = scmp.ne.s32.totalorder %s379, %s380
    %p392 = scmp.eq.s32.totalorder %s29, 1
    %p393 = por %p391, %p392
    %p395 = scmp.ne.s32.totalorder %s380, %s394
    %p396 = scmp.eq.s32.totalorder %s29, 0
    %p397 = por %p395, %p396
    %s398 = ssub.s32 %s23, %s30
    %p399 = scmp.eq.s32.totalorder %s398, 0
    %s401 = sadd.s32 %s400, 1
    %s402 = scalar_select %p399, %s400, %s401
    %p405 = pneg %p399
    %p406 = scmp.eq.s32.totalorder %s23, 1
    %p407 = por %p405, %p406
    %p408 = scmp.ne.s32.totalorder %s400, %s403
    %p409 = scmp.eq.s32.totalorder %s23, 0
    %p410 = por %p408, %p409
    %p411 = scmp.ne.s32.totalorder %s400, %s403
    %p412 = scmp.eq.s32.totalorder %s28, 1
    %p413 = por %p411, %p412
    %p414 = scmp.ne.s32.totalorder %s403, %s404
    %p415 = scmp.eq.s32.totalorder %s28, 0
    %p416 = por %p414, %p415
    %p417 = scmp.ne.s32.totalorder %s403, %s404
    %p418 = scmp.eq.s32.totalorder %s29, 1
    %p419 = por %p417, %p418
    %p421 = scmp.ne.s32.totalorder %s404, %s420
    %p422 = scmp.eq.s32.totalorder %s29, 0
    %p423 = por %p421, %p422
    %p424 = scmp.le.s32.totalorder 1, %s23
    %p425 = scmp.lt.s32.totalorder %s23, 3
    %p426 = pnand %p424, %p425
    %p427 = pneg %p426
    // Predicated region
    $region9: #{forward.1} parent=5 // pred_check
      _
    $region10: #{forward.1} parent=5 // pred_check_branch
      %429 = sbr.rel (%p426) target = $region12
    $region11: #{forward.1} parent=5 // pred_region
      %s430 = ssub.s32 %s23, 1
      // Predicated region
      $region13: #{forward.1} parent=11 // pred_check
        %p431 = pneg %p96
      $region14: #{forward.1} parent=11 // pred_check_branch
        %433 = sbr.rel (%p431) target = $region16
      $region15: #{forward.1} parent=11 // pred_region
        _
      $region16: #{forward.1} parent=11 // pred_fallthru
        _
      // Predicated region
      $region17: #{forward.1} parent=11 // pred_check
        %p434 = pneg %p117
      $region18: #{forward.1} parent=11 // pred_check_branch
        %436 = sbr.rel (%p434) target = $region20
      $region19: #{forward.1} parent=11 // pred_region
        _
      $region20: #{forward.1} parent=11 // pred_fallthru
        _
      // Predicated region
      $region21: #{forward.1} parent=11 // pred_check
        %p437 = pneg %p138
      $region22: #{forward.1} parent=11 // pred_check_branch
        %439 = sbr.rel (%p437) target = $region24
      $region23: #{forward.1} parent=11 // pred_region
        _
      $region24: #{forward.1} parent=11 // pred_fallthru
        _
      // Predicated region
      $region25: #{forward.1} parent=11 // pred_check
        %p440 = pneg %p159
      $region26: #{forward.1} parent=11 // pred_check_branch
        %442 = sbr.rel (%p440) target = $region28
      $region27: #{forward.1} parent=11 // pred_region
        _
      $region28: #{forward.1} parent=11 // pred_fallthru
        _
      // Predicated region
      $region29: #{forward.1} parent=11 // pred_check
        %p443 = pneg %p180
      $region30: #{forward.1} parent=11 // pred_check_branch
        %445 = sbr.rel (%p443) target = $region32
      $region31: #{forward.1} parent=11 // pred_region
        _
      $region32: #{forward.1} parent=11 // pred_fallthru
        _
      // Predicated region
      $region33: #{forward.1} parent=11 // pred_check
        %p446 = pneg %p201
      $region34: #{forward.1} parent=11 // pred_check_branch
        %448 = sbr.rel (%p446) target = $region36
      $region35: #{forward.1} parent=11 // pred_region
        _
      $region36: #{forward.1} parent=11 // pred_fallthru
        _
      // Predicated region
      $region37: #{forward.1} parent=11 // pred_check
        %p449 = pneg %p222
      $region38: #{forward.1} parent=11 // pred_check_branch
        %451 = sbr.rel (%p449) target = $region40
      $region39: #{forward.1} parent=11 // pred_region
        _
      $region40: #{forward.1} parent=11 // pred_fallthru
        _
      // Predicated region
      $region41: #{forward.1} parent=11 // pred_check
        %p452 = pneg %p243
      $region42: #{forward.1} parent=11 // pred_check_branch
        %454 = sbr.rel (%p452) target = $region44
      $region43: #{forward.1} parent=11 // pred_region
        _
      $region44: #{forward.1} parent=11 // pred_fallthru
        _
      // Predicated region
      $region45: #{forward.1} parent=11 // pred_check
        %p455 = pneg %p264
      $region46: #{forward.1} parent=11 // pred_check_branch
        %457 = sbr.rel (%p455) target = $region48
      $region47: #{forward.1} parent=11 // pred_region
        _
      $region48: #{forward.1} parent=11 // pred_fallthru
        _
      // Predicated region
      $region49: #{forward.1} parent=11 // pred_check
        %p458 = pneg %p285
      $region50: #{forward.1} parent=11 // pred_check_branch
        %460 = sbr.rel (%p458) target = $region52
      $region51: #{forward.1} parent=11 // pred_region
        _
      $region52: #{forward.1} parent=11 // pred_fallthru
        _
      // Predicated region
      $region53: #{forward.1} parent=11 // pred_check
        %p461 = pneg %p306
      $region54: #{forward.1} parent=11 // pred_check_branch
        %463 = sbr.rel (%p461) target = $region56
      $region55: #{forward.1} parent=11 // pred_region
        _
      $region56: #{forward.1} parent=11 // pred_fallthru
        _
      // Predicated region
      $region57: #{forward.1} parent=11 // pred_check
        %p464 = pneg %p327
      $region58: #{forward.1} parent=11 // pred_check_branch
        %466 = sbr.rel (%p464) target = $region60
      $region59: #{forward.1} parent=11 // pred_region
        _
      $region60: #{forward.1} parent=11 // pred_fallthru
        _
      // Predicated region
      $region61: #{forward.1} parent=11 // pred_check
        %p467 = pneg %p348
      $region62: #{forward.1} parent=11 // pred_check_branch
        %469 = sbr.rel (%p467) target = $region64
      $region63: #{forward.1} parent=11 // pred_region
        _
      $region64: #{forward.1} parent=11 // pred_fallthru
        _
      // Predicated region
      $region65: #{forward.1} parent=11 // pred_check
        %p470 = pneg %p369
      $region66: #{forward.1} parent=11 // pred_check_branch
        %472 = sbr.rel (%p470) target = $region68
      $region67: #{forward.1} parent=11 // pred_region
        _
      $region68: #{forward.1} parent=11 // pred_fallthru
        _
      // Predicated region
      $region69: #{forward.1} parent=11 // pred_check
        %p473 = pneg %p390
      $region70: #{forward.1} parent=11 // pred_check_branch
        %475 = sbr.rel (%p473) target = $region72
      $region71: #{forward.1} parent=11 // pred_region
        _
      $region72: #{forward.1} parent=11 // pred_fallthru
        _
    $region12: #{forward.1} parent=5 // pred_fallthru
      _
    %p476 = scmp.lt.s32.totalorder %s23, 2
    // Predicated region
    $region73: #{forward.1} parent=5 // pred_check
      %p477 = pneg %p476
    $region74: #{forward.1} parent=5 // pred_check_branch
      %479 = sbr.rel (%p477) target = $region76
    $region75: #{forward.1} parent=5 // pred_region
      // Predicated region
      $region77: #{forward.1} parent=75 // pred_check
        %p480 = pneg %p43
      $region78: #{forward.1} parent=75 // pred_check_branch
        %482 = sbr.rel (%p480) target = $region80
      $region79: #{forward.1} parent=75 // pred_region
        %p483 = scmp.lt.s32.totalorder %s23, 1
        %s484 = scalar_select %p483, %s23, 1
        %s485 = smul.addr %s484, 32
        %s486 = smul.addr %s485, 8
        %s487 = scalar_lea.vmem %s0, %s486
      $region80: #{forward.1} parent=75 // pred_fallthru
        _
      // Predicated region
      $region81: #{forward.1} parent=75 // pred_check
        %p488 = pneg %p69
      $region82: #{forward.1} parent=75 // pred_check_branch
        %490 = sbr.rel (%p488) target = $region84
      $region83: #{forward.1} parent=75 // pred_region
        %p491 = scmp.lt.s32.totalorder %s23, 1
        %s492 = scalar_select %p491, %s23, 1
        %s493 = smul.addr %s492, 8
        %s494 = smul.addr %s493, 8
        %s495 = scalar_lea.vmem %s1, %s494
      $region84: #{forward.1} parent=75 // pred_fallthru
        _
    $region76: #{forward.1} parent=5 // pred_fallthru
      _
    %p496 = scmp.le.s32.totalorder 1, %s23
    %p497 = scmp.lt.s32.totalorder %s23, 3
    %p498 = pnand %p496, %p497
    %p499 = pneg %p498
    // Predicated region
    $region85: #{forward.1} parent=5 // pred_check
      _
    $region86: #{forward.1} parent=5 // pred_check_branch
      %501 = sbr.rel (%p498) target = $region88
    $region87: #{forward.1} parent=5 // pred_region
      %s502 = ssub.s32 %s23, 1
      %p503 = scmp.lt.s32.totalorder %s28, 1
      %s504 = scalar_select %p503, %s28, 1
      %s505 = smul.addr %s504, 32
      %s506 = smul.addr %s505, 8
      %s507 = scalar_lea.vmem %s0, %s506
      %p508 = pneg %p49
      %p509 = pneg %p46
      %p510 = scmp.lt.s32.totalorder %s28, 1
      %s511 = scalar_select %p510, %s28, 1
      %s512 = smul.addr %s511, 8
      %s513 = smul.addr %s512, 8
      %s514 = scalar_lea.vmem %s1, %s513
      %p515 = pneg %p75
      %p516 = pneg %p72
      %p517 = pneg %p96
      %p518 = pneg %p93
      %p519 = pneg %p117
      %p520 = pneg %p114
      %p521 = pneg %p138
      %p522 = pneg %p135
      %p523 = pneg %p159
      %p524 = pneg %p156
      %p525 = pneg %p180
      %p526 = pneg %p177
      %p527 = pneg %p201
      %p528 = pneg %p198
      %p529 = pneg %p222
      %p530 = pneg %p219
      %p531 = pneg %p243
      %p532 = pneg %p240
      %p533 = pneg %p264
      %p534 = pneg %p261
      %p535 = pneg %p285
      %p536 = pneg %p282
      %p537 = pneg %p306
      %p538 = pneg %p303
      %p539 = pneg %p327
      %p540 = pneg %p324
      %p541 = pneg %p348
      %p542 = pneg %p345
      %p543 = pneg %p369
      %p544 = pneg %p366
      %p545 = pneg %p390
      %p546 = pneg %p387
      %p547 = pneg %p416
      %p548 = pneg %p413
      %p549 = scmp.lt.s32.totalorder %s28, 1
      %s550 = scalar_select %p549, %s28, 1
      %s551 = smul.addr %s550, 64
      %s552 = smul.addr %s551, 8
      %s553 = scalar_lea.vmem %s17, %s552
      %p554 = scmp.lt.s32.totalorder %s28, 1
      %s555 = scalar_select %p554, %s28, 1
      %s556 = smul.addr %s555, 32
      %s557 = smul.addr %s556, 8
      %s558 = scalar_lea.vmem %s0, %s557
      %p559 = scmp.lt.s32.totalorder %s28, 1
      %s560 = scalar_select %p559, %s28, 1
      %s561 = smul.addr %s560, 8
      %s562 = smul.addr %s561, 8
      %s563 = scalar_lea.vmem %s1, %s562
      %p564 = scmp.lt.s32.totalorder %s28, 1
      %s565 = scalar_select %p564, %s28, 1
      %s566 = smul.addr %s565, 64
      %s567 = smul.addr %s566, 8
      %s568 = scalar_lea.vmem %s17, %s567
      %v569 = vld [vmem:[%s558] sm:$0xff]
      %v570 = vld [vmem:[%s558 + $0x8] sm:$0xff]
      %v571 = vld [vmem:[%s558 + $0x10] sm:$0xff]
      %v572 = vld [vmem:[%s558 + $0x18] sm:$0xff]
      %v573 = vld [vmem:[%s558 + $0x20] sm:$0xff]
      %v574 = vld [vmem:[%s558 + $0x28] sm:$0xff]
      %v575 = vld [vmem:[%s558 + $0x30] sm:$0xff]
      %v576 = vld [vmem:[%s558 + $0x38] sm:$0xff]
      %v577 = vld [vmem:[%s558 + $0x40] sm:$0xff]
      %v578 = vld [vmem:[%s558 + $0x48] sm:$0xff]
      %v579 = vld [vmem:[%s558 + $0x50] sm:$0xff]
      %v580 = vld [vmem:[%s558 + $0x58] sm:$0xff]
      %v581 = vld [vmem:[%s558 + $0x60] sm:$0xff]
      %v582 = vld [vmem:[%s558 + $0x68] sm:$0xff]
      %v583 = vld [vmem:[%s558 + $0x70] sm:$0xff]
      %v584 = vld [vmem:[%s558 + $0x78] sm:$0xff]
      %v585 = vld [vmem:[%s558 + $0x80] sm:$0xff]
      %v586 = vld [vmem:[%s558 + $0x88] sm:$0xff]
      %v587 = vld [vmem:[%s558 + $0x90] sm:$0xff]
      %v588 = vld [vmem:[%s558 + $0x98] sm:$0xff]
      %v589 = vld [vmem:[%s558 + $0xa0] sm:$0xff]
      %v590 = vld [vmem:[%s558 + $0xa8] sm:$0xff]
      %v591 = vld [vmem:[%s558 + $0xb0] sm:$0xff]
      %v592 = vld [vmem:[%s558 + $0xb8] sm:$0xff]
      %v593 = vld [vmem:[%s558 + $0xc0] sm:$0xff]
      %v594 = vld [vmem:[%s558 + $0xc8] sm:$0xff]
      %v595 = vld [vmem:[%s558 + $0xd0] sm:$0xff]
      %v596 = vld [vmem:[%s558 + $0xd8] sm:$0xff]
      %v597 = vld [vmem:[%s558 + $0xe0] sm:$0xff]
      %v598 = vld [vmem:[%s558 + $0xe8] sm:$0xff]
      %v599 = vld [vmem:[%s558 + $0xf0] sm:$0xff]
      %v600 = vld [vmem:[%s558 + $0xf8] sm:$0xff]
      %v601 = vld [vmem:[%s563] sm:$0xff]
      %v602 = vld [vmem:[%s563 + $0x8] sm:$0xff]
      %v603 = vld [vmem:[%s563 + $0x10] sm:$0xff]
      %v604 = vld [vmem:[%s563 + $0x18] sm:$0xff]
      %v605 = vld [vmem:[%s563 + $0x20] sm:$0xff]
      %v606 = vld [vmem:[%s563 + $0x28] sm:$0xff]
      %v607 = vld [vmem:[%s563 + $0x30] sm:$0xff]
      %v608 = vld [vmem:[%s563 + $0x38] sm:$0xff]
      %v609 = vld [vmem:[%s16] sm:$0xf]
      %vm610 = vcmp.gt.f32.partialorder %v609, 0.0
      %v611 = vsel %vm610, 1, 0
      %v612 = vlaneseq
      %v613 = vshrl.u32 %v612, 7
      %v614 = vsub.s32 0, %v613
      %v615 = vrot.slane %v611, %v614
      %v616 = vlaneseq
      %v617 = vshrl.u32 %v616, 7
      %v618 = vsub.s32 1, %v617
      %v619 = vrot.slane %v611, %v618
      %v620 = vlaneseq
      %v621 = vshrl.u32 %v620, 7
      %v622 = vsub.s32 2, %v621
      %v623 = vrot.slane %v611, %v622
      %v624 = vlaneseq
      %v625 = vshrl.u32 %v624, 7
      %v626 = vsub.s32 3, %v625
      %v627 = vrot.slane %v611, %v626
      %vm628 = vcmp.eq.s32.totalorder %v615, 1
      %vm629 = vcmp.eq.s32.totalorder %v619, 1
      %vm630 = vcmp.eq.s32.totalorder %v623, 1
      %vm631 = vcmp.eq.s32.totalorder %v627, 1
      %v632 = vsel %vm628, %v569, -3e+38
      %v633 = vsel %vm629, %v570, -3e+38
      %v634 = vsel %vm630, %v571, -3e+38
      %v635 = vsel %vm631, %v572, -3e+38
      %v636 = vsel %vm628, %v573, -3e+38
      %v637 = vsel %vm629, %v574, -3e+38
      %v638 = vsel %vm630, %v575, -3e+38
      %v639 = vsel %vm631, %v576, -3e+38
      %v640 = vsel %vm628, %v577, -3e+38
      %v641 = vsel %vm629, %v578, -3e+38
      %v642 = vsel %vm630, %v579, -3e+38
      %v643 = vsel %vm631, %v580, -3e+38
      %v644 = vsel %vm628, %v581, -3e+38
      %v645 = vsel %vm629, %v582, -3e+38
      %v646 = vsel %vm630, %v583, -3e+38
      %v647 = vsel %vm631, %v584, -3e+38
      %v648 = vsel %vm628, %v585, -3e+38
      %v649 = vsel %vm629, %v586, -3e+38
      %v650 = vsel %vm630, %v587, -3e+38
      %v651 = vsel %vm631, %v588, -3e+38
      %v652 = vsel %vm628, %v589, -3e+38
      %v653 = vsel %vm629, %v590, -3e+38
      %v654 = vsel %vm630, %v591, -3e+38
      %v655 = vsel %vm631, %v592, -3e+38
      %v656 = vsel %vm628, %v593, -3e+38
      %v657 = vsel %vm629, %v594, -3e+38
      %v658 = vsel %vm630, %v595, -3e+38
      %v659 = vsel %vm631, %v596, -3e+38
      %v660 = vsel %vm628, %v597, -3e+38
      %v661 = vsel %vm629, %v598, -3e+38
      %v662 = vsel %vm630, %v599, -3e+38
      %v663 = vsel %vm631, %v600, -3e+38
      %v664 = vmax.f32 %v632, %v633
      %v665 = vmax.f32 %v664, %v634
      %vm666 = vcmask 785408
      %v667 = vsel %vm666, %v635, -inf
      %v668 = vmax.f32 %v665, %v667
      %669 = vmax.xlane.f32.xlu0 %v668
      %v670 = vpop.xlane.xlu0 %669
      %v671 = vmax.f32 %v636, %v637
      %v672 = vmax.f32 %v671, %v638
      %v673 = vsel %vm666, %v639, -inf
      %v674 = vmax.f32 %v672, %v673
      %675 = vmax.xlane.f32.xlu0 %v674
      %v676 = vpop.xlane.xlu0 %675
      %v677 = vmax.f32 %v640, %v641
      %v678 = vmax.f32 %v677, %v642
      %v679 = vsel %vm666, %v643, -inf
      %v680 = vmax.f32 %v678, %v679
      %681 = vmax.xlane.f32.xlu0 %v680
      %v682 = vpop.xlane.xlu0 %681
      %v683 = vmax.f32 %v644, %v645
      %v684 = vmax.f32 %v683, %v646
      %v685 = vsel %vm666, %v647, -inf
      %v686 = vmax.f32 %v684, %v685
      %687 = vmax.xlane.f32.xlu0 %v686
      %v688 = vpop.xlane.xlu0 %687
      %v689 = vmax.f32 %v648, %v649
      %v690 = vmax.f32 %v689, %v650
      %v691 = vsel %vm666, %v651, -inf
      %v692 = vmax.f32 %v690, %v691
      %693 = vmax.xlane.f32.xlu0 %v692
      %v694 = vpop.xlane.xlu0 %693
      %v695 = vmax.f32 %v652, %v653
      %v696 = vmax.f32 %v695, %v654
      %v697 = vsel %vm666, %v655, -inf
      %v698 = vmax.f32 %v696, %v697
      %699 = vmax.xlane.f32.xlu0 %v698
      %v700 = vpop.xlane.xlu0 %699
      %v701 = vmax.f32 %v656, %v657
      %v702 = vmax.f32 %v701, %v658
      %v703 = vsel %vm666, %v659, -inf
      %v704 = vmax.f32 %v702, %v703
      %705 = vmax.xlane.f32.xlu0 %v704
      %v706 = vpop.xlane.xlu0 %705
      %v707 = vmax.f32 %v660, %v661
      %v708 = vmax.f32 %v707, %v662
      %v709 = vsel %vm666, %v663, -inf
      %v710 = vmax.f32 %v708, %v709
      %711 = vmax.xlane.f32.xlu0 %v710
      %v712 = vpop.xlane.xlu0 %711
      %v713 = vld [vmem:[%s3] sm:$0xff]
      %v714 = vld [vmem:[%s3 + $0x8] sm:$0xff]
      %v715 = vld [vmem:[%s4] sm:$0xff]
      %v716 = vld [vmem:[%s4 + $0x8] sm:$0xff]
      %vm717 = vcmask 523264
      %v719 = vsel %vm717, %v713, 0
      %v722 = vsel %vm717, %v714, 0
      %724 = vmatprep.subr.mxu0 0.0
      %725 = vmatpush1.msra.mxu0 %v670
      %726 = vmatprep.subr.mxu0 0.0
      %727 = vmatpush1.msra.mxu0 %v676
      %728 = vmatprep.subr.mxu0 0.0
      %729 = vmatpush1.msra.mxu0 %v682
      %730 = vmatprep.subr.mxu0 0.0
      %731 = vmatpush1.msra.mxu0 %v688
      %732 = vmatprep.subr.mxu0 0.0
      %733 = vmatpush1.msra.mxu0 %v694
      %734 = vmatprep.subr.mxu0 0.0
      %735 = vmatpush1.msra.mxu0 %v700
      %736 = vmatprep.subr.mxu0 0.0
      %737 = vmatpush1.msra.mxu0 %v706
      %738 = vmatprep.subr.mxu0 0.0
      %739 = vmatpush1.msra.mxu0 %v712
      %740 = vmatprep.subr.mxu0 0.0
      %741 = vmatpush1.msra.mxu0 0.0
      %742 = vmatprep.subr.mxu0 0.0
      %743 = vmatpush1.msra.mxu0 0.0
      %744 = vmatprep.subr.mxu0 0.0
      %745 = vmatpush1.msra.mxu0 0.0
      %746 = vmatprep.subr.mxu0 0.0
      %747 = vmatpush1.msra.mxu0 0.0
      %748 = vmatprep.subr.mxu0 0.0
      %749 = vmatpush1.msra.mxu0 0.0
      %750 = vmatprep.subr.mxu0 0.0
      %751 = vmatpush1.msra.mxu0 0.0
      %752 = vmatprep.subr.mxu0 0.0
      %753 = vmatpush1.msra.mxu0 0.0
      %754 = vmatprep.subr.mxu0 0.0
      %755 = vmatpush1.msra.mxu0 0.0
      %756 = vmatprep.subr.mxu0 0.0
      %757 = vmatpush1.msra.mxu0 0.0
      %758 = vmatprep.subr.mxu0 0.0
      %759 = vmatpush1.msra.mxu0 0.0
      %760 = vmatprep.subr.mxu0 0.0
      %761 = vmatpush1.msra.mxu0 0.0
      %762 = vmatprep.subr.mxu0 0.0
      %763 = vmatpush1.msra.mxu0 0.0
      %764 = vmatprep.subr.mxu0 0.0
      %765 = vmatpush1.msra.mxu0 0.0
      %766 = vmatprep.subr.mxu0 0.0
      %767 = vmatpush1.msra.mxu0 0.0
      %768 = vmatprep.subr.mxu0 0.0
      %769 = vmatpush1.msra.mxu0 0.0
      %770 = vmatprep.subr.mxu0 0.0
      %771 = vmatpush1.msra.mxu0 0.0
      %772 = vmatprep.subr.mxu0 0.0
      %773 = vmatpush1.msra.mxu0 0.0
      %774 = vmatprep.subr.mxu0 0.0
      %775 = vmatpush1.msra.mxu0 0.0
      %776 = vmatprep.subr.mxu0 0.0
      %777 = vmatpush1.msra.mxu0 0.0
      %778 = vmatprep.subr.mxu0 0.0
      %779 = vmatpush1.msra.mxu0 0.0
      %780 = vmatprep.subr.mxu0 0.0
      %781 = vmatpush1.msra.mxu0 0.0
      %782 = vmatprep.subr.mxu0 0.0
      %783 = vmatpush1.msra.mxu0 0.0
      %784 = vmatprep.subr.mxu0 0.0
      %785 = vmatpush1.msra.mxu0 0.0
      %786 = vmatprep.subr.mxu0 0.0
      %787 = vmatpush1.msra.mxu0 0.0
      %788 = vmatprep.mubr.f32.mxu0 0.0
      %789 = vmatmul.mubr.f32.gmra.mrb[0].mxu0 %v719
      %v790 = vpop.f32.mrb[0].mxu0
      %v791 = vadd.f32 %v715, %v790
      %v792 = vpop.f32.mrb[0].mxu0
      %793 = vmatprep.mubr.f32.mxu0 0.0
      %794 = vmatmul.mubr.f32.gmra.mrb[0].mxu0 %v722
      %v795 = vpop.f32.mrb[0].mxu0
      %v796 = vadd.f32 %v716, %v795
      %v797 = vpop.f32.mrb[0].mxu0
      %798 = vdwg.mxu0
      %v799 = vld [vmem:[%s2] sm:$0xff]
      %v800 = vld [vmem:[%s2 + $0x8] sm:$0xff]
      %802 = vset.pattern.permute.xlu0 0
      %803 = vperm.xlu0 %802, %v791
      %v804 = vpop.permute.xlu0 %803
      %807 = vset.pattern.permute.xlu0 0
      %808 = vperm.xlu0 %807, %v796
      %v809 = vpop.permute.xlu0 %808
      %v812 = vsel %vm717, %v799, 0
      %v815 = vsel %vm717, %v800, 0
      %817 = vmatprep.subr.mxu0 0.0
      %818 = vmatpush1.msra.mxu0 %v601
      %819 = vmatprep.subr.mxu0 0.0
      %820 = vmatpush1.msra.mxu0 %v602
      %821 = vmatprep.subr.mxu0 0.0
      %822 = vmatpush1.msra.mxu0 %v603
      %823 = vmatprep.subr.mxu0 0.0
      %824 = vmatpush1.msra.mxu0 %v604
      %825 = vmatprep.subr.mxu0 0.0
      %826 = vmatpush1.msra.mxu0 %v605
      %827 = vmatprep.subr.mxu0 0.0
      %828 = vmatpush1.msra.mxu0 %v606
      %829 = vmatprep.subr.mxu0 0.0
      %830 = vmatpush1.msra.mxu0 %v607
      %831 = vmatprep.subr.mxu0 0.0
      %832 = vmatpush1.msra.mxu0 %v608
      %833 = vmatprep.subr.mxu0 0.0
      %834 = vmatpush1.msra.mxu0 0.0
      %835 = vmatprep.subr.mxu0 0.0
      %836 = vmatpush1.msra.mxu0 0.0
      %837 = vmatprep.subr.mxu0 0.0
      %838 = vmatpush1.msra.mxu0 0.0
      %839 = vmatprep.subr.mxu0 0.0
      %840 = vmatpush1.msra.mxu0 0.0
      %841 = vmatprep.subr.mxu0 0.0
      %842 = vmatpush1.msra.mxu0 0.0
      %843 = vmatprep.subr.mxu0 0.0
      %844 = vmatpush1.msra.mxu0 0.0
      %845 = vmatprep.subr.mxu0 0.0
      %846 = vmatpush1.msra.mxu0 0.0
      %847 = vmatprep.subr.mxu0 0.0
      %848 = vmatpush1.msra.mxu0 0.0
      %849 = vmatprep.subr.mxu0 0.0
      %850 = vmatpush1.msra.mxu0 0.0
      %851 = vmatprep.subr.mxu0 0.0
      %852 = vmatpush1.msra.mxu0 0.0
      %853 = vmatprep.subr.mxu0 0.0
      %854 = vmatpush1.msra.mxu0 0.0
      %855 = vmatprep.subr.mxu0 0.0
      %856 = vmatpush1.msra.mxu0 0.0
      %857 = vmatprep.subr.mxu0 0.0
      %858 = vmatpush1.msra.mxu0 0.0
      %859 = vmatprep.subr.mxu0 0.0
      %860 = vmatpush1.msra.mxu0 0.0
      %861 = vmatprep.subr.mxu0 0.0
      %862 = vmatpush1.msra.mxu0 0.0
      %863 = vmatprep.subr.mxu0 0.0
      %864 = vmatpush1.msra.mxu0 0.0
      %865 = vmatprep.subr.mxu0 0.0
      %866 = vmatpush1.msra.mxu0 0.0
      %867 = vmatprep.subr.mxu0 0.0
      %868 = vmatpush1.msra.mxu0 0.0
      %869 = vmatprep.subr.mxu0 0.0
      %870 = vmatpush1.msra.mxu0 0.0
      %871 = vmatprep.subr.mxu0 0.0
      %872 = vmatpush1.msra.mxu0 0.0
      %873 = vmatprep.subr.mxu0 0.0
      %874 = vmatpush1.msra.mxu0 0.0
      %875 = vmatprep.subr.mxu0 0.0
      %876 = vmatpush1.msra.mxu0 0.0
      %877 = vmatprep.subr.mxu0 0.0
      %878 = vmatpush1.msra.mxu0 0.0
      %879 = vmatprep.subr.mxu0 0.0
      %880 = vmatpush1.msra.mxu0 0.0
      %881 = vmatprep.mubr.f32.mxu0 0.0
      %882 = vmatmul.mubr.f32.gmra.mrb[0].mxu0 %v812
      %v883 = vpop.f32.mrb[0].mxu0
      %v884 = vadd.f32 %v804, %v883
      %v885 = vpop.f32.mrb[0].mxu0
      %886 = vmatprep.mubr.f32.mxu0 0.0
      %887 = vmatmul.mubr.f32.gmra.mrb[0].mxu0 %v815
      %v888 = vpop.f32.mrb[0].mxu0
      %v889 = vadd.f32 %v809, %v888
      %v890 = vpop.f32.mrb[0].mxu0
      %891 = vdwg.mxu0
      %v892 = vmax.f32 %v884, 0.0
      %v893 = vmax.f32 %v889, 0.0
      %v894 = vmax.f32 %v715, 0.0
      %v895 = vmax.f32 %v716, 0.0
      %v896 = vld [vmem:[%s15] sm:$0x7f]
      %898 = vset.pattern.permute.xlu0 0
      %899 = vperm.xlu0 %898, %v894
      %v900 = vpop.permute.xlu0 %899
      %903 = vset.pattern.permute.xlu0 0
      %904 = vperm.xlu0 %903, %v895
      %v905 = vpop.permute.xlu0 %904
      %v908 = vlaneseq
      %v909 = vshrl.u32 %v908, 7
      %v910 = vsub.s32 0, %v909
      %v911 = vrot.slane %v896, %v910
      %v912 = vlaneseq
      %v913 = vshrl.u32 %v912, 7
      %v914 = vsub.s32 1, %v913
      %v915 = vrot.slane %v896, %v914
      %v916 = vlaneseq
      %v917 = vshrl.u32 %v916, 7
      %v918 = vsub.s32 2, %v917
      %v919 = vrot.slane %v896, %v918
      %v920 = vlaneseq
      %v921 = vshrl.u32 %v920, 7
      %v922 = vsub.s32 3, %v921
      %v923 = vrot.slane %v896, %v922
      %v924 = vlaneseq
      %v925 = vshrl.u32 %v924, 7
      %v926 = vsub.s32 4, %v925
      %v927 = vrot.slane %v896, %v926
      %v928 = vlaneseq
      %v929 = vshrl.u32 %v928, 7
      %v930 = vsub.s32 5, %v929
      %v931 = vrot.slane %v896, %v930
      %v932 = vlaneseq
      %v933 = vshrl.u32 %v932, 7
      %v934 = vsub.s32 6, %v933
      %v935 = vrot.slane %v896, %v934
      %v943 = vmul.f32 %v900, %v911
      %v944 = vmul.f32 %v900, %v915
      %v945 = vmul.f32 %v900, %v919
      %v946 = vmul.f32 %v900, %v923
      %v947 = vmul.f32 %v900, %v927
      %v948 = vmul.f32 %v900, %v931
      %v949 = vmul.f32 %v900, %v935
      %v950 = vmul.f32 %v905, %v911
      %v951 = vmul.f32 %v905, %v915
      %v952 = vmul.f32 %v905, %v919
      %v953 = vmul.f32 %v905, %v923
      %v954 = vmul.f32 %v905, %v927
      %v955 = vmul.f32 %v905, %v931
      %v956 = vmul.f32 %v905, %v935
      %957 = vst [vmem:[#allocation2] sm:$0xff] %v943
      %958 = vst [vmem:[#allocation2 + $0x8] sm:$0xff] %v944
      %959 = vst [vmem:[#allocation2 + $0x10] sm:$0xff] %v945
      %960 = vst [vmem:[#allocation2 + $0x18] sm:$0xff] %v946
      %961 = vst [vmem:[#allocation2 + $0x20] sm:$0xff] %v947
      %962 = vst [vmem:[#allocation2 + $0x28] sm:$0xff] %v948
      %vm963 = vcmask 261120
      %964 = vst.msk [vmem:[#allocation2 + $0x30] sm:$0xff] %vm963, %v949
      %965 = vst [vmem:[#allocation2 + $0x38] sm:$0xff] %v950
      %966 = vst [vmem:[#allocation2 + $0x40] sm:$0xff] %v951
      %967 = vst [vmem:[#allocation2 + $0x48] sm:$0xff] %v952
      %968 = vst [vmem:[#allocation2 + $0x50] sm:$0xff] %v953
      %969 = vst [vmem:[#allocation2 + $0x58] sm:$0xff] %v954
      %970 = vst [vmem:[#allocation2 + $0x60] sm:$0xff] %v955
      %971 = vst.msk [vmem:[#allocation2 + $0x68] sm:$0xff] %vm963, %v956
      %974 = vrot.lane.b32.xlu0 %v892, 9
      %v975 = vpop.permute.xlu0 %974
      %976 = vrot.lane.b32.xlu0 %v893, 9
      %v977 = vpop.permute.xlu0 %976
      %vm980 = vcmask 154696
      %981 = vst.msk [vmem:[#allocation2 + $0x10] sm:$0xff] %vm980, %v975
      %982 = vst.msk [vmem:[#allocation2 + $0x48] sm:$0xff] %vm980, %v977
      %983 = vrot.lane.b32.xlu0 %v892, 31
      %v984 = vpop.permute.xlu0 %983
      %985 = vrot.lane.b32.xlu0 %v893, 31
      %v986 = vpop.permute.xlu0 %985
      %vm989 = vcmask 417096
      %990 = vst.msk [vmem:[#allocation2 + $0x10] sm:$0xff] %vm989, %v984
      %991 = vst.msk [vmem:[#allocation2 + $0x48] sm:$0xff] %vm989, %v986
      %992 = vrot.lane.b32.xlu0 %v892, 53
      %v993 = vpop.permute.xlu0 %992
      %994 = vrot.lane.b32.xlu0 %v893, 53
      %v995 = vpop.permute.xlu0 %994
      %vm998 = vcmask 679496
      %999 = vst.msk [vmem:[#allocation2 + $0x10] sm:$0xff] %vm998, %v993
      %1000 = vst.msk [vmem:[#allocation2 + $0x48] sm:$0xff] %vm998, %v995
      %1001 = vrot.lane.b32.xlu0 %v892, 75
      %v1002 = vpop.permute.xlu0 %1001
      %1003 = vrot.lane.b32.xlu0 %v893, 75
      %v1004 = vpop.permute.xlu0 %1003
      %vm1007 = vcmask 941896
      %1008 = vst.msk [vmem:[#allocation2 + $0x10] sm:$0xff] %vm1007, %v1002
      %1009 = vst.msk [vmem:[#allocation2 + $0x48] sm:$0xff] %vm1007, %v1004
      %1010 = vrot.lane.b32.xlu0 %v892, 97
      %v1011 = vpop.permute.xlu0 %1010
      %1012 = vrot.lane.b32.xlu0 %v893, 97
      %v1013 = vpop.permute.xlu0 %1012
      %1016 = vst.msk [vmem:[#allocation2 + $0x18] sm:$0xff] %vm980, %v1011
      %1017 = vst.msk [vmem:[#allocation2 + $0x50] sm:$0xff] %vm980, %v1013
      %1018 = vrot.lane.b32.xlu0 %v892, 119
      %v1019 = vpop.permute.xlu0 %1018
      %1020 = vrot.lane.b32.xlu0 %v893, 119
      %v1021 = vpop.permute.xlu0 %1020
      %1024 = vst.msk [vmem:[#allocation2 + $0x18] sm:$0xff] %vm989, %v1019
      %1025 = vst.msk [vmem:[#allocation2 + $0x50] sm:$0xff] %vm989, %v1021
      %1026 = vrot.lane.b32.xlu0 %v892, 13
      %v1027 = vpop.permute.xlu0 %1026
      %1028 = vrot.lane.b32.xlu0 %v893, 13
      %v1029 = vpop.permute.xlu0 %1028
      %1032 = vst.msk [vmem:[#allocation2 + $0x18] sm:$0xff] %vm998, %v1027
      %1033 = vst.msk [vmem:[#allocation2 + $0x50] sm:$0xff] %vm998, %v1029
      %1034 = vrot.lane.b32.xlu0 %v892, 35
      %v1035 = vpop.permute.xlu0 %1034
      %1036 = vrot.lane.b32.xlu0 %v893, 35
      %v1037 = vpop.permute.xlu0 %1036
      %1040 = vst.msk [vmem:[#allocation2 + $0x18] sm:$0xff] %vm1007, %v1035
      %1041 = vst.msk [vmem:[#allocation2 + $0x50] sm:$0xff] %vm1007, %v1037
      %v1042 = vld [vmem:[#allocation2] sm:$0xff]
      %v1043 = vld [vmem:[#allocation2 + $0x8] sm:$0xff]
      %v1044 = vld [vmem:[#allocation2 + $0x10] sm:$0xff]
      %v1045 = vld [vmem:[#allocation2 + $0x18] sm:$0xff]
      %v1046 = vld [vmem:[#allocation2 + $0x20] sm:$0xff]
      %v1047 = vld [vmem:[#allocation2 + $0x28] sm:$0xff]
      %v1048 = vld [vmem:[#allocation2 + $0x38] sm:$0xff]
      %v1049 = vld [vmem:[#allocation2 + $0x40] sm:$0xff]
      %v1050 = vld [vmem:[#allocation2 + $0x48] sm:$0xff]
      %v1051 = vld [vmem:[#allocation2 + $0x50] sm:$0xff]
      %v1052 = vld [vmem:[#allocation2 + $0x58] sm:$0xff]
      %v1053 = vld [vmem:[#allocation2 + $0x60] sm:$0xff]
      %1054 = vst [vmem:[#allocation3] sm:$0xff] %v1042
      %1055 = vst [vmem:[#allocation3 + $0x8] sm:$0xff] %v1043
      %1056 = vst [vmem:[#allocation3 + $0x10] sm:$0xff] %v1044
      %1057 = vst [vmem:[#allocation3 + $0x18] sm:$0xff] %v1045
      %1058 = vst [vmem:[#allocation3 + $0x20] sm:$0xff] %v1046
      %1059 = vst [vmem:[#allocation3 + $0x28] sm:$0xff] %v1047
      %1060 = vst [vmem:[#allocation3 + $0x30] sm:$0xff] %v1048
      %1061 = vst [vmem:[#allocation3 + $0x38] sm:$0xff] %v1049
      %1062 = vst [vmem:[#allocation3 + $0x40] sm:$0xff] %v1050
      %1063 = vst [vmem:[#allocation3 + $0x48] sm:$0xff] %v1051
      %1064 = vst [vmem:[#allocation3 + $0x50] sm:$0xff] %v1052
      %1065 = vst [vmem:[#allocation3 + $0x58] sm:$0xff] %v1053
      %v1066 = vld [vmem:[#allocation2] sm:$0xff]
      %v1067 = vld [vmem:[#allocation2 + $0x8] sm:$0xff]
      %v1068 = vld [vmem:[#allocation2 + $0x10] sm:$0xff]
      %v1069 = vld [vmem:[#allocation2 + $0x18] sm:$0xff]
      %v1070 = vld [vmem:[#allocation2 + $0x20] sm:$0xff]
      %v1071 = vld [vmem:[#allocation2 + $0x28] sm:$0xff]
      %v1072 = vld [vmem:[#allocation2 + $0x30] sm:$0xff]
      %v1073 = vld [vmem:[#allocation2 + $0x38] sm:$0xff]
      %v1074 = vld [vmem:[#allocation2 + $0x40] sm:$0xff]
      %v1075 = vld [vmem:[#allocation2 + $0x48] sm:$0xff]
      %v1076 = vld [vmem:[#allocation2 + $0x50] sm:$0xff]
      %v1077 = vld [vmem:[#allocation2 + $0x58] sm:$0xff]
      %v1078 = vld [vmem:[#allocation2 + $0x60] sm:$0xff]
      %v1079 = vld [vmem:[#allocation2 + $0x68] sm:$0xff]
      %1094 = vrot.lane.b32.xlu0 %v1066, 127
      %v1095 = vpop.permute.xlu0 %1094
      %1096 = vrot.lane.b32.xlu0 %v1067, 127
      %v1097 = vpop.permute.xlu0 %1096
      %1098 = vrot.lane.b32.xlu0 %v1068, 127
      %v1099 = vpop.permute.xlu0 %1098
      %1100 = vrot.lane.b32.xlu0 %v1069, 127
      %v1101 = vpop.permute.xlu0 %1100
      %1102 = vrot.lane.b32.xlu0 %v1070, 127
      %v1103 = vpop.permute.xlu0 %1102
      %1104 = vrot.lane.b32.xlu0 %v1071, 127
      %v1105 = vpop.permute.xlu0 %1104
      %1106 = vrot.lane.b32.xlu0 %v1072, 127
      %v1107 = vpop.permute.xlu0 %1106
      %1108 = vrot.lane.b32.xlu0 %v1073, 127
      %v1109 = vpop.permute.xlu0 %1108
      %1110 = vrot.lane.b32.xlu0 %v1074, 127
      %v1111 = vpop.permute.xlu0 %1110
      %1112 = vrot.lane.b32.xlu0 %v1075, 127
      %v1113 = vpop.permute.xlu0 %1112
      %1114 = vrot.lane.b32.xlu0 %v1076, 127
      %v1115 = vpop.permute.xlu0 %1114
      %1116 = vrot.lane.b32.xlu0 %v1077, 127
      %v1117 = vpop.permute.xlu0 %1116
      %1118 = vrot.lane.b32.xlu0 %v1078, 127
      %v1119 = vpop.permute.xlu0 %1118
      %1120 = vrot.lane.b32.xlu0 %v1079, 127
      %v1121 = vpop.permute.xlu0 %1120
      %vm1122 = vcmask 1039360
      %v1123 = vsel %vm1122, %v1095, %v1097
      %v1124 = vsel %vm1122, %v1097, %v1099
      %v1125 = vsel %vm1122, %v1099, %v1101
      %v1126 = vsel %vm1122, %v1101, %v1103
      %v1127 = vsel %vm1122, %v1103, %v1105
      %v1128 = vsel %vm1122, %v1105, %v1107
      %v1129 = vsel %vm1122, %v1109, %v1111
      %v1130 = vsel %vm1122, %v1111, %v1113
      %v1131 = vsel %vm1122, %v1113, %v1115
      %v1132 = vsel %vm1122, %v1115, %v1117
      %v1133 = vsel %vm1122, %v1117, %v1119
      %v1134 = vsel %vm1122, %v1119, %v1121
      %1147 = vst [vmem:[#allocation3 + $0x60] sm:$0xff] %v1123
      %1148 = vst [vmem:[#allocation3 + $0x68] sm:$0xff] %v1124
      %1149 = vst [vmem:[#allocation3 + $0x70] sm:$0xff] %v1125
      %1150 = vst [vmem:[#allocation3 + $0x78] sm:$0xff] %v1126
      %1151 = vst [vmem:[#allocation3 + $0x80] sm:$0xff] %v1127
      %1152 = vst [vmem:[#allocation3 + $0x88] sm:$0xff] %v1128
      %1153 = vst [vmem:[#allocation3 + $0x90] sm:$0xff] %v1129
      %1154 = vst [vmem:[#allocation3 + $0x98] sm:$0xff] %v1130
      %1155 = vst [vmem:[#allocation3 + $0xa0] sm:$0xff] %v1131
      %1156 = vst [vmem:[#allocation3 + $0xa8] sm:$0xff] %v1132
      %1157 = vst [vmem:[#allocation3 + $0xb0] sm:$0xff] %v1133
      %1158 = vst [vmem:[#allocation3 + $0xb8] sm:$0xff] %v1134
      %v1159 = vld [vmem:[#allocation2] sm:$0xff]
      %v1160 = vld [vmem:[#allocation2 + $0x8] sm:$0xff]
      %v1161 = vld [vmem:[#allocation2 + $0x10] sm:$0xff]
      %v1162 = vld [vmem:[#allocation2 + $0x18] sm:$0xff]
      %v1163 = vld [vmem:[#allocation2 + $0x20] sm:$0xff]
      %v1164 = vld [vmem:[#allocation2 + $0x28] sm:$0xff]
      %v1165 = vld [vmem:[#allocation2 + $0x30] sm:$0xff]
      %v1166 = vld [vmem:[#allocation2 + $0x38] sm:$0xff]
      %v1167 = vld [vmem:[#allocation2 + $0x40] sm:$0xff]
      %v1168 = vld [vmem:[#allocation2 + $0x48] sm:$0xff]
      %v1169 = vld [vmem:[#allocation2 + $0x50] sm:$0xff]
      %v1170 = vld [vmem:[#allocation2 + $0x58] sm:$0xff]
      %v1171 = vld [vmem:[#allocation2 + $0x60] sm:$0xff]
      %v1172 = vld [vmem:[#allocation2 + $0x68] sm:$0xff]
      %1187 = vrot.lane.b32.xlu0 %v1159, 126
      %v1188 = vpop.permute.xlu0 %1187
      %1189 = vrot.lane.b32.xlu0 %v1160, 126
      %v1190 = vpop.permute.xlu0 %1189
      %1191 = vrot.lane.b32.xlu0 %v1161, 126
      %v1192 = vpop.permute.xlu0 %1191
      %1193 = vrot.lane.b32.xlu0 %v1162, 126
      %v1194 = vpop.permute.xlu0 %1193
      %1195 = vrot.lane.b32.xlu0 %v1163, 126
      %v1196 = vpop.permute.xlu0 %1195
      %1197 = vrot.lane.b32.xlu0 %v1164, 126
      %v1198 = vpop.permute.xlu0 %1197
      %1199 = vrot.lane.b32.xlu0 %v1165, 126
      %v1200 = vpop.permute.xlu0 %1199
      %1201 = vrot.lane.b32.xlu0 %v1166, 126
      %v1202 = vpop.permute.xlu0 %1201
      %1203 = vrot.lane.b32.xlu0 %v1167, 126
      %v1204 = vpop.permute.xlu0 %1203
      %1205 = vrot.lane.b32.xlu0 %v1168, 126
      %v1206 = vpop.permute.xlu0 %1205
      %1207 = vrot.lane.b32.xlu0 %v1169, 126
      %v1208 = vpop.permute.xlu0 %1207
      %1209 = vrot.lane.b32.xlu0 %v1170, 126
      %v1210 = vpop.permute.xlu0 %1209
      %1211 = vrot.lane.b32.xlu0 %v1171, 126
      %v1212 = vpop.permute.xlu0 %1211
      %1213 = vrot.lane.b32.xlu0 %v1172, 126
      %v1214 = vpop.permute.xlu0 %1213
      %vm1215 = vcmask 1031168
      %v1216 = vsel %vm1215, %v1188, %v1190
      %v1217 = vsel %vm1215, %v1190, %v1192
      %v1218 = vsel %vm1215, %v1192, %v1194
      %v1219 = vsel %vm1215, %v1194, %v1196
      %v1220 = vsel %vm1215, %v1196, %v1198
      %v1221 = vsel %vm1215, %v1198, %v1200
      %v1222 = vsel %vm1215, %v1202, %v1204
      %v1223 = vsel %vm1215, %v1204, %v1206
      %v1224 = vsel %vm1215, %v1206, %v1208
      %v1225 = vsel %vm1215, %v1208, %v1210
      %v1226 = vsel %vm1215, %v1210, %v1212
      %v1227 = vsel %vm1215, %v1212, %v1214
      %1240 = vst [vmem:[#allocation3 + $0xc0] sm:$0xff] %v1216
      %1241 = vst [vmem:[#allocation3 + $0xc8] sm:$0xff] %v1217
      %1242 = vst [vmem:[#allocation3 + $0xd0] sm:$0xff] %v1218
      %1243 = vst [vmem:[#allocation3 + $0xd8] sm:$0xff] %v1219
      %1244 = vst [vmem:[#allocation3 + $0xe0] sm:$0xff] %v1220
      %1245 = vst [vmem:[#allocation3 + $0xe8] sm:$0xff] %v1221
      %1246 = vst [vmem:[#allocation3 + $0xf0] sm:$0xff] %v1222
      %1247 = vst [vmem:[#allocation3 + $0xf8] sm:$0xff] %v1223
      %1248 = vst [vmem:[#allocation3 + $0x100] sm:$0xff] %v1224
      %1249 = vst [vmem:[#allocation3 + $0x108] sm:$0xff] %v1225
      %1250 = vst [vmem:[#allocation3 + $0x110] sm:$0xff] %v1226
      %1251 = vst [vmem:[#allocation3 + $0x118] sm:$0xff] %v1227
      %v1252 = vld [vmem:[#allocation2] sm:$0xff]
      %v1253 = vld [vmem:[#allocation2 + $0x8] sm:$0xff]
      %v1254 = vld [vmem:[#allocation2 + $0x10] sm:$0xff]
      %v1255 = vld [vmem:[#allocation2 + $0x18] sm:$0xff]
      %v1256 = vld [vmem:[#allocation2 + $0x20] sm:$0xff]
      %v1257 = vld [vmem:[#allocation2 + $0x28] sm:$0xff]
      %v1258 = vld [vmem:[#allocation2 + $0x30] sm:$0xff]
      %v1259 = vld [vmem:[#allocation2 + $0x38] sm:$0xff]
      %v1260 = vld [vmem:[#allocation2 + $0x40] sm:$0xff]
      %v1261 = vld [vmem:[#allocation2 + $0x48] sm:$0xff]
      %v1262 = vld [vmem:[#allocation2 + $0x50] sm:$0xff]
      %v1263 = vld [vmem:[#allocation2 + $0x58] sm:$0xff]
      %v1264 = vld [vmem:[#allocation2 + $0x60] sm:$0xff]
      %v1265 = vld [vmem:[#allocation2 + $0x68] sm:$0xff]
      %1280 = vrot.lane.b32.xlu0 %v1252, 125
      %v1281 = vpop.permute.xlu0 %1280
      %1282 = vrot.lane.b32.xlu0 %v1253, 125
      %v1283 = vpop.permute.xlu0 %1282
      %1284 = vrot.lane.b32.xlu0 %v1254, 125
      %v1285 = vpop.permute.xlu0 %1284
      %1286 = vrot.lane.b32.xlu0 %v1255, 125
      %v1287 = vpop.permute.xlu0 %1286
      %1288 = vrot.lane.b32.xlu0 %v1256, 125
      %v1289 = vpop.permute.xlu0 %1288
      %1290 = vrot.lane.b32.xlu0 %v1257, 125
      %v1291 = vpop.permute.xlu0 %1290
      %1292 = vrot.lane.b32.xlu0 %v1258, 125
      %v1293 = vpop.permute.xlu0 %1292
      %1294 = vrot.lane.b32.xlu0 %v1259, 125
      %v1295 = vpop.permute.xlu0 %1294
      %1296 = vrot.lane.b32.xlu0 %v1260, 125
      %v1297 = vpop.permute.xlu0 %1296
      %1298 = vrot.lane.b32.xlu0 %v1261, 125
      %v1299 = vpop.permute.xlu0 %1298
      %1300 = vrot.lane.b32.xlu0 %v1262, 125
      %v1301 = vpop.permute.xlu0 %1300
      %1302 = vrot.lane.b32.xlu0 %v1263, 125
      %v1303 = vpop.permute.xlu0 %1302
      %1304 = vrot.lane.b32.xlu0 %v1264, 125
      %v1305 = vpop.permute.xlu0 %1304
      %1306 = vrot.lane.b32.xlu0 %v1265, 125
      %v1307 = vpop.permute.xlu0 %1306
      %vm1308 = vcmask 1022976
      %v1309 = vsel %vm1308, %v1281, %v1283
      %v1310 = vsel %vm1308, %v1283, %v1285
      %v1311 = vsel %vm1308, %v1285, %v1287
      %v1312 = vsel %vm1308, %v1287, %v1289
      %v1313 = vsel %vm1308, %v1289, %v1291
      %v1314 = vsel %vm1308, %v1291, %v1293
      %v1315 = vsel %vm1308, %v1295, %v1297
      %v1316 = vsel %vm1308, %v1297, %v1299
      %v1317 = vsel %vm1308, %v1299, %v1301
      %v1318 = vsel %vm1308, %v1301, %v1303
      %v1319 = vsel %vm1308, %v1303, %v1305
      %v1320 = vsel %vm1308, %v1305, %v1307
      %1333 = vst [vmem:[#allocation3 + $0x120] sm:$0xff] %v1309
      %1334 = vst [vmem:[#allocation3 + $0x128] sm:$0xff] %v1310
      %1335 = vst [vmem:[#allocation3 + $0x130] sm:$0xff] %v1311
      %1336 = vst [vmem:[#allocation3 + $0x138] sm:$0xff] %v1312
      %1337 = vst [vmem:[#allocation3 + $0x140] sm:$0xff] %v1313
      %1338 = vst [vmem:[#allocation3 + $0x148] sm:$0xff] %v1314
      %1339 = vst [vmem:[#allocation3 + $0x150] sm:$0xff] %v1315
      %1340 = vst [vmem:[#allocation3 + $0x158] sm:$0xff] %v1316
      %1341 = vst [vmem:[#allocation3 + $0x160] sm:$0xff] %v1317
      %1342 = vst [vmem:[#allocation3 + $0x168] sm:$0xff] %v1318
      %1343 = vst [vmem:[#allocation3 + $0x170] sm:$0xff] %v1319
      %1344 = vst [vmem:[#allocation3 + $0x178] sm:$0xff] %v1320
      %v1345 = vld [vmem:[#allocation2] sm:$0xff]
      %v1346 = vld [vmem:[#allocation2 + $0x8] sm:$0xff]
      %v1347 = vld [vmem:[#allocation2 + $0x10] sm:$0xff]
      %v1348 = vld [vmem:[#allocation2 + $0x18] sm:$0xff]
      %v1349 = vld [vmem:[#allocation2 + $0x20] sm:$0xff]
      %v1350 = vld [vmem:[#allocation2 + $0x28] sm:$0xff]
      %v1351 = vld [vmem:[#allocation2 + $0x30] sm:$0xff]
      %v1352 = vld [vmem:[#allocation2 + $0x38] sm:$0xff]
      %v1353 = vld [vmem:[#allocation2 + $0x40] sm:$0xff]
      %v1354 = vld [vmem:[#allocation2 + $0x48] sm:$0xff]
      %v1355 = vld [vmem:[#allocation2 + $0x50] sm:$0xff]
      %v1356 = vld [vmem:[#allocation2 + $0x58] sm:$0xff]
      %v1357 = vld [vmem:[#allocation2 + $0x60] sm:$0xff]
      %v1358 = vld [vmem:[#allocation2 + $0x68] sm:$0xff]
      %1373 = vrot.lane.b32.xlu0 %v1345, 124
      %v1374 = vpop.permute.xlu0 %1373
      %1375 = vrot.lane.b32.xlu0 %v1346, 124
      %v1376 = vpop.permute.xlu0 %1375
      %1377 = vrot.lane.b32.xlu0 %v1347, 124
      %v1378 = vpop.permute.xlu0 %1377
      %1379 = vrot.lane.b32.xlu0 %v1348, 124
      %v1380 = vpop.permute.xlu0 %1379
      %1381 = vrot.lane.b32.xlu0 %v1349, 124
      %v1382 = vpop.permute.xlu0 %1381
      %1383 = vrot.lane.b32.xlu0 %v1350, 124
      %v1384 = vpop.permute.xlu0 %1383
      %1385 = vrot.lane.b32.xlu0 %v1351, 124
      %v1386 = vpop.permute.xlu0 %1385
      %1387 = vrot.lane.b32.xlu0 %v1352, 124
      %v1388 = vpop.permute.xlu0 %1387
      %1389 = vrot.lane.b32.xlu0 %v1353, 124
      %v1390 = vpop.permute.xlu0 %1389
      %1391 = vrot.lane.b32.xlu0 %v1354, 124
      %v1392 = vpop.permute.xlu0 %1391
      %1393 = vrot.lane.b32.xlu0 %v1355, 124
      %v1394 = vpop.permute.xlu0 %1393
      %1395 = vrot.lane.b32.xlu0 %v1356, 124
      %v1396 = vpop.permute.xlu0 %1395
      %1397 = vrot.lane.b32.xlu0 %v1357, 124
      %v1398 = vpop.permute.xlu0 %1397
      %1399 = vrot.lane.b32.xlu0 %v1358, 124
      %v1400 = vpop.permute.xlu0 %1399
      %vm1401 = vcmask 1014784
      %v1402 = vsel %vm1401, %v1374, %v1376
      %v1403 = vsel %vm1401, %v1376, %v1378
      %v1404 = vsel %vm1401, %v1378, %v1380
      %v1405 = vsel %vm1401, %v1380, %v1382
      %v1406 = vsel %vm1401, %v1382, %v1384
      %v1407 = vsel %vm1401, %v1384, %v1386
      %v1408 = vsel %vm1401, %v1388, %v1390
      %v1409 = vsel %vm1401, %v1390, %v1392
      %v1410 = vsel %vm1401, %v1392, %v1394
      %v1411 = vsel %vm1401, %v1394, %v1396
      %v1412 = vsel %vm1401, %v1396, %v1398
      %v1413 = vsel %vm1401, %v1398, %v1400
      %1426 = vst [vmem:[#allocation3 + $0x180] sm:$0xff] %v1402
      %1427 = vst [vmem:[#allocation3 + $0x188] sm:$0xff] %v1403
      %1428 = vst [vmem:[#allocation3 + $0x190] sm:$0xff] %v1404
      %1429 = vst [vmem:[#allocation3 + $0x198] sm:$0xff] %v1405
      %1430 = vst [vmem:[#allocation3 + $0x1a0] sm:$0xff] %v1406
      %1431 = vst [vmem:[#allocation3 + $0x1a8] sm:$0xff] %v1407
      %1432 = vst [vmem:[#allocation3 + $0x1b0] sm:$0xff] %v1408
      %1433 = vst [vmem:[#allocation3 + $0x1b8] sm:$0xff] %v1409
      %1434 = vst [vmem:[#allocation3 + $0x1c0] sm:$0xff] %v1410
      %1435 = vst [vmem:[#allocation3 + $0x1c8] sm:$0xff] %v1411
      %1436 = vst [vmem:[#allocation3 + $0x1d0] sm:$0xff] %v1412
      %1437 = vst [vmem:[#allocation3 + $0x1d8] sm:$0xff] %v1413
      %v1438 = vld [vmem:[#allocation2] sm:$0xff]
      %v1439 = vld [vmem:[#allocation2 + $0x8] sm:$0xff]
      %v1440 = vld [vmem:[#allocation2 + $0x10] sm:$0xff]
      %v1441 = vld [vmem:[#allocation2 + $0x18] sm:$0xff]
      %v1442 = vld [vmem:[#allocation2 + $0x20] sm:$0xff]
      %v1443 = vld [vmem:[#allocation2 + $0x28] sm:$0xff]
      %v1444 = vld [vmem:[#allocation2 + $0x30] sm:$0xff]
      %v1445 = vld [vmem:[#allocation2 + $0x38] sm:$0xff]
      %v1446 = vld [vmem:[#allocation2 + $0x40] sm:$0xff]
      %v1447 = vld [vmem:[#allocation2 + $0x48] sm:$0xff]
      %v1448 = vld [vmem:[#allocation2 + $0x50] sm:$0xff]
      %v1449 = vld [vmem:[#allocation2 + $0x58] sm:$0xff]
      %v1450 = vld [vmem:[#allocation2 + $0x60] sm:$0xff]
      %v1451 = vld [vmem:[#allocation2 + $0x68] sm:$0xff]
      %1466 = vrot.lane.b32.xlu0 %v1438, 123
      %v1467 = vpop.permute.xlu0 %1466
      %1468 = vrot.lane.b32.xlu0 %v1439, 123
      %v1469 = vpop.permute.xlu0 %1468
      %1470 = vrot.lane.b32.xlu0 %v1440, 123
      %v1471 = vpop.permute.xlu0 %1470
      %1472 = vrot.lane.b32.xlu0 %v1441, 123
      %v1473 = vpop.permute.xlu0 %1472
      %1474 = vrot.lane.b32.xlu0 %v1442, 123
      %v1475 = vpop.permute.xlu0 %1474
      %1476 = vrot.lane.b32.xlu0 %v1443, 123
      %v1477 = vpop.permute.xlu0 %1476
      %1478 = vrot.lane.b32.xlu0 %v1444, 123
      %v1479 = vpop.permute.xlu0 %1478
      %1480 = vrot.lane.b32.xlu0 %v1445, 123
      %v1481 = vpop.permute.xlu0 %1480
      %1482 = vrot.lane.b32.xlu0 %v1446, 123
      %v1483 = vpop.permute.xlu0 %1482
      %1484 = vrot.lane.b32.xlu0 %v1447, 123
      %v1485 = vpop.permute.xlu0 %1484
      %1486 = vrot.lane.b32.xlu0 %v1448, 123
      %v1487 = vpop.permute.xlu0 %1486
      %1488 = vrot.lane.b32.xlu0 %v1449, 123
      %v1489 = vpop.permute.xlu0 %1488
      %1490 = vrot.lane.b32.xlu0 %v1450, 123
      %v1491 = vpop.permute.xlu0 %1490
      %1492 = vrot.lane.b32.xlu0 %v1451, 123
      %v1493 = vpop.permute.xlu0 %1492
      %vm1494 = vcmask 1006592
      %v1495 = vsel %vm1494, %v1467, %v1469
      %v1496 = vsel %vm1494, %v1469, %v1471
      %v1497 = vsel %vm1494, %v1471, %v1473
      %v1498 = vsel %vm1494, %v1473, %v1475
      %v1499 = vsel %vm1494, %v1475, %v1477
      %v1500 = vsel %vm1494, %v1477, %v1479
      %v1501 = vsel %vm1494, %v1481, %v1483
      %v1502 = vsel %vm1494, %v1483, %v1485
      %v1503 = vsel %vm1494, %v1485, %v1487
      %v1504 = vsel %vm1494, %v1487, %v1489
      %v1505 = vsel %vm1494, %v1489, %v1491
      %v1506 = vsel %vm1494, %v1491, %v1493
      %1519 = vst [vmem:[#allocation3 + $0x1e0] sm:$0xff] %v1495
      %1520 = vst [vmem:[#allocation3 + $0x1e8] sm:$0xff] %v1496
      %1521 = vst [vmem:[#allocation3 + $0x1f0] sm:$0xff] %v1497
      %1522 = vst [vmem:[#allocation3 + $0x1f8] sm:$0xff] %v1498
      %1523 = vst [vmem:[#allocation3 + $0x200] sm:$0xff] %v1499
      %1524 = vst [vmem:[#allocation3 + $0x208] sm:$0xff] %v1500
      %1525 = vst [vmem:[#allocation3 + $0x210] sm:$0xff] %v1501
      %1526 = vst [vmem:[#allocation3 + $0x218] sm:$0xff] %v1502
      %1527 = vst [vmem:[#allocation3 + $0x220] sm:$0xff] %v1503
      %1528 = vst [vmem:[#allocation3 + $0x228] sm:$0xff] %v1504
      %1529 = vst [vmem:[#allocation3 + $0x230] sm:$0xff] %v1505
      %1530 = vst [vmem:[#allocation3 + $0x238] sm:$0xff] %v1506
      %v1531 = vld [vmem:[#allocation2] sm:$0xff]
      %v1532 = vld [vmem:[#allocation2 + $0x8] sm:$0xff]
      %v1533 = vld [vmem:[#allocation2 + $0x10] sm:$0xff]
      %v1534 = vld [vmem:[#allocation2 + $0x18] sm:$0xff]
      %v1535 = vld [vmem:[#allocation2 + $0x20] sm:$0xff]
      %v1536 = vld [vmem:[#allocation2 + $0x28] sm:$0xff]
      %v1537 = vld [vmem:[#allocation2 + $0x30] sm:$0xff]
      %v1538 = vld [vmem:[#allocation2 + $0x38] sm:$0xff]
      %v1539 = vld [vmem:[#allocation2 + $0x40] sm:$0xff]
      %v1540 = vld [vmem:[#allocation2 + $0x48] sm:$0xff]
      %v1541 = vld [vmem:[#allocation2 + $0x50] sm:$0xff]
      %v1542 = vld [vmem:[#allocation2 + $0x58] sm:$0xff]
      %v1543 = vld [vmem:[#allocation2 + $0x60] sm:$0xff]
      %v1544 = vld [vmem:[#allocation2 + $0x68] sm:$0xff]
      %1559 = vrot.lane.b32.xlu0 %v1531, 122
      %v1560 = vpop.permute.xlu0 %1559
      %1561 = vrot.lane.b32.xlu0 %v1532, 122
      %v1562 = vpop.permute.xlu0 %1561
      %1563 = vrot.lane.b32.xlu0 %v1533, 122
      %v1564 = vpop.permute.xlu0 %1563
      %1565 = vrot.lane.b32.xlu0 %v1534, 122
      %v1566 = vpop.permute.xlu0 %1565
      %1567 = vrot.lane.b32.xlu0 %v1535, 122
      %v1568 = vpop.permute.xlu0 %1567
      %1569 = vrot.lane.b32.xlu0 %v1536, 122
      %v1570 = vpop.permute.xlu0 %1569
      %1571 = vrot.lane.b32.xlu0 %v1537, 122
      %v1572 = vpop.permute.xlu0 %1571
      %1573 = vrot.lane.b32.xlu0 %v1538, 122
      %v1574 = vpop.permute.xlu0 %1573
      %1575 = vrot.lane.b32.xlu0 %v1539, 122
      %v1576 = vpop.permute.xlu0 %1575
      %1577 = vrot.lane.b32.xlu0 %v1540, 122
      %v1578 = vpop.permute.xlu0 %1577
      %1579 = vrot.lane.b32.xlu0 %v1541, 122
      %v1580 = vpop.permute.xlu0 %1579
      %1581 = vrot.lane.b32.xlu0 %v1542, 122
      %v1582 = vpop.permute.xlu0 %1581
      %1583 = vrot.lane.b32.xlu0 %v1543, 122
      %v1584 = vpop.permute.xlu0 %1583
      %1585 = vrot.lane.b32.xlu0 %v1544, 122
      %v1586 = vpop.permute.xlu0 %1585
      %vm1587 = vcmask 998400
      %v1588 = vsel %vm1587, %v1560, %v1562
      %v1589 = vsel %vm1587, %v1562, %v1564
      %v1590 = vsel %vm1587, %v1564, %v1566
      %v1591 = vsel %vm1587, %v1566, %v1568
      %v1592 = vsel %vm1587, %v1568, %v1570
      %v1593 = vsel %vm1587, %v1570, %v1572
      %v1594 = vsel %vm1587, %v1574, %v1576
      %v1595 = vsel %vm1587, %v1576, %v1578
      %v1596 = vsel %vm1587, %v1578, %v1580
      %v1597 = vsel %vm1587, %v1580, %v1582
      %v1598 = vsel %vm1587, %v1582, %v1584
      %v1599 = vsel %vm1587, %v1584, %v1586
      %1612 = vst [vmem:[#allocation3 + $0x240] sm:$0xff] %v1588
      %1613 = vst [vmem:[#allocation3 + $0x248] sm:$0xff] %v1589
      %1614 = vst [vmem:[#allocation3 + $0x250] sm:$0xff] %v1590
      %1615 = vst [vmem:[#allocation3 + $0x258] sm:$0xff] %v1591
      %1616 = vst [vmem:[#allocation3 + $0x260] sm:$0xff] %v1592
      %1617 = vst [vmem:[#allocation3 + $0x268] sm:$0xff] %v1593
      %1618 = vst [vmem:[#allocation3 + $0x270] sm:$0xff] %v1594
      %1619 = vst [vmem:[#allocation3 + $0x278] sm:$0xff] %v1595
      %1620 = vst [vmem:[#allocation3 + $0x280] sm:$0xff] %v1596
      %1621 = vst [vmem:[#allocation3 + $0x288] sm:$0xff] %v1597
      %1622 = vst [vmem:[#allocation3 + $0x290] sm:$0xff] %v1598
      %1623 = vst [vmem:[#allocation3 + $0x298] sm:$0xff] %v1599
      %v1624 = vld [vmem:[#allocation2] sm:$0xff]
      %v1625 = vld [vmem:[#allocation2 + $0x8] sm:$0xff]
      %v1626 = vld [vmem:[#allocation2 + $0x10] sm:$0xff]
      %v1627 = vld [vmem:[#allocation2 + $0x18] sm:$0xff]
      %v1628 = vld [vmem:[#allocation2 + $0x20] sm:$0xff]
      %v1629 = vld [vmem:[#allocation2 + $0x28] sm:$0xff]
      %v1630 = vld [vmem:[#allocation2 + $0x30] sm:$0xff]
      %v1631 = vld [vmem:[#allocation2 + $0x38] sm:$0xff]
      %v1632 = vld [vmem:[#allocation2 + $0x40] sm:$0xff]
      %v1633 = vld [vmem:[#allocation2 + $0x48] sm:$0xff]
      %v1634 = vld [vmem:[#allocation2 + $0x50] sm:$0xff]
      %v1635 = vld [vmem:[#allocation2 + $0x58] sm:$0xff]
      %v1636 = vld [vmem:[#allocation2 + $0x60] sm:$0xff]
      %v1637 = vld [vmem:[#allocation2 + $0x68] sm:$0xff]
      %1652 = vrot.lane.b32.xlu0 %v1624, 121
      %v1653 = vpop.permute.xlu0 %1652
      %1654 = vrot.lane.b32.xlu0 %v1625, 121
      %v1655 = vpop.permute.xlu0 %1654
      %1656 = vrot.lane.b32.xlu0 %v1626, 121
      %v1657 = vpop.permute.xlu0 %1656
      %1658 = vrot.lane.b32.xlu0 %v1627, 121
      %v1659 = vpop.permute.xlu0 %1658
      %1660 = vrot.lane.b32.xlu0 %v1628, 121
      %v1661 = vpop.permute.xlu0 %1660
      %1662 = vrot.lane.b32.xlu0 %v1629, 121
      %v1663 = vpop.permute.xlu0 %1662
      %1664 = vrot.lane.b32.xlu0 %v1630, 121
      %v1665 = vpop.permute.xlu0 %1664
      %1666 = vrot.lane.b32.xlu0 %v1631, 121
      %v1667 = vpop.permute.xlu0 %1666
      %1668 = vrot.lane.b32.xlu0 %v1632, 121
      %v1669 = vpop.permute.xlu0 %1668
      %1670 = vrot.lane.b32.xlu0 %v1633, 121
      %v1671 = vpop.permute.xlu0 %1670
      %1672 = vrot.lane.b32.xlu0 %v1634, 121
      %v1673 = vpop.permute.xlu0 %1672
      %1674 = vrot.lane.b32.xlu0 %v1635, 121
      %v1675 = vpop.permute.xlu0 %1674
      %1676 = vrot.lane.b32.xlu0 %v1636, 121
      %v1677 = vpop.permute.xlu0 %1676
      %1678 = vrot.lane.b32.xlu0 %v1637, 121
      %v1679 = vpop.permute.xlu0 %1678
      %vm1680 = vcmask 990208
      %v1681 = vsel %vm1680, %v1653, %v1655
      %v1682 = vsel %vm1680, %v1655, %v1657
      %v1683 = vsel %vm1680, %v1657, %v1659
      %v1684 = vsel %vm1680, %v1659, %v1661
      %v1685 = vsel %vm1680, %v1661, %v1663
      %v1686 = vsel %vm1680, %v1663, %v1665
      %v1687 = vsel %vm1680, %v1667, %v1669
      %v1688 = vsel %vm1680, %v1669, %v1671
      %v1689 = vsel %vm1680, %v1671, %v1673
      %v1690 = vsel %vm1680, %v1673, %v1675
      %v1691 = vsel %vm1680, %v1675, %v1677
      %v1692 = vsel %vm1680, %v1677, %v1679
      %1705 = vst [vmem:[#allocation3 + $0x2a0] sm:$0xff] %v1681
      %1706 = vst [vmem:[#allocation3 + $0x2a8] sm:$0xff] %v1682
      %1707 = vst [vmem:[#allocation3 + $0x2b0] sm:$0xff] %v1683
      %1708 = vst [vmem:[#allocation3 + $0x2b8] sm:$0xff] %v1684
      %1709 = vst [vmem:[#allocation3 + $0x2c0] sm:$0xff] %v1685
      %1710 = vst [vmem:[#allocation3 + $0x2c8] sm:$0xff] %v1686
      %1711 = vst [vmem:[#allocation3 + $0x2d0] sm:$0xff] %v1687
      %1712 = vst [vmem:[#allocation3 + $0x2d8] sm:$0xff] %v1688
      %1713 = vst [vmem:[#allocation3 + $0x2e0] sm:$0xff] %v1689
      %1714 = vst [vmem:[#allocation3 + $0x2e8] sm:$0xff] %v1690
      %1715 = vst [vmem:[#allocation3 + $0x2f0] sm:$0xff] %v1691
      %1716 = vst [vmem:[#allocation3 + $0x2f8] sm:$0xff] %v1692
      %v1717 = vld [vmem:[#allocation2] sm:$0xff]
      %v1718 = vld [vmem:[#allocation2 + $0x8] sm:$0xff]
      %v1719 = vld [vmem:[#allocation2 + $0x10] sm:$0xff]
      %v1720 = vld [vmem:[#allocation2 + $0x18] sm:$0xff]
      %v1721 = vld [vmem:[#allocation2 + $0x20] sm:$0xff]
      %v1722 = vld [vmem:[#allocation2 + $0x28] sm:$0xff]
      %v1723 = vld [vmem:[#allocation2 + $0x30] sm:$0xff]
      %v1724 = vld [vmem:[#allocation2 + $0x38] sm:$0xff]
      %v1725 = vld [vmem:[#allocation2 + $0x40] sm:$0xff]
      %v1726 = vld [vmem:[#allocation2 + $0x48] sm:$0xff]
      %v1727 = vld [vmem:[#allocation2 + $0x50] sm:$0xff]
      %v1728 = vld [vmem:[#allocation2 + $0x58] sm:$0xff]
      %v1729 = vld [vmem:[#allocation2 + $0x60] sm:$0xff]
      %v1730 = vld [vmem:[#allocation2 + $0x68] sm:$0xff]
      %1745 = vrot.lane.b32.xlu0 %v1717, 120
      %v1746 = vpop.permute.xlu0 %1745
      %1747 = vrot.lane.b32.xlu0 %v1718, 120
      %v1748 = vpop.permute.xlu0 %1747
      %1749 = vrot.lane.b32.xlu0 %v1719, 120
      %v1750 = vpop.permute.xlu0 %1749
      %1751 = vrot.lane.b32.xlu0 %v1720, 120
      %v1752 = vpop.permute.xlu0 %1751
      %1753 = vrot.lane.b32.xlu0 %v1721, 120
      %v1754 = vpop.permute.xlu0 %1753
      %1755 = vrot.lane.b32.xlu0 %v1722, 120
      %v1756 = vpop.permute.xlu0 %1755
      %1757 = vrot.lane.b32.xlu0 %v1723, 120
      %v1758 = vpop.permute.xlu0 %1757
      %1759 = vrot.lane.b32.xlu0 %v1724, 120
      %v1760 = vpop.permute.xlu0 %1759
      %1761 = vrot.lane.b32.xlu0 %v1725, 120
      %v1762 = vpop.permute.xlu0 %1761
      %1763 = vrot.lane.b32.xlu0 %v1726, 120
      %v1764 = vpop.permute.xlu0 %1763
      %1765 = vrot.lane.b32.xlu0 %v1727, 120
      %v1766 = vpop.permute.xlu0 %1765
      %1767 = vrot.lane.b32.xlu0 %v1728, 120
      %v1768 = vpop.permute.xlu0 %1767
      %1769 = vrot.lane.b32.xlu0 %v1729, 120
      %v1770 = vpop.permute.xlu0 %1769
      %1771 = vrot.lane.b32.xlu0 %v1730, 120
      %v1772 = vpop.permute.xlu0 %1771
      %vm1773 = vcmask 982016
      %v1774 = vsel %vm1773, %v1746, %v1748
      %v1775 = vsel %vm1773, %v1748, %v1750
      %v1776 = vsel %vm1773, %v1750, %v1752
      %v1777 = vsel %vm1773, %v1752, %v1754
      %v1778 = vsel %vm1773, %v1754, %v1756
      %v1779 = vsel %vm1773, %v1756, %v1758
      %v1780 = vsel %vm1773, %v1760, %v1762
      %v1781 = vsel %vm1773, %v1762, %v1764
      %v1782 = vsel %vm1773, %v1764, %v1766
      %v1783 = vsel %vm1773, %v1766, %v1768
      %v1784 = vsel %vm1773, %v1768, %v1770
      %v1785 = vsel %vm1773, %v1770, %v1772
      %1798 = vst [vmem:[#allocation3 + $0x300] sm:$0xff] %v1774
      %1799 = vst [vmem:[#allocation3 + $0x308] sm:$0xff] %v1775
      %1800 = vst [vmem:[#allocation3 + $0x310] sm:$0xff] %v1776
      %1801 = vst [vmem:[#allocation3 + $0x318] sm:$0xff] %v1777
      %1802 = vst [vmem:[#allocation3 + $0x320] sm:$0xff] %v1778
      %1803 = vst [vmem:[#allocation3 + $0x328] sm:$0xff] %v1779
      %1804 = vst [vmem:[#allocation3 + $0x330] sm:$0xff] %v1780
      %1805 = vst [vmem:[#allocation3 + $0x338] sm:$0xff] %v1781
      %1806 = vst [vmem:[#allocation3 + $0x340] sm:$0xff] %v1782
      %1807 = vst [vmem:[#allocation3 + $0x348] sm:$0xff] %v1783
      %1808 = vst [vmem:[#allocation3 + $0x350] sm:$0xff] %v1784
      %1809 = vst [vmem:[#allocation3 + $0x358] sm:$0xff] %v1785
      %v1810 = vld [vmem:[#allocation2] sm:$0xff]
      %v1811 = vld [vmem:[#allocation2 + $0x8] sm:$0xff]
      %v1812 = vld [vmem:[#allocation2 + $0x10] sm:$0xff]
      %v1813 = vld [vmem:[#allocation2 + $0x18] sm:$0xff]
      %v1814 = vld [vmem:[#allocation2 + $0x20] sm:$0xff]
      %v1815 = vld [vmem:[#allocation2 + $0x28] sm:$0xff]
      %v1816 = vld [vmem:[#allocation2 + $0x30] sm:$0xff]
      %v1817 = vld [vmem:[#allocation2 + $0x38] sm:$0xff]
      %v1818 = vld [vmem:[#allocation2 + $0x40] sm:$0xff]
      %v1819 = vld [vmem:[#allocation2 + $0x48] sm:$0xff]
      %v1820 = vld [vmem:[#allocation2 + $0x50] sm:$0xff]
      %v1821 = vld [vmem:[#allocation2 + $0x58] sm:$0xff]
      %v1822 = vld [vmem:[#allocation2 + $0x60] sm:$0xff]
      %v1823 = vld [vmem:[#allocation2 + $0x68] sm:$0xff]
      %1838 = vrot.lane.b32.xlu0 %v1810, 119
      %v1839 = vpop.permute.xlu0 %1838
      %1840 = vrot.lane.b32.xlu0 %v1811, 119
      %v1841 = vpop.permute.xlu0 %1840
      %1842 = vrot.lane.b32.xlu0 %v1812, 119
      %v1843 = vpop.permute.xlu0 %1842
      %1844 = vrot.lane.b32.xlu0 %v1813, 119
      %v1845 = vpop.permute.xlu0 %1844
      %1846 = vrot.lane.b32.xlu0 %v1814, 119
      %v1847 = vpop.permute.xlu0 %1846
      %1848 = vrot.lane.b32.xlu0 %v1815, 119
      %v1849 = vpop.permute.xlu0 %1848
      %1850 = vrot.lane.b32.xlu0 %v1816, 119
      %v1851 = vpop.permute.xlu0 %1850
      %1852 = vrot.lane.b32.xlu0 %v1817, 119
      %v1853 = vpop.permute.xlu0 %1852
      %1854 = vrot.lane.b32.xlu0 %v1818, 119
      %v1855 = vpop.permute.xlu0 %1854
      %1856 = vrot.lane.b32.xlu0 %v1819, 119
      %v1857 = vpop.permute.xlu0 %1856
      %1858 = vrot.lane.b32.xlu0 %v1820, 119
      %v1859 = vpop.permute.xlu0 %1858
      %1860 = vrot.lane.b32.xlu0 %v1821, 119
      %v1861 = vpop.permute.xlu0 %1860
      %1862 = vrot.lane.b32.xlu0 %v1822, 119
      %v1863 = vpop.permute.xlu0 %1862
      %1864 = vrot.lane.b32.xlu0 %v1823, 119
      %v1865 = vpop.permute.xlu0 %1864
      %vm1866 = vcmask 973824
      %v1867 = vsel %vm1866, %v1839, %v1841
      %v1868 = vsel %vm1866, %v1841, %v1843
      %v1869 = vsel %vm1866, %v1843, %v1845
      %v1870 = vsel %vm1866, %v1845, %v1847
      %v1871 = vsel %vm1866, %v1847, %v1849
      %v1872 = vsel %vm1866, %v1849, %v1851
      %v1873 = vsel %vm1866, %v1853, %v1855
      %v1874 = vsel %vm1866, %v1855, %v1857
      %v1875 = vsel %vm1866, %v1857, %v1859
      %v1876 = vsel %vm1866, %v1859, %v1861
      %v1877 = vsel %vm1866, %v1861, %v1863
      %v1878 = vsel %vm1866, %v1863, %v1865
      %1891 = vst [vmem:[#allocation3 + $0x360] sm:$0xff] %v1867
      %1892 = vst [vmem:[#allocation3 + $0x368] sm:$0xff] %v1868
      %1893 = vst [vmem:[#allocation3 + $0x370] sm:$0xff] %v1869
      %1894 = vst [vmem:[#allocation3 + $0x378] sm:$0xff] %v1870
      %1895 = vst [vmem:[#allocation3 + $0x380] sm:$0xff] %v1871
      %1896 = vst [vmem:[#allocation3 + $0x388] sm:$0xff] %v1872
      %1897 = vst [vmem:[#allocation3 + $0x390] sm:$0xff] %v1873
      %1898 = vst [vmem:[#allocation3 + $0x398] sm:$0xff] %v1874
      %1899 = vst [vmem:[#allocation3 + $0x3a0] sm:$0xff] %v1875
      %1900 = vst [vmem:[#allocation3 + $0x3a8] sm:$0xff] %v1876
      %1901 = vst [vmem:[#allocation3 + $0x3b0] sm:$0xff] %v1877
      %1902 = vst [vmem:[#allocation3 + $0x3b8] sm:$0xff] %v1878
      %v1903 = vld [vmem:[%s5] sm:$0xff]
      %v1904 = vld [vmem:[%s5 + $0x8] sm:$0xff]
      %v1905 = vld [vmem:[%s5 + $0x10] sm:$0xff]
      %v1906 = vld [vmem:[%s5 + $0x18] sm:$0xff]
      %v1907 = vld [vmem:[#allocation3] sm:$0xff]
      %v1908 = vld [vmem:[#allocation3 + $0x8] sm:$0xff]
      %v1909 = vld [vmem:[#allocation3 + $0x10] sm:$0xff]
      %v1910 = vld [vmem:[#allocation3 + $0x18] sm:$0xff]
      %v1911 = vld [vmem:[#allocation3 + $0x30] sm:$0xff]
      %v1912 = vld [vmem:[#allocation3 + $0x38] sm:$0xff]
      %v1913 = vld [vmem:[#allocation3 + $0x40] sm:$0xff]
      %v1914 = vld [vmem:[#allocation3 + $0x48] sm:$0xff]
      %v1915 = vld [vmem:[#allocation3 + $0x60] sm:$0xff]
      %v1916 = vld [vmem:[#allocation3 + $0x68] sm:$0xff]
      %v1917 = vld [vmem:[#allocation3 + $0x70] sm:$0xff]
      %v1918 = vld [vmem:[#allocation3 + $0x78] sm:$0xff]
      %v1919 = vld [vmem:[#allocation3 + $0x90] sm:$0xff]
      %v1920 = vld [vmem:[#allocation3 + $0x98] sm:$0xff]
      %v1921 = vld [vmem:[#allocation3 + $0xa0] sm:$0xff]
      %v1922 = vld [vmem:[#allocation3 + $0xa8] sm:$0xff]
      %v1923 = vld [vmem:[#allocation3 + $0xc0] sm:$0xff]
      %v1924 = vld [vmem:[#allocation3 + $0xc8] sm:$0xff]
      %v1925 = vld [vmem:[#allocation3 + $0xd0] sm:$0xff]
      %v1926 = vld [vmem:[#allocation3 + $0xd8] sm:$0xff]
      %v1927 = vld [vmem:[#allocation3 + $0xf0] sm:$0xff]
      %v1928 = vld [vmem:[#allocation3 + $0xf8] sm:$0xff]
      %v1929 = vld [vmem:[#allocation3 + $0x100] sm:$0xff]
      %v1930 = vld [vmem:[#allocation3 + $0x108] sm:$0xff]
      %v1931 = vld [vmem:[#allocation3 + $0x120] sm:$0xff]
      %v1932 = vld [vmem:[#allocation3 + $0x128] sm:$0xff]
      %v1933 = vld [vmem:[#allocation3 + $0x130] sm:$0xff]
      %v1934 = vld [vmem:[#allocation3 + $0x138] sm:$0xff]
      %v1935 = vld [vmem:[#allocation3 + $0x150] sm:$0xff]
      %v1936 = vld [vmem:[#allocation3 + $0x158] sm:$0xff]
      %v1937 = vld [vmem:[#allocation3 + $0x160] sm:$0xff]
      %v1938 = vld [vmem:[#allocation3 + $0x168] sm:$0xff]
      %v1939 = vld [vmem:[#allocation3 + $0x180] sm:$0xff]
      %v1940 = vld [vmem:[#allocation3 + $0x188] sm:$0xff]
      %v1941 = vld [vmem:[#allocation3 + $0x190] sm:$0xff]
      %v1942 = vld [vmem:[#allocation3 + $0x198] sm:$0xff]
      %v1943 = vld [vmem:[#allocation3 + $0x1b0] sm:$0xff]
      %v1944 = vld [vmem:[#allocation3 + $0x1b8] sm:$0xff]
      %v1945 = vld [vmem:[#allocation3 + $0x1c0] sm:$0xff]
      %v1946 = vld [vmem:[#allocation3 + $0x1c8] sm:$0xff]
      %v1947 = vld [vmem:[#allocation3 + $0x1e0] sm:$0xff]
      %v1948 = vld [vmem:[#allocation3 + $0x1e8] sm:$0xff]
      %v1949 = vld [vmem:[#allocation3 + $0x1f0] sm:$0xff]
      %v1950 = vld [vmem:[#allocation3 + $0x1f8] sm:$0xff]
      %v1951 = vld [vmem:[#allocation3 + $0x210] sm:$0xff]
      %v1952 = vld [vmem:[#allocation3 + $0x218] sm:$0xff]
      %v1953 = vld [vmem:[#allocation3 + $0x220] sm:$0xff]
      %v1954 = vld [vmem:[#allocation3 + $0x228] sm:$0xff]
      %v1955 = vld [vmem:[#allocation3 + $0x240] sm:$0xff]
      %v1956 = vld [vmem:[#allocation3 + $0x248] sm:$0xff]
      %v1957 = vld [vmem:[#allocation3 + $0x250] sm:$0xff]
      %v1958 = vld [vmem:[#allocation3 + $0x258] sm:$0xff]
      %v1959 = vld [vmem:[#allocation3 + $0x270] sm:$0xff]
      %v1960 = vld [vmem:[#allocation3 + $0x278] sm:$0xff]
      %v1961 = vld [vmem:[#allocation3 + $0x280] sm:$0xff]
      %v1962 = vld [vmem:[#allocation3 + $0x288] sm:$0xff]
      %v1963 = vld [vmem:[#allocation3 + $0x2a0] sm:$0xff]
      %v1964 = vld [vmem:[#allocation3 + $0x2a8] sm:$0xff]
      %v1965 = vld [vmem:[#allocation3 + $0x2b0] sm:$0xff]
      %v1966 = vld [vmem:[#allocation3 + $0x2b8] sm:$0xff]
      %v1967 = vld [vmem:[#allocation3 + $0x2d0] sm:$0xff]
      %v1968 = vld [vmem:[#allocation3 + $0x2d8] sm:$0xff]
      %v1969 = vld [vmem:[#allocation3 + $0x2e0] sm:$0xff]
      %v1970 = vld [vmem:[#allocation3 + $0x2e8] sm:$0xff]
      %v1971 = vld [vmem:[#allocation3 + $0x300] sm:$0xff]
      %v1972 = vld [vmem:[#allocation3 + $0x308] sm:$0xff]
      %v1973 = vld [vmem:[#allocation3 + $0x310] sm:$0xff]
      %v1974 = vld [vmem:[#allocation3 + $0x318] sm:$0xff]
      %v1975 = vld [vmem:[#allocation3 + $0x330] sm:$0xff]
      %v1976 = vld [vmem:[#allocation3 + $0x338] sm:$0xff]
      %v1977 = vld [vmem:[#allocation3 + $0x340] sm:$0xff]
      %v1978 = vld [vmem:[#allocation3 + $0x348] sm:$0xff]
      %v1979 = vld [vmem:[#allocation3 + $0x360] sm:$0xff]
      %v1980 = vld [vmem:[#allocation3 + $0x368] sm:$0xff]
      %v1981 = vld [vmem:[#allocation3 + $0x370] sm:$0xff]
      %v1982 = vld [vmem:[#allocation3 + $0x378] sm:$0xff]
      %v1983 = vld [vmem:[#allocation3 + $0x390] sm:$0xff]
      %v1984 = vld [vmem:[#allocation3 + $0x398] sm:$0xff]
      %v1985 = vld [vmem:[#allocation3 + $0x3a0] sm:$0xff]
      %v1986 = vld [vmem:[#allocation3 + $0x3a8] sm:$0xff]
      %s1987 = scalar_lea.vmem %s5, 32
      %v1988 = vld [vmem:[%s1987] sm:$0xff]
      %v1989 = vld [vmem:[%s1987 + $0x8] sm:$0xff]
      %v1990 = vld [vmem:[%s1987 + $0x10] sm:$0xff]
      %v1991 = vld [vmem:[%s1987 + $0x18] sm:$0xff]
      %2072 = vrot.lane.b32.xlu0 %v1907, 96
      %v2073 = vpop.permute.xlu0 %2072
      %2074 = vrot.lane.b32.xlu0 %v1908, 96
      %v2075 = vpop.permute.xlu0 %2074
      %2076 = vrot.lane.b32.xlu0 %v1909, 96
      %v2077 = vpop.permute.xlu0 %2076
      %2078 = vrot.lane.b32.xlu0 %v1910, 96
      %v2079 = vpop.permute.xlu0 %2078
      %2080 = vrot.lane.b32.xlu0 %v1911, 96
      %v2081 = vpop.permute.xlu0 %2080
      %2082 = vrot.lane.b32.xlu0 %v1912, 96
      %v2083 = vpop.permute.xlu0 %2082
      %2084 = vrot.lane.b32.xlu0 %v1913, 96
      %v2085 = vpop.permute.xlu0 %2084
      %2086 = vrot.lane.b32.xlu0 %v1914, 96
      %v2087 = vpop.permute.xlu0 %2086
      %2088 = vrot.lane.b32.xlu0 %v1915, 96
      %v2089 = vpop.permute.xlu0 %2088
      %2090 = vrot.lane.b32.xlu0 %v1916, 96
      %v2091 = vpop.permute.xlu0 %2090
      %2092 = vrot.lane.b32.xlu0 %v1917, 96
      %v2093 = vpop.permute.xlu0 %2092
      %2094 = vrot.lane.b32.xlu0 %v1918, 96
      %v2095 = vpop.permute.xlu0 %2094
      %2096 = vrot.lane.b32.xlu0 %v1919, 96
      %v2097 = vpop.permute.xlu0 %2096
      %2098 = vrot.lane.b32.xlu0 %v1920, 96
      %v2099 = vpop.permute.xlu0 %2098
      %2100 = vrot.lane.b32.xlu0 %v1921, 96
      %v2101 = vpop.permute.xlu0 %2100
      %2102 = vrot.lane.b32.xlu0 %v1922, 96
      %v2103 = vpop.permute.xlu0 %2102
      %2104 = vrot.lane.b32.xlu0 %v1923, 96
      %v2105 = vpop.permute.xlu0 %2104
      %2106 = vrot.lane.b32.xlu0 %v1924, 96
      %v2107 = vpop.permute.xlu0 %2106
      %2108 = vrot.lane.b32.xlu0 %v1925, 96
      %v2109 = vpop.permute.xlu0 %2108
      %2110 = vrot.lane.b32.xlu0 %v1926, 96
      %v2111 = vpop.permute.xlu0 %2110
      %2112 = vrot.lane.b32.xlu0 %v1927, 96
      %v2113 = vpop.permute.xlu0 %2112
      %2114 = vrot.lane.b32.xlu0 %v1928, 96
      %v2115 = vpop.permute.xlu0 %2114
      %2116 = vrot.lane.b32.xlu0 %v1929, 96
      %v2117 = vpop.permute.xlu0 %2116
      %2118 = vrot.lane.b32.xlu0 %v1930, 96
      %v2119 = vpop.permute.xlu0 %2118
      %2120 = vrot.lane.b32.xlu0 %v1931, 96
      %v2121 = vpop.permute.xlu0 %2120
      %2122 = vrot.lane.b32.xlu0 %v1932, 96
      %v2123 = vpop.permute.xlu0 %2122
      %2124 = vrot.lane.b32.xlu0 %v1933, 96
      %v2125 = vpop.permute.xlu0 %2124
      %2126 = vrot.lane.b32.xlu0 %v1934, 96
      %v2127 = vpop.permute.xlu0 %2126
      %2128 = vrot.lane.b32.xlu0 %v1935, 96
      %v2129 = vpop.permute.xlu0 %2128
      %2130 = vrot.lane.b32.xlu0 %v1936, 96
      %v2131 = vpop.permute.xlu0 %2130
      %2132 = vrot.lane.b32.xlu0 %v1937, 96
      %v2133 = vpop.permute.xlu0 %2132
      %2134 = vrot.lane.b32.xlu0 %v1938, 96
      %v2135 = vpop.permute.xlu0 %2134
      %2136 = vrot.lane.b32.xlu0 %v1939, 96
      %v2137 = vpop.permute.xlu0 %2136
      %2138 = vrot.lane.b32.xlu0 %v1940, 96
      %v2139 = vpop.permute.xlu0 %2138
      %2140 = vrot.lane.b32.xlu0 %v1941, 96
      %v2141 = vpop.permute.xlu0 %2140
      %2142 = vrot.lane.b32.xlu0 %v1942, 96
      %v2143 = vpop.permute.xlu0 %2142
      %2144 = vrot.lane.b32.xlu0 %v1943, 96
      %v2145 = vpop.permute.xlu0 %2144
      %2146 = vrot.lane.b32.xlu0 %v1944, 96
      %v2147 = vpop.permute.xlu0 %2146
      %2148 = vrot.lane.b32.xlu0 %v1945, 96
      %v2149 = vpop.permute.xlu0 %2148
      %2150 = vrot.lane.b32.xlu0 %v1946, 96
      %v2151 = vpop.permute.xlu0 %2150
      %2152 = vrot.lane.b32.xlu0 %v1947, 96
      %v2153 = vpop.permute.xlu0 %2152
      %2154 = vrot.lane.b32.xlu0 %v1948, 96
      %v2155 = vpop.permute.xlu0 %2154
      %2156 = vrot.lane.b32.xlu0 %v1949, 96
      %v2157 = vpop.permute.xlu0 %2156
      %2158 = vrot.lane.b32.xlu0 %v1950, 96
      %v2159 = vpop.permute.xlu0 %2158
      %2160 = vrot.lane.b32.xlu0 %v1951, 96
      %v2161 = vpop.permute.xlu0 %2160
      %2162 = vrot.lane.b32.xlu0 %v1952, 96
      %v2163 = vpop.permute.xlu0 %2162
      %2164 = vrot.lane.b32.xlu0 %v1953, 96
      %v2165 = vpop.permute.xlu0 %2164
      %2166 = vrot.lane.b32.xlu0 %v1954, 96
      %v2167 = vpop.permute.xlu0 %2166
      %2168 = vrot.lane.b32.xlu0 %v1955, 96
      %v2169 = vpop.permute.xlu0 %2168
      %2170 = vrot.lane.b32.xlu0 %v1956, 96
      %v2171 = vpop.permute.xlu0 %2170
      %2172 = vrot.lane.b32.xlu0 %v1957, 96
      %v2173 = vpop.permute.xlu0 %2172
      %2174 = vrot.lane.b32.xlu0 %v1958, 96
      %v2175 = vpop.permute.xlu0 %2174
      %2176 = vrot.lane.b32.xlu0 %v1959, 96
      %v2177 = vpop.permute.xlu0 %2176
      %2178 = vrot.lane.b32.xlu0 %v1960, 96
      %v2179 = vpop.permute.xlu0 %2178
      %2180 = vrot.lane.b32.xlu0 %v1961, 96
      %v2181 = vpop.permute.xlu0 %2180
      %2182 = vrot.lane.b32.xlu0 %v1962, 96
      %v2183 = vpop.permute.xlu0 %2182
      %2184 = vrot.lane.b32.xlu0 %v1963, 96
      %v2185 = vpop.permute.xlu0 %2184
      %2186 = vrot.lane.b32.xlu0 %v1964, 96
      %v2187 = vpop.permute.xlu0 %2186
      %2188 = vrot.lane.b32.xlu0 %v1965, 96
      %v2189 = vpop.permute.xlu0 %2188
      %2190 = vrot.lane.b32.xlu0 %v1966, 96
      %v2191 = vpop.permute.xlu0 %2190
      %2192 = vrot.lane.b32.xlu0 %v1967, 96
      %v2193 = vpop.permute.xlu0 %2192
      %2194 = vrot.lane.b32.xlu0 %v1968, 96
      %v2195 = vpop.permute.xlu0 %2194
      %2196 = vrot.lane.b32.xlu0 %v1969, 96
      %v2197 = vpop.permute.xlu0 %2196
      %2198 = vrot.lane.b32.xlu0 %v1970, 96
      %v2199 = vpop.permute.xlu0 %2198
      %2200 = vrot.lane.b32.xlu0 %v1971, 96
      %v2201 = vpop.permute.xlu0 %2200
      %2202 = vrot.lane.b32.xlu0 %v1972, 96
      %v2203 = vpop.permute.xlu0 %2202
      %2204 = vrot.lane.b32.xlu0 %v1973, 96
      %v2205 = vpop.permute.xlu0 %2204
      %2206 = vrot.lane.b32.xlu0 %v1974, 96
      %v2207 = vpop.permute.xlu0 %2206
      %2208 = vrot.lane.b32.xlu0 %v1975, 96
      %v2209 = vpop.permute.xlu0 %2208
      %2210 = vrot.lane.b32.xlu0 %v1976, 96
      %v2211 = vpop.permute.xlu0 %2210
      %2212 = vrot.lane.b32.xlu0 %v1977, 96
      %v2213 = vpop.permute.xlu0 %2212
      %2214 = vrot.lane.b32.xlu0 %v1978, 96
      %v2215 = vpop.permute.xlu0 %2214
      %2216 = vrot.lane.b32.xlu0 %v1979, 96
      %v2217 = vpop.permute.xlu0 %2216
      %2218 = vrot.lane.b32.xlu0 %v1980, 96
      %v2219 = vpop.permute.xlu0 %2218
      %2220 = vrot.lane.b32.xlu0 %v1981, 96
      %v2221 = vpop.permute.xlu0 %2220
      %2222 = vrot.lane.b32.xlu0 %v1982, 96
      %v2223 = vpop.permute.xlu0 %2222
      %2224 = vrot.lane.b32.xlu0 %v1983, 96
      %v2225 = vpop.permute.xlu0 %2224
      %2226 = vrot.lane.b32.xlu0 %v1984, 96
      %v2227 = vpop.permute.xlu0 %2226
      %2228 = vrot.lane.b32.xlu0 %v1985, 96
      %v2229 = vpop.permute.xlu0 %2228
      %2230 = vrot.lane.b32.xlu0 %v1986, 96
      %v2231 = vpop.permute.xlu0 %2230
      %v2232 = vsel %vm666, %v2073, %v2075
      %v2233 = vsel %vm666, %v2075, %v2077
      %v2234 = vsel %vm666, %v2077, %v2079
      %v2235 = vsel %vm666, %v2081, %v2083
      %v2236 = vsel %vm666, %v2083, %v2085
      %v2237 = vsel %vm666, %v2085, %v2087
      %v2238 = vsel %vm666, %v2089, %v2091
      %v2239 = vsel %vm666, %v2091, %v2093
      %v2240 = vsel %vm666, %v2093, %v2095
      %v2241 = vsel %vm666, %v2097, %v2099
      %v2242 = vsel %vm666, %v2099, %v2101
      %v2243 = vsel %vm666, %v2101, %v2103
      %v2244 = vsel %vm666, %v2105, %v2107
      %v2245 = vsel %vm666, %v2107, %v2109
      %v2246 = vsel %vm666, %v2109, %v2111
      %v2247 = vsel %vm666, %v2113, %v2115
      %v2248 = vsel %vm666, %v2115, %v2117
      %v2249 = vsel %vm666, %v2117, %v2119
      %v2250 = vsel %vm666, %v2121, %v2123
      %v2251 = vsel %vm666, %v2123, %v2125
      %v2252 = vsel %vm666, %v2125, %v2127
      %v2253 = vsel %vm666, %v2129, %v2131
      %v2254 = vsel %vm666, %v2131, %v2133
      %v2255 = vsel %vm666, %v2133, %v2135
      %v2256 = vsel %vm666, %v2137, %v2139
      %v2257 = vsel %vm666, %v2139, %v2141
      %v2258 = vsel %vm666, %v2141, %v2143
      %v2259 = vsel %vm666, %v2145, %v2147
      %v2260 = vsel %vm666, %v2147, %v2149
      %v2261 = vsel %vm666, %v2149, %v2151
      %v2262 = vsel %vm666, %v2153, %v2155
      %v2263 = vsel %vm666, %v2155, %v2157
      %v2264 = vsel %vm666, %v2157, %v2159
      %v2265 = vsel %vm666, %v2161, %v2163
      %v2266 = vsel %vm666, %v2163, %v2165
      %v2267 = vsel %vm666, %v2165, %v2167
      %v2268 = vsel %vm666, %v2169, %v2171
      %v2269 = vsel %vm666, %v2171, %v2173
      %v2270 = vsel %vm666, %v2173, %v2175
      %v2271 = vsel %vm666, %v2177, %v2179
      %v2272 = vsel %vm666, %v2179, %v2181
      %v2273 = vsel %vm666, %v2181, %v2183
      %v2274 = vsel %vm666, %v2185, %v2187
      %v2275 = vsel %vm666, %v2187, %v2189
      %v2276 = vsel %vm666, %v2189, %v2191
      %v2277 = vsel %vm666, %v2193, %v2195
      %v2278 = vsel %vm666, %v2195, %v2197
      %v2279 = vsel %vm666, %v2197, %v2199
      %v2280 = vsel %vm666, %v2201, %v2203
      %v2281 = vsel %vm666, %v2203, %v2205
      %v2282 = vsel %vm666, %v2205, %v2207
      %v2283 = vsel %vm666, %v2209, %v2211
      %v2284 = vsel %vm666, %v2211, %v2213
      %v2285 = vsel %vm666, %v2213, %v2215
      %v2286 = vsel %vm666, %v2217, %v2219
      %v2287 = vsel %vm666, %v2219, %v2221
      %v2288 = vsel %vm666, %v2221, %v2223
      %v2289 = vsel %vm666, %v2225, %v2227
      %v2290 = vsel %vm666, %v2227, %v2229
      %v2291 = vsel %vm666, %v2229, %v2231
      %v2373 = vsel %vm963, %v1989, 0
      %v2376 = vsel %vm963, %v1991, 0
      %2378 = vmatprep.subr.mxu0 %v2233
      %2379 = vmatpush1.msra.mxu0 %v2232
      %2380 = vmatprep.subr.mxu0 %v2236
      %2381 = vmatpush1.msra.mxu0 %v2235
      %2382 = vmatprep.subr.mxu0 %v2239
      %2383 = vmatpush1.msra.mxu0 %v2238
      %2384 = vmatprep.subr.mxu0 %v2242
      %2385 = vmatpush1.msra.mxu0 %v2241
      %2386 = vmatprep.subr.mxu0 %v2245
      %2387 = vmatpush1.msra.mxu0 %v2244
      %2388 = vmatprep.subr.mxu0 %v2248
      %2389 = vmatpush1.msra.mxu0 %v2247
      %2390 = vmatprep.subr.mxu0 %v2251
      %2391 = vmatpush1.msra.mxu0 %v2250
      %2392 = vmatprep.subr.mxu0 %v2254
      %2393 = vmatpush1.msra.mxu0 %v2253
      %2394 = vmatprep.subr.mxu0 %v2257
      %2395 = vmatpush1.msra.mxu0 %v2256
      %2396 = vmatprep.subr.mxu0 %v2260
      %2397 = vmatpush1.msra.mxu0 %v2259
      %2398 = vmatprep.subr.mxu0 %v2263
      %2399 = vmatpush1.msra.mxu0 %v2262
      %2400 = vmatprep.subr.mxu0 %v2266
      %2401 = vmatpush1.msra.mxu0 %v2265
      %2402 = vmatprep.subr.mxu0 %v2269
      %2403 = vmatpush1.msra.mxu0 %v2268
      %2404 = vmatprep.subr.mxu0 %v2272
      %2405 = vmatpush1.msra.mxu0 %v2271
      %2406 = vmatprep.subr.mxu0 %v2275
      %2407 = vmatpush1.msra.mxu0 %v2274
      %2408 = vmatprep.subr.mxu0 %v2278
      %2409 = vmatpush1.msra.mxu0 %v2277
      %2410 = vmatprep.subr.mxu0 %v2281
      %2411 = vmatpush1.msra.mxu0 %v2280
      %2412 = vmatprep.subr.mxu0 %v2284
      %2413 = vmatpush1.msra.mxu0 %v2283
      %2414 = vmatprep.subr.mxu0 %v2287
      %2415 = vmatpush1.msra.mxu0 %v2286
      %2416 = vmatprep.subr.mxu0 %v2290
      %2417 = vmatpush1.msra.mxu0 %v2289
      %2418 = vmatprep.subr.mxu0 0.0
      %2419 = vmatpush1.msra.mxu0 0.0
      %2420 = vmatprep.subr.mxu0 0.0
      %2421 = vmatpush1.msra.mxu0 0.0
      %2422 = vmatprep.subr.mxu0 0.0
      %2423 = vmatpush1.msra.mxu0 0.0
      %2424 = vmatprep.subr.mxu0 0.0
      %2425 = vmatpush1.msra.mxu0 0.0
      %2426 = vmatprep.subr.mxu0 0.0
      %2427 = vmatpush1.msra.mxu0 0.0
      %2428 = vmatprep.subr.mxu0 0.0
      %2429 = vmatpush1.msra.mxu0 0.0
      %2430 = vmatprep.subr.mxu0 0.0
      %2431 = vmatpush1.msra.mxu0 0.0
      %2432 = vmatprep.subr.mxu0 0.0
      %2433 = vmatpush1.msra.mxu0 0.0
      %2434 = vmatprep.subr.mxu0 0.0
      %2435 = vmatpush1.msra.mxu0 0.0
      %2436 = vmatprep.subr.mxu0 0.0
      %2437 = vmatpush1.msra.mxu0 0.0
      %2438 = vmatprep.subr.mxu0 0.0
      %2439 = vmatpush1.msra.mxu0 0.0
      %2440 = vmatprep.subr.mxu0 0.0
      %2441 = vmatpush1.msra.mxu0 0.0
      %2442 = vmatprep.mubr.f32.mxu0 %v2373
      %2443 = vmatmul.mubr.f32.gmra.mrb[0].mxu0 %v1988
      %v2444 = vpop.f32.mrb[0].mxu0
      %v2445 = vadd.f32 0.0, %v2444
      %v2446 = vpop.f32.mrb[0].mxu0
      %v2447 = vadd.f32 0.0, %v2446
      %2448 = vmatprep.mubr.f32.mxu0 %v2376
      %2449 = vmatmul.mubr.f32.gmra.mrb[0].mxu0 %v1990
      %v2450 = vpop.f32.mrb[0].mxu0
      %v2451 = vadd.f32 0.0, %v2450
      %v2452 = vpop.f32.mrb[0].mxu0
      %v2453 = vadd.f32 0.0, %v2452
      %2454 = vdwg.mxu0
      %2455 = vmatprep.subr.mxu0 %v2079
      %2456 = vmatpush1.msra.mxu0 %v2234
      %2457 = vmatprep.subr.mxu0 %v2087
      %2458 = vmatpush1.msra.mxu0 %v2237
      %2459 = vmatprep.subr.mxu0 %v2095
      %2460 = vmatpush1.msra.mxu0 %v2240
      %2461 = vmatprep.subr.mxu0 %v2103
      %2462 = vmatpush1.msra.mxu0 %v2243
      %2463 = vmatprep.subr.mxu0 %v2111
      %2464 = vmatpush1.msra.mxu0 %v2246
      %2465 = vmatprep.subr.mxu0 %v2119
      %2466 = vmatpush1.msra.mxu0 %v2249
      %2467 = vmatprep.subr.mxu0 %v2127
      %2468 = vmatpush1.msra.mxu0 %v2252
      %2469 = vmatprep.subr.mxu0 %v2135
      %2470 = vmatpush1.msra.mxu0 %v2255
      %2471 = vmatprep.subr.mxu0 %v2143
      %2472 = vmatpush1.msra.mxu0 %v2258
      %2473 = vmatprep.subr.mxu0 %v2151
      %2474 = vmatpush1.msra.mxu0 %v2261
      %2475 = vmatprep.subr.mxu0 %v2159
      %2476 = vmatpush1.msra.mxu0 %v2264
      %2477 = vmatprep.subr.mxu0 %v2167
      %2478 = vmatpush1.msra.mxu0 %v2267
      %2479 = vmatprep.subr.mxu0 %v2175
      %2480 = vmatpush1.msra.mxu0 %v2270
      %2481 = vmatprep.subr.mxu0 %v2183
      %2482 = vmatpush1.msra.mxu0 %v2273
      %2483 = vmatprep.subr.mxu0 %v2191
      %2484 = vmatpush1.msra.mxu0 %v2276
      %2485 = vmatprep.subr.mxu0 %v2199
      %2486 = vmatpush1.msra.mxu0 %v2279
      %2487 = vmatprep.subr.mxu0 %v2207
      %2488 = vmatpush1.msra.mxu0 %v2282
      %2489 = vmatprep.subr.mxu0 %v2215
      %2490 = vmatpush1.msra.mxu0 %v2285
      %2491 = vmatprep.subr.mxu0 %v2223
      %2492 = vmatpush1.msra.mxu0 %v2288
      %2493 = vmatprep.subr.mxu0 %v2231
      %2494 = vmatpush1.msra.mxu0 %v2291
      %2495 = vmatprep.subr.mxu0 0.0
      %2496 = vmatpush1.msra.mxu0 0.0
      %2497 = vmatprep.subr.mxu0 0.0
      %2498 = vmatpush1.msra.mxu0 0.0
      %2499 = vmatprep.subr.mxu0 0.0
      %2500 = vmatpush1.msra.mxu0 0.0
      %2501 = vmatprep.subr.mxu0 0.0
      %2502 = vmatpush1.msra.mxu0 0.0
      %2503 = vmatprep.subr.mxu0 0.0
      %2504 = vmatpush1.msra.mxu0 0.0
      %2505 = vmatprep.subr.mxu0 0.0
      %2506 = vmatpush1.msra.mxu0 0.0
      %2507 = vmatprep.subr.mxu0 0.0
      %2508 = vmatpush1.msra.mxu0 0.0
      %2509 = vmatprep.subr.mxu0 0.0
      %2510 = vmatpush1.msra.mxu0 0.0
      %2511 = vmatprep.subr.mxu0 0.0
      %2512 = vmatpush1.msra.mxu0 0.0
      %2513 = vmatprep.subr.mxu0 0.0
      %2514 = vmatpush1.msra.mxu0 0.0
      %2515 = vmatprep.subr.mxu0 0.0
      %2516 = vmatpush1.msra.mxu0 0.0
      %2517 = vmatprep.subr.mxu0 0.0
      %2518 = vmatpush1.msra.mxu0 0.0
      %2519 = vmatprep.mubr.f32.mxu0 %v2373
      %2520 = vmatmul.mubr.f32.gmra.mrb[0].mxu0 %v1988
      %v2521 = vpop.f32.mrb[0].mxu0
      %v2522 = vadd.f32 0.0, %v2521
      %v2523 = vpop.f32.mrb[0].mxu0
      %v2524 = vadd.f32 0.0, %v2523
      %2525 = vmatprep.mubr.f32.mxu0 %v2376
      %2526 = vmatmul.mubr.f32.gmra.mrb[0].mxu0 %v1990
      %v2527 = vpop.f32.mrb[0].mxu0
      %v2528 = vadd.f32 0.0, %v2527
      %v2529 = vpop.f32.mrb[0].mxu0
      %v2530 = vadd.f32 0.0, %v2529
      %2531 = vdwg.mxu0
      %v2533 = vsel %vm963, %v1904, 0
      %v2536 = vsel %vm963, %v1906, 0
      %2538 = vmatprep.subr.mxu0 %v1908
      %2539 = vmatpush1.msra.mxu0 %v1907
      %2540 = vmatprep.subr.mxu0 %v1912
      %2541 = vmatpush1.msra.mxu0 %v1911
      %2542 = vmatprep.subr.mxu0 %v1916
      %2543 = vmatpush1.msra.mxu0 %v1915
      %2544 = vmatprep.subr.mxu0 %v1920
      %2545 = vmatpush1.msra.mxu0 %v1919
      %2546 = vmatprep.subr.mxu0 %v1924
      %2547 = vmatpush1.msra.mxu0 %v1923
      %2548 = vmatprep.subr.mxu0 %v1928
      %2549 = vmatpush1.msra.mxu0 %v1927
      %2550 = vmatprep.subr.mxu0 %v1932
      %2551 = vmatpush1.msra.mxu0 %v1931
      %2552 = vmatprep.subr.mxu0 %v1936
      %2553 = vmatpush1.msra.mxu0 %v1935
      %2554 = vmatprep.subr.mxu0 %v1940
      %2555 = vmatpush1.msra.mxu0 %v1939
      %2556 = vmatprep.subr.mxu0 %v1944
      %2557 = vmatpush1.msra.mxu0 %v1943
      %2558 = vmatprep.subr.mxu0 %v1948
      %2559 = vmatpush1.msra.mxu0 %v1947
      %2560 = vmatprep.subr.mxu0 %v1952
      %2561 = vmatpush1.msra.mxu0 %v1951
      %2562 = vmatprep.subr.mxu0 %v1956
      %2563 = vmatpush1.msra.mxu0 %v1955
      %2564 = vmatprep.subr.mxu0 %v1960
      %2565 = vmatpush1.msra.mxu0 %v1959
      %2566 = vmatprep.subr.mxu0 %v1964
      %2567 = vmatpush1.msra.mxu0 %v1963
      %2568 = vmatprep.subr.mxu0 %v1968
      %2569 = vmatpush1.msra.mxu0 %v1967
      %2570 = vmatprep.subr.mxu0 %v1972
      %2571 = vmatpush1.msra.mxu0 %v1971
      %2572 = vmatprep.subr.mxu0 %v1976
      %2573 = vmatpush1.msra.mxu0 %v1975
      %2574 = vmatprep.subr.mxu0 %v1980
      %2575 = vmatpush1.msra.mxu0 %v1979
      %2576 = vmatprep.subr.mxu0 %v1984
      %2577 = vmatpush1.msra.mxu0 %v1983
      %2578 = vmatprep.subr.mxu0 0.0
      %2579 = vmatpush1.msra.mxu0 0.0
      %2580 = vmatprep.subr.mxu0 0.0
      %2581 = vmatpush1.msra.mxu0 0.0
      %2582 = vmatprep.subr.mxu0 0.0
      %2583 = vmatpush1.msra.mxu0 0.0
      %2584 = vmatprep.subr.mxu0 0.0
      %2585 = vmatpush1.msra.mxu0 0.0
      %2586 = vmatprep.subr.mxu0 0.0
      %2587 = vmatpush1.msra.mxu0 0.0
      %2588 = vmatprep.subr.mxu0 0.0
      %2589 = vmatpush1.msra.mxu0 0.0
      %2590 = vmatprep.subr.mxu0 0.0
      %2591 = vmatpush1.msra.mxu0 0.0
      %2592 = vmatprep.subr.mxu0 0.0
      %2593 = vmatpush1.msra.mxu0 0.0
      %2594 = vmatprep.subr.mxu0 0.0
      %2595 = vmatpush1.msra.mxu0 0.0
      %2596 = vmatprep.subr.mxu0 0.0
      %2597 = vmatpush1.msra.mxu0 0.0
      %2598 = vmatprep.subr.mxu0 0.0
      %2599 = vmatpush1.msra.mxu0 0.0
      %2600 = vmatprep.subr.mxu0 0.0
      %2601 = vmatpush1.msra.mxu0 0.0
      %2602 = vmatprep.mubr.f32.mxu0 %v2533
      %2603 = vmatmul.mubr.f32.gmra.mrb[0].mxu0 %v1903
      %v2604 = vpop.f32.mrb[0].mxu0
      %v2605 = vadd.f32 %v2445, %v2604
      %v2606 = vpop.f32.mrb[0].mxu0
      %v2607 = vadd.f32 %v2447, %v2606
      %2608 = vmatprep.mubr.f32.mxu0 %v2536
      %2609 = vmatmul.mubr.f32.gmra.mrb[0].mxu0 %v1905
      %v2610 = vpop.f32.mrb[0].mxu0
      %v2611 = vadd.f32 %v2451, %v2610
      %v2612 = vpop.f32.mrb[0].mxu0
      %v2613 = vadd.f32 %v2453, %v2612
      %2614 = vdwg.mxu0
      %2615 = vmatprep.subr.mxu0 %v1910
      %2616 = vmatpush1.msra.mxu0 %v1909
      %2617 = vmatprep.subr.mxu0 %v1914
      %2618 = vmatpush1.msra.mxu0 %v1913
      %2619 = vmatprep.subr.mxu0 %v1918
      %2620 = vmatpush1.msra.mxu0 %v1917
      %2621 = vmatprep.subr.mxu0 %v1922
      %2622 = vmatpush1.msra.mxu0 %v1921
      %2623 = vmatprep.subr.mxu0 %v1926
      %2624 = vmatpush1.msra.mxu0 %v1925
      %2625 = vmatprep.subr.mxu0 %v1930
      %2626 = vmatpush1.msra.mxu0 %v1929
      %2627 = vmatprep.subr.mxu0 %v1934
      %2628 = vmatpush1.msra.mxu0 %v1933
      %2629 = vmatprep.subr.mxu0 %v1938
      %2630 = vmatpush1.msra.mxu0 %v1937
      %2631 = vmatprep.subr.mxu0 %v1942
      %2632 = vmatpush1.msra.mxu0 %v1941
      %2633 = vmatprep.subr.mxu0 %v1946
      %2634 = vmatpush1.msra.mxu0 %v1945
      %2635 = vmatprep.subr.mxu0 %v1950
      %2636 = vmatpush1.msra.mxu0 %v1949
      %2637 = vmatprep.subr.mxu0 %v1954
      %2638 = vmatpush1.msra.mxu0 %v1953
      %2639 = vmatprep.subr.mxu0 %v1958
      %2640 = vmatpush1.msra.mxu0 %v1957
      %2641 = vmatprep.subr.mxu0 %v1962
      %2642 = vmatpush1.msra.mxu0 %v1961
      %2643 = vmatprep.subr.mxu0 %v1966
      %2644 = vmatpush1.msra.mxu0 %v1965
      %2645 = vmatprep.subr.mxu0 %v1970
      %2646 = vmatpush1.msra.mxu0 %v1969
      %2647 = vmatprep.subr.mxu0 %v1974
      %2648 = vmatpush1.msra.mxu0 %v1973
      %2649 = vmatprep.subr.mxu0 %v1978
      %2650 = vmatpush1.msra.mxu0 %v1977
      %2651 = vmatprep.subr.mxu0 %v1982
      %2652 = vmatpush1.msra.mxu0 %v1981
      %2653 = vmatprep.subr.mxu0 %v1986
      %2654 = vmatpush1.msra.mxu0 %v1985
      %2655 = vmatprep.subr.mxu0 0.0
      %2656 = vmatpush1.msra.mxu0 0.0
      %2657 = vmatprep.subr.mxu0 0.0
      %2658 = vmatpush1.msra.mxu0 0.0
      %2659 = vmatprep.subr.mxu0 0.0
      %2660 = vmatpush1.msra.mxu0 0.0
      %2661 = vmatprep.subr.mxu0 0.0
      %2662 = vmatpush1.msra.mxu0 0.0
      %2663 = vmatprep.subr.mxu0 0.0
      %2664 = vmatpush1.msra.mxu0 0.0
      %2665 = vmatprep.subr.mxu0 0.0
      %2666 = vmatpush1.msra.mxu0 0.0
      %2667 = vmatprep.subr.mxu0 0.0
      %2668 = vmatpush1.msra.mxu0 0.0
      %2669 = vmatprep.subr.mxu0 0.0
      %2670 = vmatpush1.msra.mxu0 0.0
      %2671 = vmatprep.subr.mxu0 0.0
      %2672 = vmatpush1.msra.mxu0 0.0
      %2673 = vmatprep.subr.mxu0 0.0
      %2674 = vmatpush1.msra.mxu0 0.0
      %2675 = vmatprep.subr.mxu0 0.0
      %2676 = vmatpush1.msra.mxu0 0.0
      %2677 = vmatprep.subr.mxu0 0.0
      %2678 = vmatpush1.msra.mxu0 0.0
      %2679 = vmatprep.mubr.f32.mxu0 %v2533
      %2680 = vmatmul.mubr.f32.gmra.mrb[0].mxu0 %v1903
      %v2681 = vpop.f32.mrb[0].mxu0
      %v2682 = vadd.f32 %v2522, %v2681
      %v2683 = vpop.f32.mrb[0].mxu0
      %v2684 = vadd.f32 %v2524, %v2683
      %2685 = vmatprep.mubr.f32.mxu0 %v2536
      %2686 = vmatmul.mubr.f32.gmra.mrb[0].mxu0 %v1905
      %v2687 = vpop.f32.mrb[0].mxu0
      %v2688 = vadd.f32 %v2528, %v2687
      %v2689 = vpop.f32.mrb[0].mxu0
      %v2690 = vadd.f32 %v2530, %v2689
      %2691 = vdwg.mxu0
      %s2692 = scalar_lea.vmem %s5, 64
      %v2693 = vld [vmem:[%s2692] sm:$0xff]
      %v2694 = vld [vmem:[%s2692 + $0x8] sm:$0xff]
      %v2695 = vld [vmem:[%s2692 + $0x10] sm:$0xff]
      %v2696 = vld [vmem:[%s2692 + $0x18] sm:$0xff]
      %v2697 = vld [vmem:[#allocation3] sm:$0xff]
      %v2698 = vld [vmem:[#allocation3 + $0x8] sm:$0xff]
      %v2699 = vld [vmem:[#allocation3 + $0x10] sm:$0xff]
      %v2700 = vld [vmem:[#allocation3 + $0x18] sm:$0xff]
      %v2701 = vld [vmem:[#allocation3 + $0x20] sm:$0xff]
      %v2702 = vld [vmem:[#allocation3 + $0x30] sm:$0xff]
      %v2703 = vld [vmem:[#allocation3 + $0x38] sm:$0xff]
      %v2704 = vld [vmem:[#allocation3 + $0x40] sm:$0xff]
      %v2705 = vld [vmem:[#allocation3 + $0x48] sm:$0xff]
      %v2706 = vld [vmem:[#allocation3 + $0x50] sm:$0xff]
      %v2707 = vld [vmem:[#allocation3 + $0x60] sm:$0xff]
      %v2708 = vld [vmem:[#allocation3 + $0x68] sm:$0xff]
      %v2709 = vld [vmem:[#allocation3 + $0x70] sm:$0xff]
      %v2710 = vld [vmem:[#allocation3 + $0x78] sm:$0xff]
      %v2711 = vld [vmem:[#allocation3 + $0x80] sm:$0xff]
      %v2712 = vld [vmem:[#allocation3 + $0x90] sm:$0xff]
      %v2713 = vld [vmem:[#allocation3 + $0x98] sm:$0xff]
      %v2714 = vld [vmem:[#allocation3 + $0xa0] sm:$0xff]
      %v2715 = vld [vmem:[#allocation3 + $0xa8] sm:$0xff]
      %v2716 = vld [vmem:[#allocation3 + $0xb0] sm:$0xff]
      %v2717 = vld [vmem:[#allocation3 + $0xc0] sm:$0xff]
      %v2718 = vld [vmem:[#allocation3 + $0xc8] sm:$0xff]
      %v2719 = vld [vmem:[#allocation3 + $0xd0] sm:$0xff]
      %v2720 = vld [vmem:[#allocation3 + $0xd8] sm:$0xff]
      %v2721 = vld [vmem:[#allocation3 + $0xe0] sm:$0xff]
      %v2722 = vld [vmem:[#allocation3 + $0xf0] sm:$0xff]
      %v2723 = vld [vmem:[#allocation3 + $0xf8] sm:$0xff]
      %v2724 = vld [vmem:[#allocation3 + $0x100] sm:$0xff]
      %v2725 = vld [vmem:[#allocation3 + $0x108] sm:$0xff]
      %v2726 = vld [vmem:[#allocation3 + $0x110] sm:$0xff]
      %v2727 = vld [vmem:[#allocation3 + $0x120] sm:$0xff]
      %v2728 = vld [vmem:[#allocation3 + $0x128] sm:$0xff]
      %v2729 = vld [vmem:[#allocation3 + $0x130] sm:$0xff]
      %v2730 = vld [vmem:[#allocation3 + $0x138] sm:$0xff]
      %v2731 = vld [vmem:[#allocation3 + $0x140] sm:$0xff]
      %v2732 = vld [vmem:[#allocation3 + $0x150] sm:$0xff]
      %v2733 = vld [vmem:[#allocation3 + $0x158] sm:$0xff]
      %v2734 = vld [vmem:[#allocation3 + $0x160] sm:$0xff]
      %v2735 = vld [vmem:[#allocation3 + $0x168] sm:$0xff]
      %v2736 = vld [vmem:[#allocation3 + $0x170] sm:$0xff]
      %v2737 = vld [vmem:[#allocation3 + $0x180] sm:$0xff]
      %v2738 = vld [vmem:[#allocation3 + $0x188] sm:$0xff]
      %v2739 = vld [vmem:[#allocation3 + $0x190] sm:$0xff]
      %v2740 = vld [vmem:[#allocation3 + $0x198] sm:$0xff]
      %v2741 = vld [vmem:[#allocation3 + $0x1a0] sm:$0xff]
      %v2742 = vld [vmem:[#allocation3 + $0x1b0] sm:$0xff]
      %v2743 = vld [vmem:[#allocation3 + $0x1b8] sm:$0xff]
      %v2744 = vld [vmem:[#allocation3 + $0x1c0] sm:$0xff]
      %v2745 = vld [vmem:[#allocation3 + $0x1c8] sm:$0xff]
      %v2746 = vld [vmem:[#allocation3 + $0x1d0] sm:$0xff]
      %v2747 = vld [vmem:[#allocation3 + $0x1e0] sm:$0xff]
      %v2748 = vld [vmem:[#allocation3 + $0x1e8] sm:$0xff]
      %v2749 = vld [vmem:[#allocation3 + $0x1f0] sm:$0xff]
      %v2750 = vld [vmem:[#allocation3 + $0x1f8] sm:$0xff]
      %v2751 = vld [vmem:[#allocation3 + $0x200] sm:$0xff]
      %v2752 = vld [vmem:[#allocation3 + $0x210] sm:$0xff]
      %v2753 = vld [vmem:[#allocation3 + $0x218] sm:$0xff]
      %v2754 = vld [vmem:[#allocation3 + $0x220] sm:$0xff]
      %v2755 = vld [vmem:[#allocation3 + $0x228] sm:$0xff]
      %v2756 = vld [vmem:[#allocation3 + $0x230] sm:$0xff]
      %v2757 = vld [vmem:[#allocation3 + $0x240] sm:$0xff]
      %v2758 = vld [vmem:[#allocation3 + $0x248] sm:$0xff]
      %v2759 = vld [vmem:[#allocation3 + $0x250] sm:$0xff]
      %v2760 = vld [vmem:[#allocation3 + $0x258] sm:$0xff]
      %v2761 = vld [vmem:[#allocation3 + $0x260] sm:$0xff]
      %v2762 = vld [vmem:[#allocation3 + $0x270] sm:$0xff]
      %v2763 = vld [vmem:[#allocation3 + $0x278] sm:$0xff]
      %v2764 = vld [vmem:[#allocation3 + $0x280] sm:$0xff]
      %v2765 = vld [vmem:[#allocation3 + $0x288] sm:$0xff]
      %v2766 = vld [vmem:[#allocation3 + $0x290] sm:$0xff]
      %v2767 = vld [vmem:[#allocation3 + $0x2a0] sm:$0xff]
      %v2768 = vld [vmem:[#allocation3 + $0x2a8] sm:$0xff]
      %v2769 = vld [vmem:[#allocation3 + $0x2b0] sm:$0xff]
      %v2770 = vld [vmem:[#allocation3 + $0x2b8] sm:$0xff]
      %v2771 = vld [vmem:[#allocation3 + $0x2c0] sm:$0xff]
      %v2772 = vld [vmem:[#allocation3 + $0x2d0] sm:$0xff]
      %v2773 = vld [vmem:[#allocation3 + $0x2d8] sm:$0xff]
      %v2774 = vld [vmem:[#allocation3 + $0x2e0] sm:$0xff]
      %v2775 = vld [vmem:[#allocation3 + $0x2e8] sm:$0xff]
      %v2776 = vld [vmem:[#allocation3 + $0x2f0] sm:$0xff]
      %v2777 = vld [vmem:[#allocation3 + $0x300] sm:$0xff]
      %v2778 = vld [vmem:[#allocation3 + $0x308] sm:$0xff]
      %v2779 = vld [vmem:[#allocation3 + $0x310] sm:$0xff]
      %v2780 = vld [vmem:[#allocation3 + $0x318] sm:$0xff]
      %v2781 = vld [vmem:[#allocation3 + $0x320] sm:$0xff]
      %v2782 = vld [vmem:[#allocation3 + $0x330] sm:$0xff]
      %v2783 = vld [vmem:[#allocation3 + $0x338] sm:$0xff]
      %v2784 = vld [vmem:[#allocation3 + $0x340] sm:$0xff]
      %v2785 = vld [vmem:[#allocation3 + $0x348] sm:$0xff]
      %v2786 = vld [vmem:[#allocation3 + $0x350] sm:$0xff]
      %v2787 = vld [vmem:[#allocation3 + $0x360] sm:$0xff]
      %v2788 = vld [vmem:[#allocation3 + $0x368] sm:$0xff]
      %v2789 = vld [vmem:[#allocation3 + $0x370] sm:$0xff]
      %v2790 = vld [vmem:[#allocation3 + $0x378] sm:$0xff]
      %v2791 = vld [vmem:[#allocation3 + $0x380] sm:$0xff]
      %v2792 = vld [vmem:[#allocation3 + $0x390] sm:$0xff]
      %v2793 = vld [vmem:[#allocation3 + $0x398] sm:$0xff]
      %v2794 = vld [vmem:[#allocation3 + $0x3a0] sm:$0xff]
      %v2795 = vld [vmem:[#allocation3 + $0x3a8] sm:$0xff]
      %v2796 = vld [vmem:[#allocation3 + $0x3b0] sm:$0xff]
      %2897 = vrot.lane.b32.xlu0 %v2697, 64
      %v2898 = vpop.permute.xlu0 %2897
      %2899 = vrot.lane.b32.xlu0 %v2698, 64
      %v2900 = vpop.permute.xlu0 %2899
      %2901 = vrot.lane.b32.xlu0 %v2699, 64
      %v2902 = vpop.permute.xlu0 %2901
      %2903 = vrot.lane.b32.xlu0 %v2700, 64
      %v2904 = vpop.permute.xlu0 %2903
      %2905 = vrot.lane.b32.xlu0 %v2701, 64
      %v2906 = vpop.permute.xlu0 %2905
      %2907 = vrot.lane.b32.xlu0 %v2702, 64
      %v2908 = vpop.permute.xlu0 %2907
      %2909 = vrot.lane.b32.xlu0 %v2703, 64
      %v2910 = vpop.permute.xlu0 %2909
      %2911 = vrot.lane.b32.xlu0 %v2704, 64
      %v2912 = vpop.permute.xlu0 %2911
      %2913 = vrot.lane.b32.xlu0 %v2705, 64
      %v2914 = vpop.permute.xlu0 %2913
      %2915 = vrot.lane.b32.xlu0 %v2706, 64
      %v2916 = vpop.permute.xlu0 %2915
      %2917 = vrot.lane.b32.xlu0 %v2707, 64
      %v2918 = vpop.permute.xlu0 %2917
      %2919 = vrot.lane.b32.xlu0 %v2708, 64
      %v2920 = vpop.permute.xlu0 %2919
      %2921 = vrot.lane.b32.xlu0 %v2709, 64
      %v2922 = vpop.permute.xlu0 %2921
      %2923 = vrot.lane.b32.xlu0 %v2710, 64
      %v2924 = vpop.permute.xlu0 %2923
      %2925 = vrot.lane.b32.xlu0 %v2711, 64
      %v2926 = vpop.permute.xlu0 %2925
      %2927 = vrot.lane.b32.xlu0 %v2712, 64
      %v2928 = vpop.permute.xlu0 %2927
      %2929 = vrot.lane.b32.xlu0 %v2713, 64
      %v2930 = vpop.permute.xlu0 %2929
      %2931 = vrot.lane.b32.xlu0 %v2714, 64
      %v2932 = vpop.permute.xlu0 %2931
      %2933 = vrot.lane.b32.xlu0 %v2715, 64
      %v2934 = vpop.permute.xlu0 %2933
      %2935 = vrot.lane.b32.xlu0 %v2716, 64
      %v2936 = vpop.permute.xlu0 %2935
      %2937 = vrot.lane.b32.xlu0 %v2717, 64
      %v2938 = vpop.permute.xlu0 %2937
      %2939 = vrot.lane.b32.xlu0 %v2718, 64
      %v2940 = vpop.permute.xlu0 %2939
      %2941 = vrot.lane.b32.xlu0 %v2719, 64
      %v2942 = vpop.permute.xlu0 %2941
      %2943 = vrot.lane.b32.xlu0 %v2720, 64
      %v2944 = vpop.permute.xlu0 %2943
      %2945 = vrot.lane.b32.xlu0 %v2721, 64
      %v2946 = vpop.permute.xlu0 %2945
      %2947 = vrot.lane.b32.xlu0 %v2722, 64
      %v2948 = vpop.permute.xlu0 %2947
      %2949 = vrot.lane.b32.xlu0 %v2723, 64
      %v2950 = vpop.permute.xlu0 %2949
      %2951 = vrot.lane.b32.xlu0 %v2724, 64
      %v2952 = vpop.permute.xlu0 %2951
      %2953 = vrot.lane.b32.xlu0 %v2725, 64
      %v2954 = vpop.permute.xlu0 %2953
      %2955 = vrot.lane.b32.xlu0 %v2726, 64
      %v2956 = vpop.permute.xlu0 %2955
      %2957 = vrot.lane.b32.xlu0 %v2727, 64
      %v2958 = vpop.permute.xlu0 %2957
      %2959 = vrot.lane.b32.xlu0 %v2728, 64
      %v2960 = vpop.permute.xlu0 %2959
      %2961 = vrot.lane.b32.xlu0 %v2729, 64
      %v2962 = vpop.permute.xlu0 %2961
      %2963 = vrot.lane.b32.xlu0 %v2730, 64
      %v2964 = vpop.permute.xlu0 %2963
      %2965 = vrot.lane.b32.xlu0 %v2731, 64
      %v2966 = vpop.permute.xlu0 %2965
      %2967 = vrot.lane.b32.xlu0 %v2732, 64
      %v2968 = vpop.permute.xlu0 %2967
      %2969 = vrot.lane.b32.xlu0 %v2733, 64
      %v2970 = vpop.permute.xlu0 %2969
      %2971 = vrot.lane.b32.xlu0 %v2734, 64
      %v2972 = vpop.permute.xlu0 %2971
      %2973 = vrot.lane.b32.xlu0 %v2735, 64
      %v2974 = vpop.permute.xlu0 %2973
      %2975 = vrot.lane.b32.xlu0 %v2736, 64
      %v2976 = vpop.permute.xlu0 %2975
      %2977 = vrot.lane.b32.xlu0 %v2737, 64
      %v2978 = vpop.permute.xlu0 %2977
      %2979 = vrot.lane.b32.xlu0 %v2738, 64
      %v2980 = vpop.permute.xlu0 %2979
      %2981 = vrot.lane.b32.xlu0 %v2739, 64
      %v2982 = vpop.permute.xlu0 %2981
      %2983 = vrot.lane.b32.xlu0 %v2740, 64
      %v2984 = vpop.permute.xlu0 %2983
      %2985 = vrot.lane.b32.xlu0 %v2741, 64
      %v2986 = vpop.permute.xlu0 %2985
      %2987 = vrot.lane.b32.xlu0 %v2742, 64
      %v2988 = vpop.permute.xlu0 %2987
      %2989 = vrot.lane.b32.xlu0 %v2743, 64
      %v2990 = vpop.permute.xlu0 %2989
      %2991 = vrot.lane.b32.xlu0 %v2744, 64
      %v2992 = vpop.permute.xlu0 %2991
      %2993 = vrot.lane.b32.xlu0 %v2745, 64
      %v2994 = vpop.permute.xlu0 %2993
      %2995 = vrot.lane.b32.xlu0 %v2746, 64
      %v2996 = vpop.permute.xlu0 %2995
      %2997 = vrot.lane.b32.xlu0 %v2747, 64
      %v2998 = vpop.permute.xlu0 %2997
      %2999 = vrot.lane.b32.xlu0 %v2748, 64
      %v3000 = vpop.permute.xlu0 %2999
      %3001 = vrot.lane.b32.xlu0 %v2749, 64
      %v3002 = vpop.permute.xlu0 %3001
      %3003 = vrot.lane.b32.xlu0 %v2750, 64
      %v3004 = vpop.permute.xlu0 %3003
      %3005 = vrot.lane.b32.xlu0 %v2751, 64
      %v3006 = vpop.permute.xlu0 %3005
      %3007 = vrot.lane.b32.xlu0 %v2752, 64
      %v3008 = vpop.permute.xlu0 %3007
      %3009 = vrot.lane.b32.xlu0 %v2753, 64
      %v3010 = vpop.permute.xlu0 %3009
      %3011 = vrot.lane.b32.xlu0 %v2754, 64
      %v3012 = vpop.permute.xlu0 %3011
      %3013 = vrot.lane.b32.xlu0 %v2755, 64
      %v3014 = vpop.permute.xlu0 %3013
      %3015 = vrot.lane.b32.xlu0 %v2756, 64
      %v3016 = vpop.permute.xlu0 %3015
      %3017 = vrot.lane.b32.xlu0 %v2757, 64
      %v3018 = vpop.permute.xlu0 %3017
      %3019 = vrot.lane.b32.xlu0 %v2758, 64
      %v3020 = vpop.permute.xlu0 %3019
      %3021 = vrot.lane.b32.xlu0 %v2759, 64
      %v3022 = vpop.permute.xlu0 %3021
      %3023 = vrot.lane.b32.xlu0 %v2760, 64
      %v3024 = vpop.permute.xlu0 %3023
      %3025 = vrot.lane.b32.xlu0 %v2761, 64
      %v3026 = vpop.permute.xlu0 %3025
      %3027 = vrot.lane.b32.xlu0 %v2762, 64
      %v3028 = vpop.permute.xlu0 %3027
      %3029 = vrot.lane.b32.xlu0 %v2763, 64
      %v3030 = vpop.permute.xlu0 %3029
      %3031 = vrot.lane.b32.xlu0 %v2764, 64
      %v3032 = vpop.permute.xlu0 %3031
      %3033 = vrot.lane.b32.xlu0 %v2765, 64
      %v3034 = vpop.permute.xlu0 %3033
      %3035 = vrot.lane.b32.xlu0 %v2766, 64
      %v3036 = vpop.permute.xlu0 %3035
      %3037 = vrot.lane.b32.xlu0 %v2767, 64
      %v3038 = vpop.permute.xlu0 %3037
      %3039 = vrot.lane.b32.xlu0 %v2768, 64
      %v3040 = vpop.permute.xlu0 %3039
      %3041 = vrot.lane.b32.xlu0 %v2769, 64
      %v3042 = vpop.permute.xlu0 %3041
      %3043 = vrot.lane.b32.xlu0 %v2770, 64
      %v3044 = vpop.permute.xlu0 %3043
      %3045 = vrot.lane.b32.xlu0 %v2771, 64
      %v3046 = vpop.permute.xlu0 %3045
      %3047 = vrot.lane.b32.xlu0 %v2772, 64
      %v3048 = vpop.permute.xlu0 %3047
      %3049 = vrot.lane.b32.xlu0 %v2773, 64
      %v3050 = vpop.permute.xlu0 %3049
      %3051 = vrot.lane.b32.xlu0 %v2774, 64
      %v3052 = vpop.permute.xlu0 %3051
      %3053 = vrot.lane.b32.xlu0 %v2775, 64
      %v3054 = vpop.permute.xlu0 %3053
      %3055 = vrot.lane.b32.xlu0 %v2776, 64
      %v3056 = vpop.permute.xlu0 %3055
      %3057 = vrot.lane.b32.xlu0 %v2777, 64
      %v3058 = vpop.permute.xlu0 %3057
      %3059 = vrot.lane.b32.xlu0 %v2778, 64
      %v3060 = vpop.permute.xlu0 %3059
      %3061 = vrot.lane.b32.xlu0 %v2779, 64
      %v3062 = vpop.permute.xlu0 %3061
      %3063 = vrot.lane.b32.xlu0 %v2780, 64
      %v3064 = vpop.permute.xlu0 %3063
      %3065 = vrot.lane.b32.xlu0 %v2781, 64
      %v3066 = vpop.permute.xlu0 %3065
      %3067 = vrot.lane.b32.xlu0 %v2782, 64
      %v3068 = vpop.permute.xlu0 %3067
      %3069 = vrot.lane.b32.xlu0 %v2783, 64
      %v3070 = vpop.permute.xlu0 %3069
      %3071 = vrot.lane.b32.xlu0 %v2784, 64
      %v3072 = vpop.permute.xlu0 %3071
      %3073 = vrot.lane.b32.xlu0 %v2785, 64
      %v3074 = vpop.permute.xlu0 %3073
      %3075 = vrot.lane.b32.xlu0 %v2786, 64
      %v3076 = vpop.permute.xlu0 %3075
      %3077 = vrot.lane.b32.xlu0 %v2787, 64
      %v3078 = vpop.permute.xlu0 %3077
      %3079 = vrot.lane.b32.xlu0 %v2788, 64
      %v3080 = vpop.permute.xlu0 %3079
      %3081 = vrot.lane.b32.xlu0 %v2789, 64
      %v3082 = vpop.permute.xlu0 %3081
      %3083 = vrot.lane.b32.xlu0 %v2790, 64
      %v3084 = vpop.permute.xlu0 %3083
      %3085 = vrot.lane.b32.xlu0 %v2791, 64
      %v3086 = vpop.permute.xlu0 %3085
      %3087 = vrot.lane.b32.xlu0 %v2792, 64
      %v3088 = vpop.permute.xlu0 %3087
      %3089 = vrot.lane.b32.xlu0 %v2793, 64
      %v3090 = vpop.permute.xlu0 %3089
      %3091 = vrot.lane.b32.xlu0 %v2794, 64
      %v3092 = vpop.permute.xlu0 %3091
      %3093 = vrot.lane.b32.xlu0 %v2795, 64
      %v3094 = vpop.permute.xlu0 %3093
      %3095 = vrot.lane.b32.xlu0 %v2796, 64
      %v3096 = vpop.permute.xlu0 %3095
      %v3097 = vsel %vm717, %v2898, %v2900
      %v3098 = vsel %vm717, %v2900, %v2902
      %v3099 = vsel %vm717, %v2902, %v2904
      %v3100 = vsel %vm717, %v2904, %v2906
      %v3101 = vsel %vm717, %v2908, %v2910
      %v3102 = vsel %vm717, %v2910, %v2912
      %v3103 = vsel %vm717, %v2912, %v2914
      %v3104 = vsel %vm717, %v2914, %v2916
      %v3105 = vsel %vm717, %v2918, %v2920
      %v3106 = vsel %vm717, %v2920, %v2922
      %v3107 = vsel %vm717, %v2922, %v2924
      %v3108 = vsel %vm717, %v2924, %v2926
      %v3109 = vsel %vm717, %v2928, %v2930
      %v3110 = vsel %vm717, %v2930, %v2932
      %v3111 = vsel %vm717, %v2932, %v2934
      %v3112 = vsel %vm717, %v2934, %v2936
      %v3113 = vsel %vm717, %v2938, %v2940
      %v3114 = vsel %vm717, %v2940, %v2942
      %v3115 = vsel %vm717, %v2942, %v2944
      %v3116 = vsel %vm717, %v2944, %v2946
      %v3117 = vsel %vm717, %v2948, %v2950
      %v3118 = vsel %vm717, %v2950, %v2952
      %v3119 = vsel %vm717, %v2952, %v2954
      %v3120 = vsel %vm717, %v2954, %v2956
      %v3121 = vsel %vm717, %v2958, %v2960
      %v3122 = vsel %vm717, %v2960, %v2962
      %v3123 = vsel %vm717, %v2962, %v2964
      %v3124 = vsel %vm717, %v2964, %v2966
      %v3125 = vsel %vm717, %v2968, %v2970
      %v3126 = vsel %vm717, %v2970, %v2972
      %v3127 = vsel %vm717, %v2972, %v2974
      %v3128 = vsel %vm717, %v2974, %v2976
      %v3129 = vsel %vm717, %v2978, %v2980
      %v3130 = vsel %vm717, %v2980, %v2982
      %v3131 = vsel %vm717, %v2982, %v2984
      %v3132 = vsel %vm717, %v2984, %v2986
      %v3133 = vsel %vm717, %v2988, %v2990
      %v3134 = vsel %vm717, %v2990, %v2992
      %v3135 = vsel %vm717, %v2992, %v2994
      %v3136 = vsel %vm717, %v2994, %v2996
      %v3137 = vsel %vm717, %v2998, %v3000
      %v3138 = vsel %vm717, %v3000, %v3002
      %v3139 = vsel %vm717, %v3002, %v3004
      %v3140 = vsel %vm717, %v3004, %v3006
      %v3141 = vsel %vm717, %v3008, %v3010
      %v3142 = vsel %vm717, %v3010, %v3012
      %v3143 = vsel %vm717, %v3012, %v3014
      %v3144 = vsel %vm717, %v3014, %v3016
      %v3145 = vsel %vm717, %v3018, %v3020
      %v3146 = vsel %vm717, %v3020, %v3022
      %v3147 = vsel %vm717, %v3022, %v3024
      %v3148 = vsel %vm717, %v3024, %v3026
      %v3149 = vsel %vm717, %v3028, %v3030
      %v3150 = vsel %vm717, %v3030, %v3032
      %v3151 = vsel %vm717, %v3032, %v3034
      %v3152 = vsel %vm717, %v3034, %v3036
      %v3153 = vsel %vm717, %v3038, %v3040
      %v3154 = vsel %vm717, %v3040, %v3042
      %v3155 = vsel %vm717, %v3042, %v3044
      %v3156 = vsel %vm717, %v3044, %v3046
      %v3157 = vsel %vm717, %v3048, %v3050
      %v3158 = vsel %vm717, %v3050, %v3052
      %v3159 = vsel %vm717, %v3052, %v3054
      %v3160 = vsel %vm717, %v3054, %v3056
      %v3161 = vsel %vm717, %v3058, %v3060
      %v3162 = vsel %vm717, %v3060, %v3062
      %v3163 = vsel %vm717, %v3062, %v3064
      %v3164 = vsel %vm717, %v3064, %v3066
      %v3165 = vsel %vm717, %v3068, %v3070
      %v3166 = vsel %vm717, %v3070, %v3072
      %v3167 = vsel %vm717, %v3072, %v3074
      %v3168 = vsel %vm717, %v3074, %v3076
      %v3169 = vsel %vm717, %v3078, %v3080
      %v3170 = vsel %vm717, %v3080, %v3082
      %v3171 = vsel %vm717, %v3082, %v3084
      %v3172 = vsel %vm717, %v3084, %v3086
      %v3173 = vsel %vm717, %v3088, %v3090
      %v3174 = vsel %vm717, %v3090, %v3092
      %v3175 = vsel %vm717, %v3092, %v3094
      %v3176 = vsel %vm717, %v3094, %v3096
      %v3258 = vsel %vm963, %v2694, 0
      %v3261 = vsel %vm963, %v2696, 0
      %3263 = vmatprep.subr.mxu0 %v3098
      %3264 = vmatpush1.msra.mxu0 %v3097
      %3265 = vmatprep.subr.mxu0 %v3102
      %3266 = vmatpush1.msra.mxu0 %v3101
      %3267 = vmatprep.subr.mxu0 %v3106
      %3268 = vmatpush1.msra.mxu0 %v3105
      %3269 = vmatprep.subr.mxu0 %v3110
      %3270 = vmatpush1.msra.mxu0 %v3109
      %3271 = vmatprep.subr.mxu0 %v3114
      %3272 = vmatpush1.msra.mxu0 %v3113
      %3273 = vmatprep.subr.mxu0 %v3118
      %3274 = vmatpush1.msra.mxu0 %v3117
      %3275 = vmatprep.subr.mxu0 %v3122
      %3276 = vmatpush1.msra.mxu0 %v3121
      %3277 = vmatprep.subr.mxu0 %v3126
      %3278 = vmatpush1.msra.mxu0 %v3125
      %3279 = vmatprep.subr.mxu0 %v3130
      %3280 = vmatpush1.msra.mxu0 %v3129
      %3281 = vmatprep.subr.mxu0 %v3134
      %3282 = vmatpush1.msra.mxu0 %v3133
      %3283 = vmatprep.subr.mxu0 %v3138
      %3284 = vmatpush1.msra.mxu0 %v3137
      %3285 = vmatprep.subr.mxu0 %v3142
      %3286 = vmatpush1.msra.mxu0 %v3141
      %3287 = vmatprep.subr.mxu0 %v3146
      %3288 = vmatpush1.msra.mxu0 %v3145
      %3289 = vmatprep.subr.mxu0 %v3150
      %3290 = vmatpush1.msra.mxu0 %v3149
      %3291 = vmatprep.subr.mxu0 %v3154
      %3292 = vmatpush1.msra.mxu0 %v3153
      %3293 = vmatprep.subr.mxu0 %v3158
      %3294 = vmatpush1.msra.mxu0 %v3157
      %3295 = vmatprep.subr.mxu0 %v3162
      %3296 = vmatpush1.msra.mxu0 %v3161
      %3297 = vmatprep.subr.mxu0 %v3166
      %3298 = vmatpush1.msra.mxu0 %v3165
      %3299 = vmatprep.subr.mxu0 %v3170
      %3300 = vmatpush1.msra.mxu0 %v3169
      %3301 = vmatprep.subr.mxu0 %v3174
      %3302 = vmatpush1.msra.mxu0 %v3173
      %3303 = vmatprep.subr.mxu0 0.0
      %3304 = vmatpush1.msra.mxu0 0.0
      %3305 = vmatprep.subr.mxu0 0.0
      %3306 = vmatpush1.msra.mxu0 0.0
      %3307 = vmatprep.subr.mxu0 0.0
      %3308 = vmatpush1.msra.mxu0 0.0
      %3309 = vmatprep.subr.mxu0 0.0
      %3310 = vmatpush1.msra.mxu0 0.0
      %3311 = vmatprep.subr.mxu0 0.0
      %3312 = vmatpush1.msra.mxu0 0.0
      %3313 = vmatprep.subr.mxu0 0.0
      %3314 = vmatpush1.msra.mxu0 0.0
      %3315 = vmatprep.subr.mxu0 0.0
      %3316 = vmatpush1.msra.mxu0 0.0
      %3317 = vmatprep.subr.mxu0 0.0
      %3318 = vmatpush1.msra.mxu0 0.0
      %3319 = vmatprep.subr.mxu0 0.0
      %3320 = vmatpush1.msra.mxu0 0.0
      %3321 = vmatprep.subr.mxu0 0.0
      %3322 = vmatpush1.msra.mxu0 0.0
      %3323 = vmatprep.subr.mxu0 0.0
      %3324 = vmatpush1.msra.mxu0 0.0
      %3325 = vmatprep.subr.mxu0 0.0
      %3326 = vmatpush1.msra.mxu0 0.0
      %3327 = vmatprep.mubr.f32.mxu0 %v3258
      %3328 = vmatmul.mubr.f32.gmra.mrb[0].mxu0 %v2693
      %v3329 = vpop.f32.mrb[0].mxu0
      %v3330 = vadd.f32 0.0, %v3329
      %v3331 = vpop.f32.mrb[0].mxu0
      %v3332 = vadd.f32 0.0, %v3331
      %3333 = vmatprep.mubr.f32.mxu0 %v3261
      %3334 = vmatmul.mubr.f32.gmra.mrb[0].mxu0 %v2695
      %v3335 = vpop.f32.mrb[0].mxu0
      %v3336 = vadd.f32 0.0, %v3335
      %v3337 = vpop.f32.mrb[0].mxu0
      %v3338 = vadd.f32 0.0, %v3337
      %3339 = vdwg.mxu0
      %3340 = vmatprep.subr.mxu0 %v3100
      %3341 = vmatpush1.msra.mxu0 %v3099
      %3342 = vmatprep.subr.mxu0 %v3104
      %3343 = vmatpush1.msra.mxu0 %v3103
      %3344 = vmatprep.subr.mxu0 %v3108
      %3345 = vmatpush1.msra.mxu0 %v3107
      %3346 = vmatprep.subr.mxu0 %v3112
      %3347 = vmatpush1.msra.mxu0 %v3111
      %3348 = vmatprep.subr.mxu0 %v3116
      %3349 = vmatpush1.msra.mxu0 %v3115
      %3350 = vmatprep.subr.mxu0 %v3120
      %3351 = vmatpush1.msra.mxu0 %v3119
      %3352 = vmatprep.subr.mxu0 %v3124
      %3353 = vmatpush1.msra.mxu0 %v3123
      %3354 = vmatprep.subr.mxu0 %v3128
      %3355 = vmatpush1.msra.mxu0 %v3127
      %3356 = vmatprep.subr.mxu0 %v3132
      %3357 = vmatpush1.msra.mxu0 %v3131
      %3358 = vmatprep.subr.mxu0 %v3136
      %3359 = vmatpush1.msra.mxu0 %v3135
      %3360 = vmatprep.subr.mxu0 %v3140
      %3361 = vmatpush1.msra.mxu0 %v3139
      %3362 = vmatprep.subr.mxu0 %v3144
      %3363 = vmatpush1.msra.mxu0 %v3143
      %3364 = vmatprep.subr.mxu0 %v3148
      %3365 = vmatpush1.msra.mxu0 %v3147
      %3366 = vmatprep.subr.mxu0 %v3152
      %3367 = vmatpush1.msra.mxu0 %v3151
      %3368 = vmatprep.subr.mxu0 %v3156
      %3369 = vmatpush1.msra.mxu0 %v3155
      %3370 = vmatprep.subr.mxu0 %v3160
      %3371 = vmatpush1.msra.mxu0 %v3159
      %3372 = vmatprep.subr.mxu0 %v3164
      %3373 = vmatpush1.msra.mxu0 %v3163
      %3374 = vmatprep.subr.mxu0 %v3168
      %3375 = vmatpush1.msra.mxu0 %v3167
      %3376 = vmatprep.subr.mxu0 %v3172
      %3377 = vmatpush1.msra.mxu0 %v3171
      %3378 = vmatprep.subr.mxu0 %v3176
      %3379 = vmatpush1.msra.mxu0 %v3175
      %3380 = vmatprep.subr.mxu0 0.0
      %3381 = vmatpush1.msra.mxu0 0.0
      %3382 = vmatprep.subr.mxu0 0.0
      %3383 = vmatpush1.msra.mxu0 0.0
      %3384 = vmatprep.subr.mxu0 0.0
      %3385 = vmatpush1.msra.mxu0 0.0
      %3386 = vmatprep.subr.mxu0 0.0
      %3387 = vmatpush1.msra.mxu0 0.0
      %3388 = vmatprep.subr.mxu0 0.0
      %3389 = vmatpush1.msra.mxu0 0.0
      %3390 = vmatprep.subr.mxu0 0.0
      %3391 = vmatpush1.msra.mxu0 0.0
      %3392 = vmatprep.subr.mxu0 0.0
      %3393 = vmatpush1.msra.mxu0 0.0
      %3394 = vmatprep.subr.mxu0 0.0
      %3395 = vmatpush1.msra.mxu0 0.0
      %3396 = vmatprep.subr.mxu0 0.0
      %3397 = vmatpush1.msra.mxu0 0.0
      %3398 = vmatprep.subr.mxu0 0.0
      %3399 = vmatpush1.msra.mxu0 0.0
      %3400 = vmatprep.subr.mxu0 0.0
      %3401 = vmatpush1.msra.mxu0 0.0
      %3402 = vmatprep.subr.mxu0 0.0
      %3403 = vmatpush1.msra.mxu0 0.0
      %3404 = vmatprep.mubr.f32.mxu0 %v3258
      %3405 = vmatmul.mubr.f32.gmra.mrb[0].mxu0 %v2693
      %v3406 = vpop.f32.mrb[0].mxu0
      %v3407 = vadd.f32 0.0, %v3406
      %v3408 = vpop.f32.mrb[0].mxu0
      %v3409 = vadd.f32 0.0, %v3408
      %3410 = vmatprep.mubr.f32.mxu0 %v3261
      %3411 = vmatmul.mubr.f32.gmra.mrb[0].mxu0 %v2695
      %v3412 = vpop.f32.mrb[0].mxu0
      %v3413 = vadd.f32 0.0, %v3412
      %v3414 = vpop.f32.mrb[0].mxu0
      %v3415 = vadd.f32 0.0, %v3414
      %3416 = vdwg.mxu0
      %v3417 = vadd.f32 %v2605, %v3330
      %v3418 = vadd.f32 %v2607, %v3332
      %v3419 = vadd.f32 %v2682, %v3407
      %v3420 = vadd.f32 %v2684, %v3409
      %v3421 = vadd.f32 %v2611, %v3336
      %v3422 = vadd.f32 %v2613, %v3338
      %v3423 = vadd.f32 %v2688, %v3413
      %v3424 = vadd.f32 %v2690, %v3415
      %s3425 = scalar_lea.vmem %s5, 96
      %v3426 = vld [vmem:[%s3425] sm:$0xff]
      %v3427 = vld [vmem:[%s3425 + $0x8] sm:$0xff]
      %v3428 = vld [vmem:[%s3425 + $0x10] sm:$0xff]
      %v3429 = vld [vmem:[%s3425 + $0x18] sm:$0xff]
      %3430 = vrot.lane.b32.xlu0 %v2697, 32
      %v3431 = vpop.permute.xlu0 %3430
      %3432 = vrot.lane.b32.xlu0 %v2698, 32
      %v3433 = vpop.permute.xlu0 %3432
      %3434 = vrot.lane.b32.xlu0 %v2699, 32
      %v3435 = vpop.permute.xlu0 %3434
      %3436 = vrot.lane.b32.xlu0 %v2700, 32
      %v3437 = vpop.permute.xlu0 %3436
      %3438 = vrot.lane.b32.xlu0 %v2701, 32
      %v3439 = vpop.permute.xlu0 %3438
      %3440 = vrot.lane.b32.xlu0 %v2702, 32
      %v3441 = vpop.permute.xlu0 %3440
      %3442 = vrot.lane.b32.xlu0 %v2703, 32
      %v3443 = vpop.permute.xlu0 %3442
      %3444 = vrot.lane.b32.xlu0 %v2704, 32
      %v3445 = vpop.permute.xlu0 %3444
      %3446 = vrot.lane.b32.xlu0 %v2705, 32
      %v3447 = vpop.permute.xlu0 %3446
      %3448 = vrot.lane.b32.xlu0 %v2706, 32
      %v3449 = vpop.permute.xlu0 %3448
      %3450 = vrot.lane.b32.xlu0 %v2707, 32
      %v3451 = vpop.permute.xlu0 %3450
      %3452 = vrot.lane.b32.xlu0 %v2708, 32
      %v3453 = vpop.permute.xlu0 %3452
      %3454 = vrot.lane.b32.xlu0 %v2709, 32
      %v3455 = vpop.permute.xlu0 %3454
      %3456 = vrot.lane.b32.xlu0 %v2710, 32
      %v3457 = vpop.permute.xlu0 %3456
      %3458 = vrot.lane.b32.xlu0 %v2711, 32
      %v3459 = vpop.permute.xlu0 %3458
      %3460 = vrot.lane.b32.xlu0 %v2712, 32
      %v3461 = vpop.permute.xlu0 %3460
      %3462 = vrot.lane.b32.xlu0 %v2713, 32
      %v3463 = vpop.permute.xlu0 %3462
      %3464 = vrot.lane.b32.xlu0 %v2714, 32
      %v3465 = vpop.permute.xlu0 %3464
      %3466 = vrot.lane.b32.xlu0 %v2715, 32
      %v3467 = vpop.permute.xlu0 %3466
      %3468 = vrot.lane.b32.xlu0 %v2716, 32
      %v3469 = vpop.permute.xlu0 %3468
      %3470 = vrot.lane.b32.xlu0 %v2717, 32
      %v3471 = vpop.permute.xlu0 %3470
      %3472 = vrot.lane.b32.xlu0 %v2718, 32
      %v3473 = vpop.permute.xlu0 %3472
      %3474 = vrot.lane.b32.xlu0 %v2719, 32
      %v3475 = vpop.permute.xlu0 %3474
      %3476 = vrot.lane.b32.xlu0 %v2720, 32
      %v3477 = vpop.permute.xlu0 %3476
      %3478 = vrot.lane.b32.xlu0 %v2721, 32
      %v3479 = vpop.permute.xlu0 %3478
      %3480 = vrot.lane.b32.xlu0 %v2722, 32
      %v3481 = vpop.permute.xlu0 %3480
      %3482 = vrot.lane.b32.xlu0 %v2723, 32
      %v3483 = vpop.permute.xlu0 %3482
      %3484 = vrot.lane.b32.xlu0 %v2724, 32
      %v3485 = vpop.permute.xlu0 %3484
      %3486 = vrot.lane.b32.xlu0 %v2725, 32
      %v3487 = vpop.permute.xlu0 %3486
      %3488 = vrot.lane.b32.xlu0 %v2726, 32
      %v3489 = vpop.permute.xlu0 %3488
      %3490 = vrot.lane.b32.xlu0 %v2727, 32
      %v3491 = vpop.permute.xlu0 %3490
      %3492 = vrot.lane.b32.xlu0 %v2728, 32
      %v3493 = vpop.permute.xlu0 %3492
      %3494 = vrot.lane.b32.xlu0 %v2729, 32
      %v3495 = vpop.permute.xlu0 %3494
      %3496 = vrot.lane.b32.xlu0 %v2730, 32
      %v3497 = vpop.permute.xlu0 %3496
      %3498 = vrot.lane.b32.xlu0 %v2731, 32
      %v3499 = vpop.permute.xlu0 %3498
      %3500 = vrot.lane.b32.xlu0 %v2732, 32
      %v3501 = vpop.permute.xlu0 %3500
      %3502 = vrot.lane.b32.xlu0 %v2733, 32
      %v3503 = vpop.permute.xlu0 %3502
      %3504 = vrot.lane.b32.xlu0 %v2734, 32
      %v3505 = vpop.permute.xlu0 %3504
      %3506 = vrot.lane.b32.xlu0 %v2735, 32
      %v3507 = vpop.permute.xlu0 %3506
      %3508 = vrot.lane.b32.xlu0 %v2736, 32
      %v3509 = vpop.permute.xlu0 %3508
      %3510 = vrot.lane.b32.xlu0 %v2737, 32
      %v3511 = vpop.permute.xlu0 %3510
      %3512 = vrot.lane.b32.xlu0 %v2738, 32
      %v3513 = vpop.permute.xlu0 %3512
      %3514 = vrot.lane.b32.xlu0 %v2739, 32
      %v3515 = vpop.permute.xlu0 %3514
      %3516 = vrot.lane.b32.xlu0 %v2740, 32
      %v3517 = vpop.permute.xlu0 %3516
      %3518 = vrot.lane.b32.xlu0 %v2741, 32
      %v3519 = vpop.permute.xlu0 %3518
      %3520 = vrot.lane.b32.xlu0 %v2742, 32
      %v3521 = vpop.permute.xlu0 %3520
      %3522 = vrot.lane.b32.xlu0 %v2743, 32
      %v3523 = vpop.permute.xlu0 %3522
      %3524 = vrot.lane.b32.xlu0 %v2744, 32
      %v3525 = vpop.permute.xlu0 %3524
      %3526 = vrot.lane.b32.xlu0 %v2745, 32
      %v3527 = vpop.permute.xlu0 %3526
      %3528 = vrot.lane.b32.xlu0 %v2746, 32
      %v3529 = vpop.permute.xlu0 %3528
      %3530 = vrot.lane.b32.xlu0 %v2747, 32
      %v3531 = vpop.permute.xlu0 %3530
      %3532 = vrot.lane.b32.xlu0 %v2748, 32
      %v3533 = vpop.permute.xlu0 %3532
      %3534 = vrot.lane.b32.xlu0 %v2749, 32
      %v3535 = vpop.permute.xlu0 %3534
      %3536 = vrot.lane.b32.xlu0 %v2750, 32
      %v3537 = vpop.permute.xlu0 %3536
      %3538 = vrot.lane.b32.xlu0 %v2751, 32
      %v3539 = vpop.permute.xlu0 %3538
      %3540 = vrot.lane.b32.xlu0 %v2752, 32
      %v3541 = vpop.permute.xlu0 %3540
      %3542 = vrot.lane.b32.xlu0 %v2753, 32
      %v3543 = vpop.permute.xlu0 %3542
      %3544 = vrot.lane.b32.xlu0 %v2754, 32
      %v3545 = vpop.permute.xlu0 %3544
      %3546 = vrot.lane.b32.xlu0 %v2755, 32
      %v3547 = vpop.permute.xlu0 %3546
      %3548 = vrot.lane.b32.xlu0 %v2756, 32
      %v3549 = vpop.permute.xlu0 %3548
      %3550 = vrot.lane.b32.xlu0 %v2757, 32
      %v3551 = vpop.permute.xlu0 %3550
      %3552 = vrot.lane.b32.xlu0 %v2758, 32
      %v3553 = vpop.permute.xlu0 %3552
      %3554 = vrot.lane.b32.xlu0 %v2759, 32
      %v3555 = vpop.permute.xlu0 %3554
      %3556 = vrot.lane.b32.xlu0 %v2760, 32
      %v3557 = vpop.permute.xlu0 %3556
      %3558 = vrot.lane.b32.xlu0 %v2761, 32
      %v3559 = vpop.permute.xlu0 %3558
      %3560 = vrot.lane.b32.xlu0 %v2762, 32
      %v3561 = vpop.permute.xlu0 %3560
      %3562 = vrot.lane.b32.xlu0 %v2763, 32
      %v3563 = vpop.permute.xlu0 %3562
      %3564 = vrot.lane.b32.xlu0 %v2764, 32
      %v3565 = vpop.permute.xlu0 %3564
      %3566 = vrot.lane.b32.xlu0 %v2765, 32
      %v3567 = vpop.permute.xlu0 %3566
      %3568 = vrot.lane.b32.xlu0 %v2766, 32
      %v3569 = vpop.permute.xlu0 %3568
      %3570 = vrot.lane.b32.xlu0 %v2767, 32
      %v3571 = vpop.permute.xlu0 %3570
      %3572 = vrot.lane.b32.xlu0 %v2768, 32
      %v3573 = vpop.permute.xlu0 %3572
      %3574 = vrot.lane.b32.xlu0 %v2769, 32
      %v3575 = vpop.permute.xlu0 %3574
      %3576 = vrot.lane.b32.xlu0 %v2770, 32
      %v3577 = vpop.permute.xlu0 %3576
      %3578 = vrot.lane.b32.xlu0 %v2771, 32
      %v3579 = vpop.permute.xlu0 %3578
      %3580 = vrot.lane.b32.xlu0 %v2772, 32
      %v3581 = vpop.permute.xlu0 %3580
      %3582 = vrot.lane.b32.xlu0 %v2773, 32
      %v3583 = vpop.permute.xlu0 %3582
      %3584 = vrot.lane.b32.xlu0 %v2774, 32
      %v3585 = vpop.permute.xlu0 %3584
      %3586 = vrot.lane.b32.xlu0 %v2775, 32
      %v3587 = vpop.permute.xlu0 %3586
      %3588 = vrot.lane.b32.xlu0 %v2776, 32
      %v3589 = vpop.permute.xlu0 %3588
      %3590 = vrot.lane.b32.xlu0 %v2777, 32
      %v3591 = vpop.permute.xlu0 %3590
      %3592 = vrot.lane.b32.xlu0 %v2778, 32
      %v3593 = vpop.permute.xlu0 %3592
      %3594 = vrot.lane.b32.xlu0 %v2779, 32
      %v3595 = vpop.permute.xlu0 %3594
      %3596 = vrot.lane.b32.xlu0 %v2780, 32
      %v3597 = vpop.permute.xlu0 %3596
      %3598 = vrot.lane.b32.xlu0 %v2781, 32
      %v3599 = vpop.permute.xlu0 %3598
      %3600 = vrot.lane.b32.xlu0 %v2782, 32
      %v3601 = vpop.permute.xlu0 %3600
      %3602 = vrot.lane.b32.xlu0 %v2783, 32
      %v3603 = vpop.permute.xlu0 %3602
      %3604 = vrot.lane.b32.xlu0 %v2784, 32
      %v3605 = vpop.permute.xlu0 %3604
      %3606 = vrot.lane.b32.xlu0 %v2785, 32
      %v3607 = vpop.permute.xlu0 %3606
      %3608 = vrot.lane.b32.xlu0 %v2786, 32
      %v3609 = vpop.permute.xlu0 %3608
      %3610 = vrot.lane.b32.xlu0 %v2787, 32
      %v3611 = vpop.permute.xlu0 %3610
      %3612 = vrot.lane.b32.xlu0 %v2788, 32
      %v3613 = vpop.permute.xlu0 %3612
      %3614 = vrot.lane.b32.xlu0 %v2789, 32
      %v3615 = vpop.permute.xlu0 %3614
      %3616 = vrot.lane.b32.xlu0 %v2790, 32
      %v3617 = vpop.permute.xlu0 %3616
      %3618 = vrot.lane.b32.xlu0 %v2791, 32
      %v3619 = vpop.permute.xlu0 %3618
      %3620 = vrot.lane.b32.xlu0 %v2792, 32
      %v3621 = vpop.permute.xlu0 %3620
      %3622 = vrot.lane.b32.xlu0 %v2793, 32
      %v3623 = vpop.permute.xlu0 %3622
      %3624 = vrot.lane.b32.xlu0 %v2794, 32
      %v3625 = vpop.permute.xlu0 %3624
      %3626 = vrot.lane.b32.xlu0 %v2795, 32
      %v3627 = vpop.permute.xlu0 %3626
      %3628 = vrot.lane.b32.xlu0 %v2796, 32
      %v3629 = vpop.permute.xlu0 %3628
      %v3630 = vsel %vm963, %v3431, %v3433
      %v3631 = vsel %vm963, %v3433, %v3435
      %v3632 = vsel %vm963, %v3435, %v3437
      %v3633 = vsel %vm963, %v3437, %v3439
      %v3634 = vsel %vm963, %v3441, %v3443
      %v3635 = vsel %vm963, %v3443, %v3445
      %v3636 = vsel %vm963, %v3445, %v3447
      %v3637 = vsel %vm963, %v3447, %v3449
      %v3638 = vsel %vm963, %v3451, %v3453
      %v3639 = vsel %vm963, %v3453, %v3455
      %v3640 = vsel %vm963, %v3455, %v3457
      %v3641 = vsel %vm963, %v3457, %v3459
      %v3642 = vsel %vm963, %v3461, %v3463
      %v3643 = vsel %vm963, %v3463, %v3465
      %v3644 = vsel %vm963, %v3465, %v3467
      %v3645 = vsel %vm963, %v3467, %v3469
      %v3646 = vsel %vm963, %v3471, %v3473
      %v3647 = vsel %vm963, %v3473, %v3475
      %v3648 = vsel %vm963, %v3475, %v3477
      %v3649 = vsel %vm963, %v3477, %v3479
      %v3650 = vsel %vm963, %v3481, %v3483
      %v3651 = vsel %vm963, %v3483, %v3485
      %v3652 = vsel %vm963, %v3485, %v3487
      %v3653 = vsel %vm963, %v3487, %v3489
      %v3654 = vsel %vm963, %v3491, %v3493
      %v3655 = vsel %vm963, %v3493, %v3495
      %v3656 = vsel %vm963, %v3495, %v3497
      %v3657 = vsel %vm963, %v3497, %v3499
      %v3658 = vsel %vm963, %v3501, %v3503
      %v3659 = vsel %vm963, %v3503, %v3505
      %v3660 = vsel %vm963, %v3505, %v3507
      %v3661 = vsel %vm963, %v3507, %v3509
      %v3662 = vsel %vm963, %v3511, %v3513
      %v3663 = vsel %vm963, %v3513, %v3515
      %v3664 = vsel %vm963, %v3515, %v3517
      %v3665 = vsel %vm963, %v3517, %v3519
      %v3666 = vsel %vm963, %v3521, %v3523
      %v3667 = vsel %vm963, %v3523, %v3525
      %v3668 = vsel %vm963, %v3525, %v3527
      %v3669 = vsel %vm963, %v3527, %v3529
      %v3670 = vsel %vm963, %v3531, %v3533
      %v3671 = vsel %vm963, %v3533, %v3535
      %v3672 = vsel %vm963, %v3535, %v3537
      %v3673 = vsel %vm963, %v3537, %v3539
      %v3674 = vsel %vm963, %v3541, %v3543
      %v3675 = vsel %vm963, %v3543, %v3545
      %v3676 = vsel %vm963, %v3545, %v3547
      %v3677 = vsel %vm963, %v3547, %v3549
      %v3678 = vsel %vm963, %v3551, %v3553
      %v3679 = vsel %vm963, %v3553, %v3555
      %v3680 = vsel %vm963, %v3555, %v3557
      %v3681 = vsel %vm963, %v3557, %v3559
      %v3682 = vsel %vm963, %v3561, %v3563
      %v3683 = vsel %vm963, %v3563, %v3565
      %v3684 = vsel %vm963, %v3565, %v3567
      %v3685 = vsel %vm963, %v3567, %v3569
      %v3686 = vsel %vm963, %v3571, %v3573
      %v3687 = vsel %vm963, %v3573, %v3575
      %v3688 = vsel %vm963, %v3575, %v3577
      %v3689 = vsel %vm963, %v3577, %v3579
      %v3690 = vsel %vm963, %v3581, %v3583
      %v3691 = vsel %vm963, %v3583, %v3585
      %v3692 = vsel %vm963, %v3585, %v3587
      %v3693 = vsel %vm963, %v3587, %v3589
      %v3694 = vsel %vm963, %v3591, %v3593
      %v3695 = vsel %vm963, %v3593, %v3595
      %v3696 = vsel %vm963, %v3595, %v3597
      %v3697 = vsel %vm963, %v3597, %v3599
      %v3698 = vsel %vm963, %v3601, %v3603
      %v3699 = vsel %vm963, %v3603, %v3605
      %v3700 = vsel %vm963, %v3605, %v3607
      %v3701 = vsel %vm963, %v3607, %v3609
      %v3702 = vsel %vm963, %v3611, %v3613
      %v3703 = vsel %vm963, %v3613, %v3615
      %v3704 = vsel %vm963, %v3615, %v3617
      %v3705 = vsel %vm963, %v3617, %v3619
      %v3706 = vsel %vm963, %v3621, %v3623
      %v3707 = vsel %vm963, %v3623, %v3625
      %v3708 = vsel %vm963, %v3625, %v3627
      %v3709 = vsel %vm963, %v3627, %v3629
      %v3791 = vsel %vm963, %v3427, 0
      %v3794 = vsel %vm963, %v3429, 0
      %3796 = vmatprep.subr.mxu0 %v3631
      %3797 = vmatpush1.msra.mxu0 %v3630
      %3798 = vmatprep.subr.mxu0 %v3635
      %3799 = vmatpush1.msra.mxu0 %v3634
      %3800 = vmatprep.subr.mxu0 %v3639
      %3801 = vmatpush1.msra.mxu0 %v3638
      %3802 = vmatprep.subr.mxu0 %v3643
      %3803 = vmatpush1.msra.mxu0 %v3642
      %3804 = vmatprep.subr.mxu0 %v3647
      %3805 = vmatpush1.msra.mxu0 %v3646
      %3806 = vmatprep.subr.mxu0 %v3651
      %3807 = vmatpush1.msra.mxu0 %v3650
      %3808 = vmatprep.subr.mxu0 %v3655
      %3809 = vmatpush1.msra.mxu0 %v3654
      %3810 = vmatprep.subr.mxu0 %v3659
      %3811 = vmatpush1.msra.mxu0 %v3658
      %3812 = vmatprep.subr.mxu0 %v3663
      %3813 = vmatpush1.msra.mxu0 %v3662
      %3814 = vmatprep.subr.mxu0 %v3667
      %3815 = vmatpush1.msra.mxu0 %v3666
      %3816 = vmatprep.subr.mxu0 %v3671
      %3817 = vmatpush1.msra.mxu0 %v3670
      %3818 = vmatprep.subr.mxu0 %v3675
      %3819 = vmatpush1.msra.mxu0 %v3674
      %3820 = vmatprep.subr.mxu0 %v3679
      %3821 = vmatpush1.msra.mxu0 %v3678
      %3822 = vmatprep.subr.mxu0 %v3683
      %3823 = vmatpush1.msra.mxu0 %v3682
      %3824 = vmatprep.subr.mxu0 %v3687
      %3825 = vmatpush1.msra.mxu0 %v3686
      %3826 = vmatprep.subr.mxu0 %v3691
      %3827 = vmatpush1.msra.mxu0 %v3690
      %3828 = vmatprep.subr.mxu0 %v3695
      %3829 = vmatpush1.msra.mxu0 %v3694
      %3830 = vmatprep.subr.mxu0 %v3699
      %3831 = vmatpush1.msra.mxu0 %v3698
      %3832 = vmatprep.subr.mxu0 %v3703
      %3833 = vmatpush1.msra.mxu0 %v3702
      %3834 = vmatprep.subr.mxu0 %v3707
      %3835 = vmatpush1.msra.mxu0 %v3706
      %3836 = vmatprep.subr.mxu0 0.0
      %3837 = vmatpush1.msra.mxu0 0.0
      %3838 = vmatprep.subr.mxu0 0.0
      %3839 = vmatpush1.msra.mxu0 0.0
      %3840 = vmatprep.subr.mxu0 0.0
      %3841 = vmatpush1.msra.mxu0 0.0
      %3842 = vmatprep.subr.mxu0 0.0
      %3843 = vmatpush1.msra.mxu0 0.0
      %3844 = vmatprep.subr.mxu0 0.0
      %3845 = vmatpush1.msra.mxu0 0.0
      %3846 = vmatprep.subr.mxu0 0.0
      %3847 = vmatpush1.msra.mxu0 0.0
      %3848 = vmatprep.subr.mxu0 0.0
      %3849 = vmatpush1.msra.mxu0 0.0
      %3850 = vmatprep.subr.mxu0 0.0
      %3851 = vmatpush1.msra.mxu0 0.0
      %3852 = vmatprep.subr.mxu0 0.0
      %3853 = vmatpush1.msra.mxu0 0.0
      %3854 = vmatprep.subr.mxu0 0.0
      %3855 = vmatpush1.msra.mxu0 0.0
      %3856 = vmatprep.subr.mxu0 0.0
      %3857 = vmatpush1.msra.mxu0 0.0
      %3858 = vmatprep.subr.mxu0 0.0
      %3859 = vmatpush1.msra.mxu0 0.0
      %3860 = vmatprep.mubr.f32.mxu0 %v3791
      %3861 = vmatmul.mubr.f32.gmra.mrb[0].mxu0 %v3426
      %v3862 = vpop.f32.mrb[0].mxu0
      %v3863 = vadd.f32 0.0, %v3862
      %v3864 = vpop.f32.mrb[0].mxu0
      %v3865 = vadd.f32 0.0, %v3864
      %3866 = vmatprep.mubr.f32.mxu0 %v3794
      %3867 = vmatmul.mubr.f32.gmra.mrb[0].mxu0 %v3428
      %v3868 = vpop.f32.mrb[0].mxu0
      %v3869 = vadd.f32 0.0, %v3868
      %v3870 = vpop.f32.mrb[0].mxu0
      %v3871 = vadd.f32 0.0, %v3870
      %3872 = vdwg.mxu0
      %3873 = vmatprep.subr.mxu0 %v3633
      %3874 = vmatpush1.msra.mxu0 %v3632
      %3875 = vmatprep.subr.mxu0 %v3637
      %3876 = vmatpush1.msra.mxu0 %v3636
      %3877 = vmatprep.subr.mxu0 %v3641
      %3878 = vmatpush1.msra.mxu0 %v3640
      %3879 = vmatprep.subr.mxu0 %v3645
      %3880 = vmatpush1.msra.mxu0 %v3644
      %3881 = vmatprep.subr.mxu0 %v3649
      %3882 = vmatpush1.msra.mxu0 %v3648
      %3883 = vmatprep.subr.mxu0 %v3653
      %3884 = vmatpush1.msra.mxu0 %v3652
      %3885 = vmatprep.subr.mxu0 %v3657
      %3886 = vmatpush1.msra.mxu0 %v3656
      %3887 = vmatprep.subr.mxu0 %v3661
      %3888 = vmatpush1.msra.mxu0 %v3660
      %3889 = vmatprep.subr.mxu0 %v3665
      %3890 = vmatpush1.msra.mxu0 %v3664
      %3891 = vmatprep.subr.mxu0 %v3669
      %3892 = vmatpush1.msra.mxu0 %v3668
      %3893 = vmatprep.subr.mxu0 %v3673
      %3894 = vmatpush1.msra.mxu0 %v3672
      %3895 = vmatprep.subr.mxu0 %v3677
      %3896 = vmatpush1.msra.mxu0 %v3676
      %3897 = vmatprep.subr.mxu0 %v3681
      %3898 = vmatpush1.msra.mxu0 %v3680
      %3899 = vmatprep.subr.mxu0 %v3685
      %3900 = vmatpush1.msra.mxu0 %v3684
      %3901 = vmatprep.subr.mxu0 %v3689
      %3902 = vmatpush1.msra.mxu0 %v3688
      %3903 = vmatprep.subr.mxu0 %v3693
      %3904 = vmatpush1.msra.mxu0 %v3692
      %3905 = vmatprep.subr.mxu0 %v3697
      %3906 = vmatpush1.msra.mxu0 %v3696
      %3907 = vmatprep.subr.mxu0 %v3701
      %3908 = vmatpush1.msra.mxu0 %v3700
      %3909 = vmatprep.subr.mxu0 %v3705
      %3910 = vmatpush1.msra.mxu0 %v3704
      %3911 = vmatprep.subr.mxu0 %v3709
      %3912 = vmatpush1.msra.mxu0 %v3708
      %3913 = vmatprep.subr.mxu0 0.0
      %3914 = vmatpush1.msra.mxu0 0.0
      %3915 = vmatprep.subr.mxu0 0.0
      %3916 = vmatpush1.msra.mxu0 0.0
      %3917 = vmatprep.subr.mxu0 0.0
      %3918 = vmatpush1.msra.mxu0 0.0
      %3919 = vmatprep.subr.mxu0 0.0
      %3920 = vmatpush1.msra.mxu0 0.0
      %3921 = vmatprep.subr.mxu0 0.0
      %3922 = vmatpush1.msra.mxu0 0.0
      %3923 = vmatprep.subr.mxu0 0.0
      %3924 = vmatpush1.msra.mxu0 0.0
      %3925 = vmatprep.subr.mxu0 0.0
      %3926 = vmatpush1.msra.mxu0 0.0
      %3927 = vmatprep.subr.mxu0 0.0
      %3928 = vmatpush1.msra.mxu0 0.0
      %3929 = vmatprep.subr.mxu0 0.0
      %3930 = vmatpush1.msra.mxu0 0.0
      %3931 = vmatprep.subr.mxu0 0.0
      %3932 = vmatpush1.msra.mxu0 0.0
      %3933 = vmatprep.subr.mxu0 0.0
      %3934 = vmatpush1.msra.mxu0 0.0
      %3935 = vmatprep.subr.mxu0 0.0
      %3936 = vmatpush1.msra.mxu0 0.0
      %3937 = vmatprep.mubr.f32.mxu0 %v3791
      %3938 = vmatmul.mubr.f32.gmra.mrb[0].mxu0 %v3426
      %v3939 = vpop.f32.mrb[0].mxu0
      %v3940 = vadd.f32 0.0, %v3939
      %v3941 = vpop.f32.mrb[0].mxu0
      %v3942 = vadd.f32 0.0, %v3941
      %3943 = vmatprep.mubr.f32.mxu0 %v3794
      %3944 = vmatmul.mubr.f32.gmra.mrb[0].mxu0 %v3428
      %v3945 = vpop.f32.mrb[0].mxu0
      %v3946 = vadd.f32 0.0, %v3945
      %v3947 = vpop.f32.mrb[0].mxu0
      %v3948 = vadd.f32 0.0, %v3947
      %3949 = vdwg.mxu0
      %v3950 = vadd.f32 %v3417, %v3863
      %v3951 = vadd.f32 %v3418, %v3865
      %v3952 = vadd.f32 %v3419, %v3940
      %v3953 = vadd.f32 %v3420, %v3942
      %v3954 = vadd.f32 %v3421, %v3869
      %v3955 = vadd.f32 %v3422, %v3871
      %v3956 = vadd.f32 %v3423, %v3946
      %v3957 = vadd.f32 %v3424, %v3948
      %s3958 = scalar_lea.vmem %s5, 128
      %v3959 = vld [vmem:[%s3958] sm:$0xff]
      %v3960 = vld [vmem:[%s3958 + $0x8] sm:$0xff]
      %v3961 = vld [vmem:[%s3958 + $0x10] sm:$0xff]
      %v3962 = vld [vmem:[%s3958 + $0x18] sm:$0xff]
      %v3964 = vsel %vm963, %v3960, 0
      %v3967 = vsel %vm963, %v3962, 0
      %3969 = vmatprep.subr.mxu0 %v2699
      %3970 = vmatpush1.msra.mxu0 %v2698
      %3971 = vmatprep.subr.mxu0 %v2704
      %3972 = vmatpush1.msra.mxu0 %v2703
      %3973 = vmatprep.subr.mxu0 %v2709
      %3974 = vmatpush1.msra.mxu0 %v2708
      %3975 = vmatprep.subr.mxu0 %v2714
      %3976 = vmatpush1.msra.mxu0 %v2713
      %3977 = vmatprep.subr.mxu0 %v2719
      %3978 = vmatpush1.msra.mxu0 %v2718
      %3979 = vmatprep.subr.mxu0 %v2724
      %3980 = vmatpush1.msra.mxu0 %v2723
      %3981 = vmatprep.subr.mxu0 %v2729
      %3982 = vmatpush1.msra.mxu0 %v2728
      %3983 = vmatprep.subr.mxu0 %v2734
      %3984 = vmatpush1.msra.mxu0 %v2733
      %3985 = vmatprep.subr.mxu0 %v2739
      %3986 = vmatpush1.msra.mxu0 %v2738
      %3987 = vmatprep.subr.mxu0 %v2744
      %3988 = vmatpush1.msra.mxu0 %v2743
      %3989 = vmatprep.subr.mxu0 %v2749
      %3990 = vmatpush1.msra.mxu0 %v2748
      %3991 = vmatprep.subr.mxu0 %v2754
      %3992 = vmatpush1.msra.mxu0 %v2753
      %3993 = vmatprep.subr.mxu0 %v2759
      %3994 = vmatpush1.msra.mxu0 %v2758
      %3995 = vmatprep.subr.mxu0 %v2764
      %3996 = vmatpush1.msra.mxu0 %v2763
      %3997 = vmatprep.subr.mxu0 %v2769
      %3998 = vmatpush1.msra.mxu0 %v2768
      %3999 = vmatprep.subr.mxu0 %v2774
      %4000 = vmatpush1.msra.mxu0 %v2773
      %4001 = vmatprep.subr.mxu0 %v2779
      %4002 = vmatpush1.msra.mxu0 %v2778
      %4003 = vmatprep.subr.mxu0 %v2784
      %4004 = vmatpush1.msra.mxu0 %v2783
      %4005 = vmatprep.subr.mxu0 %v2789
      %4006 = vmatpush1.msra.mxu0 %v2788
      %4007 = vmatprep.subr.mxu0 %v2794
      %4008 = vmatpush1.msra.mxu0 %v2793
      %4009 = vmatprep.subr.mxu0 0.0
      %4010 = vmatpush1.msra.mxu0 0.0
      %4011 = vmatprep.subr.mxu0 0.0
      %4012 = vmatpush1.msra.mxu0 0.0
      %4013 = vmatprep.subr.mxu0 0.0
      %4014 = vmatpush1.msra.mxu0 0.0
      %4015 = vmatprep.subr.mxu0 0.0
      %4016 = vmatpush1.msra.mxu0 0.0
      %4017 = vmatprep.subr.mxu0 0.0
      %4018 = vmatpush1.msra.mxu0 0.0
      %4019 = vmatprep.subr.mxu0 0.0
      %4020 = vmatpush1.msra.mxu0 0.0
      %4021 = vmatprep.subr.mxu0 0.0
      %4022 = vmatpush1.msra.mxu0 0.0
      %4023 = vmatprep.subr.mxu0 0.0
      %4024 = vmatpush1.msra.mxu0 0.0
      %4025 = vmatprep.subr.mxu0 0.0
      %4026 = vmatpush1.msra.mxu0 0.0
      %4027 = vmatprep.subr.mxu0 0.0
      %4028 = vmatpush1.msra.mxu0 0.0
      %4029 = vmatprep.subr.mxu0 0.0
      %4030 = vmatpush1.msra.mxu0 0.0
      %4031 = vmatprep.subr.mxu0 0.0
      %4032 = vmatpush1.msra.mxu0 0.0
      %4033 = vmatprep.mubr.f32.mxu0 %v3964
      %4034 = vmatmul.mubr.f32.gmra.mrb[0].mxu0 %v3959
      %v4035 = vpop.f32.mrb[0].mxu0
      %v4036 = vadd.f32 0.0, %v4035
      %v4037 = vpop.f32.mrb[0].mxu0
      %v4038 = vadd.f32 0.0, %v4037
      %4039 = vmatprep.mubr.f32.mxu0 %v3967
      %4040 = vmatmul.mubr.f32.gmra.mrb[0].mxu0 %v3961
      %v4041 = vpop.f32.mrb[0].mxu0
      %v4042 = vadd.f32 0.0, %v4041
      %v4043 = vpop.f32.mrb[0].mxu0
      %v4044 = vadd.f32 0.0, %v4043
      %4045 = vdwg.mxu0
      %4046 = vmatprep.subr.mxu0 %v2701
      %4047 = vmatpush1.msra.mxu0 %v2700
      %4048 = vmatprep.subr.mxu0 %v2706
      %4049 = vmatpush1.msra.mxu0 %v2705
      %4050 = vmatprep.subr.mxu0 %v2711
      %4051 = vmatpush1.msra.mxu0 %v2710
      %4052 = vmatprep.subr.mxu0 %v2716
      %4053 = vmatpush1.msra.mxu0 %v2715
      %4054 = vmatprep.subr.mxu0 %v2721
      %4055 = vmatpush1.msra.mxu0 %v2720
      %4056 = vmatprep.subr.mxu0 %v2726
      %4057 = vmatpush1.msra.mxu0 %v2725
      %4058 = vmatprep.subr.mxu0 %v2731
      %4059 = vmatpush1.msra.mxu0 %v2730
      %4060 = vmatprep.subr.mxu0 %v2736
      %4061 = vmatpush1.msra.mxu0 %v2735
      %4062 = vmatprep.subr.mxu0 %v2741
      %4063 = vmatpush1.msra.mxu0 %v2740
      %4064 = vmatprep.subr.mxu0 %v2746
      %4065 = vmatpush1.msra.mxu0 %v2745
      %4066 = vmatprep.subr.mxu0 %v2751
      %4067 = vmatpush1.msra.mxu0 %v2750
      %4068 = vmatprep.subr.mxu0 %v2756
      %4069 = vmatpush1.msra.mxu0 %v2755
      %4070 = vmatprep.subr.mxu0 %v2761
      %4071 = vmatpush1.msra.mxu0 %v2760
      %4072 = vmatprep.subr.mxu0 %v2766
      %4073 = vmatpush1.msra.mxu0 %v2765
      %4074 = vmatprep.subr.mxu0 %v2771
      %4075 = vmatpush1.msra.mxu0 %v2770
      %4076 = vmatprep.subr.mxu0 %v2776
      %4077 = vmatpush1.msra.mxu0 %v2775
      %4078 = vmatprep.subr.mxu0 %v2781
      %4079 = vmatpush1.msra.mxu0 %v2780
      %4080 = vmatprep.subr.mxu0 %v2786
      %4081 = vmatpush1.msra.mxu0 %v2785
      %4082 = vmatprep.subr.mxu0 %v2791
      %4083 = vmatpush1.msra.mxu0 %v2790
      %4084 = vmatprep.subr.mxu0 %v2796
      %4085 = vmatpush1.msra.mxu0 %v2795
      %4086 = vmatprep.subr.mxu0 0.0
      %4087 = vmatpush1.msra.mxu0 0.0
      %4088 = vmatprep.subr.mxu0 0.0
      %4089 = vmatpush1.msra.mxu0 0.0
      %4090 = vmatprep.subr.mxu0 0.0
      %4091 = vmatpush1.msra.mxu0 0.0
      %4092 = vmatprep.subr.mxu0 0.0
      %4093 = vmatpush1.msra.mxu0 0.0
      %4094 = vmatprep.subr.mxu0 0.0
      %4095 = vmatpush1.msra.mxu0 0.0
      %4096 = vmatprep.subr.mxu0 0.0
      %4097 = vmatpush1.msra.mxu0 0.0
      %4098 = vmatprep.subr.mxu0 0.0
      %4099 = vmatpush1.msra.mxu0 0.0
      %4100 = vmatprep.subr.mxu0 0.0
      %4101 = vmatpush1.msra.mxu0 0.0
      %4102 = vmatprep.subr.mxu0 0.0
      %4103 = vmatpush1.msra.mxu0 0.0
      %4104 = vmatprep.subr.mxu0 0.0
      %4105 = vmatpush1.msra.mxu0 0.0
      %4106 = vmatprep.subr.mxu0 0.0
      %4107 = vmatpush1.msra.mxu0 0.0
      %4108 = vmatprep.subr.mxu0 0.0
      %4109 = vmatpush1.msra.mxu0 0.0
      %4110 = vmatprep.mubr.f32.mxu0 %v3964
      %4111 = vmatmul.mubr.f32.gmra.mrb[0].mxu0 %v3959
      %v4112 = vpop.f32.mrb[0].mxu0
      %v4113 = vadd.f32 0.0, %v4112
      %v4114 = vpop.f32.mrb[0].mxu0
      %v4115 = vadd.f32 0.0, %v4114
      %4116 = vmatprep.mubr.f32.mxu0 %v3967
      %4117 = vmatmul.mubr.f32.gmra.mrb[0].mxu0 %v3961
      %v4118 = vpop.f32.mrb[0].mxu0
      %v4119 = vadd.f32 0.0, %v4118
      %v4120 = vpop.f32.mrb[0].mxu0
      %v4121 = vadd.f32 0.0, %v4120
      %4122 = vdwg.mxu0
      %v4123 = vadd.f32 %v3950, %v4036
      %v4124 = vadd.f32 %v3951, %v4038
      %v4125 = vadd.f32 %v3952, %v4113
      %v4126 = vadd.f32 %v3953, %v4115
      %v4127 = vadd.f32 %v3954, %v4042
      %v4128 = vadd.f32 %v3955, %v4044
      %v4129 = vadd.f32 %v3956, %v4119
      %v4130 = vadd.f32 %v3957, %v4121
      %s4131 = scalar_lea.vmem %s5, 160
      %v4132 = vld [vmem:[%s4131] sm:$0xff]
      %v4133 = vld [vmem:[%s4131 + $0x8] sm:$0xff]
      %v4134 = vld [vmem:[%s4131 + $0x10] sm:$0xff]
      %v4135 = vld [vmem:[%s4131 + $0x18] sm:$0xff]
      %4136 = vrot.lane.b32.xlu0 %v2698, 96
      %v4137 = vpop.permute.xlu0 %4136
      %4138 = vrot.lane.b32.xlu0 %v2699, 96
      %v4139 = vpop.permute.xlu0 %4138
      %4140 = vrot.lane.b32.xlu0 %v2700, 96
      %v4141 = vpop.permute.xlu0 %4140
      %4142 = vrot.lane.b32.xlu0 %v2701, 96
      %v4143 = vpop.permute.xlu0 %4142
      %4144 = vrot.lane.b32.xlu0 %v2703, 96
      %v4145 = vpop.permute.xlu0 %4144
      %4146 = vrot.lane.b32.xlu0 %v2704, 96
      %v4147 = vpop.permute.xlu0 %4146
      %4148 = vrot.lane.b32.xlu0 %v2705, 96
      %v4149 = vpop.permute.xlu0 %4148
      %4150 = vrot.lane.b32.xlu0 %v2706, 96
      %v4151 = vpop.permute.xlu0 %4150
      %4152 = vrot.lane.b32.xlu0 %v2708, 96
      %v4153 = vpop.permute.xlu0 %4152
      %4154 = vrot.lane.b32.xlu0 %v2709, 96
      %v4155 = vpop.permute.xlu0 %4154
      %4156 = vrot.lane.b32.xlu0 %v2710, 96
      %v4157 = vpop.permute.xlu0 %4156
      %4158 = vrot.lane.b32.xlu0 %v2711, 96
      %v4159 = vpop.permute.xlu0 %4158
      %4160 = vrot.lane.b32.xlu0 %v2713, 96
      %v4161 = vpop.permute.xlu0 %4160
      %4162 = vrot.lane.b32.xlu0 %v2714, 96
      %v4163 = vpop.permute.xlu0 %4162
      %4164 = vrot.lane.b32.xlu0 %v2715, 96
      %v4165 = vpop.permute.xlu0 %4164
      %4166 = vrot.lane.b32.xlu0 %v2716, 96
      %v4167 = vpop.permute.xlu0 %4166
      %4168 = vrot.lane.b32.xlu0 %v2718, 96
      %v4169 = vpop.permute.xlu0 %4168
      %4170 = vrot.lane.b32.xlu0 %v2719, 96
      %v4171 = vpop.permute.xlu0 %4170
      %4172 = vrot.lane.b32.xlu0 %v2720, 96
      %v4173 = vpop.permute.xlu0 %4172
      %4174 = vrot.lane.b32.xlu0 %v2721, 96
      %v4175 = vpop.permute.xlu0 %4174
      %4176 = vrot.lane.b32.xlu0 %v2723, 96
      %v4177 = vpop.permute.xlu0 %4176
      %4178 = vrot.lane.b32.xlu0 %v2724, 96
      %v4179 = vpop.permute.xlu0 %4178
      %4180 = vrot.lane.b32.xlu0 %v2725, 96
      %v4181 = vpop.permute.xlu0 %4180
      %4182 = vrot.lane.b32.xlu0 %v2726, 96
      %v4183 = vpop.permute.xlu0 %4182
      %4184 = vrot.lane.b32.xlu0 %v2728, 96
      %v4185 = vpop.permute.xlu0 %4184
      %4186 = vrot.lane.b32.xlu0 %v2729, 96
      %v4187 = vpop.permute.xlu0 %4186
      %4188 = vrot.lane.b32.xlu0 %v2730, 96
      %v4189 = vpop.permute.xlu0 %4188
      %4190 = vrot.lane.b32.xlu0 %v2731, 96
      %v4191 = vpop.permute.xlu0 %4190
      %4192 = vrot.lane.b32.xlu0 %v2733, 96
      %v4193 = vpop.permute.xlu0 %4192
      %4194 = vrot.lane.b32.xlu0 %v2734, 96
      %v4195 = vpop.permute.xlu0 %4194
      %4196 = vrot.lane.b32.xlu0 %v2735, 96
      %v4197 = vpop.permute.xlu0 %4196
      %4198 = vrot.lane.b32.xlu0 %v2736, 96
      %v4199 = vpop.permute.xlu0 %4198
      %4200 = vrot.lane.b32.xlu0 %v2738, 96
      %v4201 = vpop.permute.xlu0 %4200
      %4202 = vrot.lane.b32.xlu0 %v2739, 96
      %v4203 = vpop.permute.xlu0 %4202
      %4204 = vrot.lane.b32.xlu0 %v2740, 96
      %v4205 = vpop.permute.xlu0 %4204
      %4206 = vrot.lane.b32.xlu0 %v2741, 96
      %v4207 = vpop.permute.xlu0 %4206
      %4208 = vrot.lane.b32.xlu0 %v2743, 96
      %v4209 = vpop.permute.xlu0 %4208
      %4210 = vrot.lane.b32.xlu0 %v2744, 96
      %v4211 = vpop.permute.xlu0 %4210
      %4212 = vrot.lane.b32.xlu0 %v2745, 96
      %v4213 = vpop.permute.xlu0 %4212
      %4214 = vrot.lane.b32.xlu0 %v2746, 96
      %v4215 = vpop.permute.xlu0 %4214
      %4216 = vrot.lane.b32.xlu0 %v2748, 96
      %v4217 = vpop.permute.xlu0 %4216
      %4218 = vrot.lane.b32.xlu0 %v2749, 96
      %v4219 = vpop.permute.xlu0 %4218
      %4220 = vrot.lane.b32.xlu0 %v2750, 96
      %v4221 = vpop.permute.xlu0 %4220
      %4222 = vrot.lane.b32.xlu0 %v2751, 96
      %v4223 = vpop.permute.xlu0 %4222
      %4224 = vrot.lane.b32.xlu0 %v2753, 96
      %v4225 = vpop.permute.xlu0 %4224
      %4226 = vrot.lane.b32.xlu0 %v2754, 96
      %v4227 = vpop.permute.xlu0 %4226
      %4228 = vrot.lane.b32.xlu0 %v2755, 96
      %v4229 = vpop.permute.xlu0 %4228
      %4230 = vrot.lane.b32.xlu0 %v2756, 96
      %v4231 = vpop.permute.xlu0 %4230
      %4232 = vrot.lane.b32.xlu0 %v2758, 96
      %v4233 = vpop.permute.xlu0 %4232
      %4234 = vrot.lane.b32.xlu0 %v2759, 96
      %v4235 = vpop.permute.xlu0 %4234
      %4236 = vrot.lane.b32.xlu0 %v2760, 96
      %v4237 = vpop.permute.xlu0 %4236
      %4238 = vrot.lane.b32.xlu0 %v2761, 96
      %v4239 = vpop.permute.xlu0 %4238
      %4240 = vrot.lane.b32.xlu0 %v2763, 96
      %v4241 = vpop.permute.xlu0 %4240
      %4242 = vrot.lane.b32.xlu0 %v2764, 96
      %v4243 = vpop.permute.xlu0 %4242
      %4244 = vrot.lane.b32.xlu0 %v2765, 96
      %v4245 = vpop.permute.xlu0 %4244
      %4246 = vrot.lane.b32.xlu0 %v2766, 96
      %v4247 = vpop.permute.xlu0 %4246
      %4248 = vrot.lane.b32.xlu0 %v2768, 96
      %v4249 = vpop.permute.xlu0 %4248
      %4250 = vrot.lane.b32.xlu0 %v2769, 96
      %v4251 = vpop.permute.xlu0 %4250
      %4252 = vrot.lane.b32.xlu0 %v2770, 96
      %v4253 = vpop.permute.xlu0 %4252
      %4254 = vrot.lane.b32.xlu0 %v2771, 96
      %v4255 = vpop.permute.xlu0 %4254
      %4256 = vrot.lane.b32.xlu0 %v2773, 96
      %v4257 = vpop.permute.xlu0 %4256
      %4258 = vrot.lane.b32.xlu0 %v2774, 96
      %v4259 = vpop.permute.xlu0 %4258
      %4260 = vrot.lane.b32.xlu0 %v2775, 96
      %v4261 = vpop.permute.xlu0 %4260
      %4262 = vrot.lane.b32.xlu0 %v2776, 96
      %v4263 = vpop.permute.xlu0 %4262
      %4264 = vrot.lane.b32.xlu0 %v2778, 96
      %v4265 = vpop.permute.xlu0 %4264
      %4266 = vrot.lane.b32.xlu0 %v2779, 96
      %v4267 = vpop.permute.xlu0 %4266
      %4268 = vrot.lane.b32.xlu0 %v2780, 96
      %v4269 = vpop.permute.xlu0 %4268
      %4270 = vrot.lane.b32.xlu0 %v2781, 96
      %v4271 = vpop.permute.xlu0 %4270
      %4272 = vrot.lane.b32.xlu0 %v2783, 96
      %v4273 = vpop.permute.xlu0 %4272
      %4274 = vrot.lane.b32.xlu0 %v2784, 96
      %v4275 = vpop.permute.xlu0 %4274
      %4276 = vrot.lane.b32.xlu0 %v2785, 96
      %v4277 = vpop.permute.xlu0 %4276
      %4278 = vrot.lane.b32.xlu0 %v2786, 96
      %v4279 = vpop.permute.xlu0 %4278
      %4280 = vrot.lane.b32.xlu0 %v2788, 96
      %v4281 = vpop.permute.xlu0 %4280
      %4282 = vrot.lane.b32.xlu0 %v2789, 96
      %v4283 = vpop.permute.xlu0 %4282
      %4284 = vrot.lane.b32.xlu0 %v2790, 96
      %v4285 = vpop.permute.xlu0 %4284
      %4286 = vrot.lane.b32.xlu0 %v2791, 96
      %v4287 = vpop.permute.xlu0 %4286
      %4288 = vrot.lane.b32.xlu0 %v2793, 96
      %v4289 = vpop.permute.xlu0 %4288
      %4290 = vrot.lane.b32.xlu0 %v2794, 96
      %v4291 = vpop.permute.xlu0 %4290
      %4292 = vrot.lane.b32.xlu0 %v2795, 96
      %v4293 = vpop.permute.xlu0 %4292
      %4294 = vrot.lane.b32.xlu0 %v2796, 96
      %v4295 = vpop.permute.xlu0 %4294
      %v4296 = vsel %vm666, %v4137, %v4139
      %v4297 = vsel %vm666, %v4139, %v4141
      %v4298 = vsel %vm666, %v4141, %v4143
      %v4299 = vsel %vm666, %v4145, %v4147
      %v4300 = vsel %vm666, %v4147, %v4149
      %v4301 = vsel %vm666, %v4149, %v4151
      %v4302 = vsel %vm666, %v4153, %v4155
      %v4303 = vsel %vm666, %v4155, %v4157
      %v4304 = vsel %vm666, %v4157, %v4159
      %v4305 = vsel %vm666, %v4161, %v4163
      %v4306 = vsel %vm666, %v4163, %v4165
      %v4307 = vsel %vm666, %v4165, %v4167
      %v4308 = vsel %vm666, %v4169, %v4171
      %v4309 = vsel %vm666, %v4171, %v4173
      %v4310 = vsel %vm666, %v4173, %v4175
      %v4311 = vsel %vm666, %v4177, %v4179
      %v4312 = vsel %vm666, %v4179, %v4181
      %v4313 = vsel %vm666, %v4181, %v4183
      %v4314 = vsel %vm666, %v4185, %v4187
      %v4315 = vsel %vm666, %v4187, %v4189
      %v4316 = vsel %vm666, %v4189, %v4191
      %v4317 = vsel %vm666, %v4193, %v4195
      %v4318 = vsel %vm666, %v4195, %v4197
      %v4319 = vsel %vm666, %v4197, %v4199
      %v4320 = vsel %vm666, %v4201, %v4203
      %v4321 = vsel %vm666, %v4203, %v4205
      %v4322 = vsel %vm666, %v4205, %v4207
      %v4323 = vsel %vm666, %v4209, %v4211
      %v4324 = vsel %vm666, %v4211, %v4213
      %v4325 = vsel %vm666, %v4213, %v4215
      %v4326 = vsel %vm666, %v4217, %v4219
      %v4327 = vsel %vm666, %v4219, %v4221
      %v4328 = vsel %vm666, %v4221, %v4223
      %v4329 = vsel %vm666, %v4225, %v4227
      %v4330 = vsel %vm666, %v4227, %v4229
      %v4331 = vsel %vm666, %v4229, %v4231
      %v4332 = vsel %vm666, %v4233, %v4235
      %v4333 = vsel %vm666, %v4235, %v4237
      %v4334 = vsel %vm666, %v4237, %v4239
      %v4335 = vsel %vm666, %v4241, %v4243
      %v4336 = vsel %vm666, %v4243, %v4245
      %v4337 = vsel %vm666, %v4245, %v4247
      %v4338 = vsel %vm666, %v4249, %v4251
      %v4339 = vsel %vm666, %v4251, %v4253
      %v4340 = vsel %vm666, %v4253, %v4255
      %v4341 = vsel %vm666, %v4257, %v4259
      %v4342 = vsel %vm666, %v4259, %v4261
      %v4343 = vsel %vm666, %v4261, %v4263
      %v4344 = vsel %vm666, %v4265, %v4267
      %v4345 = vsel %vm666, %v4267, %v4269
      %v4346 = vsel %vm666, %v4269, %v4271
      %v4347 = vsel %vm666, %v4273, %v4275
      %v4348 = vsel %vm666, %v4275, %v4277
      %v4349 = vsel %vm666, %v4277, %v4279
      %v4350 = vsel %vm666, %v4281, %v4283
      %v4351 = vsel %vm666, %v4283, %v4285
      %v4352 = vsel %vm666, %v4285, %v4287
      %v4353 = vsel %vm666, %v4289, %v4291
      %v4354 = vsel %vm666, %v4291, %v4293
      %v4355 = vsel %vm666, %v4293, %v4295
      %v4437 = vsel %vm963, %v4133, 0
      %v4440 = vsel %vm963, %v4135, 0
      %4442 = vmatprep.subr.mxu0 %v4297
      %4443 = vmatpush1.msra.mxu0 %v4296
      %4444 = vmatprep.subr.mxu0 %v4300
      %4445 = vmatpush1.msra.mxu0 %v4299
      %4446 = vmatprep.subr.mxu0 %v4303
      %4447 = vmatpush1.msra.mxu0 %v4302
      %4448 = vmatprep.subr.mxu0 %v4306
      %4449 = vmatpush1.msra.mxu0 %v4305
      %4450 = vmatprep.subr.mxu0 %v4309
      %4451 = vmatpush1.msra.mxu0 %v4308
      %4452 = vmatprep.subr.mxu0 %v4312
      %4453 = vmatpush1.msra.mxu0 %v4311
      %4454 = vmatprep.subr.mxu0 %v4315
      %4455 = vmatpush1.msra.mxu0 %v4314
      %4456 = vmatprep.subr.mxu0 %v4318
      %4457 = vmatpush1.msra.mxu0 %v4317
      %4458 = vmatprep.subr.mxu0 %v4321
      %4459 = vmatpush1.msra.mxu0 %v4320
      %4460 = vmatprep.subr.mxu0 %v4324
      %4461 = vmatpush1.msra.mxu0 %v4323
      %4462 = vmatprep.subr.mxu0 %v4327
      %4463 = vmatpush1.msra.mxu0 %v4326
      %4464 = vmatprep.subr.mxu0 %v4330
      %4465 = vmatpush1.msra.mxu0 %v4329
      %4466 = vmatprep.subr.mxu0 %v4333
      %4467 = vmatpush1.msra.mxu0 %v4332
      %4468 = vmatprep.subr.mxu0 %v4336
      %4469 = vmatpush1.msra.mxu0 %v4335
      %4470 = vmatprep.subr.mxu0 %v4339
      %4471 = vmatpush1.msra.mxu0 %v4338
      %4472 = vmatprep.subr.mxu0 %v4342
      %4473 = vmatpush1.msra.mxu0 %v4341
      %4474 = vmatprep.subr.mxu0 %v4345
      %4475 = vmatpush1.msra.mxu0 %v4344
      %4476 = vmatprep.subr.mxu0 %v4348
      %4477 = vmatpush1.msra.mxu0 %v4347
      %4478 = vmatprep.subr.mxu0 %v4351
      %4479 = vmatpush1.msra.mxu0 %v4350
      %4480 = vmatprep.subr.mxu0 %v4354
      %4481 = vmatpush1.msra.mxu0 %v4353
      %4482 = vmatprep.subr.mxu0 0.0
      %4483 = vmatpush1.msra.mxu0 0.0
      %4484 = vmatprep.subr.mxu0 0.0
      %4485 = vmatpush1.msra.mxu0 0.0
      %4486 = vmatprep.subr.mxu0 0.0
      %4487 = vmatpush1.msra.mxu0 0.0
      %4488 = vmatprep.subr.mxu0 0.0
      %4489 = vmatpush1.msra.mxu0 0.0
      %4490 = vmatprep.subr.mxu0 0.0
      %4491 = vmatpush1.msra.mxu0 0.0
      %4492 = vmatprep.subr.mxu0 0.0
      %4493 = vmatpush1.msra.mxu0 0.0
      %4494 = vmatprep.subr.mxu0 0.0
      %4495 = vmatpush1.msra.mxu0 0.0
      %4496 = vmatprep.subr.mxu0 0.0
      %4497 = vmatpush1.msra.mxu0 0.0
      %4498 = vmatprep.subr.mxu0 0.0
      %4499 = vmatpush1.msra.mxu0 0.0
      %4500 = vmatprep.subr.mxu0 0.0
      %4501 = vmatpush1.msra.mxu0 0.0
      %4502 = vmatprep.subr.mxu0 0.0
      %4503 = vmatpush1.msra.mxu0 0.0
      %4504 = vmatprep.subr.mxu0 0.0
      %4505 = vmatpush1.msra.mxu0 0.0
      %4506 = vmatprep.mubr.f32.mxu0 %v4437
      %4507 = vmatmul.mubr.f32.gmra.mrb[0].mxu0 %v4132
      %v4508 = vpop.f32.mrb[0].mxu0
      %v4509 = vadd.f32 0.0, %v4508
      %v4510 = vpop.f32.mrb[0].mxu0
      %v4511 = vadd.f32 0.0, %v4510
      %4512 = vmatprep.mubr.f32.mxu0 %v4440
      %4513 = vmatmul.mubr.f32.gmra.mrb[0].mxu0 %v4134
      %v4514 = vpop.f32.mrb[0].mxu0
      %v4515 = vadd.f32 0.0, %v4514
      %v4516 = vpop.f32.mrb[0].mxu0
      %v4517 = vadd.f32 0.0, %v4516
      %4518 = vdwg.mxu0
      %4519 = vmatprep.subr.mxu0 %v4143
      %4520 = vmatpush1.msra.mxu0 %v4298
      %4521 = vmatprep.subr.mxu0 %v4151
      %4522 = vmatpush1.msra.mxu0 %v4301
      %4523 = vmatprep.subr.mxu0 %v4159
      %4524 = vmatpush1.msra.mxu0 %v4304
      %4525 = vmatprep.subr.mxu0 %v4167
      %4526 = vmatpush1.msra.mxu0 %v4307
      %4527 = vmatprep.subr.mxu0 %v4175
      %4528 = vmatpush1.msra.mxu0 %v4310
      %4529 = vmatprep.subr.mxu0 %v4183
      %4530 = vmatpush1.msra.mxu0 %v4313
      %4531 = vmatprep.subr.mxu0 %v4191
      %4532 = vmatpush1.msra.mxu0 %v4316
      %4533 = vmatprep.subr.mxu0 %v4199
      %4534 = vmatpush1.msra.mxu0 %v4319
      %4535 = vmatprep.subr.mxu0 %v4207
      %4536 = vmatpush1.msra.mxu0 %v4322
      %4537 = vmatprep.subr.mxu0 %v4215
      %4538 = vmatpush1.msra.mxu0 %v4325
      %4539 = vmatprep.subr.mxu0 %v4223
      %4540 = vmatpush1.msra.mxu0 %v4328
      %4541 = vmatprep.subr.mxu0 %v4231
      %4542 = vmatpush1.msra.mxu0 %v4331
      %4543 = vmatprep.subr.mxu0 %v4239
      %4544 = vmatpush1.msra.mxu0 %v4334
      %4545 = vmatprep.subr.mxu0 %v4247
      %4546 = vmatpush1.msra.mxu0 %v4337
      %4547 = vmatprep.subr.mxu0 %v4255
      %4548 = vmatpush1.msra.mxu0 %v4340
      %4549 = vmatprep.subr.mxu0 %v4263
      %4550 = vmatpush1.msra.mxu0 %v4343
      %4551 = vmatprep.subr.mxu0 %v4271
      %4552 = vmatpush1.msra.mxu0 %v4346
      %4553 = vmatprep.subr.mxu0 %v4279
      %4554 = vmatpush1.msra.mxu0 %v4349
      %4555 = vmatprep.subr.mxu0 %v4287
      %4556 = vmatpush1.msra.mxu0 %v4352
      %4557 = vmatprep.subr.mxu0 %v4295
      %4558 = vmatpush1.msra.mxu0 %v4355
      %4559 = vmatprep.subr.mxu0 0.0
      %4560 = vmatpush1.msra.mxu0 0.0
      %4561 = vmatprep.subr.mxu0 0.0
      %4562 = vmatpush1.msra.mxu0 0.0
      %4563 = vmatprep.subr.mxu0 0.0
      %4564 = vmatpush1.msra.mxu0 0.0
      %4565 = vmatprep.subr.mxu0 0.0
      %4566 = vmatpush1.msra.mxu0 0.0
      %4567 = vmatprep.subr.mxu0 0.0
      %4568 = vmatpush1.msra.mxu0 0.0
      %4569 = vmatprep.subr.mxu0 0.0
      %4570 = vmatpush1.msra.mxu0 0.0
      %4571 = vmatprep.subr.mxu0 0.0
      %4572 = vmatpush1.msra.mxu0 0.0
      %4573 = vmatprep.subr.mxu0 0.0
      %4574 = vmatpush1.msra.mxu0 0.0
      %4575 = vmatprep.subr.mxu0 0.0
      %4576 = vmatpush1.msra.mxu0 0.0
      %4577 = vmatprep.subr.mxu0 0.0
      %4578 = vmatpush1.msra.mxu0 0.0
      %4579 = vmatprep.subr.mxu0 0.0
      %4580 = vmatpush1.msra.mxu0 0.0
      %4581 = vmatprep.subr.mxu0 0.0
      %4582 = vmatpush1.msra.mxu0 0.0
      %4583 = vmatprep.mubr.f32.mxu0 %v4437
      %4584 = vmatmul.mubr.f32.gmra.mrb[0].mxu0 %v4132
      %v4585 = vpop.f32.mrb[0].mxu0
      %v4586 = vadd.f32 0.0, %v4585
      %v4587 = vpop.f32.mrb[0].mxu0
      %v4588 = vadd.f32 0.0, %v4587
      %4589 = vmatprep.mubr.f32.mxu0 %v4440
      %4590 = vmatmul.mubr.f32.gmra.mrb[0].mxu0 %v4134
      %v4591 = vpop.f32.mrb[0].mxu0
      %v4592 = vadd.f32 0.0, %v4591
      %v4593 = vpop.f32.mrb[0].mxu0
      %v4594 = vadd.f32 0.0, %v4593
      %4595 = vdwg.mxu0
      %v4596 = vadd.f32 %v4123, %v4509
      %v4597 = vadd.f32 %v4124, %v4511
      %v4598 = vadd.f32 %v4125, %v4586
      %v4599 = vadd.f32 %v4126, %v4588
      %v4600 = vadd.f32 %v4127, %v4515
      %v4601 = vadd.f32 %v4128, %v4517
      %v4602 = vadd.f32 %v4129, %v4592
      %v4603 = vadd.f32 %v4130, %v4594
      %s4604 = scalar_lea.vmem %s5, 192
      %v4605 = vld [vmem:[%s4604] sm:$0xff]
      %v4606 = vld [vmem:[%s4604 + $0x8] sm:$0xff]
      %v4607 = vld [vmem:[%s4604 + $0x10] sm:$0xff]
      %v4608 = vld [vmem:[%s4604 + $0x18] sm:$0xff]
      %v4609 = vld [vmem:[#allocation3 + $0x8] sm:$0xff]
      %v4610 = vld [vmem:[#allocation3 + $0x10] sm:$0xff]
      %v4611 = vld [vmem:[#allocation3 + $0x18] sm:$0xff]
      %v4612 = vld [vmem:[#allocation3 + $0x20] sm:$0xff]
      %v4613 = vld [vmem:[#allocation3 + $0x28] sm:$0xff]
      %v4614 = vld [vmem:[#allocation3 + $0x38] sm:$0xff]
      %v4615 = vld [vmem:[#allocation3 + $0x40] sm:$0xff]
      %v4616 = vld [vmem:[#allocation3 + $0x48] sm:$0xff]
      %v4617 = vld [vmem:[#allocation3 + $0x50] sm:$0xff]
      %v4618 = vld [vmem:[#allocation3 + $0x58] sm:$0xff]
      %v4619 = vld [vmem:[#allocation3 + $0x68] sm:$0xff]
      %v4620 = vld [vmem:[#allocation3 + $0x70] sm:$0xff]
      %v4621 = vld [vmem:[#allocation3 + $0x78] sm:$0xff]
      %v4622 = vld [vmem:[#allocation3 + $0x80] sm:$0xff]
      %v4623 = vld [vmem:[#allocation3 + $0x88] sm:$0xff]
      %v4624 = vld [vmem:[#allocation3 + $0x98] sm:$0xff]
      %v4625 = vld [vmem:[#allocation3 + $0xa0] sm:$0xff]
      %v4626 = vld [vmem:[#allocation3 + $0xa8] sm:$0xff]
      %v4627 = vld [vmem:[#allocation3 + $0xb0] sm:$0xff]
      %v4628 = vld [vmem:[#allocation3 + $0xb8] sm:$0xff]
      %v4629 = vld [vmem:[#allocation3 + $0xc8] sm:$0xff]
      %v4630 = vld [vmem:[#allocation3 + $0xd0] sm:$0xff]
      %v4631 = vld [vmem:[#allocation3 + $0xd8] sm:$0xff]
      %v4632 = vld [vmem:[#allocation3 + $0xe0] sm:$0xff]
      %v4633 = vld [vmem:[#allocation3 + $0xe8] sm:$0xff]
      %v4634 = vld [vmem:[#allocation3 + $0xf8] sm:$0xff]
      %v4635 = vld [vmem:[#allocation3 + $0x100] sm:$0xff]
      %v4636 = vld [vmem:[#allocation3 + $0x108] sm:$0xff]
      %v4637 = vld [vmem:[#allocation3 + $0x110] sm:$0xff]
      %v4638 = vld [vmem:[#allocation3 + $0x118] sm:$0xff]
      %v4639 = vld [vmem:[#allocation3 + $0x128] sm:$0xff]
      %v4640 = vld [vmem:[#allocation3 + $0x130] sm:$0xff]
      %v4641 = vld [vmem:[#allocation3 + $0x138] sm:$0xff]
      %v4642 = vld [vmem:[#allocation3 + $0x140] sm:$0xff]
      %v4643 = vld [vmem:[#allocation3 + $0x148] sm:$0xff]
      %v4644 = vld [vmem:[#allocation3 + $0x158] sm:$0xff]
      %v4645 = vld [vmem:[#allocation3 + $0x160] sm:$0xff]
      %v4646 = vld [vmem:[#allocation3 + $0x168] sm:$0xff]
      %v4647 = vld [vmem:[#allocation3 + $0x170] sm:$0xff]
      %v4648 = vld [vmem:[#allocation3 + $0x178] sm:$0xff]
      %v4649 = vld [vmem:[#allocation3 + $0x188] sm:$0xff]
      %v4650 = vld [vmem:[#allocation3 + $0x190] sm:$0xff]
      %v4651 = vld [vmem:[#allocation3 + $0x198] sm:$0xff]
      %v4652 = vld [vmem:[#allocation3 + $0x1a0] sm:$0xff]
      %v4653 = vld [vmem:[#allocation3 + $0x1a8] sm:$0xff]
      %v4654 = vld [vmem:[#allocation3 + $0x1b8] sm:$0xff]
      %v4655 = vld [vmem:[#allocation3 + $0x1c0] sm:$0xff]
      %v4656 = vld [vmem:[#allocation3 + $0x1c8] sm:$0xff]
      %v4657 = vld [vmem:[#allocation3 + $0x1d0] sm:$0xff]
      %v4658 = vld [vmem:[#allocation3 + $0x1d8] sm:$0xff]
      %v4659 = vld [vmem:[#allocation3 + $0x1e8] sm:$0xff]
      %v4660 = vld [vmem:[#allocation3 + $0x1f0] sm:$0xff]
      %v4661 = vld [vmem:[#allocation3 + $0x1f8] sm:$0xff]
      %v4662 = vld [vmem:[#allocation3 + $0x200] sm:$0xff]
      %v4663 = vld [vmem:[#allocation3 + $0x208] sm:$0xff]
      %v4664 = vld [vmem:[#allocation3 + $0x218] sm:$0xff]
      %v4665 = vld [vmem:[#allocation3 + $0x220] sm:$0xff]
      %v4666 = vld [vmem:[#allocation3 + $0x228] sm:$0xff]
      %v4667 = vld [vmem:[#allocation3 + $0x230] sm:$0xff]
      %v4668 = vld [vmem:[#allocation3 + $0x238] sm:$0xff]
      %v4669 = vld [vmem:[#allocation3 + $0x248] sm:$0xff]
      %v4670 = vld [vmem:[#allocation3 + $0x250] sm:$0xff]
      %v4671 = vld [vmem:[#allocation3 + $0x258] sm:$0xff]
      %v4672 = vld [vmem:[#allocation3 + $0x260] sm:$0xff]
      %v4673 = vld [vmem:[#allocation3 + $0x268] sm:$0xff]
      %v4674 = vld [vmem:[#allocation3 + $0x278] sm:$0xff]
      %v4675 = vld [vmem:[#allocation3 + $0x280] sm:$0xff]
      %v4676 = vld [vmem:[#allocation3 + $0x288] sm:$0xff]
      %v4677 = vld [vmem:[#allocation3 + $0x290] sm:$0xff]
      %v4678 = vld [vmem:[#allocation3 + $0x298] sm:$0xff]
      %v4679 = vld [vmem:[#allocation3 + $0x2a8] sm:$0xff]
      %v4680 = vld [vmem:[#allocation3 + $0x2b0] sm:$0xff]
      %v4681 = vld [vmem:[#allocation3 + $0x2b8] sm:$0xff]
      %v4682 = vld [vmem:[#allocation3 + $0x2c0] sm:$0xff]
      %v4683 = vld [vmem:[#allocation3 + $0x2c8] sm:$0xff]
      %v4684 = vld [vmem:[#allocation3 + $0x2d8] sm:$0xff]
      %v4685 = vld [vmem:[#allocation3 + $0x2e0] sm:$0xff]
      %v4686 = vld [vmem:[#allocation3 + $0x2e8] sm:$0xff]
      %v4687 = vld [vmem:[#allocation3 + $0x2f0] sm:$0xff]
      %v4688 = vld [vmem:[#allocation3 + $0x2f8] sm:$0xff]
      %v4689 = vld [vmem:[#allocation3 + $0x308] sm:$0xff]
      %v4690 = vld [vmem:[#allocation3 + $0x310] sm:$0xff]
      %v4691 = vld [vmem:[#allocation3 + $0x318] sm:$0xff]
      %v4692 = vld [vmem:[#allocation3 + $0x320] sm:$0xff]
      %v4693 = vld [vmem:[#allocation3 + $0x328] sm:$0xff]
      %v4694 = vld [vmem:[#allocation3 + $0x338] sm:$0xff]
      %v4695 = vld [vmem:[#allocation3 + $0x340] sm:$0xff]
      %v4696 = vld [vmem:[#allocation3 + $0x348] sm:$0xff]
      %v4697 = vld [vmem:[#allocation3 + $0x350] sm:$0xff]
      %v4698 = vld [vmem:[#allocation3 + $0x358] sm:$0xff]
      %v4699 = vld [vmem:[#allocation3 + $0x368] sm:$0xff]
      %v4700 = vld [vmem:[#allocation3 + $0x370] sm:$0xff]
      %v4701 = vld [vmem:[#allocation3 + $0x378] sm:$0xff]
      %v4702 = vld [vmem:[#allocation3 + $0x380] sm:$0xff]
      %v4703 = vld [vmem:[#allocation3 + $0x388] sm:$0xff]
      %v4704 = vld [vmem:[#allocation3 + $0x398] sm:$0xff]
      %v4705 = vld [vmem:[#allocation3 + $0x3a0] sm:$0xff]
      %v4706 = vld [vmem:[#allocation3 + $0x3a8] sm:$0xff]
      %v4707 = vld [vmem:[#allocation3 + $0x3b0] sm:$0xff]
      %v4708 = vld [vmem:[#allocation3 + $0x3b8] sm:$0xff]
      %4809 = vrot.lane.b32.xlu0 %v4609, 64
      %v4810 = vpop.permute.xlu0 %4809
      %4811 = vrot.lane.b32.xlu0 %v4610, 64
      %v4812 = vpop.permute.xlu0 %4811
      %4813 = vrot.lane.b32.xlu0 %v4611, 64
      %v4814 = vpop.permute.xlu0 %4813
      %4815 = vrot.lane.b32.xlu0 %v4612, 64
      %v4816 = vpop.permute.xlu0 %4815
      %4817 = vrot.lane.b32.xlu0 %v4613, 64
      %v4818 = vpop.permute.xlu0 %4817
      %4819 = vrot.lane.b32.xlu0 %v4614, 64
      %v4820 = vpop.permute.xlu0 %4819
      %4821 = vrot.lane.b32.xlu0 %v4615, 64
      %v4822 = vpop.permute.xlu0 %4821
      %4823 = vrot.lane.b32.xlu0 %v4616, 64
      %v4824 = vpop.permute.xlu0 %4823
      %4825 = vrot.lane.b32.xlu0 %v4617, 64
      %v4826 = vpop.permute.xlu0 %4825
      %4827 = vrot.lane.b32.xlu0 %v4618, 64
      %v4828 = vpop.permute.xlu0 %4827
      %4829 = vrot.lane.b32.xlu0 %v4619, 64
      %v4830 = vpop.permute.xlu0 %4829
      %4831 = vrot.lane.b32.xlu0 %v4620, 64
      %v4832 = vpop.permute.xlu0 %4831
      %4833 = vrot.lane.b32.xlu0 %v4621, 64
      %v4834 = vpop.permute.xlu0 %4833
      %4835 = vrot.lane.b32.xlu0 %v4622, 64
      %v4836 = vpop.permute.xlu0 %4835
      %4837 = vrot.lane.b32.xlu0 %v4623, 64
      %v4838 = vpop.permute.xlu0 %4837
      %4839 = vrot.lane.b32.xlu0 %v4624, 64
      %v4840 = vpop.permute.xlu0 %4839
      %4841 = vrot.lane.b32.xlu0 %v4625, 64
      %v4842 = vpop.permute.xlu0 %4841
      %4843 = vrot.lane.b32.xlu0 %v4626, 64
      %v4844 = vpop.permute.xlu0 %4843
      %4845 = vrot.lane.b32.xlu0 %v4627, 64
      %v4846 = vpop.permute.xlu0 %4845
      %4847 = vrot.lane.b32.xlu0 %v4628, 64
      %v4848 = vpop.permute.xlu0 %4847
      %4849 = vrot.lane.b32.xlu0 %v4629, 64
      %v4850 = vpop.permute.xlu0 %4849
      %4851 = vrot.lane.b32.xlu0 %v4630, 64
      %v4852 = vpop.permute.xlu0 %4851
      %4853 = vrot.lane.b32.xlu0 %v4631, 64
      %v4854 = vpop.permute.xlu0 %4853
      %4855 = vrot.lane.b32.xlu0 %v4632, 64
      %v4856 = vpop.permute.xlu0 %4855
      %4857 = vrot.lane.b32.xlu0 %v4633, 64
      %v4858 = vpop.permute.xlu0 %4857
      %4859 = vrot.lane.b32.xlu0 %v4634, 64
      %v4860 = vpop.permute.xlu0 %4859
      %4861 = vrot.lane.b32.xlu0 %v4635, 64
      %v4862 = vpop.permute.xlu0 %4861
      %4863 = vrot.lane.b32.xlu0 %v4636, 64
      %v4864 = vpop.permute.xlu0 %4863
      %4865 = vrot.lane.b32.xlu0 %v4637, 64
      %v4866 = vpop.permute.xlu0 %4865
      %4867 = vrot.lane.b32.xlu0 %v4638, 64
      %v4868 = vpop.permute.xlu0 %4867
      %4869 = vrot.lane.b32.xlu0 %v4639, 64
      %v4870 = vpop.permute.xlu0 %4869
      %4871 = vrot.lane.b32.xlu0 %v4640, 64
      %v4872 = vpop.permute.xlu0 %4871
      %4873 = vrot.lane.b32.xlu0 %v4641, 64
      %v4874 = vpop.permute.xlu0 %4873
      %4875 = vrot.lane.b32.xlu0 %v4642, 64
      %v4876 = vpop.permute.xlu0 %4875
      %4877 = vrot.lane.b32.xlu0 %v4643, 64
      %v4878 = vpop.permute.xlu0 %4877
      %4879 = vrot.lane.b32.xlu0 %v4644, 64
      %v4880 = vpop.permute.xlu0 %4879
      %4881 = vrot.lane.b32.xlu0 %v4645, 64
      %v4882 = vpop.permute.xlu0 %4881
      %4883 = vrot.lane.b32.xlu0 %v4646, 64
      %v4884 = vpop.permute.xlu0 %4883
      %4885 = vrot.lane.b32.xlu0 %v4647, 64
      %v4886 = vpop.permute.xlu0 %4885
      %4887 = vrot.lane.b32.xlu0 %v4648, 64
      %v4888 = vpop.permute.xlu0 %4887
      %4889 = vrot.lane.b32.xlu0 %v4649, 64
      %v4890 = vpop.permute.xlu0 %4889
      %4891 = vrot.lane.b32.xlu0 %v4650, 64
      %v4892 = vpop.permute.xlu0 %4891
      %4893 = vrot.lane.b32.xlu0 %v4651, 64
      %v4894 = vpop.permute.xlu0 %4893
      %4895 = vrot.lane.b32.xlu0 %v4652, 64
      %v4896 = vpop.permute.xlu0 %4895
      %4897 = vrot.lane.b32.xlu0 %v4653, 64
      %v4898 = vpop.permute.xlu0 %4897
      %4899 = vrot.lane.b32.xlu0 %v4654, 64
      %v4900 = vpop.permute.xlu0 %4899
      %4901 = vrot.lane.b32.xlu0 %v4655, 64
      %v4902 = vpop.permute.xlu0 %4901
      %4903 = vrot.lane.b32.xlu0 %v4656, 64
      %v4904 = vpop.permute.xlu0 %4903
      %4905 = vrot.lane.b32.xlu0 %v4657, 64
      %v4906 = vpop.permute.xlu0 %4905
      %4907 = vrot.lane.b32.xlu0 %v4658, 64
      %v4908 = vpop.permute.xlu0 %4907
      %4909 = vrot.lane.b32.xlu0 %v4659, 64
      %v4910 = vpop.permute.xlu0 %4909
      %4911 = vrot.lane.b32.xlu0 %v4660, 64
      %v4912 = vpop.permute.xlu0 %4911
      %4913 = vrot.lane.b32.xlu0 %v4661, 64
      %v4914 = vpop.permute.xlu0 %4913
      %4915 = vrot.lane.b32.xlu0 %v4662, 64
      %v4916 = vpop.permute.xlu0 %4915
      %4917 = vrot.lane.b32.xlu0 %v4663, 64
      %v4918 = vpop.permute.xlu0 %4917
      %4919 = vrot.lane.b32.xlu0 %v4664, 64
      %v4920 = vpop.permute.xlu0 %4919
      %4921 = vrot.lane.b32.xlu0 %v4665, 64
      %v4922 = vpop.permute.xlu0 %4921
      %4923 = vrot.lane.b32.xlu0 %v4666, 64
      %v4924 = vpop.permute.xlu0 %4923
      %4925 = vrot.lane.b32.xlu0 %v4667, 64
      %v4926 = vpop.permute.xlu0 %4925
      %4927 = vrot.lane.b32.xlu0 %v4668, 64
      %v4928 = vpop.permute.xlu0 %4927
      %4929 = vrot.lane.b32.xlu0 %v4669, 64
      %v4930 = vpop.permute.xlu0 %4929
      %4931 = vrot.lane.b32.xlu0 %v4670, 64
      %v4932 = vpop.permute.xlu0 %4931
      %4933 = vrot.lane.b32.xlu0 %v4671, 64
      %v4934 = vpop.permute.xlu0 %4933
      %4935 = vrot.lane.b32.xlu0 %v4672, 64
      %v4936 = vpop.permute.xlu0 %4935
      %4937 = vrot.lane.b32.xlu0 %v4673, 64
      %v4938 = vpop.permute.xlu0 %4937
      %4939 = vrot.lane.b32.xlu0 %v4674, 64
      %v4940 = vpop.permute.xlu0 %4939
      %4941 = vrot.lane.b32.xlu0 %v4675, 64
      %v4942 = vpop.permute.xlu0 %4941
      %4943 = vrot.lane.b32.xlu0 %v4676, 64
      %v4944 = vpop.permute.xlu0 %4943
      %4945 = vrot.lane.b32.xlu0 %v4677, 64
      %v4946 = vpop.permute.xlu0 %4945
      %4947 = vrot.lane.b32.xlu0 %v4678, 64
      %v4948 = vpop.permute.xlu0 %4947
      %4949 = vrot.lane.b32.xlu0 %v4679, 64
      %v4950 = vpop.permute.xlu0 %4949
      %4951 = vrot.lane.b32.xlu0 %v4680, 64
      %v4952 = vpop.permute.xlu0 %4951
      %4953 = vrot.lane.b32.xlu0 %v4681, 64
      %v4954 = vpop.permute.xlu0 %4953
      %4955 = vrot.lane.b32.xlu0 %v4682, 64
      %v4956 = vpop.permute.xlu0 %4955
      %4957 = vrot.lane.b32.xlu0 %v4683, 64
      %v4958 = vpop.permute.xlu0 %4957
      %4959 = vrot.lane.b32.xlu0 %v4684, 64
      %v4960 = vpop.permute.xlu0 %4959
      %4961 = vrot.lane.b32.xlu0 %v4685, 64
      %v4962 = vpop.permute.xlu0 %4961
      %4963 = vrot.lane.b32.xlu0 %v4686, 64
      %v4964 = vpop.permute.xlu0 %4963
      %4965 = vrot.lane.b32.xlu0 %v4687, 64
      %v4966 = vpop.permute.xlu0 %4965
      %4967 = vrot.lane.b32.xlu0 %v4688, 64
      %v4968 = vpop.permute.xlu0 %4967
      %4969 = vrot.lane.b32.xlu0 %v4689, 64
      %v4970 = vpop.permute.xlu0 %4969
      %4971 = vrot.lane.b32.xlu0 %v4690, 64
      %v4972 = vpop.permute.xlu0 %4971
      %4973 = vrot.lane.b32.xlu0 %v4691, 64
      %v4974 = vpop.permute.xlu0 %4973
      %4975 = vrot.lane.b32.xlu0 %v4692, 64
      %v4976 = vpop.permute.xlu0 %4975
      %4977 = vrot.lane.b32.xlu0 %v4693, 64
      %v4978 = vpop.permute.xlu0 %4977
      %4979 = vrot.lane.b32.xlu0 %v4694, 64
      %v4980 = vpop.permute.xlu0 %4979
      %4981 = vrot.lane.b32.xlu0 %v4695, 64
      %v4982 = vpop.permute.xlu0 %4981
      %4983 = vrot.lane.b32.xlu0 %v4696, 64
      %v4984 = vpop.permute.xlu0 %4983
      %4985 = vrot.lane.b32.xlu0 %v4697, 64
      %v4986 = vpop.permute.xlu0 %4985
      %4987 = vrot.lane.b32.xlu0 %v4698, 64
      %v4988 = vpop.permute.xlu0 %4987
      %4989 = vrot.lane.b32.xlu0 %v4699, 64
      %v4990 = vpop.permute.xlu0 %4989
      %4991 = vrot.lane.b32.xlu0 %v4700, 64
      %v4992 = vpop.permute.xlu0 %4991
      %4993 = vrot.lane.b32.xlu0 %v4701, 64
      %v4994 = vpop.permute.xlu0 %4993
      %4995 = vrot.lane.b32.xlu0 %v4702, 64
      %v4996 = vpop.permute.xlu0 %4995
      %4997 = vrot.lane.b32.xlu0 %v4703, 64
      %v4998 = vpop.permute.xlu0 %4997
      %4999 = vrot.lane.b32.xlu0 %v4704, 64
      %v5000 = vpop.permute.xlu0 %4999
      %5001 = vrot.lane.b32.xlu0 %v4705, 64
      %v5002 = vpop.permute.xlu0 %5001
      %5003 = vrot.lane.b32.xlu0 %v4706, 64
      %v5004 = vpop.permute.xlu0 %5003
      %5005 = vrot.lane.b32.xlu0 %v4707, 64
      %v5006 = vpop.permute.xlu0 %5005
      %5007 = vrot.lane.b32.xlu0 %v4708, 64
      %v5008 = vpop.permute.xlu0 %5007
      %v5009 = vsel %vm717, %v4810, %v4812
      %v5010 = vsel %vm717, %v4812, %v4814
      %v5011 = vsel %vm717, %v4814, %v4816
      %v5012 = vsel %vm717, %v4816, %v4818
      %v5013 = vsel %vm717, %v4820, %v4822
      %v5014 = vsel %vm717, %v4822, %v4824
      %v5015 = vsel %vm717, %v4824, %v4826
      %v5016 = vsel %vm717, %v4826, %v4828
      %v5017 = vsel %vm717, %v4830, %v4832
      %v5018 = vsel %vm717, %v4832, %v4834
      %v5019 = vsel %vm717, %v4834, %v4836
      %v5020 = vsel %vm717, %v4836, %v4838
      %v5021 = vsel %vm717, %v4840, %v4842
      %v5022 = vsel %vm717, %v4842, %v4844
      %v5023 = vsel %vm717, %v4844, %v4846
      %v5024 = vsel %vm717, %v4846, %v4848
      %v5025 = vsel %vm717, %v4850, %v4852
      %v5026 = vsel %vm717, %v4852, %v4854
      %v5027 = vsel %vm717, %v4854, %v4856
      %v5028 = vsel %vm717, %v4856, %v4858
      %v5029 = vsel %vm717, %v4860, %v4862
      %v5030 = vsel %vm717, %v4862, %v4864
      %v5031 = vsel %vm717, %v4864, %v4866
      %v5032 = vsel %vm717, %v4866, %v4868
      %v5033 = vsel %vm717, %v4870, %v4872
      %v5034 = vsel %vm717, %v4872, %v4874
      %v5035 = vsel %vm717, %v4874, %v4876
      %v5036 = vsel %vm717, %v4876, %v4878
      %v5037 = vsel %vm717, %v4880, %v4882
      %v5038 = vsel %vm717, %v4882, %v4884
      %v5039 = vsel %vm717, %v4884, %v4886
      %v5040 = vsel %vm717, %v4886, %v4888
      %v5041 = vsel %vm717, %v4890, %v4892
      %v5042 = vsel %vm717, %v4892, %v4894
      %v5043 = vsel %vm717, %v4894, %v4896
      %v5044 = vsel %vm717, %v4896, %v4898
      %v5045 = vsel %vm717, %v4900, %v4902
      %v5046 = vsel %vm717, %v4902, %v4904
      %v5047 = vsel %vm717, %v4904, %v4906
      %v5048 = vsel %vm717, %v4906, %v4908
      %v5049 = vsel %vm717, %v4910, %v4912
      %v5050 = vsel %vm717, %v4912, %v4914
      %v5051 = vsel %vm717, %v4914, %v4916
      %v5052 = vsel %vm717, %v4916, %v4918
      %v5053 = vsel %vm717, %v4920, %v4922
      %v5054 = vsel %vm717, %v4922, %v4924
      %v5055 = vsel %vm717, %v4924, %v4926
      %v5056 = vsel %vm717, %v4926, %v4928
      %v5057 = vsel %vm717, %v4930, %v4932
      %v5058 = vsel %vm717, %v4932, %v4934
      %v5059 = vsel %vm717, %v4934, %v4936
      %v5060 = vsel %vm717, %v4936, %v4938
      %v5061 = vsel %vm717, %v4940, %v4942
      %v5062 = vsel %vm717, %v4942, %v4944
      %v5063 = vsel %vm717, %v4944, %v4946
      %v5064 = vsel %vm717, %v4946, %v4948
      %v5065 = vsel %vm717, %v4950, %v4952
      %v5066 = vsel %vm717, %v4952, %v4954
      %v5067 = vsel %vm717, %v4954, %v4956
      %v5068 = vsel %vm717, %v4956, %v4958
      %v5069 = vsel %vm717, %v4960, %v4962
      %v5070 = vsel %vm717, %v4962, %v4964
      %v5071 = vsel %vm717, %v4964, %v4966
      %v5072 = vsel %vm717, %v4966, %v4968
      %v5073 = vsel %vm717, %v4970, %v4972
      %v5074 = vsel %vm717, %v4972, %v4974
      %v5075 = vsel %vm717, %v4974, %v4976
      %v5076 = vsel %vm717, %v4976, %v4978
      %v5077 = vsel %vm717, %v4980, %v4982
      %v5078 = vsel %vm717, %v4982, %v4984
      %v5079 = vsel %vm717, %v4984, %v4986
      %v5080 = vsel %vm717, %v4986, %v4988
      %v5081 = vsel %vm717, %v4990, %v4992
      %v5082 = vsel %vm717, %v4992, %v4994
      %v5083 = vsel %vm717, %v4994, %v4996
      %v5084 = vsel %vm717, %v4996, %v4998
      %v5085 = vsel %vm717, %v5000, %v5002
      %v5086 = vsel %vm717, %v5002, %v5004
      %v5087 = vsel %vm717, %v5004, %v5006
      %v5088 = vsel %vm717, %v5006, %v5008
      %v5170 = vsel %vm963, %v4606, 0
      %v5173 = vsel %vm963, %v4608, 0
      %5175 = vmatprep.subr.mxu0 %v5010
      %5176 = vmatpush1.msra.mxu0 %v5009
      %5177 = vmatprep.subr.mxu0 %v5014
      %5178 = vmatpush1.msra.mxu0 %v5013
      %5179 = vmatprep.subr.mxu0 %v5018
      %5180 = vmatpush1.msra.mxu0 %v5017
      %5181 = vmatprep.subr.mxu0 %v5022
      %5182 = vmatpush1.msra.mxu0 %v5021
      %5183 = vmatprep.subr.mxu0 %v5026
      %5184 = vmatpush1.msra.mxu0 %v5025
      %5185 = vmatprep.subr.mxu0 %v5030
      %5186 = vmatpush1.msra.mxu0 %v5029
      %5187 = vmatprep.subr.mxu0 %v5034
      %5188 = vmatpush1.msra.mxu0 %v5033
      %5189 = vmatprep.subr.mxu0 %v5038
      %5190 = vmatpush1.msra.mxu0 %v5037
      %5191 = vmatprep.subr.mxu0 %v5042
      %5192 = vmatpush1.msra.mxu0 %v5041
      %5193 = vmatprep.subr.mxu0 %v5046
      %5194 = vmatpush1.msra.mxu0 %v5045
      %5195 = vmatprep.subr.mxu0 %v5050
      %5196 = vmatpush1.msra.mxu0 %v5049
      %5197 = vmatprep.subr.mxu0 %v5054
      %5198 = vmatpush1.msra.mxu0 %v5053
      %5199 = vmatprep.subr.mxu0 %v5058
      %5200 = vmatpush1.msra.mxu0 %v5057
      %5201 = vmatprep.subr.mxu0 %v5062
      %5202 = vmatpush1.msra.mxu0 %v5061
      %5203 = vmatprep.subr.mxu0 %v5066
      %5204 = vmatpush1.msra.mxu0 %v5065
      %5205 = vmatprep.subr.mxu0 %v5070
      %5206 = vmatpush1.msra.mxu0 %v5069
      %5207 = vmatprep.subr.mxu0 %v5074
      %5208 = vmatpush1.msra.mxu0 %v5073
      %5209 = vmatprep.subr.mxu0 %v5078
      %5210 = vmatpush1.msra.mxu0 %v5077
      %5211 = vmatprep.subr.mxu0 %v5082
      %5212 = vmatpush1.msra.mxu0 %v5081
      %5213 = vmatprep.subr.mxu0 %v5086
      %5214 = vmatpush1.msra.mxu0 %v5085
      %5215 = vmatprep.subr.mxu0 0.0
      %5216 = vmatpush1.msra.mxu0 0.0
      %5217 = vmatprep.subr.mxu0 0.0
      %5218 = vmatpush1.msra.mxu0 0.0
      %5219 = vmatprep.subr.mxu0 0.0
      %5220 = vmatpush1.msra.mxu0 0.0
      %5221 = vmatprep.subr.mxu0 0.0
      %5222 = vmatpush1.msra.mxu0 0.0
      %5223 = vmatprep.subr.mxu0 0.0
      %5224 = vmatpush1.msra.mxu0 0.0
      %5225 = vmatprep.subr.mxu0 0.0
      %5226 = vmatpush1.msra.mxu0 0.0
      %5227 = vmatprep.subr.mxu0 0.0
      %5228 = vmatpush1.msra.mxu0 0.0
      %5229 = vmatprep.subr.mxu0 0.0
      %5230 = vmatpush1.msra.mxu0 0.0
      %5231 = vmatprep.subr.mxu0 0.0
      %5232 = vmatpush1.msra.mxu0 0.0
      %5233 = vmatprep.subr.mxu0 0.0
      %5234 = vmatpush1.msra.mxu0 0.0
      %5235 = vmatprep.subr.mxu0 0.0
      %5236 = vmatpush1.msra.mxu0 0.0
      %5237 = vmatprep.subr.mxu0 0.0
      %5238 = vmatpush1.msra.mxu0 0.0
      %5239 = vmatprep.mubr.f32.mxu0 %v5170
      %5240 = vmatmul.mubr.f32.gmra.mrb[0].mxu0 %v4605
      %v5241 = vpop.f32.mrb[0].mxu0
      %v5242 = vadd.f32 0.0, %v5241
      %v5243 = vpop.f32.mrb[0].mxu0
      %v5244 = vadd.f32 0.0, %v5243
      %5245 = vmatprep.mubr.f32.mxu0 %v5173
      %5246 = vmatmul.mubr.f32.gmra.mrb[0].mxu0 %v4607
      %v5247 = vpop.f32.mrb[0].mxu0
      %v5248 = vadd.f32 0.0, %v5247
      %v5249 = vpop.f32.mrb[0].mxu0
      %v5250 = vadd.f32 0.0, %v5249
      %5251 = vdwg.mxu0
      %5252 = vmatprep.subr.mxu0 %v5012
      %5253 = vmatpush1.msra.mxu0 %v5011
      %5254 = vmatprep.subr.mxu0 %v5016
      %5255 = vmatpush1.msra.mxu0 %v5015
      %5256 = vmatprep.subr.mxu0 %v5020
      %5257 = vmatpush1.msra.mxu0 %v5019
      %5258 = vmatprep.subr.mxu0 %v5024
      %5259 = vmatpush1.msra.mxu0 %v5023
      %5260 = vmatprep.subr.mxu0 %v5028
      %5261 = vmatpush1.msra.mxu0 %v5027
      %5262 = vmatprep.subr.mxu0 %v5032
      %5263 = vmatpush1.msra.mxu0 %v5031
      %5264 = vmatprep.subr.mxu0 %v5036
      %5265 = vmatpush1.msra.mxu0 %v5035
      %5266 = vmatprep.subr.mxu0 %v5040
      %5267 = vmatpush1.msra.mxu0 %v5039
      %5268 = vmatprep.subr.mxu0 %v5044
      %5269 = vmatpush1.msra.mxu0 %v5043
      %5270 = vmatprep.subr.mxu0 %v5048
      %5271 = vmatpush1.msra.mxu0 %v5047
      %5272 = vmatprep.subr.mxu0 %v5052
      %5273 = vmatpush1.msra.mxu0 %v5051
      %5274 = vmatprep.subr.mxu0 %v5056
      %5275 = vmatpush1.msra.mxu0 %v5055
      %5276 = vmatprep.subr.mxu0 %v5060
      %5277 = vmatpush1.msra.mxu0 %v5059
      %5278 = vmatprep.subr.mxu0 %v5064
      %5279 = vmatpush1.msra.mxu0 %v5063
      %5280 = vmatprep.subr.mxu0 %v5068
      %5281 = vmatpush1.msra.mxu0 %v5067
      %5282 = vmatprep.subr.mxu0 %v5072
      %5283 = vmatpush1.msra.mxu0 %v5071
      %5284 = vmatprep.subr.mxu0 %v5076
      %5285 = vmatpush1.msra.mxu0 %v5075
      %5286 = vmatprep.subr.mxu0 %v5080
      %5287 = vmatpush1.msra.mxu0 %v5079
      %5288 = vmatprep.subr.mxu0 %v5084
      %5289 = vmatpush1.msra.mxu0 %v5083
      %5290 = vmatprep.subr.mxu0 %v5088
      %5291 = vmatpush1.msra.mxu0 %v5087
      %5292 = vmatprep.subr.mxu0 0.0
      %5293 = vmatpush1.msra.mxu0 0.0
      %5294 = vmatprep.subr.mxu0 0.0
      %5295 = vmatpush1.msra.mxu0 0.0
      %5296 = vmatprep.subr.mxu0 0.0
      %5297 = vmatpush1.msra.mxu0 0.0
      %5298 = vmatprep.subr.mxu0 0.0
      %5299 = vmatpush1.msra.mxu0 0.0
      %5300 = vmatprep.subr.mxu0 0.0
      %5301 = vmatpush1.msra.mxu0 0.0
      %5302 = vmatprep.subr.mxu0 0.0
      %5303 = vmatpush1.msra.mxu0 0.0
      %5304 = vmatprep.subr.mxu0 0.0
      %5305 = vmatpush1.msra.mxu0 0.0
      %5306 = vmatprep.subr.mxu0 0.0
      %5307 = vmatpush1.msra.mxu0 0.0
      %5308 = vmatprep.subr.mxu0 0.0
      %5309 = vmatpush1.msra.mxu0 0.0
      %5310 = vmatprep.subr.mxu0 0.0
      %5311 = vmatpush1.msra.mxu0 0.0
      %5312 = vmatprep.subr.mxu0 0.0
      %5313 = vmatpush1.msra.mxu0 0.0
      %5314 = vmatprep.subr.mxu0 0.0
      %5315 = vmatpush1.msra.mxu0 0.0
      %5316 = vmatprep.mubr.f32.mxu0 %v5170
      %5317 = vmatmul.mubr.f32.gmra.mrb[0].mxu0 %v4605
      %v5318 = vpop.f32.mrb[0].mxu0
      %v5319 = vadd.f32 0.0, %v5318
      %v5320 = vpop.f32.mrb[0].mxu0
      %v5321 = vadd.f32 0.0, %v5320
      %5322 = vmatprep.mubr.f32.mxu0 %v5173
      %5323 = vmatmul.mubr.f32.gmra.mrb[0].mxu0 %v4607
      %v5324 = vpop.f32.mrb[0].mxu0
      %v5325 = vadd.f32 0.0, %v5324
      %v5326 = vpop.f32.mrb[0].mxu0
      %v5327 = vadd.f32 0.0, %v5326
      %5328 = vdwg.mxu0
      %v5329 = vadd.f32 %v4596, %v5242
      %v5330 = vadd.f32 %v4597, %v5244
      %v5331 = vadd.f32 %v4598, %v5319
      %v5332 = vadd.f32 %v4599, %v5321
      %v5333 = vadd.f32 %v4600, %v5248
      %v5334 = vadd.f32 %v4601, %v5250
      %v5335 = vadd.f32 %v4602, %v5325
      %v5336 = vadd.f32 %v4603, %v5327
      %s5337 = scalar_lea.vmem %s5, 224
      %v5338 = vld [vmem:[%s5337] sm:$0xff]
      %v5339 = vld [vmem:[%s5337 + $0x8] sm:$0xff]
      %v5340 = vld [vmem:[%s5337 + $0x10] sm:$0xff]
      %v5341 = vld [vmem:[%s5337 + $0x18] sm:$0xff]
      %5342 = vrot.lane.b32.xlu0 %v4609, 32
      %v5343 = vpop.permute.xlu0 %5342
      %5344 = vrot.lane.b32.xlu0 %v4610, 32
      %v5345 = vpop.permute.xlu0 %5344
      %5346 = vrot.lane.b32.xlu0 %v4611, 32
      %v5347 = vpop.permute.xlu0 %5346
      %5348 = vrot.lane.b32.xlu0 %v4612, 32
      %v5349 = vpop.permute.xlu0 %5348
      %5350 = vrot.lane.b32.xlu0 %v4613, 32
      %v5351 = vpop.permute.xlu0 %5350
      %5352 = vrot.lane.b32.xlu0 %v4614, 32
      %v5353 = vpop.permute.xlu0 %5352
      %5354 = vrot.lane.b32.xlu0 %v4615, 32
      %v5355 = vpop.permute.xlu0 %5354
      %5356 = vrot.lane.b32.xlu0 %v4616, 32
      %v5357 = vpop.permute.xlu0 %5356
      %5358 = vrot.lane.b32.xlu0 %v4617, 32
      %v5359 = vpop.permute.xlu0 %5358
      %5360 = vrot.lane.b32.xlu0 %v4618, 32
      %v5361 = vpop.permute.xlu0 %5360
      %5362 = vrot.lane.b32.xlu0 %v4619, 32
      %v5363 = vpop.permute.xlu0 %5362
      %5364 = vrot.lane.b32.xlu0 %v4620, 32
      %v5365 = vpop.permute.xlu0 %5364
      %5366 = vrot.lane.b32.xlu0 %v4621, 32
      %v5367 = vpop.permute.xlu0 %5366
      %5368 = vrot.lane.b32.xlu0 %v4622, 32
      %v5369 = vpop.permute.xlu0 %5368
      %5370 = vrot.lane.b32.xlu0 %v4623, 32
      %v5371 = vpop.permute.xlu0 %5370
      %5372 = vrot.lane.b32.xlu0 %v4624, 32
      %v5373 = vpop.permute.xlu0 %5372
      %5374 = vrot.lane.b32.xlu0 %v4625, 32
      %v5375 = vpop.permute.xlu0 %5374
      %5376 = vrot.lane.b32.xlu0 %v4626, 32
      %v5377 = vpop.permute.xlu0 %5376
      %5378 = vrot.lane.b32.xlu0 %v4627, 32
      %v5379 = vpop.permute.xlu0 %5378
      %5380 = vrot.lane.b32.xlu0 %v4628, 32
      %v5381 = vpop.permute.xlu0 %5380
      %5382 = vrot.lane.b32.xlu0 %v4629, 32
      %v5383 = vpop.permute.xlu0 %5382
      %5384 = vrot.lane.b32.xlu0 %v4630, 32
      %v5385 = vpop.permute.xlu0 %5384
      %5386 = vrot.lane.b32.xlu0 %v4631, 32
      %v5387 = vpop.permute.xlu0 %5386
      %5388 = vrot.lane.b32.xlu0 %v4632, 32
      %v5389 = vpop.permute.xlu0 %5388
      %5390 = vrot.lane.b32.xlu0 %v4633, 32
      %v5391 = vpop.permute.xlu0 %5390
      %5392 = vrot.lane.b32.xlu0 %v4634, 32
      %v5393 = vpop.permute.xlu0 %5392
      %5394 = vrot.lane.b32.xlu0 %v4635, 32
      %v5395 = vpop.permute.xlu0 %5394
      %5396 = vrot.lane.b32.xlu0 %v4636, 32
      %v5397 = vpop.permute.xlu0 %5396
      %5398 = vrot.lane.b32.xlu0 %v4637, 32
      %v5399 = vpop.permute.xlu0 %5398
      %5400 = vrot.lane.b32.xlu0 %v4638, 32
      %v5401 = vpop.permute.xlu0 %5400
      %5402 = vrot.lane.b32.xlu0 %v4639, 32
      %v5403 = vpop.permute.xlu0 %5402
      %5404 = vrot.lane.b32.xlu0 %v4640, 32
      %v5405 = vpop.permute.xlu0 %5404
      %5406 = vrot.lane.b32.xlu0 %v4641, 32
      %v5407 = vpop.permute.xlu0 %5406
      %5408 = vrot.lane.b32.xlu0 %v4642, 32
      %v5409 = vpop.permute.xlu0 %5408
      %5410 = vrot.lane.b32.xlu0 %v4643, 32
      %v5411 = vpop.permute.xlu0 %5410
      %5412 = vrot.lane.b32.xlu0 %v4644, 32
      %v5413 = vpop.permute.xlu0 %5412
      %5414 = vrot.lane.b32.xlu0 %v4645, 32
      %v5415 = vpop.permute.xlu0 %5414
      %5416 = vrot.lane.b32.xlu0 %v4646, 32
      %v5417 = vpop.permute.xlu0 %5416
      %5418 = vrot.lane.b32.xlu0 %v4647, 32
      %v5419 = vpop.permute.xlu0 %5418
      %5420 = vrot.lane.b32.xlu0 %v4648, 32
      %v5421 = vpop.permute.xlu0 %5420
      %5422 = vrot.lane.b32.xlu0 %v4649, 32
      %v5423 = vpop.permute.xlu0 %5422
      %5424 = vrot.lane.b32.xlu0 %v4650, 32
      %v5425 = vpop.permute.xlu0 %5424
      %5426 = vrot.lane.b32.xlu0 %v4651, 32
      %v5427 = vpop.permute.xlu0 %5426
      %5428 = vrot.lane.b32.xlu0 %v4652, 32
      %v5429 = vpop.permute.xlu0 %5428
      %5430 = vrot.lane.b32.xlu0 %v4653, 32
      %v5431 = vpop.permute.xlu0 %5430
      %5432 = vrot.lane.b32.xlu0 %v4654, 32
      %v5433 = vpop.permute.xlu0 %5432
      %5434 = vrot.lane.b32.xlu0 %v4655, 32
      %v5435 = vpop.permute.xlu0 %5434
      %5436 = vrot.lane.b32.xlu0 %v4656, 32
      %v5437 = vpop.permute.xlu0 %5436
      %5438 = vrot.lane.b32.xlu0 %v4657, 32
      %v5439 = vpop.permute.xlu0 %5438
      %5440 = vrot.lane.b32.xlu0 %v4658, 32
      %v5441 = vpop.permute.xlu0 %5440
      %5442 = vrot.lane.b32.xlu0 %v4659, 32
      %v5443 = vpop.permute.xlu0 %5442
      %5444 = vrot.lane.b32.xlu0 %v4660, 32
      %v5445 = vpop.permute.xlu0 %5444
      %5446 = vrot.lane.b32.xlu0 %v4661, 32
      %v5447 = vpop.permute.xlu0 %5446
      %5448 = vrot.lane.b32.xlu0 %v4662, 32
      %v5449 = vpop.permute.xlu0 %5448
      %5450 = vrot.lane.b32.xlu0 %v4663, 32
      %v5451 = vpop.permute.xlu0 %5450
      %5452 = vrot.lane.b32.xlu0 %v4664, 32
      %v5453 = vpop.permute.xlu0 %5452
      %5454 = vrot.lane.b32.xlu0 %v4665, 32
      %v5455 = vpop.permute.xlu0 %5454
      %5456 = vrot.lane.b32.xlu0 %v4666, 32
      %v5457 = vpop.permute.xlu0 %5456
      %5458 = vrot.lane.b32.xlu0 %v4667, 32
      %v5459 = vpop.permute.xlu0 %5458
      %5460 = vrot.lane.b32.xlu0 %v4668, 32
      %v5461 = vpop.permute.xlu0 %5460
      %5462 = vrot.lane.b32.xlu0 %v4669, 32
      %v5463 = vpop.permute.xlu0 %5462
      %5464 = vrot.lane.b32.xlu0 %v4670, 32
      %v5465 = vpop.permute.xlu0 %5464
      %5466 = vrot.lane.b32.xlu0 %v4671, 32
      %v5467 = vpop.permute.xlu0 %5466
      %5468 = vrot.lane.b32.xlu0 %v4672, 32
      %v5469 = vpop.permute.xlu0 %5468
      %5470 = vrot.lane.b32.xlu0 %v4673, 32
      %v5471 = vpop.permute.xlu0 %5470
      %5472 = vrot.lane.b32.xlu0 %v4674, 32
      %v5473 = vpop.permute.xlu0 %5472
      %5474 = vrot.lane.b32.xlu0 %v4675, 32
      %v5475 = vpop.permute.xlu0 %5474
      %5476 = vrot.lane.b32.xlu0 %v4676, 32
      %v5477 = vpop.permute.xlu0 %5476
      %5478 = vrot.lane.b32.xlu0 %v4677, 32
      %v5479 = vpop.permute.xlu0 %5478
      %5480 = vrot.lane.b32.xlu0 %v4678, 32
      %v5481 = vpop.permute.xlu0 %5480
      %5482 = vrot.lane.b32.xlu0 %v4679, 32
      %v5483 = vpop.permute.xlu0 %5482
      %5484 = vrot.lane.b32.xlu0 %v4680, 32
      %v5485 = vpop.permute.xlu0 %5484
      %5486 = vrot.lane.b32.xlu0 %v4681, 32
      %v5487 = vpop.permute.xlu0 %5486
      %5488 = vrot.lane.b32.xlu0 %v4682, 32
      %v5489 = vpop.permute.xlu0 %5488
      %5490 = vrot.lane.b32.xlu0 %v4683, 32
      %v5491 = vpop.permute.xlu0 %5490
      %5492 = vrot.lane.b32.xlu0 %v4684, 32
      %v5493 = vpop.permute.xlu0 %5492
      %5494 = vrot.lane.b32.xlu0 %v4685, 32
      %v5495 = vpop.permute.xlu0 %5494
      %5496 = vrot.lane.b32.xlu0 %v4686, 32
      %v5497 = vpop.permute.xlu0 %5496
      %5498 = vrot.lane.b32.xlu0 %v4687, 32
      %v5499 = vpop.permute.xlu0 %5498
      %5500 = vrot.lane.b32.xlu0 %v4688, 32
      %v5501 = vpop.permute.xlu0 %5500
      %5502 = vrot.lane.b32.xlu0 %v4689, 32
      %v5503 = vpop.permute.xlu0 %5502
      %5504 = vrot.lane.b32.xlu0 %v4690, 32
      %v5505 = vpop.permute.xlu0 %5504
      %5506 = vrot.lane.b32.xlu0 %v4691, 32
      %v5507 = vpop.permute.xlu0 %5506
      %5508 = vrot.lane.b32.xlu0 %v4692, 32
      %v5509 = vpop.permute.xlu0 %5508
      %5510 = vrot.lane.b32.xlu0 %v4693, 32
      %v5511 = vpop.permute.xlu0 %5510
      %5512 = vrot.lane.b32.xlu0 %v4694, 32
      %v5513 = vpop.permute.xlu0 %5512
      %5514 = vrot.lane.b32.xlu0 %v4695, 32
      %v5515 = vpop.permute.xlu0 %5514
      %5516 = vrot.lane.b32.xlu0 %v4696, 32
      %v5517 = vpop.permute.xlu0 %5516
      %5518 = vrot.lane.b32.xlu0 %v4697, 32
      %v5519 = vpop.permute.xlu0 %5518
      %5520 = vrot.lane.b32.xlu0 %v4698, 32
      %v5521 = vpop.permute.xlu0 %5520
      %5522 = vrot.lane.b32.xlu0 %v4699, 32
      %v5523 = vpop.permute.xlu0 %5522
      %5524 = vrot.lane.b32.xlu0 %v4700, 32
      %v5525 = vpop.permute.xlu0 %5524
      %5526 = vrot.lane.b32.xlu0 %v4701, 32
      %v5527 = vpop.permute.xlu0 %5526
      %5528 = vrot.lane.b32.xlu0 %v4702, 32
      %v5529 = vpop.permute.xlu0 %5528
      %5530 = vrot.lane.b32.xlu0 %v4703, 32
      %v5531 = vpop.permute.xlu0 %5530
      %5532 = vrot.lane.b32.xlu0 %v4704, 32
      %v5533 = vpop.permute.xlu0 %5532
      %5534 = vrot.lane.b32.xlu0 %v4705, 32
      %v5535 = vpop.permute.xlu0 %5534
      %5536 = vrot.lane.b32.xlu0 %v4706, 32
      %v5537 = vpop.permute.xlu0 %5536
      %5538 = vrot.lane.b32.xlu0 %v4707, 32
      %v5539 = vpop.permute.xlu0 %5538
      %5540 = vrot.lane.b32.xlu0 %v4708, 32
      %v5541 = vpop.permute.xlu0 %5540
      %v5542 = vsel %vm963, %v5343, %v5345
      %v5543 = vsel %vm963, %v5345, %v5347
      %v5544 = vsel %vm963, %v5347, %v5349
      %v5545 = vsel %vm963, %v5349, %v5351
      %v5546 = vsel %vm963, %v5353, %v5355
      %v5547 = vsel %vm963, %v5355, %v5357
      %v5548 = vsel %vm963, %v5357, %v5359
      %v5549 = vsel %vm963, %v5359, %v5361
      %v5550 = vsel %vm963, %v5363, %v5365
      %v5551 = vsel %vm963, %v5365, %v5367
      %v5552 = vsel %vm963, %v5367, %v5369
      %v5553 = vsel %vm963, %v5369, %v5371
      %v5554 = vsel %vm963, %v5373, %v5375
      %v5555 = vsel %vm963, %v5375, %v5377
      %v5556 = vsel %vm963, %v5377, %v5379
      %v5557 = vsel %vm963, %v5379, %v5381
      %v5558 = vsel %vm963, %v5383, %v5385
      %v5559 = vsel %vm963, %v5385, %v5387
      %v5560 = vsel %vm963, %v5387, %v5389
      %v5561 = vsel %vm963, %v5389, %v5391
      %v5562 = vsel %vm963, %v5393, %v5395
      %v5563 = vsel %vm963, %v5395, %v5397
      %v5564 = vsel %vm963, %v5397, %v5399
      %v5565 = vsel %vm963, %v5399, %v5401
      %v5566 = vsel %vm963, %v5403, %v5405
      %v5567 = vsel %vm963, %v5405, %v5407
      %v5568 = vsel %vm963, %v5407, %v5409
      %v5569 = vsel %vm963, %v5409, %v5411
      %v5570 = vsel %vm963, %v5413, %v5415
      %v5571 = vsel %vm963, %v5415, %v5417
      %v5572 = vsel %vm963, %v5417, %v5419
      %v5573 = vsel %vm963, %v5419, %v5421
      %v5574 = vsel %vm963, %v5423, %v5425
      %v5575 = vsel %vm963, %v5425, %v5427
      %v5576 = vsel %vm963, %v5427, %v5429
      %v5577 = vsel %vm963, %v5429, %v5431
      %v5578 = vsel %vm963, %v5433, %v5435
      %v5579 = vsel %vm963, %v5435, %v5437
      %v5580 = vsel %vm963, %v5437, %v5439
      %v5581 = vsel %vm963, %v5439, %v5441
      %v5582 = vsel %vm963, %v5443, %v5445
      %v5583 = vsel %vm963, %v5445, %v5447
      %v5584 = vsel %vm963, %v5447, %v5449
      %v5585 = vsel %vm963, %v5449, %v5451
      %v5586 = vsel %vm963, %v5453, %v5455
      %v5587 = vsel %vm963, %v5455, %v5457
      %v5588 = vsel %vm963, %v5457, %v5459
      %v5589 = vsel %vm963, %v5459, %v5461
      %v5590 = vsel %vm963, %v5463, %v5465
      %v5591 = vsel %vm963, %v5465, %v5467
      %v5592 = vsel %vm963, %v5467, %v5469
      %v5593 = vsel %vm963, %v5469, %v5471
      %v5594 = vsel %vm963, %v5473, %v5475
      %v5595 = vsel %vm963, %v5475, %v5477
      %v5596 = vsel %vm963, %v5477, %v5479
      %v5597 = vsel %vm963, %v5479, %v5481
      %v5598 = vsel %vm963, %v5483, %v5485
      %v5599 = vsel %vm963, %v5485, %v5487
      %v5600 = vsel %vm963, %v5487, %v5489
      %v5601 = vsel %vm963, %v5489, %v5491
      %v5602 = vsel %vm963, %v5493, %v5495
      %v5603 = vsel %vm963, %v5495, %v5497
      %v5604 = vsel %vm963, %v5497, %v5499
      %v5605 = vsel %vm963, %v5499, %v5501
      %v5606 = vsel %vm963, %v5503, %v5505
      %v5607 = vsel %vm963, %v5505, %v5507
      %v5608 = vsel %vm963, %v5507, %v5509
      %v5609 = vsel %vm963, %v5509, %v5511
      %v5610 = vsel %vm963, %v5513, %v5515
      %v5611 = vsel %vm963, %v5515, %v5517
      %v5612 = vsel %vm963, %v5517, %v5519
      %v5613 = vsel %vm963, %v5519, %v5521
      %v5614 = vsel %vm963, %v5523, %v5525
      %v5615 = vsel %vm963, %v5525, %v5527
      %v5616 = vsel %vm963, %v5527, %v5529
      %v5617 = vsel %vm963, %v5529, %v5531
      %v5618 = vsel %vm963, %v5533, %v5535
      %v5619 = vsel %vm963, %v5535, %v5537
      %v5620 = vsel %vm963, %v5537, %v5539
      %v5621 = vsel %vm963, %v5539, %v5541
      %v5703 = vsel %vm963, %v5339, 0
      %v5706 = vsel %vm963, %v5341, 0
      %5708 = vmatprep.subr.mxu0 %v5543
      %5709 = vmatpush1.msra.mxu0 %v5542
      %5710 = vmatprep.subr.mxu0 %v5547
      %5711 = vmatpush1.msra.mxu0 %v5546
      %5712 = vmatprep.subr.mxu0 %v5551
      %5713 = vmatpush1.msra.mxu0 %v5550
      %5714 = vmatprep.subr.mxu0 %v5555
      %5715 = vmatpush1.msra.mxu0 %v5554
      %5716 = vmatprep.subr.mxu0 %v5559
      %5717 = vmatpush1.msra.mxu0 %v5558
      %5718 = vmatprep.subr.mxu0 %v5563
      %5719 = vmatpush1.msra.mxu0 %v5562
      %5720 = vmatprep.subr.mxu0 %v5567
      %5721 = vmatpush1.msra.mxu0 %v5566
      %5722 = vmatprep.subr.mxu0 %v5571
      %5723 = vmatpush1.msra.mxu0 %v5570
      %5724 = vmatprep.subr.mxu0 %v5575
      %5725 = vmatpush1.msra.mxu0 %v5574
      %5726 = vmatprep.subr.mxu0 %v5579
      %5727 = vmatpush1.msra.mxu0 %v5578
      %5728 = vmatprep.subr.mxu0 %v5583
      %5729 = vmatpush1.msra.mxu0 %v5582
      %5730 = vmatprep.subr.mxu0 %v5587
      %5731 = vmatpush1.msra.mxu0 %v5586
      %5732 = vmatprep.subr.mxu0 %v5591
      %5733 = vmatpush1.msra.mxu0 %v5590
      %5734 = vmatprep.subr.mxu0 %v5595
      %5735 = vmatpush1.msra.mxu0 %v5594
      %5736 = vmatprep.subr.mxu0 %v5599
      %5737 = vmatpush1.msra.mxu0 %v5598
      %5738 = vmatprep.subr.mxu0 %v5603
      %5739 = vmatpush1.msra.mxu0 %v5602
      %5740 = vmatprep.subr.mxu0 %v5607
      %5741 = vmatpush1.msra.mxu0 %v5606
      %5742 = vmatprep.subr.mxu0 %v5611
      %5743 = vmatpush1.msra.mxu0 %v5610
      %5744 = vmatprep.subr.mxu0 %v5615
      %5745 = vmatpush1.msra.mxu0 %v5614
      %5746 = vmatprep.subr.mxu0 %v5619
      %5747 = vmatpush1.msra.mxu0 %v5618
      %5748 = vmatprep.subr.mxu0 0.0
      %5749 = vmatpush1.msra.mxu0 0.0
      %5750 = vmatprep.subr.mxu0 0.0
      %5751 = vmatpush1.msra.mxu0 0.0
      %5752 = vmatprep.subr.mxu0 0.0
      %5753 = vmatpush1.msra.mxu0 0.0
      %5754 = vmatprep.subr.mxu0 0.0
      %5755 = vmatpush1.msra.mxu0 0.0
      %5756 = vmatprep.subr.mxu0 0.0
      %5757 = vmatpush1.msra.mxu0 0.0
      %5758 = vmatprep.subr.mxu0 0.0
      %5759 = vmatpush1.msra.mxu0 0.0
      %5760 = vmatprep.subr.mxu0 0.0
      %5761 = vmatpush1.msra.mxu0 0.0
      %5762 = vmatprep.subr.mxu0 0.0
      %5763 = vmatpush1.msra.mxu0 0.0
      %5764 = vmatprep.subr.mxu0 0.0
      %5765 = vmatpush1.msra.mxu0 0.0
      %5766 = vmatprep.subr.mxu0 0.0
      %5767 = vmatpush1.msra.mxu0 0.0
      %5768 = vmatprep.subr.mxu0 0.0
      %5769 = vmatpush1.msra.mxu0 0.0
      %5770 = vmatprep.subr.mxu0 0.0
      %5771 = vmatpush1.msra.mxu0 0.0
      %5772 = vmatprep.mubr.f32.mxu0 %v5703
      %5773 = vmatmul.mubr.f32.gmra.mrb[0].mxu0 %v5338
      %v5774 = vpop.f32.mrb[0].mxu0
      %v5775 = vadd.f32 0.0, %v5774
      %v5776 = vpop.f32.mrb[0].mxu0
      %v5777 = vadd.f32 0.0, %v5776
      %5778 = vmatprep.mubr.f32.mxu0 %v5706
      %5779 = vmatmul.mubr.f32.gmra.mrb[0].mxu0 %v5340
      %v5780 = vpop.f32.mrb[0].mxu0
      %v5781 = vadd.f32 0.0, %v5780
      %v5782 = vpop.f32.mrb[0].mxu0
      %v5783 = vadd.f32 0.0, %v5782
      %5784 = vdwg.mxu0
      %5785 = vmatprep.subr.mxu0 %v5545
      %5786 = vmatpush1.msra.mxu0 %v5544
      %5787 = vmatprep.subr.mxu0 %v5549
      %5788 = vmatpush1.msra.mxu0 %v5548
      %5789 = vmatprep.subr.mxu0 %v5553
      %5790 = vmatpush1.msra.mxu0 %v5552
      %5791 = vmatprep.subr.mxu0 %v5557
      %5792 = vmatpush1.msra.mxu0 %v5556
      %5793 = vmatprep.subr.mxu0 %v5561
      %5794 = vmatpush1.msra.mxu0 %v5560
      %5795 = vmatprep.subr.mxu0 %v5565
      %5796 = vmatpush1.msra.mxu0 %v5564
      %5797 = vmatprep.subr.mxu0 %v5569
      %5798 = vmatpush1.msra.mxu0 %v5568
      %5799 = vmatprep.subr.mxu0 %v5573
      %5800 = vmatpush1.msra.mxu0 %v5572
      %5801 = vmatprep.subr.mxu0 %v5577
      %5802 = vmatpush1.msra.mxu0 %v5576
      %5803 = vmatprep.subr.mxu0 %v5581
      %5804 = vmatpush1.msra.mxu0 %v5580
      %5805 = vmatprep.subr.mxu0 %v5585
      %5806 = vmatpush1.msra.mxu0 %v5584
      %5807 = vmatprep.subr.mxu0 %v5589
      %5808 = vmatpush1.msra.mxu0 %v5588
      %5809 = vmatprep.subr.mxu0 %v5593
      %5810 = vmatpush1.msra.mxu0 %v5592
      %5811 = vmatprep.subr.mxu0 %v5597
      %5812 = vmatpush1.msra.mxu0 %v5596
      %5813 = vmatprep.subr.mxu0 %v5601
      %5814 = vmatpush1.msra.mxu0 %v5600
      %5815 = vmatprep.subr.mxu0 %v5605
      %5816 = vmatpush1.msra.mxu0 %v5604
      %5817 = vmatprep.subr.mxu0 %v5609
      %5818 = vmatpush1.msra.mxu0 %v5608
      %5819 = vmatprep.subr.mxu0 %v5613
      %5820 = vmatpush1.msra.mxu0 %v5612
      %5821 = vmatprep.subr.mxu0 %v5617
      %5822 = vmatpush1.msra.mxu0 %v5616
      %5823 = vmatprep.subr.mxu0 %v5621
      %5824 = vmatpush1.msra.mxu0 %v5620
      %5825 = vmatprep.subr.mxu0 0.0
      %5826 = vmatpush1.msra.mxu0 0.0
      %5827 = vmatprep.subr.mxu0 0.0
      %5828 = vmatpush1.msra.mxu0 0.0
      %5829 = vmatprep.subr.mxu0 0.0
      %5830 = vmatpush1.msra.mxu0 0.0
      %5831 = vmatprep.subr.mxu0 0.0
      %5832 = vmatpush1.msra.mxu0 0.0
      %5833 = vmatprep.subr.mxu0 0.0
      %5834 = vmatpush1.msra.mxu0 0.0
      %5835 = vmatprep.subr.mxu0 0.0
      %5836 = vmatpush1.msra.mxu0 0.0
      %5837 = vmatprep.subr.mxu0 0.0
      %5838 = vmatpush1.msra.mxu0 0.0
      %5839 = vmatprep.subr.mxu0 0.0
      %5840 = vmatpush1.msra.mxu0 0.0
      %5841 = vmatprep.subr.mxu0 0.0
      %5842 = vmatpush1.msra.mxu0 0.0
      %5843 = vmatprep.subr.mxu0 0.0
      %5844 = vmatpush1.msra.mxu0 0.0
      %5845 = vmatprep.subr.mxu0 0.0
      %5846 = vmatpush1.msra.mxu0 0.0
      %5847 = vmatprep.subr.mxu0 0.0
      %5848 = vmatpush1.msra.mxu0 0.0
      %5849 = vmatprep.mubr.f32.mxu0 %v5703
      %5850 = vmatmul.mubr.f32.gmra.mrb[0].mxu0 %v5338
      %v5851 = vpop.f32.mrb[0].mxu0
      %v5852 = vadd.f32 0.0, %v5851
      %v5853 = vpop.f32.mrb[0].mxu0
      %v5854 = vadd.f32 0.0, %v5853
      %5855 = vmatprep.mubr.f32.mxu0 %v5706
      %5856 = vmatmul.mubr.f32.gmra.mrb[0].mxu0 %v5340
      %v5857 = vpop.f32.mrb[0].mxu0
      %v5858 = vadd.f32 0.0, %v5857
      %v5859 = vpop.f32.mrb[0].mxu0
      %v5860 = vadd.f32 0.0, %v5859
      %5861 = vdwg.mxu0
      %v5862 = vadd.f32 %v5329, %v5775
      %v5863 = vadd.f32 %v5330, %v5777
      %v5864 = vadd.f32 %v5331, %v5852
      %v5865 = vadd.f32 %v5332, %v5854
      %v5866 = vadd.f32 %v5333, %v5781
      %v5867 = vadd.f32 %v5334, %v5783
      %v5868 = vadd.f32 %v5335, %v5858
      %v5869 = vadd.f32 %v5336, %v5860
      %s5870 = scalar_lea.vmem %s5, 256
      %v5871 = vld [vmem:[%s5870] sm:$0xff]
      %v5872 = vld [vmem:[%s5870 + $0x8] sm:$0xff]
      %v5873 = vld [vmem:[%s5870 + $0x10] sm:$0xff]
      %v5874 = vld [vmem:[%s5870 + $0x18] sm:$0xff]
      %v5876 = vsel %vm963, %v5872, 0
      %v5879 = vsel %vm963, %v5874, 0
      %5881 = vmatprep.subr.mxu0 %v4611
      %5882 = vmatpush1.msra.mxu0 %v4610
      %5883 = vmatprep.subr.mxu0 %v4616
      %5884 = vmatpush1.msra.mxu0 %v4615
      %5885 = vmatprep.subr.mxu0 %v4621
      %5886 = vmatpush1.msra.mxu0 %v4620
      %5887 = vmatprep.subr.mxu0 %v4626
      %5888 = vmatpush1.msra.mxu0 %v4625
      %5889 = vmatprep.subr.mxu0 %v4631
      %5890 = vmatpush1.msra.mxu0 %v4630
      %5891 = vmatprep.subr.mxu0 %v4636
      %5892 = vmatpush1.msra.mxu0 %v4635
      %5893 = vmatprep.subr.mxu0 %v4641
      %5894 = vmatpush1.msra.mxu0 %v4640
      %5895 = vmatprep.subr.mxu0 %v4646
      %5896 = vmatpush1.msra.mxu0 %v4645
      %5897 = vmatprep.subr.mxu0 %v4651
      %5898 = vmatpush1.msra.mxu0 %v4650
      %5899 = vmatprep.subr.mxu0 %v4656
      %5900 = vmatpush1.msra.mxu0 %v4655
      %5901 = vmatprep.subr.mxu0 %v4661
      %5902 = vmatpush1.msra.mxu0 %v4660
      %5903 = vmatprep.subr.mxu0 %v4666
      %5904 = vmatpush1.msra.mxu0 %v4665
      %5905 = vmatprep.subr.mxu0 %v4671
      %5906 = vmatpush1.msra.mxu0 %v4670
      %5907 = vmatprep.subr.mxu0 %v4676
      %5908 = vmatpush1.msra.mxu0 %v4675
      %5909 = vmatprep.subr.mxu0 %v4681
      %5910 = vmatpush1.msra.mxu0 %v4680
      %5911 = vmatprep.subr.mxu0 %v4686
      %5912 = vmatpush1.msra.mxu0 %v4685
      %5913 = vmatprep.subr.mxu0 %v4691
      %5914 = vmatpush1.msra.mxu0 %v4690
      %5915 = vmatprep.subr.mxu0 %v4696
      %5916 = vmatpush1.msra.mxu0 %v4695
      %5917 = vmatprep.subr.mxu0 %v4701
      %5918 = vmatpush1.msra.mxu0 %v4700
      %5919 = vmatprep.subr.mxu0 %v4706
      %5920 = vmatpush1.msra.mxu0 %v4705
      %5921 = vmatprep.subr.mxu0 0.0
      %5922 = vmatpush1.msra.mxu0 0.0
      %5923 = vmatprep.subr.mxu0 0.0
      %5924 = vmatpush1.msra.mxu0 0.0
      %5925 = vmatprep.subr.mxu0 0.0
      %5926 = vmatpush1.msra.mxu0 0.0
      %5927 = vmatprep.subr.mxu0 0.0
      %5928 = vmatpush1.msra.mxu0 0.0
      %5929 = vmatprep.subr.mxu0 0.0
      %5930 = vmatpush1.msra.mxu0 0.0
      %5931 = vmatprep.subr.mxu0 0.0
      %5932 = vmatpush1.msra.mxu0 0.0
      %5933 = vmatprep.subr.mxu0 0.0
      %5934 = vmatpush1.msra.mxu0 0.0
      %5935 = vmatprep.subr.mxu0 0.0
      %5936 = vmatpush1.msra.mxu0 0.0
      %5937 = vmatprep.subr.mxu0 0.0
      %5938 = vmatpush1.msra.mxu0 0.0
      %5939 = vmatprep.subr.mxu0 0.0
      %5940 = vmatpush1.msra.mxu0 0.0
      %5941 = vmatprep.subr.mxu0 0.0
      %5942 = vmatpush1.msra.mxu0 0.0
      %5943 = vmatprep.subr.mxu0 0.0
      %5944 = vmatpush1.msra.mxu0 0.0
      %5945 = vmatprep.mubr.f32.mxu0 %v5876
      %5946 = vmatmul.mubr.f32.gmra.mrb[0].mxu0 %v5871
      %v5947 = vpop.f32.mrb[0].mxu0
      %v5948 = vadd.f32 0.0, %v5947
      %v5949 = vpop.f32.mrb[0].mxu0
      %v5950 = vadd.f32 0.0, %v5949
      %5951 = vmatprep.mubr.f32.mxu0 %v5879
      %5952 = vmatmul.mubr.f32.gmra.mrb[0].mxu0 %v5873
      %v5953 = vpop.f32.mrb[0].mxu0
      %v5954 = vadd.f32 0.0, %v5953
      %v5955 = vpop.f32.mrb[0].mxu0
      %v5956 = vadd.f32 0.0, %v5955
      %5957 = vdwg.mxu0
      %5958 = vmatprep.subr.mxu0 %v4613
      %5959 = vmatpush1.msra.mxu0 %v4612
      %5960 = vmatprep.subr.mxu0 %v4618
      %5961 = vmatpush1.msra.mxu0 %v4617
      %5962 = vmatprep.subr.mxu0 %v4623
      %5963 = vmatpush1.msra.mxu0 %v4622
      %5964 = vmatprep.subr.mxu0 %v4628
      %5965 = vmatpush1.msra.mxu0 %v4627
      %5966 = vmatprep.subr.mxu0 %v4633
      %5967 = vmatpush1.msra.mxu0 %v4632
      %5968 = vmatprep.subr.mxu0 %v4638
      %5969 = vmatpush1.msra.mxu0 %v4637
      %5970 = vmatprep.subr.mxu0 %v4643
      %5971 = vmatpush1.msra.mxu0 %v4642
      %5972 = vmatprep.subr.mxu0 %v4648
      %5973 = vmatpush1.msra.mxu0 %v4647
      %5974 = vmatprep.subr.mxu0 %v4653
      %5975 = vmatpush1.msra.mxu0 %v4652
      %5976 = vmatprep.subr.mxu0 %v4658
      %5977 = vmatpush1.msra.mxu0 %v4657
      %5978 = vmatprep.subr.mxu0 %v4663
      %5979 = vmatpush1.msra.mxu0 %v4662
      %5980 = vmatprep.subr.mxu0 %v4668
      %5981 = vmatpush1.msra.mxu0 %v4667
      %5982 = vmatprep.subr.mxu0 %v4673
      %5983 = vmatpush1.msra.mxu0 %v4672
      %5984 = vmatprep.subr.mxu0 %v4678
      %5985 = vmatpush1.msra.mxu0 %v4677
      %5986 = vmatprep.subr.mxu0 %v4683
      %5987 = vmatpush1.msra.mxu0 %v4682
      %5988 = vmatprep.subr.mxu0 %v4688
      %5989 = vmatpush1.msra.mxu0 %v4687
      %5990 = vmatprep.subr.mxu0 %v4693
      %5991 = vmatpush1.msra.mxu0 %v4692
      %5992 = vmatprep.subr.mxu0 %v4698
      %5993 = vmatpush1.msra.mxu0 %v4697
      %5994 = vmatprep.subr.mxu0 %v4703
      %5995 = vmatpush1.msra.mxu0 %v4702
      %5996 = vmatprep.subr.mxu0 %v4708
      %5997 = vmatpush1.msra.mxu0 %v4707
      %5998 = vmatprep.subr.mxu0 0.0
      %5999 = vmatpush1.msra.mxu0 0.0
      %6000 = vmatprep.subr.mxu0 0.0
      %6001 = vmatpush1.msra.mxu0 0.0
      %6002 = vmatprep.subr.mxu0 0.0
      %6003 = vmatpush1.msra.mxu0 0.0
      %6004 = vmatprep.subr.mxu0 0.0
      %6005 = vmatpush1.msra.mxu0 0.0
      %6006 = vmatprep.subr.mxu0 0.0
      %6007 = vmatpush1.msra.mxu0 0.0
      %6008 = vmatprep.subr.mxu0 0.0
      %6009 = vmatpush1.msra.mxu0 0.0
      %6010 = vmatprep.subr.mxu0 0.0
      %6011 = vmatpush1.msra.mxu0 0.0
      %6012 = vmatprep.subr.mxu0 0.0
      %6013 = vmatpush1.msra.mxu0 0.0
      %6014 = vmatprep.subr.mxu0 0.0
      %6015 = vmatpush1.msra.mxu0 0.0
      %6016 = vmatprep.subr.mxu0 0.0
      %6017 = vmatpush1.msra.mxu0 0.0
      %6018 = vmatprep.subr.mxu0 0.0
      %6019 = vmatpush1.msra.mxu0 0.0
      %6020 = vmatprep.subr.mxu0 0.0
      %6021 = vmatpush1.msra.mxu0 0.0
      %6022 = vmatprep.mubr.f32.mxu0 %v5876
      %6023 = vmatmul.mubr.f32.gmra.mrb[0].mxu0 %v5871
      %v6024 = vpop.f32.mrb[0].mxu0
      %v6025 = vadd.f32 0.0, %v6024
      %v6026 = vpop.f32.mrb[0].mxu0
      %v6027 = vadd.f32 0.0, %v6026
      %6028 = vmatprep.mubr.f32.mxu0 %v5879
      %6029 = vmatmul.mubr.f32.gmra.mrb[0].mxu0 %v5873
      %v6030 = vpop.f32.mrb[0].mxu0
      %v6031 = vadd.f32 0.0, %v6030
      %v6032 = vpop.f32.mrb[0].mxu0
      %v6033 = vadd.f32 0.0, %v6032
      %6034 = vdwg.mxu0
      %v6035 = vadd.f32 %v5862, %v5948
      %v6036 = vadd.f32 %v5863, %v5950
      %v6037 = vadd.f32 %v5864, %v6025
      %v6038 = vadd.f32 %v5865, %v6027
      %v6039 = vadd.f32 %v5866, %v5954
      %v6040 = vadd.f32 %v5867, %v5956
      %v6041 = vadd.f32 %v5868, %v6031
      %v6042 = vadd.f32 %v5869, %v6033
      %s6043 = scalar_lea.vmem %s5, 288
      %v6044 = vld [vmem:[%s6043] sm:$0xff]
      %v6045 = vld [vmem:[%s6043 + $0x8] sm:$0xff]
      %v6046 = vld [vmem:[%s6043 + $0x10] sm:$0xff]
      %v6047 = vld [vmem:[%s6043 + $0x18] sm:$0xff]
      %6048 = vrot.lane.b32.xlu0 %v4610, 96
      %v6049 = vpop.permute.xlu0 %6048
      %6050 = vrot.lane.b32.xlu0 %v4611, 96
      %v6051 = vpop.permute.xlu0 %6050
      %6052 = vrot.lane.b32.xlu0 %v4612, 96
      %v6053 = vpop.permute.xlu0 %6052
      %6054 = vrot.lane.b32.xlu0 %v4613, 96
      %v6055 = vpop.permute.xlu0 %6054
      %6056 = vrot.lane.b32.xlu0 %v4615, 96
      %v6057 = vpop.permute.xlu0 %6056
      %6058 = vrot.lane.b32.xlu0 %v4616, 96
      %v6059 = vpop.permute.xlu0 %6058
      %6060 = vrot.lane.b32.xlu0 %v4617, 96
      %v6061 = vpop.permute.xlu0 %6060
      %6062 = vrot.lane.b32.xlu0 %v4618, 96
      %v6063 = vpop.permute.xlu0 %6062
      %6064 = vrot.lane.b32.xlu0 %v4620, 96
      %v6065 = vpop.permute.xlu0 %6064
      %6066 = vrot.lane.b32.xlu0 %v4621, 96
      %v6067 = vpop.permute.xlu0 %6066
      %6068 = vrot.lane.b32.xlu0 %v4622, 96
      %v6069 = vpop.permute.xlu0 %6068
      %6070 = vrot.lane.b32.xlu0 %v4623, 96
      %v6071 = vpop.permute.xlu0 %6070
      %6072 = vrot.lane.b32.xlu0 %v4625, 96
      %v6073 = vpop.permute.xlu0 %6072
      %6074 = vrot.lane.b32.xlu0 %v4626, 96
      %v6075 = vpop.permute.xlu0 %6074
      %6076 = vrot.lane.b32.xlu0 %v4627, 96
      %v6077 = vpop.permute.xlu0 %6076
      %6078 = vrot.lane.b32.xlu0 %v4628, 96
      %v6079 = vpop.permute.xlu0 %6078
      %6080 = vrot.lane.b32.xlu0 %v4630, 96
      %v6081 = vpop.permute.xlu0 %6080
      %6082 = vrot.lane.b32.xlu0 %v4631, 96
      %v6083 = vpop.permute.xlu0 %6082
      %6084 = vrot.lane.b32.xlu0 %v4632, 96
      %v6085 = vpop.permute.xlu0 %6084
      %6086 = vrot.lane.b32.xlu0 %v4633, 96
      %v6087 = vpop.permute.xlu0 %6086
      %6088 = vrot.lane.b32.xlu0 %v4635, 96
      %v6089 = vpop.permute.xlu0 %6088
      %6090 = vrot.lane.b32.xlu0 %v4636, 96
      %v6091 = vpop.permute.xlu0 %6090
      %6092 = vrot.lane.b32.xlu0 %v4637, 96
      %v6093 = vpop.permute.xlu0 %6092
      %6094 = vrot.lane.b32.xlu0 %v4638, 96
      %v6095 = vpop.permute.xlu0 %6094
      %6096 = vrot.lane.b32.xlu0 %v4640, 96
      %v6097 = vpop.permute.xlu0 %6096
      %6098 = vrot.lane.b32.xlu0 %v4641, 96
      %v6099 = vpop.permute.xlu0 %6098
      %6100 = vrot.lane.b32.xlu0 %v4642, 96
      %v6101 = vpop.permute.xlu0 %6100
      %6102 = vrot.lane.b32.xlu0 %v4643, 96
      %v6103 = vpop.permute.xlu0 %6102
      %6104 = vrot.lane.b32.xlu0 %v4645, 96
      %v6105 = vpop.permute.xlu0 %6104
      %6106 = vrot.lane.b32.xlu0 %v4646, 96
      %v6107 = vpop.permute.xlu0 %6106
      %6108 = vrot.lane.b32.xlu0 %v4647, 96
      %v6109 = vpop.permute.xlu0 %6108
      %6110 = vrot.lane.b32.xlu0 %v4648, 96
      %v6111 = vpop.permute.xlu0 %6110
      %6112 = vrot.lane.b32.xlu0 %v4650, 96
      %v6113 = vpop.permute.xlu0 %6112
      %6114 = vrot.lane.b32.xlu0 %v4651, 96
      %v6115 = vpop.permute.xlu0 %6114
      %6116 = vrot.lane.b32.xlu0 %v4652, 96
      %v6117 = vpop.permute.xlu0 %6116
      %6118 = vrot.lane.b32.xlu0 %v4653, 96
      %v6119 = vpop.permute.xlu0 %6118
      %6120 = vrot.lane.b32.xlu0 %v4655, 96
      %v6121 = vpop.permute.xlu0 %6120
      %6122 = vrot.lane.b32.xlu0 %v4656, 96
      %v6123 = vpop.permute.xlu0 %6122
      %6124 = vrot.lane.b32.xlu0 %v4657, 96
      %v6125 = vpop.permute.xlu0 %6124
      %6126 = vrot.lane.b32.xlu0 %v4658, 96
      %v6127 = vpop.permute.xlu0 %6126
      %6128 = vrot.lane.b32.xlu0 %v4660, 96
      %v6129 = vpop.permute.xlu0 %6128
      %6130 = vrot.lane.b32.xlu0 %v4661, 96
      %v6131 = vpop.permute.xlu0 %6130
      %6132 = vrot.lane.b32.xlu0 %v4662, 96
      %v6133 = vpop.permute.xlu0 %6132
      %6134 = vrot.lane.b32.xlu0 %v4663, 96
      %v6135 = vpop.permute.xlu0 %6134
      %6136 = vrot.lane.b32.xlu0 %v4665, 96
      %v6137 = vpop.permute.xlu0 %6136
      %6138 = vrot.lane.b32.xlu0 %v4666, 96
      %v6139 = vpop.permute.xlu0 %6138
      %6140 = vrot.lane.b32.xlu0 %v4667, 96
      %v6141 = vpop.permute.xlu0 %6140
      %6142 = vrot.lane.b32.xlu0 %v4668, 96
      %v6143 = vpop.permute.xlu0 %6142
      %6144 = vrot.lane.b32.xlu0 %v4670, 96
      %v6145 = vpop.permute.xlu0 %6144
      %6146 = vrot.lane.b32.xlu0 %v4671, 96
      %v6147 = vpop.permute.xlu0 %6146
      %6148 = vrot.lane.b32.xlu0 %v4672, 96
      %v6149 = vpop.permute.xlu0 %6148
      %6150 = vrot.lane.b32.xlu0 %v4673, 96
      %v6151 = vpop.permute.xlu0 %6150
      %6152 = vrot.lane.b32.xlu0 %v4675, 96
      %v6153 = vpop.permute.xlu0 %6152
      %6154 = vrot.lane.b32.xlu0 %v4676, 96
      %v6155 = vpop.permute.xlu0 %6154
      %6156 = vrot.lane.b32.xlu0 %v4677, 96
      %v6157 = vpop.permute.xlu0 %6156
      %6158 = vrot.lane.b32.xlu0 %v4678, 96
      %v6159 = vpop.permute.xlu0 %6158
      %6160 = vrot.lane.b32.xlu0 %v4680, 96
      %v6161 = vpop.permute.xlu0 %6160
      %6162 = vrot.lane.b32.xlu0 %v4681, 96
      %v6163 = vpop.permute.xlu0 %6162
      %6164 = vrot.lane.b32.xlu0 %v4682, 96
      %v6165 = vpop.permute.xlu0 %6164
      %6166 = vrot.lane.b32.xlu0 %v4683, 96
      %v6167 = vpop.permute.xlu0 %6166
      %6168 = vrot.lane.b32.xlu0 %v4685, 96
      %v6169 = vpop.permute.xlu0 %6168
      %6170 = vrot.lane.b32.xlu0 %v4686, 96
      %v6171 = vpop.permute.xlu0 %6170
      %6172 = vrot.lane.b32.xlu0 %v4687, 96
      %v6173 = vpop.permute.xlu0 %6172
      %6174 = vrot.lane.b32.xlu0 %v4688, 96
      %v6175 = vpop.permute.xlu0 %6174
      %6176 = vrot.lane.b32.xlu0 %v4690, 96
      %v6177 = vpop.permute.xlu0 %6176
      %6178 = vrot.lane.b32.xlu0 %v4691, 96
      %v6179 = vpop.permute.xlu0 %6178
      %6180 = vrot.lane.b32.xlu0 %v4692, 96
      %v6181 = vpop.permute.xlu0 %6180
      %6182 = vrot.lane.b32.xlu0 %v4693, 96
      %v6183 = vpop.permute.xlu0 %6182
      %6184 = vrot.lane.b32.xlu0 %v4695, 96
      %v6185 = vpop.permute.xlu0 %6184
      %6186 = vrot.lane.b32.xlu0 %v4696, 96
      %v6187 = vpop.permute.xlu0 %6186
      %6188 = vrot.lane.b32.xlu0 %v4697, 96
      %v6189 = vpop.permute.xlu0 %6188
      %6190 = vrot.lane.b32.xlu0 %v4698, 96
      %v6191 = vpop.permute.xlu0 %6190
      %6192 = vrot.lane.b32.xlu0 %v4700, 96
      %v6193 = vpop.permute.xlu0 %6192
      %6194 = vrot.lane.b32.xlu0 %v4701, 96
      %v6195 = vpop.permute.xlu0 %6194
      %6196 = vrot.lane.b32.xlu0 %v4702, 96
      %v6197 = vpop.permute.xlu0 %6196
      %6198 = vrot.lane.b32.xlu0 %v4703, 96
      %v6199 = vpop.permute.xlu0 %6198
      %6200 = vrot.lane.b32.xlu0 %v4705, 96
      %v6201 = vpop.permute.xlu0 %6200
      %6202 = vrot.lane.b32.xlu0 %v4706, 96
      %v6203 = vpop.permute.xlu0 %6202
      %6204 = vrot.lane.b32.xlu0 %v4707, 96
      %v6205 = vpop.permute.xlu0 %6204
      %6206 = vrot.lane.b32.xlu0 %v4708, 96
      %v6207 = vpop.permute.xlu0 %6206
      %v6208 = vsel %vm666, %v6049, %v6051
      %v6209 = vsel %vm666, %v6051, %v6053
      %v6210 = vsel %vm666, %v6053, %v6055
      %v6211 = vsel %vm666, %v6057, %v6059
      %v6212 = vsel %vm666, %v6059, %v6061
      %v6213 = vsel %vm666, %v6061, %v6063
      %v6214 = vsel %vm666, %v6065, %v6067
      %v6215 = vsel %vm666, %v6067, %v6069
      %v6216 = vsel %vm666, %v6069, %v6071
      %v6217 = vsel %vm666, %v6073, %v6075
      %v6218 = vsel %vm666, %v6075, %v6077
      %v6219 = vsel %vm666, %v6077, %v6079
      %v6220 = vsel %vm666, %v6081, %v6083
      %v6221 = vsel %vm666, %v6083, %v6085
      %v6222 = vsel %vm666, %v6085, %v6087
      %v6223 = vsel %vm666, %v6089, %v6091
      %v6224 = vsel %vm666, %v6091, %v6093
      %v6225 = vsel %vm666, %v6093, %v6095
      %v6226 = vsel %vm666, %v6097, %v6099
      %v6227 = vsel %vm666, %v6099, %v6101
      %v6228 = vsel %vm666, %v6101, %v6103
      %v6229 = vsel %vm666, %v6105, %v6107
      %v6230 = vsel %vm666, %v6107, %v6109
      %v6231 = vsel %vm666, %v6109, %v6111
      %v6232 = vsel %vm666, %v6113, %v6115
      %v6233 = vsel %vm666, %v6115, %v6117
      %v6234 = vsel %vm666, %v6117, %v6119
      %v6235 = vsel %vm666, %v6121, %v6123
      %v6236 = vsel %vm666, %v6123, %v6125
      %v6237 = vsel %vm666, %v6125, %v6127
      %v6238 = vsel %vm666, %v6129, %v6131
      %v6239 = vsel %vm666, %v6131, %v6133
      %v6240 = vsel %vm666, %v6133, %v6135
      %v6241 = vsel %vm666, %v6137, %v6139
      %v6242 = vsel %vm666, %v6139, %v6141
      %v6243 = vsel %vm666, %v6141, %v6143
      %v6244 = vsel %vm666, %v6145, %v6147
      %v6245 = vsel %vm666, %v6147, %v6149
      %v6246 = vsel %vm666, %v6149, %v6151
      %v6247 = vsel %vm666, %v6153, %v6155
      %v6248 = vsel %vm666, %v6155, %v6157
      %v6249 = vsel %vm666, %v6157, %v6159
      %v6250 = vsel %vm666, %v6161, %v6163
      %v6251 = vsel %vm666, %v6163, %v6165
      %v6252 = vsel %vm666, %v6165, %v6167
      %v6253 = vsel %vm666, %v6169, %v6171
      %v6254 = vsel %vm666, %v6171, %v6173
      %v6255 = vsel %vm666, %v6173, %v6175
      %v6256 = vsel %vm666, %v6177, %v6179
      %v6257 = vsel %vm666, %v6179, %v6181
      %v6258 = vsel %vm666, %v6181, %v6183
      %v6259 = vsel %vm666, %v6185, %v6187
      %v6260 = vsel %vm666, %v6187, %v6189
      %v6261 = vsel %vm666, %v6189, %v6191
      %v6262 = vsel %vm666, %v6193, %v6195
      %v6263 = vsel %vm666, %v6195, %v6197
      %v6264 = vsel %vm666, %v6197, %v6199
      %v6265 = vsel %vm666, %v6201, %v6203
      %v6266 = vsel %vm666, %v6203, %v6205
      %v6267 = vsel %vm666, %v6205, %v6207
      %v6349 = vsel %vm963, %v6045, 0
      %v6352 = vsel %vm963, %v6047, 0
      %6354 = vmatprep.subr.mxu0 %v6209
      %6355 = vmatpush1.msra.mxu0 %v6208
      %6356 = vmatprep.subr.mxu0 %v6212
      %6357 = vmatpush1.msra.mxu0 %v6211
      %6358 = vmatprep.subr.mxu0 %v6215
      %6359 = vmatpush1.msra.mxu0 %v6214
      %6360 = vmatprep.subr.mxu0 %v6218
      %6361 = vmatpush1.msra.mxu0 %v6217
      %6362 = vmatprep.subr.mxu0 %v6221
      %6363 = vmatpush1.msra.mxu0 %v6220
      %6364 = vmatprep.subr.mxu0 %v6224
      %6365 = vmatpush1.msra.mxu0 %v6223
      %6366 = vmatprep.subr.mxu0 %v6227
      %6367 = vmatpush1.msra.mxu0 %v6226
      %6368 = vmatprep.subr.mxu0 %v6230
      %6369 = vmatpush1.msra.mxu0 %v6229
      %6370 = vmatprep.subr.mxu0 %v6233
      %6371 = vmatpush1.msra.mxu0 %v6232
      %6372 = vmatprep.subr.mxu0 %v6236
      %6373 = vmatpush1.msra.mxu0 %v6235
      %6374 = vmatprep.subr.mxu0 %v6239
      %6375 = vmatpush1.msra.mxu0 %v6238
      %6376 = vmatprep.subr.mxu0 %v6242
      %6377 = vmatpush1.msra.mxu0 %v6241
      %6378 = vmatprep.subr.mxu0 %v6245
      %6379 = vmatpush1.msra.mxu0 %v6244
      %6380 = vmatprep.subr.mxu0 %v6248
      %6381 = vmatpush1.msra.mxu0 %v6247
      %6382 = vmatprep.subr.mxu0 %v6251
      %6383 = vmatpush1.msra.mxu0 %v6250
      %6384 = vmatprep.subr.mxu0 %v6254
      %6385 = vmatpush1.msra.mxu0 %v6253
      %6386 = vmatprep.subr.mxu0 %v6257
      %6387 = vmatpush1.msra.mxu0 %v6256
      %6388 = vmatprep.subr.mxu0 %v6260
      %6389 = vmatpush1.msra.mxu0 %v6259
      %6390 = vmatprep.subr.mxu0 %v6263
      %6391 = vmatpush1.msra.mxu0 %v6262
      %6392 = vmatprep.subr.mxu0 %v6266
      %6393 = vmatpush1.msra.mxu0 %v6265
      %6394 = vmatprep.subr.mxu0 0.0
      %6395 = vmatpush1.msra.mxu0 0.0
      %6396 = vmatprep.subr.mxu0 0.0
      %6397 = vmatpush1.msra.mxu0 0.0
      %6398 = vmatprep.subr.mxu0 0.0
      %6399 = vmatpush1.msra.mxu0 0.0
      %6400 = vmatprep.subr.mxu0 0.0
      %6401 = vmatpush1.msra.mxu0 0.0
      %6402 = vmatprep.subr.mxu0 0.0
      %6403 = vmatpush1.msra.mxu0 0.0
      %6404 = vmatprep.subr.mxu0 0.0
      %6405 = vmatpush1.msra.mxu0 0.0
      %6406 = vmatprep.subr.mxu0 0.0
      %6407 = vmatpush1.msra.mxu0 0.0
      %6408 = vmatprep.subr.mxu0 0.0
      %6409 = vmatpush1.msra.mxu0 0.0
      %6410 = vmatprep.subr.mxu0 0.0
      %6411 = vmatpush1.msra.mxu0 0.0
      %6412 = vmatprep.subr.mxu0 0.0
      %6413 = vmatpush1.msra.mxu0 0.0
      %6414 = vmatprep.subr.mxu0 0.0
      %6415 = vmatpush1.msra.mxu0 0.0
      %6416 = vmatprep.subr.mxu0 0.0
      %6417 = vmatpush1.msra.mxu0 0.0
      %6418 = vmatprep.mubr.f32.mxu0 %v6349
      %6419 = vmatmul.mubr.f32.gmra.mrb[0].mxu0 %v6044
      %v6420 = vpop.f32.mrb[0].mxu0
      %v6421 = vadd.f32 0.0, %v6420
      %v6422 = vpop.f32.mrb[0].mxu0
      %v6423 = vadd.f32 0.0, %v6422
      %6424 = vmatprep.mubr.f32.mxu0 %v6352
      %6425 = vmatmul.mubr.f32.gmra.mrb[0].mxu0 %v6046
      %v6426 = vpop.f32.mrb[0].mxu0
      %v6427 = vadd.f32 0.0, %v6426
      %v6428 = vpop.f32.mrb[0].mxu0
      %v6429 = vadd.f32 0.0, %v6428
      %6430 = vdwg.mxu0
      %6431 = vmatprep.subr.mxu0 %v6055
      %6432 = vmatpush1.msra.mxu0 %v6210
      %6433 = vmatprep.subr.mxu0 %v6063
      %6434 = vmatpush1.msra.mxu0 %v6213
      %6435 = vmatprep.subr.mxu0 %v6071
      %6436 = vmatpush1.msra.mxu0 %v6216
      %6437 = vmatprep.subr.mxu0 %v6079
      %6438 = vmatpush1.msra.mxu0 %v6219
      %6439 = vmatprep.subr.mxu0 %v6087
      %6440 = vmatpush1.msra.mxu0 %v6222
      %6441 = vmatprep.subr.mxu0 %v6095
      %6442 = vmatpush1.msra.mxu0 %v6225
      %6443 = vmatprep.subr.mxu0 %v6103
      %6444 = vmatpush1.msra.mxu0 %v6228
      %6445 = vmatprep.subr.mxu0 %v6111
      %6446 = vmatpush1.msra.mxu0 %v6231
      %6447 = vmatprep.subr.mxu0 %v6119
      %6448 = vmatpush1.msra.mxu0 %v6234
      %6449 = vmatprep.subr.mxu0 %v6127
      %6450 = vmatpush1.msra.mxu0 %v6237
      %6451 = vmatprep.subr.mxu0 %v6135
      %6452 = vmatpush1.msra.mxu0 %v6240
      %6453 = vmatprep.subr.mxu0 %v6143
      %6454 = vmatpush1.msra.mxu0 %v6243
      %6455 = vmatprep.subr.mxu0 %v6151
      %6456 = vmatpush1.msra.mxu0 %v6246
      %6457 = vmatprep.subr.mxu0 %v6159
      %6458 = vmatpush1.msra.mxu0 %v6249
      %6459 = vmatprep.subr.mxu0 %v6167
      %6460 = vmatpush1.msra.mxu0 %v6252
      %6461 = vmatprep.subr.mxu0 %v6175
      %6462 = vmatpush1.msra.mxu0 %v6255
      %6463 = vmatprep.subr.mxu0 %v6183
      %6464 = vmatpush1.msra.mxu0 %v6258
      %6465 = vmatprep.subr.mxu0 %v6191
      %6466 = vmatpush1.msra.mxu0 %v6261
      %6467 = vmatprep.subr.mxu0 %v6199
      %6468 = vmatpush1.msra.mxu0 %v6264
      %6469 = vmatprep.subr.mxu0 %v6207
      %6470 = vmatpush1.msra.mxu0 %v6267
      %6471 = vmatprep.subr.mxu0 0.0
      %6472 = vmatpush1.msra.mxu0 0.0
      %6473 = vmatprep.subr.mxu0 0.0
      %6474 = vmatpush1.msra.mxu0 0.0
      %6475 = vmatprep.subr.mxu0 0.0
      %6476 = vmatpush1.msra.mxu0 0.0
      %6477 = vmatprep.subr.mxu0 0.0
      %6478 = vmatpush1.msra.mxu0 0.0
      %6479 = vmatprep.subr.mxu0 0.0
      %6480 = vmatpush1.msra.mxu0 0.0
      %6481 = vmatprep.subr.mxu0 0.0
      %6482 = vmatpush1.msra.mxu0 0.0
      %6483 = vmatprep.subr.mxu0 0.0
      %6484 = vmatpush1.msra.mxu0 0.0
      %6485 = vmatprep.subr.mxu0 0.0
      %6486 = vmatpush1.msra.mxu0 0.0
      %6487 = vmatprep.subr.mxu0 0.0
      %6488 = vmatpush1.msra.mxu0 0.0
      %6489 = vmatprep.subr.mxu0 0.0
      %6490 = vmatpush1.msra.mxu0 0.0
      %6491 = vmatprep.subr.mxu0 0.0
      %6492 = vmatpush1.msra.mxu0 0.0
      %6493 = vmatprep.subr.mxu0 0.0
      %6494 = vmatpush1.msra.mxu0 0.0
      %6495 = vmatprep.mubr.f32.mxu0 %v6349
      %6496 = vmatmul.mubr.f32.gmra.mrb[0].mxu0 %v6044
      %v6497 = vpop.f32.mrb[0].mxu0
      %v6498 = vadd.f32 0.0, %v6497
      %v6499 = vpop.f32.mrb[0].mxu0
      %v6500 = vadd.f32 0.0, %v6499
      %6501 = vmatprep.mubr.f32.mxu0 %v6352
      %6502 = vmatmul.mubr.f32.gmra.mrb[0].mxu0 %v6046
      %v6503 = vpop.f32.mrb[0].mxu0
      %v6504 = vadd.f32 0.0, %v6503
      %v6505 = vpop.f32.mrb[0].mxu0
      %v6506 = vadd.f32 0.0, %v6505
      %6507 = vdwg.mxu0
      %v6508 = vadd.f32 %v6035, %v6421
      %v6509 = vadd.f32 %v6036, %v6423
      %v6510 = vadd.f32 %v6037, %v6498
      %v6511 = vadd.f32 %v6038, %v6500
      %v6512 = vadd.f32 %v6039, %v6427
      %v6513 = vadd.f32 %v6040, %v6429
      %v6514 = vadd.f32 %v6041, %v6504
      %v6515 = vadd.f32 %v6042, %v6506
      %v6516 = vld [vmem:[%s6] sm:$0xff]
      %v6517 = vld [vmem:[%s6 + $0x8] sm:$0xff]
      %6519 = vset.pattern.permute.xlu0 0
      %6520 = vperm.xlu0 %6519, %v6516
      %v6521 = vpop.permute.xlu0 %6520
      %6524 = vset.pattern.permute.xlu0 0
      %6525 = vperm.xlu0 %6524, %v6517
      %v6526 = vpop.permute.xlu0 %6525
      %v6528 = vadd.f32 %v6508, %v6521
      %v6529 = vadd.f32 %v6509, %v6521
      %v6530 = vadd.f32 %v6510, %v6521
      %v6531 = vadd.f32 %v6511, %v6521
      %v6532 = vadd.f32 %v6512, %v6526
      %v6533 = vadd.f32 %v6513, %v6526
      %v6534 = vadd.f32 %v6514, %v6526
      %v6535 = vadd.f32 %v6515, %v6526
      %v6536 = vmax.f32 %v6528, 0.0
      %v6537 = vmax.f32 %v6529, 0.0
      %v6538 = vmax.f32 %v6530, 0.0
      %v6539 = vmax.f32 %v6531, 0.0
      %v6540 = vmax.f32 %v6532, 0.0
      %v6541 = vmax.f32 %v6533, 0.0
      %v6542 = vmax.f32 %v6534, 0.0
      %v6543 = vmax.f32 %v6535, 0.0
      %v6544 = vld [vmem:[%s8] sm:$0xff]
      %v6545 = vld [vmem:[%s8 + $0x8] sm:$0xff]
      %v6546 = vld [vmem:[%s8 + $0x10] sm:$0xff]
      %v6547 = vld [vmem:[%s8 + $0x18] sm:$0xff]
      %v6548 = vld [vmem:[%s9] sm:$0xff]
      %v6549 = vld [vmem:[%s9 + $0x8] sm:$0xff]
      %v6550 = vld [vmem:[%s9 + $0x10] sm:$0xff]
      %v6551 = vld [vmem:[%s9 + $0x18] sm:$0xff]
      %v6553 = vsel %vm717, %v6544, 0
      %v6556 = vsel %vm717, %v6545, 0
      %v6559 = vsel %vm717, %v6546, 0
      %v6562 = vsel %vm717, %v6547, 0
      %6564 = vmatprep.subr.mxu0 0.0
      %6565 = vmatpush1.msra.mxu0 %v670
      %6566 = vmatprep.subr.mxu0 0.0
      %6567 = vmatpush1.msra.mxu0 %v676
      %6568 = vmatprep.subr.mxu0 0.0
      %6569 = vmatpush1.msra.mxu0 %v682
      %6570 = vmatprep.subr.mxu0 0.0
      %6571 = vmatpush1.msra.mxu0 %v688
      %6572 = vmatprep.subr.mxu0 0.0
      %6573 = vmatpush1.msra.mxu0 %v694
      %6574 = vmatprep.subr.mxu0 0.0
      %6575 = vmatpush1.msra.mxu0 %v700
      %6576 = vmatprep.subr.mxu0 0.0
      %6577 = vmatpush1.msra.mxu0 %v706
      %6578 = vmatprep.subr.mxu0 0.0
      %6579 = vmatpush1.msra.mxu0 %v712
      %6580 = vmatprep.subr.mxu0 0.0
      %6581 = vmatpush1.msra.mxu0 0.0
      %6582 = vmatprep.subr.mxu0 0.0
      %6583 = vmatpush1.msra.mxu0 0.0
      %6584 = vmatprep.subr.mxu0 0.0
      %6585 = vmatpush1.msra.mxu0 0.0
      %6586 = vmatprep.subr.mxu0 0.0
      %6587 = vmatpush1.msra.mxu0 0.0
      %6588 = vmatprep.subr.mxu0 0.0
      %6589 = vmatpush1.msra.mxu0 0.0
      %6590 = vmatprep.subr.mxu0 0.0
      %6591 = vmatpush1.msra.mxu0 0.0
      %6592 = vmatprep.subr.mxu0 0.0
      %6593 = vmatpush1.msra.mxu0 0.0
      %6594 = vmatprep.subr.mxu0 0.0
      %6595 = vmatpush1.msra.mxu0 0.0
      %6596 = vmatprep.subr.mxu0 0.0
      %6597 = vmatpush1.msra.mxu0 0.0
      %6598 = vmatprep.subr.mxu0 0.0
      %6599 = vmatpush1.msra.mxu0 0.0
      %6600 = vmatprep.subr.mxu0 0.0
      %6601 = vmatpush1.msra.mxu0 0.0
      %6602 = vmatprep.subr.mxu0 0.0
      %6603 = vmatpush1.msra.mxu0 0.0
      %6604 = vmatprep.subr.mxu0 0.0
      %6605 = vmatpush1.msra.mxu0 0.0
      %6606 = vmatprep.subr.mxu0 0.0
      %6607 = vmatpush1.msra.mxu0 0.0
      %6608 = vmatprep.subr.mxu0 0.0
      %6609 = vmatpush1.msra.mxu0 0.0
      %6610 = vmatprep.subr.mxu0 0.0
      %6611 = vmatpush1.msra.mxu0 0.0
      %6612 = vmatprep.subr.mxu0 0.0
      %6613 = vmatpush1.msra.mxu0 0.0
      %6614 = vmatprep.subr.mxu0 0.0
      %6615 = vmatpush1.msra.mxu0 0.0
      %6616 = vmatprep.subr.mxu0 0.0
      %6617 = vmatpush1.msra.mxu0 0.0
      %6618 = vmatprep.subr.mxu0 0.0
      %6619 = vmatpush1.msra.mxu0 0.0
      %6620 = vmatprep.subr.mxu0 0.0
      %6621 = vmatpush1.msra.mxu0 0.0
      %6622 = vmatprep.subr.mxu0 0.0
      %6623 = vmatpush1.msra.mxu0 0.0
      %6624 = vmatprep.subr.mxu0 0.0
      %6625 = vmatpush1.msra.mxu0 0.0
      %6626 = vmatprep.subr.mxu0 0.0
      %6627 = vmatpush1.msra.mxu0 0.0
      %6628 = vmatprep.mubr.f32.mxu0 0.0
      %6629 = vmatmul.mubr.f32.gmra.mrb[0].mxu0 %v6553
      %v6630 = vpop.f32.mrb[0].mxu0
      %v6631 = vadd.f32 %v6548, %v6630
      %v6632 = vpop.f32.mrb[0].mxu0
      %6633 = vmatprep.mubr.f32.mxu0 0.0
      %6634 = vmatmul.mubr.f32.gmra.mrb[0].mxu0 %v6556
      %v6635 = vpop.f32.mrb[0].mxu0
      %v6636 = vadd.f32 %v6549, %v6635
      %v6637 = vpop.f32.mrb[0].mxu0
      %6638 = vmatprep.mubr.f32.mxu0 0.0
      %6639 = vmatmul.mubr.f32.gmra.mrb[0].mxu0 %v6559
      %v6640 = vpop.f32.mrb[0].mxu0
      %v6641 = vadd.f32 %v6550, %v6640
      %v6642 = vpop.f32.mrb[0].mxu0
      %6643 = vmatprep.mubr.f32.mxu0 0.0
      %6644 = vmatmul.mubr.f32.gmra.mrb[0].mxu0 %v6562
      %v6645 = vpop.f32.mrb[0].mxu0
      %v6646 = vadd.f32 %v6551, %v6645
      %v6647 = vpop.f32.mrb[0].mxu0
      %6648 = vdwg.mxu0
      %v6649 = vld [vmem:[%s7] sm:$0xff]
      %v6650 = vld [vmem:[%s7 + $0x8] sm:$0xff]
      %v6651 = vld [vmem:[%s7 + $0x10] sm:$0xff]
      %v6652 = vld [vmem:[%s7 + $0x18] sm:$0xff]
      %6654 = vset.pattern.permute.xlu0 0
      %6655 = vperm.xlu0 %6654, %v6631
      %v6656 = vpop.permute.xlu0 %6655
      %6659 = vset.pattern.permute.xlu0 0
      %6660 = vperm.xlu0 %6659, %v6636
      %v6661 = vpop.permute.xlu0 %6660
      %6664 = vset.pattern.permute.xlu0 0
      %6665 = vperm.xlu0 %6664, %v6641
      %v6666 = vpop.permute.xlu0 %6665
      %6669 = vset.pattern.permute.xlu0 0
      %6670 = vperm.xlu0 %6669, %v6646
      %v6671 = vpop.permute.xlu0 %6670
      %v6674 = vlaneseq
      %v6675 = vshrl.u32 %v6674, 7
      %v6676 = vsub.s32 0, %v6675
      %v6677 = vrot.slane %v609, %v6676
      %v6678 = vlaneseq
      %v6679 = vshrl.u32 %v6678, 7
      %v6680 = vsub.s32 1, %v6679
      %v6681 = vrot.slane %v609, %v6680
      %v6682 = vlaneseq
      %v6683 = vshrl.u32 %v6682, 7
      %v6684 = vsub.s32 2, %v6683
      %v6685 = vrot.slane %v609, %v6684
      %v6686 = vlaneseq
      %v6687 = vshrl.u32 %v6686, 7
      %v6688 = vsub.s32 3, %v6687
      %v6689 = vrot.slane %v609, %v6688
      %v6694 = vmul.f32 %v6656, %v6677
      %v6695 = vmul.f32 %v6656, %v6681
      %v6696 = vmul.f32 %v6656, %v6685
      %v6697 = vmul.f32 %v6656, %v6689
      %v6698 = vmul.f32 %v6661, %v6677
      %v6699 = vmul.f32 %v6661, %v6681
      %v6700 = vmul.f32 %v6661, %v6685
      %v6701 = vmul.f32 %v6661, %v6689
      %v6702 = vmul.f32 %v6666, %v6677
      %v6703 = vmul.f32 %v6666, %v6681
      %v6704 = vmul.f32 %v6666, %v6685
      %v6705 = vmul.f32 %v6666, %v6689
      %v6706 = vmul.f32 %v6671, %v6677
      %v6707 = vmul.f32 %v6671, %v6681
      %v6708 = vmul.f32 %v6671, %v6685
      %v6709 = vmul.f32 %v6671, %v6689
      %v6711 = vsel %vm717, %v6649, 0
      %v6714 = vsel %vm717, %v6650, 0
      %v6717 = vsel %vm717, %v6651, 0
      %v6720 = vsel %vm717, %v6652, 0
      %6722 = vmatprep.subr.mxu0 %v570
      %6723 = vmatpush1.msra.mxu0 %v569
      %6724 = vmatprep.subr.mxu0 %v574
      %6725 = vmatpush1.msra.mxu0 %v573
      %6726 = vmatprep.subr.mxu0 %v578
      %6727 = vmatpush1.msra.mxu0 %v577
      %6728 = vmatprep.subr.mxu0 %v582
      %6729 = vmatpush1.msra.mxu0 %v581
      %6730 = vmatprep.subr.mxu0 %v586
      %6731 = vmatpush1.msra.mxu0 %v585
      %6732 = vmatprep.subr.mxu0 %v590
      %6733 = vmatpush1.msra.mxu0 %v589
      %6734 = vmatprep.subr.mxu0 %v594
      %6735 = vmatpush1.msra.mxu0 %v593
      %6736 = vmatprep.subr.mxu0 %v598
      %6737 = vmatpush1.msra.mxu0 %v597
      %6738 = vmatprep.subr.mxu0 0.0
      %6739 = vmatpush1.msra.mxu0 0.0
      %6740 = vmatprep.subr.mxu0 0.0
      %6741 = vmatpush1.msra.mxu0 0.0
      %6742 = vmatprep.subr.mxu0 0.0
      %6743 = vmatpush1.msra.mxu0 0.0
      %6744 = vmatprep.subr.mxu0 0.0
      %6745 = vmatpush1.msra.mxu0 0.0
      %6746 = vmatprep.subr.mxu0 0.0
      %6747 = vmatpush1.msra.mxu0 0.0
      %6748 = vmatprep.subr.mxu0 0.0
      %6749 = vmatpush1.msra.mxu0 0.0
      %6750 = vmatprep.subr.mxu0 0.0
      %6751 = vmatpush1.msra.mxu0 0.0
      %6752 = vmatprep.subr.mxu0 0.0
      %6753 = vmatpush1.msra.mxu0 0.0
      %6754 = vmatprep.subr.mxu0 0.0
      %6755 = vmatpush1.msra.mxu0 0.0
      %6756 = vmatprep.subr.mxu0 0.0
      %6757 = vmatpush1.msra.mxu0 0.0
      %6758 = vmatprep.subr.mxu0 0.0
      %6759 = vmatpush1.msra.mxu0 0.0
      %6760 = vmatprep.subr.mxu0 0.0
      %6761 = vmatpush1.msra.mxu0 0.0
      %6762 = vmatprep.subr.mxu0 0.0
      %6763 = vmatpush1.msra.mxu0 0.0
      %6764 = vmatprep.subr.mxu0 0.0
      %6765 = vmatpush1.msra.mxu0 0.0
      %6766 = vmatprep.subr.mxu0 0.0
      %6767 = vmatpush1.msra.mxu0 0.0
      %6768 = vmatprep.subr.mxu0 0.0
      %6769 = vmatpush1.msra.mxu0 0.0
      %6770 = vmatprep.subr.mxu0 0.0
      %6771 = vmatpush1.msra.mxu0 0.0
      %6772 = vmatprep.subr.mxu0 0.0
      %6773 = vmatpush1.msra.mxu0 0.0
      %6774 = vmatprep.subr.mxu0 0.0
      %6775 = vmatpush1.msra.mxu0 0.0
      %6776 = vmatprep.subr.mxu0 0.0
      %6777 = vmatpush1.msra.mxu0 0.0
      %6778 = vmatprep.subr.mxu0 0.0
      %6779 = vmatpush1.msra.mxu0 0.0
      %6780 = vmatprep.subr.mxu0 0.0
      %6781 = vmatpush1.msra.mxu0 0.0
      %6782 = vmatprep.subr.mxu0 0.0
      %6783 = vmatpush1.msra.mxu0 0.0
      %6784 = vmatprep.subr.mxu0 0.0
      %6785 = vmatpush1.msra.mxu0 0.0
      %6786 = vmatprep.mubr.f32.mxu0 0.0
      %6787 = vmatmul.mubr.f32.gmra.mrb[0].mxu0 %v6711
      %v6788 = vpop.f32.mrb[0].mxu0
      %v6789 = vadd.f32 %v6694, %v6788
      %v6790 = vpop.f32.mrb[0].mxu0
      %v6791 = vadd.f32 %v6695, %v6790
      %6792 = vmatprep.mubr.f32.mxu0 0.0
      %6793 = vmatmul.mubr.f32.gmra.mrb[0].mxu0 %v6714
      %v6794 = vpop.f32.mrb[0].mxu0
      %v6795 = vadd.f32 %v6698, %v6794
      %v6796 = vpop.f32.mrb[0].mxu0
      %v6797 = vadd.f32 %v6699, %v6796
      %6798 = vmatprep.mubr.f32.mxu0 0.0
      %6799 = vmatmul.mubr.f32.gmra.mrb[0].mxu0 %v6717
      %v6800 = vpop.f32.mrb[0].mxu0
      %v6801 = vadd.f32 %v6702, %v6800
      %v6802 = vpop.f32.mrb[0].mxu0
      %v6803 = vadd.f32 %v6703, %v6802
      %6804 = vmatprep.mubr.f32.mxu0 0.0
      %6805 = vmatmul.mubr.f32.gmra.mrb[0].mxu0 %v6720
      %v6806 = vpop.f32.mrb[0].mxu0
      %v6807 = vadd.f32 %v6706, %v6806
      %v6808 = vpop.f32.mrb[0].mxu0
      %v6809 = vadd.f32 %v6707, %v6808
      %6810 = vdwg.mxu0
      %6811 = vmatprep.subr.mxu0 %v572
      %6812 = vmatpush1.msra.mxu0 %v571
      %6813 = vmatprep.subr.mxu0 %v576
      %6814 = vmatpush1.msra.mxu0 %v575
      %6815 = vmatprep.subr.mxu0 %v580
      %6816 = vmatpush1.msra.mxu0 %v579
      %6817 = vmatprep.subr.mxu0 %v584
      %6818 = vmatpush1.msra.mxu0 %v583
      %6819 = vmatprep.subr.mxu0 %v588
      %6820 = vmatpush1.msra.mxu0 %v587
      %6821 = vmatprep.subr.mxu0 %v592
      %6822 = vmatpush1.msra.mxu0 %v591
      %6823 = vmatprep.subr.mxu0 %v596
      %6824 = vmatpush1.msra.mxu0 %v595
      %6825 = vmatprep.subr.mxu0 %v600
      %6826 = vmatpush1.msra.mxu0 %v599
      %6827 = vmatprep.subr.mxu0 0.0
      %6828 = vmatpush1.msra.mxu0 0.0
      %6829 = vmatprep.subr.mxu0 0.0
      %6830 = vmatpush1.msra.mxu0 0.0
      %6831 = vmatprep.subr.mxu0 0.0
      %6832 = vmatpush1.msra.mxu0 0.0
      %6833 = vmatprep.subr.mxu0 0.0
      %6834 = vmatpush1.msra.mxu0 0.0
      %6835 = vmatprep.subr.mxu0 0.0
      %6836 = vmatpush1.msra.mxu0 0.0
      %6837 = vmatprep.subr.mxu0 0.0
      %6838 = vmatpush1.msra.mxu0 0.0
      %6839 = vmatprep.subr.mxu0 0.0
      %6840 = vmatpush1.msra.mxu0 0.0
      %6841 = vmatprep.subr.mxu0 0.0
      %6842 = vmatpush1.msra.mxu0 0.0
      %6843 = vmatprep.subr.mxu0 0.0
      %6844 = vmatpush1.msra.mxu0 0.0
      %6845 = vmatprep.subr.mxu0 0.0
      %6846 = vmatpush1.msra.mxu0 0.0
      %6847 = vmatprep.subr.mxu0 0.0
      %6848 = vmatpush1.msra.mxu0 0.0
      %6849 = vmatprep.subr.mxu0 0.0
      %6850 = vmatpush1.msra.mxu0 0.0
      %6851 = vmatprep.subr.mxu0 0.0
      %6852 = vmatpush1.msra.mxu0 0.0
      %6853 = vmatprep.subr.mxu0 0.0
      %6854 = vmatpush1.msra.mxu0 0.0
      %6855 = vmatprep.subr.mxu0 0.0
      %6856 = vmatpush1.msra.mxu0 0.0
      %6857 = vmatprep.subr.mxu0 0.0
      %6858 = vmatpush1.msra.mxu0 0.0
      %6859 = vmatprep.subr.mxu0 0.0
      %6860 = vmatpush1.msra.mxu0 0.0
      %6861 = vmatprep.subr.mxu0 0.0
      %6862 = vmatpush1.msra.mxu0 0.0
      %6863 = vmatprep.subr.mxu0 0.0
      %6864 = vmatpush1.msra.mxu0 0.0
      %6865 = vmatprep.subr.mxu0 0.0
      %6866 = vmatpush1.msra.mxu0 0.0
      %6867 = vmatprep.subr.mxu0 0.0
      %6868 = vmatpush1.msra.mxu0 0.0
      %6869 = vmatprep.subr.mxu0 0.0
      %6870 = vmatpush1.msra.mxu0 0.0
      %6871 = vmatprep.subr.mxu0 0.0
      %6872 = vmatpush1.msra.mxu0 0.0
      %6873 = vmatprep.subr.mxu0 0.0
      %6874 = vmatpush1.msra.mxu0 0.0
      %6875 = vmatprep.mubr.f32.mxu0 0.0
      %6876 = vmatmul.mubr.f32.gmra.mrb[0].mxu0 %v6711
      %v6877 = vpop.f32.mrb[0].mxu0
      %v6878 = vadd.f32 %v6696, %v6877
      %v6879 = vpop.f32.mrb[0].mxu0
      %v6880 = vadd.f32 %v6697, %v6879
      %6881 = vmatprep.mubr.f32.mxu0 0.0
      %6882 = vmatmul.mubr.f32.gmra.mrb[0].mxu0 %v6714
      %v6883 = vpop.f32.mrb[0].mxu0
      %v6884 = vadd.f32 %v6700, %v6883
      %v6885 = vpop.f32.mrb[0].mxu0
      %v6886 = vadd.f32 %v6701, %v6885
      %6887 = vmatprep.mubr.f32.mxu0 0.0
      %6888 = vmatmul.mubr.f32.gmra.mrb[0].mxu0 %v6717
      %v6889 = vpop.f32.mrb[0].mxu0
      %v6890 = vadd.f32 %v6704, %v6889
      %v6891 = vpop.f32.mrb[0].mxu0
      %v6892 = vadd.f32 %v6705, %v6891
      %6893 = vmatprep.mubr.f32.mxu0 0.0
      %6894 = vmatmul.mubr.f32.gmra.mrb[0].mxu0 %v6720
      %v6895 = vpop.f32.mrb[0].mxu0
      %v6896 = vadd.f32 %v6708, %v6895
      %v6897 = vpop.f32.mrb[0].mxu0
      %v6898 = vadd.f32 %v6709, %v6897
      %6899 = vdwg.mxu0
      %v6900 = vmax.f32 %v6789, 0.0
      %v6901 = vmax.f32 %v6791, 0.0
      %v6902 = vmax.f32 %v6878, 0.0
      %v6903 = vmax.f32 %v6880, 0.0
      %v6904 = vmax.f32 %v6795, 0.0
      %v6905 = vmax.f32 %v6797, 0.0
      %v6906 = vmax.f32 %v6884, 0.0
      %v6907 = vmax.f32 %v6886, 0.0
      %v6908 = vmax.f32 %v6801, 0.0
      %v6909 = vmax.f32 %v6803, 0.0
      %v6910 = vmax.f32 %v6890, 0.0
      %v6911 = vmax.f32 %v6892, 0.0
      %v6912 = vmax.f32 %v6807, 0.0
      %v6913 = vmax.f32 %v6809, 0.0
      %v6914 = vmax.f32 %v6896, 0.0
      %v6915 = vmax.f32 %v6898, 0.0
      %6916 = vst [vmem:[#allocation4] sm:$0xff] 0.0
      %6917 = vst [vmem:[#allocation4 + $0x8] sm:$0xff] 0.0
      %6918 = vst [vmem:[#allocation4 + $0x10] sm:$0xff] 0.0
      %6919 = vst [vmem:[#allocation4 + $0x18] sm:$0xff] 0.0
      %6920 = vst.msk [vmem:[#allocation4 + $0x20] sm:$0xff] %vm717, 0.0
      %6921 = vst [vmem:[#allocation4 + $0x28] sm:$0xff] 0.0
      %6922 = vst [vmem:[#allocation4 + $0x30] sm:$0xff] 0.0
      %6923 = vst [vmem:[#allocation4 + $0x38] sm:$0xff] 0.0
      %6924 = vst [vmem:[#allocation4 + $0x40] sm:$0xff] 0.0
      %6925 = vst.msk [vmem:[#allocation4 + $0x48] sm:$0xff] %vm717, 0.0
      %6926 = vst [vmem:[#allocation4 + $0x50] sm:$0xff] 0.0
      %6927 = vst [vmem:[#allocation4 + $0x58] sm:$0xff] 0.0
      %6928 = vst [vmem:[#allocation4 + $0x60] sm:$0xff] 0.0
      %6929 = vst [vmem:[#allocation4 + $0x68] sm:$0xff] 0.0
      %6930 = vst.msk [vmem:[#allocation4 + $0x70] sm:$0xff] %vm717, 0.0
      %6931 = vst [vmem:[#allocation4 + $0x78] sm:$0xff] 0.0
      %6932 = vst [vmem:[#allocation4 + $0x80] sm:$0xff] 0.0
      %6933 = vst [vmem:[#allocation4 + $0x88] sm:$0xff] 0.0
      %6934 = vst [vmem:[#allocation4 + $0x90] sm:$0xff] 0.0
      %6935 = vst.msk [vmem:[#allocation4 + $0x98] sm:$0xff] %vm717, 0.0
      %6952 = vrot.lane.b32.xlu0 %v6900, 33
      %v6953 = vpop.permute.xlu0 %6952
      %6954 = vrot.lane.b32.xlu0 %v6901, 33
      %v6955 = vpop.permute.xlu0 %6954
      %6956 = vrot.lane.b32.xlu0 %v6902, 33
      %v6957 = vpop.permute.xlu0 %6956
      %6958 = vrot.lane.b32.xlu0 %v6903, 33
      %v6959 = vpop.permute.xlu0 %6958
      %6960 = vrot.lane.b32.xlu0 %v6904, 33
      %v6961 = vpop.permute.xlu0 %6960
      %6962 = vrot.lane.b32.xlu0 %v6905, 33
      %v6963 = vpop.permute.xlu0 %6962
      %6964 = vrot.lane.b32.xlu0 %v6906, 33
      %v6965 = vpop.permute.xlu0 %6964
      %6966 = vrot.lane.b32.xlu0 %v6907, 33
      %v6967 = vpop.permute.xlu0 %6966
      %6968 = vrot.lane.b32.xlu0 %v6908, 33
      %v6969 = vpop.permute.xlu0 %6968
      %6970 = vrot.lane.b32.xlu0 %v6909, 33
      %v6971 = vpop.permute.xlu0 %6970
      %6972 = vrot.lane.b32.xlu0 %v6910, 33
      %v6973 = vpop.permute.xlu0 %6972
      %6974 = vrot.lane.b32.xlu0 %v6911, 33
      %v6975 = vpop.permute.xlu0 %6974
      %6976 = vrot.lane.b32.xlu0 %v6912, 33
      %v6977 = vpop.permute.xlu0 %6976
      %6978 = vrot.lane.b32.xlu0 %v6913, 33
      %v6979 = vpop.permute.xlu0 %6978
      %6980 = vrot.lane.b32.xlu0 %v6914, 33
      %v6981 = vpop.permute.xlu0 %6980
      %6982 = vrot.lane.b32.xlu0 %v6915, 33
      %v6983 = vpop.permute.xlu0 %6982
      %vm6984 = vcmask 269312
      %v6985 = vsel %vm6984, %v6953, %v6955
      %v6986 = vsel %vm6984, %v6955, %v6957
      %v6987 = vsel %vm6984, %v6957, %v6959
      %v6988 = vsel %vm6984, %v6961, %v6963
      %v6989 = vsel %vm6984, %v6963, %v6965
      %v6990 = vsel %vm6984, %v6965, %v6967
      %v6991 = vsel %vm6984, %v6969, %v6971
      %v6992 = vsel %vm6984, %v6971, %v6973
      %v6993 = vsel %vm6984, %v6973, %v6975
      %v6994 = vsel %vm6984, %v6977, %v6979
      %v6995 = vsel %vm6984, %v6979, %v6981
      %v6996 = vsel %vm6984, %v6981, %v6983
      %vm7017 = vcmask 1047816
      %7018 = vst.msk [vmem:[#allocation4] sm:$0xff] %vm7017, %v6953
      %7019 = vst [vmem:[#allocation4 + $0x8] sm:$0xff] %v6985
      %7020 = vst [vmem:[#allocation4 + $0x10] sm:$0xff] %v6986
      %7021 = vst [vmem:[#allocation4 + $0x18] sm:$0xff] %v6987
      %vm7022 = vcmask 7168
      %7023 = vst.msk [vmem:[#allocation4 + $0x20] sm:$0xff] %vm7022, %v6959
      %7024 = vst.msk [vmem:[#allocation4 + $0x28] sm:$0xff] %vm7017, %v6961
      %7025 = vst [vmem:[#allocation4 + $0x30] sm:$0xff] %v6988
      %7026 = vst [vmem:[#allocation4 + $0x38] sm:$0xff] %v6989
      %7027 = vst [vmem:[#allocation4 + $0x40] sm:$0xff] %v6990
      %7028 = vst.msk [vmem:[#allocation4 + $0x48] sm:$0xff] %vm7022, %v6967
      %7029 = vst.msk [vmem:[#allocation4 + $0x50] sm:$0xff] %vm7017, %v6969
      %7030 = vst [vmem:[#allocation4 + $0x58] sm:$0xff] %v6991
      %7031 = vst [vmem:[#allocation4 + $0x60] sm:$0xff] %v6992
      %7032 = vst [vmem:[#allocation4 + $0x68] sm:$0xff] %v6993
      %7033 = vst.msk [vmem:[#allocation4 + $0x70] sm:$0xff] %vm7022, %v6975
      %7034 = vst.msk [vmem:[#allocation4 + $0x78] sm:$0xff] %vm7017, %v6977
      %7035 = vst [vmem:[#allocation4 + $0x80] sm:$0xff] %v6994
      %7036 = vst [vmem:[#allocation4 + $0x88] sm:$0xff] %v6995
      %7037 = vst [vmem:[#allocation4 + $0x90] sm:$0xff] %v6996
      %7038 = vst.msk [vmem:[#allocation4 + $0x98] sm:$0xff] %vm7022, %v6983
      %v7039 = vld [vmem:[#allocation4] sm:$0xff]
      %v7040 = vld [vmem:[#allocation4 + $0x8] sm:$0xff]
      %v7041 = vld [vmem:[#allocation4 + $0x10] sm:$0xff]
      %v7042 = vld [vmem:[#allocation4 + $0x18] sm:$0xff]
      %v7043 = vld [vmem:[#allocation4 + $0x20] sm:$0xff]
      %v7044 = vld [vmem:[#allocation4 + $0x28] sm:$0xff]
      %v7045 = vld [vmem:[#allocation4 + $0x30] sm:$0xff]
      %v7046 = vld [vmem:[#allocation4 + $0x38] sm:$0xff]
      %v7047 = vld [vmem:[#allocation4 + $0x40] sm:$0xff]
      %v7048 = vld [vmem:[#allocation4 + $0x48] sm:$0xff]
      %v7049 = vld [vmem:[#allocation4 + $0x50] sm:$0xff]
      %v7050 = vld [vmem:[#allocation4 + $0x58] sm:$0xff]
      %v7051 = vld [vmem:[#allocation4 + $0x60] sm:$0xff]
      %v7052 = vld [vmem:[#allocation4 + $0x68] sm:$0xff]
      %v7053 = vld [vmem:[#allocation4 + $0x70] sm:$0xff]
      %v7054 = vld [vmem:[#allocation4 + $0x78] sm:$0xff]
      %v7055 = vld [vmem:[#allocation4 + $0x80] sm:$0xff]
      %v7056 = vld [vmem:[#allocation4 + $0x88] sm:$0xff]
      %v7057 = vld [vmem:[#allocation4 + $0x90] sm:$0xff]
      %v7058 = vld [vmem:[#allocation4 + $0x98] sm:$0xff]
      %7059 = vst [vmem:[#allocation5] sm:$0xff] %v7039
      %7060 = vst [vmem:[#allocation5 + $0x8] sm:$0xff] %v7040
      %7061 = vst [vmem:[#allocation5 + $0x10] sm:$0xff] %v7041
      %7062 = vst [vmem:[#allocation5 + $0x18] sm:$0xff] %v7042
      %7063 = vst.msk [vmem:[#allocation5 + $0x20] sm:$0xff] %vm963, %v7043
      %7064 = vst [vmem:[#allocation5 + $0x28] sm:$0xff] %v7044
      %7065 = vst [vmem:[#allocation5 + $0x30] sm:$0xff] %v7045
      %7066 = vst [vmem:[#allocation5 + $0x38] sm:$0xff] %v7046
      %7067 = vst [vmem:[#allocation5 + $0x40] sm:$0xff] %v7047
      %7068 = vst.msk [vmem:[#allocation5 + $0x48] sm:$0xff] %vm963, %v7048
      %7069 = vst [vmem:[#allocation5 + $0x50] sm:$0xff] %v7049
      %7070 = vst [vmem:[#allocation5 + $0x58] sm:$0xff] %v7050
      %7071 = vst [vmem:[#allocation5 + $0x60] sm:$0xff] %v7051
      %7072 = vst [vmem:[#allocation5 + $0x68] sm:$0xff] %v7052
      %7073 = vst.msk [vmem:[#allocation5 + $0x70] sm:$0xff] %vm963, %v7053
      %7074 = vst [vmem:[#allocation5 + $0x78] sm:$0xff] %v7054
      %7075 = vst [vmem:[#allocation5 + $0x80] sm:$0xff] %v7055
      %7076 = vst [vmem:[#allocation5 + $0x88] sm:$0xff] %v7056
      %7077 = vst [vmem:[#allocation5 + $0x90] sm:$0xff] %v7057
      %7078 = vst.msk [vmem:[#allocation5 + $0x98] sm:$0xff] %vm963, %v7058
      %v7079 = vld [vmem:[#allocation4] sm:$0xff]
      %v7080 = vld [vmem:[#allocation4 + $0x8] sm:$0xff]
      %v7081 = vld [vmem:[#allocation4 + $0x10] sm:$0xff]
      %v7082 = vld [vmem:[#allocation4 + $0x18] sm:$0xff]
      %v7083 = vld [vmem:[#allocation4 + $0x20] sm:$0xff]
      %v7084 = vld [vmem:[#allocation4 + $0x28] sm:$0xff]
      %v7085 = vld [vmem:[#allocation4 + $0x30] sm:$0xff]
      %v7086 = vld [vmem:[#allocation4 + $0x38] sm:$0xff]
      %v7087 = vld [vmem:[#allocation4 + $0x40] sm:$0xff]
      %v7088 = vld [vmem:[#allocation4 + $0x48] sm:$0xff]
      %v7089 = vld [vmem:[#allocation4 + $0x50] sm:$0xff]
      %v7090 = vld [vmem:[#allocation4 + $0x58] sm:$0xff]
      %v7091 = vld [vmem:[#allocation4 + $0x60] sm:$0xff]
      %v7092 = vld [vmem:[#allocation4 + $0x68] sm:$0xff]
      %v7093 = vld [vmem:[#allocation4 + $0x70] sm:$0xff]
      %v7094 = vld [vmem:[#allocation4 + $0x78] sm:$0xff]
      %v7095 = vld [vmem:[#allocation4 + $0x80] sm:$0xff]
      %v7096 = vld [vmem:[#allocation4 + $0x88] sm:$0xff]
      %v7097 = vld [vmem:[#allocation4 + $0x90] sm:$0xff]
      %v7098 = vld [vmem:[#allocation4 + $0x98] sm:$0xff]
      %7119 = vrot.lane.b32.xlu0 %v7079, 127
      %v7120 = vpop.permute.xlu0 %7119
      %7121 = vrot.lane.b32.xlu0 %v7080, 127
      %v7122 = vpop.permute.xlu0 %7121
      %7123 = vrot.lane.b32.xlu0 %v7081, 127
      %v7124 = vpop.permute.xlu0 %7123
      %7125 = vrot.lane.b32.xlu0 %v7082, 127
      %v7126 = vpop.permute.xlu0 %7125
      %7127 = vrot.lane.b32.xlu0 %v7083, 127
      %v7128 = vpop.permute.xlu0 %7127
      %7129 = vrot.lane.b32.xlu0 %v7084, 127
      %v7130 = vpop.permute.xlu0 %7129
      %7131 = vrot.lane.b32.xlu0 %v7085, 127
      %v7132 = vpop.permute.xlu0 %7131
      %7133 = vrot.lane.b32.xlu0 %v7086, 127
      %v7134 = vpop.permute.xlu0 %7133
      %7135 = vrot.lane.b32.xlu0 %v7087, 127
      %v7136 = vpop.permute.xlu0 %7135
      %7137 = vrot.lane.b32.xlu0 %v7088, 127
      %v7138 = vpop.permute.xlu0 %7137
      %7139 = vrot.lane.b32.xlu0 %v7089, 127
      %v7140 = vpop.permute.xlu0 %7139
      %7141 = vrot.lane.b32.xlu0 %v7090, 127
      %v7142 = vpop.permute.xlu0 %7141
      %7143 = vrot.lane.b32.xlu0 %v7091, 127
      %v7144 = vpop.permute.xlu0 %7143
      %7145 = vrot.lane.b32.xlu0 %v7092, 127
      %v7146 = vpop.permute.xlu0 %7145
      %7147 = vrot.lane.b32.xlu0 %v7093, 127
      %v7148 = vpop.permute.xlu0 %7147
      %7149 = vrot.lane.b32.xlu0 %v7094, 127
      %v7150 = vpop.permute.xlu0 %7149
      %7151 = vrot.lane.b32.xlu0 %v7095, 127
      %v7152 = vpop.permute.xlu0 %7151
      %7153 = vrot.lane.b32.xlu0 %v7096, 127
      %v7154 = vpop.permute.xlu0 %7153
      %7155 = vrot.lane.b32.xlu0 %v7097, 127
      %v7156 = vpop.permute.xlu0 %7155
      %7157 = vrot.lane.b32.xlu0 %v7098, 127
      %v7158 = vpop.permute.xlu0 %7157
      %v7159 = vsel %vm1122, %v7120, %v7122
      %v7160 = vsel %vm1122, %v7122, %v7124
      %v7161 = vsel %vm1122, %v7124, %v7126
      %v7162 = vsel %vm1122, %v7126, %v7128
      %v7163 = vsel %vm1122, %v7130, %v7132
      %v7164 = vsel %vm1122, %v7132, %v7134
      %v7165 = vsel %vm1122, %v7134, %v7136
      %v7166 = vsel %vm1122, %v7136, %v7138
      %v7167 = vsel %vm1122, %v7140, %v7142
      %v7168 = vsel %vm1122, %v7142, %v7144
      %v7169 = vsel %vm1122, %v7144, %v7146
      %v7170 = vsel %vm1122, %v7146, %v7148
      %v7171 = vsel %vm1122, %v7150, %v7152
      %v7172 = vsel %vm1122, %v7152, %v7154
      %v7173 = vsel %vm1122, %v7154, %v7156
      %v7174 = vsel %vm1122, %v7156, %v7158
      %7195 = vst [vmem:[#allocation5 + $0xa0] sm:$0xff] %v7159
      %7196 = vst [vmem:[#allocation5 + $0xa8] sm:$0xff] %v7160
      %7197 = vst [vmem:[#allocation5 + $0xb0] sm:$0xff] %v7161
      %7198 = vst [vmem:[#allocation5 + $0xb8] sm:$0xff] %v7162
      %7199 = vst.msk [vmem:[#allocation5 + $0xc0] sm:$0xff] %vm963, %v7128
      %7200 = vst [vmem:[#allocation5 + $0xc8] sm:$0xff] %v7163
      %7201 = vst [vmem:[#allocation5 + $0xd0] sm:$0xff] %v7164
      %7202 = vst [vmem:[#allocation5 + $0xd8] sm:$0xff] %v7165
      %7203 = vst [vmem:[#allocation5 + $0xe0] sm:$0xff] %v7166
      %7204 = vst.msk [vmem:[#allocation5 + $0xe8] sm:$0xff] %vm963, %v7138
      %7205 = vst [vmem:[#allocation5 + $0xf0] sm:$0xff] %v7167
      %7206 = vst [vmem:[#allocation5 + $0xf8] sm:$0xff] %v7168
      %7207 = vst [vmem:[#allocation5 + $0x100] sm:$0xff] %v7169
      %7208 = vst [vmem:[#allocation5 + $0x108] sm:$0xff] %v7170
      %7209 = vst.msk [vmem:[#allocation5 + $0x110] sm:$0xff] %vm963, %v7148
      %7210 = vst [vmem:[#allocation5 + $0x118] sm:$0xff] %v7171
      %7211 = vst [vmem:[#allocation5 + $0x120] sm:$0xff] %v7172
      %7212 = vst [vmem:[#allocation5 + $0x128] sm:$0xff] %v7173
      %7213 = vst [vmem:[#allocation5 + $0x130] sm:$0xff] %v7174
      %7214 = vst.msk [vmem:[#allocation5 + $0x138] sm:$0xff] %vm963, %v7158
      %v7215 = vld [vmem:[#allocation4] sm:$0xff]
      %v7216 = vld [vmem:[#allocation4 + $0x8] sm:$0xff]
      %v7217 = vld [vmem:[#allocation4 + $0x10] sm:$0xff]
      %v7218 = vld [vmem:[#allocation4 + $0x18] sm:$0xff]
      %v7219 = vld [vmem:[#allocation4 + $0x20] sm:$0xff]
      %v7220 = vld [vmem:[#allocation4 + $0x28] sm:$0xff]
      %v7221 = vld [vmem:[#allocation4 + $0x30] sm:$0xff]
      %v7222 = vld [vmem:[#allocation4 + $0x38] sm:$0xff]
      %v7223 = vld [vmem:[#allocation4 + $0x40] sm:$0xff]
      %v7224 = vld [vmem:[#allocation4 + $0x48] sm:$0xff]
      %v7225 = vld [vmem:[#allocation4 + $0x50] sm:$0xff]
      %v7226 = vld [vmem:[#allocation4 + $0x58] sm:$0xff]
      %v7227 = vld [vmem:[#allocation4 + $0x60] sm:$0xff]
      %v7228 = vld [vmem:[#allocation4 + $0x68] sm:$0xff]
      %v7229 = vld [vmem:[#allocation4 + $0x70] sm:$0xff]
      %v7230 = vld [vmem:[#allocation4 + $0x78] sm:$0xff]
      %v7231 = vld [vmem:[#allocation4 + $0x80] sm:$0xff]
      %v7232 = vld [vmem:[#allocation4 + $0x88] sm:$0xff]
      %v7233 = vld [vmem:[#allocation4 + $0x90] sm:$0xff]
      %v7234 = vld [vmem:[#allocation4 + $0x98] sm:$0xff]
      %7255 = vrot.lane.b32.xlu0 %v7215, 126
      %v7256 = vpop.permute.xlu0 %7255
      %7257 = vrot.lane.b32.xlu0 %v7216, 126
      %v7258 = vpop.permute.xlu0 %7257
      %7259 = vrot.lane.b32.xlu0 %v7217, 126
      %v7260 = vpop.permute.xlu0 %7259
      %7261 = vrot.lane.b32.xlu0 %v7218, 126
      %v7262 = vpop.permute.xlu0 %7261
      %7263 = vrot.lane.b32.xlu0 %v7219, 126
      %v7264 = vpop.permute.xlu0 %7263
      %7265 = vrot.lane.b32.xlu0 %v7220, 126
      %v7266 = vpop.permute.xlu0 %7265
      %7267 = vrot.lane.b32.xlu0 %v7221, 126
      %v7268 = vpop.permute.xlu0 %7267
      %7269 = vrot.lane.b32.xlu0 %v7222, 126
      %v7270 = vpop.permute.xlu0 %7269
      %7271 = vrot.lane.b32.xlu0 %v7223, 126
      %v7272 = vpop.permute.xlu0 %7271
      %7273 = vrot.lane.b32.xlu0 %v7224, 126
      %v7274 = vpop.permute.xlu0 %7273
      %7275 = vrot.lane.b32.xlu0 %v7225, 126
      %v7276 = vpop.permute.xlu0 %7275
      %7277 = vrot.lane.b32.xlu0 %v7226, 126
      %v7278 = vpop.permute.xlu0 %7277
      %7279 = vrot.lane.b32.xlu0 %v7227, 126
      %v7280 = vpop.permute.xlu0 %7279
      %7281 = vrot.lane.b32.xlu0 %v7228, 126
      %v7282 = vpop.permute.xlu0 %7281
      %7283 = vrot.lane.b32.xlu0 %v7229, 126
      %v7284 = vpop.permute.xlu0 %7283
      %7285 = vrot.lane.b32.xlu0 %v7230, 126
      %v7286 = vpop.permute.xlu0 %7285
      %7287 = vrot.lane.b32.xlu0 %v7231, 126
      %v7288 = vpop.permute.xlu0 %7287
      %7289 = vrot.lane.b32.xlu0 %v7232, 126
      %v7290 = vpop.permute.xlu0 %7289
      %7291 = vrot.lane.b32.xlu0 %v7233, 126
      %v7292 = vpop.permute.xlu0 %7291
      %7293 = vrot.lane.b32.xlu0 %v7234, 126
      %v7294 = vpop.permute.xlu0 %7293
      %v7295 = vsel %vm1215, %v7256, %v7258
      %v7296 = vsel %vm1215, %v7258, %v7260
      %v7297 = vsel %vm1215, %v7260, %v7262
      %v7298 = vsel %vm1215, %v7262, %v7264
      %v7299 = vsel %vm1215, %v7266, %v7268
      %v7300 = vsel %vm1215, %v7268, %v7270
      %v7301 = vsel %vm1215, %v7270, %v7272
      %v7302 = vsel %vm1215, %v7272, %v7274
      %v7303 = vsel %vm1215, %v7276, %v7278
      %v7304 = vsel %vm1215, %v7278, %v7280
      %v7305 = vsel %vm1215, %v7280, %v7282
      %v7306 = vsel %vm1215, %v7282, %v7284
      %v7307 = vsel %vm1215, %v7286, %v7288
      %v7308 = vsel %vm1215, %v7288, %v7290
      %v7309 = vsel %vm1215, %v7290, %v7292
      %v7310 = vsel %vm1215, %v7292, %v7294
      %7331 = vst [vmem:[#allocation5 + $0x140] sm:$0xff] %v7295
      %7332 = vst [vmem:[#allocation5 + $0x148] sm:$0xff] %v7296
      %7333 = vst [vmem:[#allocation5 + $0x150] sm:$0xff] %v7297
      %7334 = vst [vmem:[#allocation5 + $0x158] sm:$0xff] %v7298
      %7335 = vst.msk [vmem:[#allocation5 + $0x160] sm:$0xff] %vm963, %v7264
      %7336 = vst [vmem:[#allocation5 + $0x168] sm:$0xff] %v7299
      %7337 = vst [vmem:[#allocation5 + $0x170] sm:$0xff] %v7300
      %7338 = vst [vmem:[#allocation5 + $0x178] sm:$0xff] %v7301
      %7339 = vst [vmem:[#allocation5 + $0x180] sm:$0xff] %v7302
      %7340 = vst.msk [vmem:[#allocation5 + $0x188] sm:$0xff] %vm963, %v7274
      %7341 = vst [vmem:[#allocation5 + $0x190] sm:$0xff] %v7303
      %7342 = vst [vmem:[#allocation5 + $0x198] sm:$0xff] %v7304
      %7343 = vst [vmem:[#allocation5 + $0x1a0] sm:$0xff] %v7305
      %7344 = vst [vmem:[#allocation5 + $0x1a8] sm:$0xff] %v7306
      %7345 = vst.msk [vmem:[#allocation5 + $0x1b0] sm:$0xff] %vm963, %v7284
      %7346 = vst [vmem:[#allocation5 + $0x1b8] sm:$0xff] %v7307
      %7347 = vst [vmem:[#allocation5 + $0x1c0] sm:$0xff] %v7308
      %7348 = vst [vmem:[#allocation5 + $0x1c8] sm:$0xff] %v7309
      %7349 = vst [vmem:[#allocation5 + $0x1d0] sm:$0xff] %v7310
      %7350 = vst.msk [vmem:[#allocation5 + $0x1d8] sm:$0xff] %vm963, %v7294
      %v7351 = vld [vmem:[%s10] sm:$0xff]
      %v7352 = vld [vmem:[%s10 + $0x8] sm:$0xff]
      %v7353 = vld [vmem:[%s10 + $0x10] sm:$0xff]
      %v7354 = vld [vmem:[%s10 + $0x18] sm:$0xff]
      %v7355 = vld [vmem:[#allocation5] sm:$0xff]
      %v7356 = vld [vmem:[#allocation5 + $0x8] sm:$0xff]
      %v7357 = vld [vmem:[#allocation5 + $0x10] sm:$0xff]
      %v7358 = vld [vmem:[#allocation5 + $0x18] sm:$0xff]
      %v7359 = vld [vmem:[#allocation5 + $0x28] sm:$0xff]
      %v7360 = vld [vmem:[#allocation5 + $0x30] sm:$0xff]
      %v7361 = vld [vmem:[#allocation5 + $0x38] sm:$0xff]
      %v7362 = vld [vmem:[#allocation5 + $0x40] sm:$0xff]
      %v7363 = vld [vmem:[#allocation5 + $0x50] sm:$0xff]
      %v7364 = vld [vmem:[#allocation5 + $0x58] sm:$0xff]
      %v7365 = vld [vmem:[#allocation5 + $0x60] sm:$0xff]
      %v7366 = vld [vmem:[#allocation5 + $0x68] sm:$0xff]
      %v7367 = vld [vmem:[#allocation5 + $0x78] sm:$0xff]
      %v7368 = vld [vmem:[#allocation5 + $0x80] sm:$0xff]
      %v7369 = vld [vmem:[#allocation5 + $0x88] sm:$0xff]
      %v7370 = vld [vmem:[#allocation5 + $0x90] sm:$0xff]
      %v7371 = vld [vmem:[#allocation5 + $0xa0] sm:$0xff]
      %v7372 = vld [vmem:[#allocation5 + $0xa8] sm:$0xff]
      %v7373 = vld [vmem:[#allocation5 + $0xb0] sm:$0xff]
      %v7374 = vld [vmem:[#allocation5 + $0xb8] sm:$0xff]
      %v7375 = vld [vmem:[#allocation5 + $0xc8] sm:$0xff]
      %v7376 = vld [vmem:[#allocation5 + $0xd0] sm:$0xff]
      %v7377 = vld [vmem:[#allocation5 + $0xd8] sm:$0xff]
      %v7378 = vld [vmem:[#allocation5 + $0xe0] sm:$0xff]
      %v7379 = vld [vmem:[#allocation5 + $0xf0] sm:$0xff]
      %v7380 = vld [vmem:[#allocation5 + $0xf8] sm:$0xff]
      %v7381 = vld [vmem:[#allocation5 + $0x100] sm:$0xff]
      %v7382 = vld [vmem:[#allocation5 + $0x108] sm:$0xff]
      %v7383 = vld [vmem:[#allocation5 + $0x118] sm:$0xff]
      %v7384 = vld [vmem:[#allocation5 + $0x120] sm:$0xff]
      %v7385 = vld [vmem:[#allocation5 + $0x128] sm:$0xff]
      %v7386 = vld [vmem:[#allocation5 + $0x130] sm:$0xff]
      %v7387 = vld [vmem:[#allocation5 + $0x140] sm:$0xff]
      %v7388 = vld [vmem:[#allocation5 + $0x148] sm:$0xff]
      %v7389 = vld [vmem:[#allocation5 + $0x150] sm:$0xff]
      %v7390 = vld [vmem:[#allocation5 + $0x158] sm:$0xff]
      %v7391 = vld [vmem:[#allocation5 + $0x168] sm:$0xff]
      %v7392 = vld [vmem:[#allocation5 + $0x170] sm:$0xff]
      %v7393 = vld [vmem:[#allocation5 + $0x178] sm:$0xff]
      %v7394 = vld [vmem:[#allocation5 + $0x180] sm:$0xff]
      %v7395 = vld [vmem:[#allocation5 + $0x190] sm:$0xff]
      %v7396 = vld [vmem:[#allocation5 + $0x198] sm:$0xff]
      %v7397 = vld [vmem:[#allocation5 + $0x1a0] sm:$0xff]
      %v7398 = vld [vmem:[#allocation5 + $0x1a8] sm:$0xff]
      %v7399 = vld [vmem:[#allocation5 + $0x1b8] sm:$0xff]
      %v7400 = vld [vmem:[#allocation5 + $0x1c0] sm:$0xff]
      %v7401 = vld [vmem:[#allocation5 + $0x1c8] sm:$0xff]
      %v7402 = vld [vmem:[#allocation5 + $0x1d0] sm:$0xff]
      %s7403 = scalar_lea.vmem %s10, 32
      %v7404 = vld [vmem:[%s7403] sm:$0xff]
      %v7405 = vld [vmem:[%s7403 + $0x8] sm:$0xff]
      %v7406 = vld [vmem:[%s7403 + $0x10] sm:$0xff]
      %v7407 = vld [vmem:[%s7403 + $0x18] sm:$0xff]
      %7456 = vrot.lane.b32.xlu0 %v7355, 96
      %v7457 = vpop.permute.xlu0 %7456
      %7458 = vrot.lane.b32.xlu0 %v7356, 96
      %v7459 = vpop.permute.xlu0 %7458
      %7460 = vrot.lane.b32.xlu0 %v7357, 96
      %v7461 = vpop.permute.xlu0 %7460
      %7462 = vrot.lane.b32.xlu0 %v7358, 96
      %v7463 = vpop.permute.xlu0 %7462
      %7464 = vrot.lane.b32.xlu0 %v7359, 96
      %v7465 = vpop.permute.xlu0 %7464
      %7466 = vrot.lane.b32.xlu0 %v7360, 96
      %v7467 = vpop.permute.xlu0 %7466
      %7468 = vrot.lane.b32.xlu0 %v7361, 96
      %v7469 = vpop.permute.xlu0 %7468
      %7470 = vrot.lane.b32.xlu0 %v7362, 96
      %v7471 = vpop.permute.xlu0 %7470
      %7472 = vrot.lane.b32.xlu0 %v7363, 96
      %v7473 = vpop.permute.xlu0 %7472
      %7474 = vrot.lane.b32.xlu0 %v7364, 96
      %v7475 = vpop.permute.xlu0 %7474
      %7476 = vrot.lane.b32.xlu0 %v7365, 96
      %v7477 = vpop.permute.xlu0 %7476
      %7478 = vrot.lane.b32.xlu0 %v7366, 96
      %v7479 = vpop.permute.xlu0 %7478
      %7480 = vrot.lane.b32.xlu0 %v7367, 96
      %v7481 = vpop.permute.xlu0 %7480
      %7482 = vrot.lane.b32.xlu0 %v7368, 96
      %v7483 = vpop.permute.xlu0 %7482
      %7484 = vrot.lane.b32.xlu0 %v7369, 96
      %v7485 = vpop.permute.xlu0 %7484
      %7486 = vrot.lane.b32.xlu0 %v7370, 96
      %v7487 = vpop.permute.xlu0 %7486
      %7488 = vrot.lane.b32.xlu0 %v7371, 96
      %v7489 = vpop.permute.xlu0 %7488
      %7490 = vrot.lane.b32.xlu0 %v7372, 96
      %v7491 = vpop.permute.xlu0 %7490
      %7492 = vrot.lane.b32.xlu0 %v7373, 96
      %v7493 = vpop.permute.xlu0 %7492
      %7494 = vrot.lane.b32.xlu0 %v7374, 96
      %v7495 = vpop.permute.xlu0 %7494
      %7496 = vrot.lane.b32.xlu0 %v7375, 96
      %v7497 = vpop.permute.xlu0 %7496
      %7498 = vrot.lane.b32.xlu0 %v7376, 96
      %v7499 = vpop.permute.xlu0 %7498
      %7500 = vrot.lane.b32.xlu0 %v7377, 96
      %v7501 = vpop.permute.xlu0 %7500
      %7502 = vrot.lane.b32.xlu0 %v7378, 96
      %v7503 = vpop.permute.xlu0 %7502
      %7504 = vrot.lane.b32.xlu0 %v7379, 96
      %v7505 = vpop.permute.xlu0 %7504
      %7506 = vrot.lane.b32.xlu0 %v7380, 96
      %v7507 = vpop.permute.xlu0 %7506
      %7508 = vrot.lane.b32.xlu0 %v7381, 96
      %v7509 = vpop.permute.xlu0 %7508
      %7510 = vrot.lane.b32.xlu0 %v7382, 96
      %v7511 = vpop.permute.xlu0 %7510
      %7512 = vrot.lane.b32.xlu0 %v7383, 96
      %v7513 = vpop.permute.xlu0 %7512
      %7514 = vrot.lane.b32.xlu0 %v7384, 96
      %v7515 = vpop.permute.xlu0 %7514
      %7516 = vrot.lane.b32.xlu0 %v7385, 96
      %v7517 = vpop.permute.xlu0 %7516
      %7518 = vrot.lane.b32.xlu0 %v7386, 96
      %v7519 = vpop.permute.xlu0 %7518
      %7520 = vrot.lane.b32.xlu0 %v7387, 96
      %v7521 = vpop.permute.xlu0 %7520
      %7522 = vrot.lane.b32.xlu0 %v7388, 96
      %v7523 = vpop.permute.xlu0 %7522
      %7524 = vrot.lane.b32.xlu0 %v7389, 96
      %v7525 = vpop.permute.xlu0 %7524
      %7526 = vrot.lane.b32.xlu0 %v7390, 96
      %v7527 = vpop.permute.xlu0 %7526
      %7528 = vrot.lane.b32.xlu0 %v7391, 96
      %v7529 = vpop.permute.xlu0 %7528
      %7530 = vrot.lane.b32.xlu0 %v7392, 96
      %v7531 = vpop.permute.xlu0 %7530
      %7532 = vrot.lane.b32.xlu0 %v7393, 96
      %v7533 = vpop.permute.xlu0 %7532
      %7534 = vrot.lane.b32.xlu0 %v7394, 96
      %v7535 = vpop.permute.xlu0 %7534
      %7536 = vrot.lane.b32.xlu0 %v7395, 96
      %v7537 = vpop.permute.xlu0 %7536
      %7538 = vrot.lane.b32.xlu0 %v7396, 96
      %v7539 = vpop.permute.xlu0 %7538
      %7540 = vrot.lane.b32.xlu0 %v7397, 96
      %v7541 = vpop.permute.xlu0 %7540
      %7542 = vrot.lane.b32.xlu0 %v7398, 96
      %v7543 = vpop.permute.xlu0 %7542
      %7544 = vrot.lane.b32.xlu0 %v7399, 96
      %v7545 = vpop.permute.xlu0 %7544
      %7546 = vrot.lane.b32.xlu0 %v7400, 96
      %v7547 = vpop.permute.xlu0 %7546
      %7548 = vrot.lane.b32.xlu0 %v7401, 96
      %v7549 = vpop.permute.xlu0 %7548
      %7550 = vrot.lane.b32.xlu0 %v7402, 96
      %v7551 = vpop.permute.xlu0 %7550
      %v7552 = vsel %vm666, %v7457, %v7459
      %v7553 = vsel %vm666, %v7459, %v7461
      %v7554 = vsel %vm666, %v7461, %v7463
      %v7555 = vsel %vm666, %v7465, %v7467
      %v7556 = vsel %vm666, %v7467, %v7469
      %v7557 = vsel %vm666, %v7469, %v7471
      %v7558 = vsel %vm666, %v7473, %v7475
      %v7559 = vsel %vm666, %v7475, %v7477
      %v7560 = vsel %vm666, %v7477, %v7479
      %v7561 = vsel %vm666, %v7481, %v7483
      %v7562 = vsel %vm666, %v7483, %v7485
      %v7563 = vsel %vm666, %v7485, %v7487
      %v7564 = vsel %vm666, %v7489, %v7491
      %v7565 = vsel %vm666, %v7491, %v7493
      %v7566 = vsel %vm666, %v7493, %v7495
      %v7567 = vsel %vm666, %v7497, %v7499
      %v7568 = vsel %vm666, %v7499, %v7501
      %v7569 = vsel %vm666, %v7501, %v7503
      %v7570 = vsel %vm666, %v7505, %v7507
      %v7571 = vsel %vm666, %v7507, %v7509
      %v7572 = vsel %vm666, %v7509, %v7511
      %v7573 = vsel %vm666, %v7513, %v7515
      %v7574 = vsel %vm666, %v7515, %v7517
      %v7575 = vsel %vm666, %v7517, %v7519
      %v7576 = vsel %vm666, %v7521, %v7523
      %v7577 = vsel %vm666, %v7523, %v7525
      %v7578 = vsel %vm666, %v7525, %v7527
      %v7579 = vsel %vm666, %v7529, %v7531
      %v7580 = vsel %vm666, %v7531, %v7533
      %v7581 = vsel %vm666, %v7533, %v7535
      %v7582 = vsel %vm666, %v7537, %v7539
      %v7583 = vsel %vm666, %v7539, %v7541
      %v7584 = vsel %vm666, %v7541, %v7543
      %v7585 = vsel %vm666, %v7545, %v7547
      %v7586 = vsel %vm666, %v7547, %v7549
      %v7587 = vsel %vm666, %v7549, %v7551
      %v7637 = vsel %vm666, %v7404, 0
      %v7640 = vsel %vm666, %v7405, 0
      %v7643 = vsel %vm666, %v7406, 0
      %v7646 = vsel %vm666, %v7407, 0
      %7648 = vmatprep.subr.mxu0 %v7553
      %7649 = vmatpush1.msra.mxu0 %v7552
      %7650 = vmatprep.subr.mxu0 %v7556
      %7651 = vmatpush1.msra.mxu0 %v7555
      %7652 = vmatprep.subr.mxu0 %v7559
      %7653 = vmatpush1.msra.mxu0 %v7558
      %7654 = vmatprep.subr.mxu0 %v7562
      %7655 = vmatpush1.msra.mxu0 %v7561
      %7656 = vmatprep.subr.mxu0 %v7565
      %7657 = vmatpush1.msra.mxu0 %v7564
      %7658 = vmatprep.subr.mxu0 %v7568
      %7659 = vmatpush1.msra.mxu0 %v7567
      %7660 = vmatprep.subr.mxu0 %v7571
      %7661 = vmatpush1.msra.mxu0 %v7570
      %7662 = vmatprep.subr.mxu0 %v7574
      %7663 = vmatpush1.msra.mxu0 %v7573
      %7664 = vmatprep.subr.mxu0 %v7577
      %7665 = vmatpush1.msra.mxu0 %v7576
      %7666 = vmatprep.subr.mxu0 %v7580
      %7667 = vmatpush1.msra.mxu0 %v7579
      %7668 = vmatprep.subr.mxu0 %v7583
      %7669 = vmatpush1.msra.mxu0 %v7582
      %7670 = vmatprep.subr.mxu0 %v7586
      %7671 = vmatpush1.msra.mxu0 %v7585
      %7672 = vmatprep.subr.mxu0 0.0
      %7673 = vmatpush1.msra.mxu0 0.0
      %7674 = vmatprep.subr.mxu0 0.0
      %7675 = vmatpush1.msra.mxu0 0.0
      %7676 = vmatprep.subr.mxu0 0.0
      %7677 = vmatpush1.msra.mxu0 0.0
      %7678 = vmatprep.subr.mxu0 0.0
      %7679 = vmatpush1.msra.mxu0 0.0
      %7680 = vmatprep.subr.mxu0 0.0
      %7681 = vmatpush1.msra.mxu0 0.0
      %7682 = vmatprep.subr.mxu0 0.0
      %7683 = vmatpush1.msra.mxu0 0.0
      %7684 = vmatprep.subr.mxu0 0.0
      %7685 = vmatpush1.msra.mxu0 0.0
      %7686 = vmatprep.subr.mxu0 0.0
      %7687 = vmatpush1.msra.mxu0 0.0
      %7688 = vmatprep.subr.mxu0 0.0
      %7689 = vmatpush1.msra.mxu0 0.0
      %7690 = vmatprep.subr.mxu0 0.0
      %7691 = vmatpush1.msra.mxu0 0.0
      %7692 = vmatprep.subr.mxu0 0.0
      %7693 = vmatpush1.msra.mxu0 0.0
      %7694 = vmatprep.subr.mxu0 0.0
      %7695 = vmatpush1.msra.mxu0 0.0
      %7696 = vmatprep.subr.mxu0 0.0
      %7697 = vmatpush1.msra.mxu0 0.0
      %7698 = vmatprep.subr.mxu0 0.0
      %7699 = vmatpush1.msra.mxu0 0.0
      %7700 = vmatprep.subr.mxu0 0.0
      %7701 = vmatpush1.msra.mxu0 0.0
      %7702 = vmatprep.subr.mxu0 0.0
      %7703 = vmatpush1.msra.mxu0 0.0
      %7704 = vmatprep.subr.mxu0 0.0
      %7705 = vmatpush1.msra.mxu0 0.0
      %7706 = vmatprep.subr.mxu0 0.0
      %7707 = vmatpush1.msra.mxu0 0.0
      %7708 = vmatprep.subr.mxu0 0.0
      %7709 = vmatpush1.msra.mxu0 0.0
      %7710 = vmatprep.subr.mxu0 0.0
      %7711 = vmatpush1.msra.mxu0 0.0
      %7712 = vmatprep.mubr.f32.mxu0 0.0
      %7713 = vmatmul.mubr.f32.gmra.mrb[0].mxu0 %v7637
      %v7714 = vpop.f32.mrb[0].mxu0
      %v7715 = vadd.f32 0.0, %v7714
      %v7716 = vpop.f32.mrb[0].mxu0
      %v7717 = vadd.f32 0.0, %v7716
      %7718 = vmatprep.mubr.f32.mxu0 0.0
      %7719 = vmatmul.mubr.f32.gmra.mrb[0].mxu0 %v7640
      %v7720 = vpop.f32.mrb[0].mxu0
      %v7721 = vadd.f32 0.0, %v7720
      %v7722 = vpop.f32.mrb[0].mxu0
      %v7723 = vadd.f32 0.0, %v7722
      %7724 = vmatprep.mubr.f32.mxu0 0.0
      %7725 = vmatmul.mubr.f32.gmra.mrb[0].mxu0 %v7643
      %v7726 = vpop.f32.mrb[0].mxu0
      %v7727 = vadd.f32 0.0, %v7726
      %v7728 = vpop.f32.mrb[0].mxu0
      %v7729 = vadd.f32 0.0, %v7728
      %7730 = vmatprep.mubr.f32.mxu0 0.0
      %7731 = vmatmul.mubr.f32.gmra.mrb[0].mxu0 %v7646
      %v7732 = vpop.f32.mrb[0].mxu0
      %v7733 = vadd.f32 0.0, %v7732
      %v7734 = vpop.f32.mrb[0].mxu0
      %v7735 = vadd.f32 0.0, %v7734
      %7736 = vdwg.mxu0
      %7737 = vmatprep.subr.mxu0 %v7463
      %7738 = vmatpush1.msra.mxu0 %v7554
      %7739 = vmatprep.subr.mxu0 %v7471
      %7740 = vmatpush1.msra.mxu0 %v7557
      %7741 = vmatprep.subr.mxu0 %v7479
      %7742 = vmatpush1.msra.mxu0 %v7560
      %7743 = vmatprep.subr.mxu0 %v7487
      %7744 = vmatpush1.msra.mxu0 %v7563
      %7745 = vmatprep.subr.mxu0 %v7495
      %7746 = vmatpush1.msra.mxu0 %v7566
      %7747 = vmatprep.subr.mxu0 %v7503
      %7748 = vmatpush1.msra.mxu0 %v7569
      %7749 = vmatprep.subr.mxu0 %v7511
      %7750 = vmatpush1.msra.mxu0 %v7572
      %7751 = vmatprep.subr.mxu0 %v7519
      %7752 = vmatpush1.msra.mxu0 %v7575
      %7753 = vmatprep.subr.mxu0 %v7527
      %7754 = vmatpush1.msra.mxu0 %v7578
      %7755 = vmatprep.subr.mxu0 %v7535
      %7756 = vmatpush1.msra.mxu0 %v7581
      %7757 = vmatprep.subr.mxu0 %v7543
      %7758 = vmatpush1.msra.mxu0 %v7584
      %7759 = vmatprep.subr.mxu0 %v7551
      %7760 = vmatpush1.msra.mxu0 %v7587
      %7761 = vmatprep.subr.mxu0 0.0
      %7762 = vmatpush1.msra.mxu0 0.0
      %7763 = vmatprep.subr.mxu0 0.0
      %7764 = vmatpush1.msra.mxu0 0.0
      %7765 = vmatprep.subr.mxu0 0.0
      %7766 = vmatpush1.msra.mxu0 0.0
      %7767 = vmatprep.subr.mxu0 0.0
      %7768 = vmatpush1.msra.mxu0 0.0
      %7769 = vmatprep.subr.mxu0 0.0
      %7770 = vmatpush1.msra.mxu0 0.0
      %7771 = vmatprep.subr.mxu0 0.0
      %7772 = vmatpush1.msra.mxu0 0.0
      %7773 = vmatprep.subr.mxu0 0.0
      %7774 = vmatpush1.msra.mxu0 0.0
      %7775 = vmatprep.subr.mxu0 0.0
      %7776 = vmatpush1.msra.mxu0 0.0
      %7777 = vmatprep.subr.mxu0 0.0
      %7778 = vmatpush1.msra.mxu0 0.0
      %7779 = vmatprep.subr.mxu0 0.0
      %7780 = vmatpush1.msra.mxu0 0.0
      %7781 = vmatprep.subr.mxu0 0.0
      %7782 = vmatpush1.msra.mxu0 0.0
      %7783 = vmatprep.subr.mxu0 0.0
      %7784 = vmatpush1.msra.mxu0 0.0
      %7785 = vmatprep.subr.mxu0 0.0
      %7786 = vmatpush1.msra.mxu0 0.0
      %7787 = vmatprep.subr.mxu0 0.0
      %7788 = vmatpush1.msra.mxu0 0.0
      %7789 = vmatprep.subr.mxu0 0.0
      %7790 = vmatpush1.msra.mxu0 0.0
      %7791 = vmatprep.subr.mxu0 0.0
      %7792 = vmatpush1.msra.mxu0 0.0
      %7793 = vmatprep.subr.mxu0 0.0
      %7794 = vmatpush1.msra.mxu0 0.0
      %7795 = vmatprep.subr.mxu0 0.0
      %7796 = vmatpush1.msra.mxu0 0.0
      %7797 = vmatprep.subr.mxu0 0.0
      %7798 = vmatpush1.msra.mxu0 0.0
      %7799 = vmatprep.subr.mxu0 0.0
      %7800 = vmatpush1.msra.mxu0 0.0
      %7801 = vmatprep.mubr.f32.mxu0 0.0
      %7802 = vmatmul.mubr.f32.gmra.mrb[0].mxu0 %v7637
      %v7803 = vpop.f32.mrb[0].mxu0
      %v7804 = vadd.f32 0.0, %v7803
      %v7805 = vpop.f32.mrb[0].mxu0
      %v7806 = vadd.f32 0.0, %v7805
      %7807 = vmatprep.mubr.f32.mxu0 0.0
      %7808 = vmatmul.mubr.f32.gmra.mrb[0].mxu0 %v7640
      %v7809 = vpop.f32.mrb[0].mxu0
      %v7810 = vadd.f32 0.0, %v7809
      %v7811 = vpop.f32.mrb[0].mxu0
      %v7812 = vadd.f32 0.0, %v7811
      %7813 = vmatprep.mubr.f32.mxu0 0.0
      %7814 = vmatmul.mubr.f32.gmra.mrb[0].mxu0 %v7643
      %v7815 = vpop.f32.mrb[0].mxu0
      %v7816 = vadd.f32 0.0, %v7815
      %v7817 = vpop.f32.mrb[0].mxu0
      %v7818 = vadd.f32 0.0, %v7817
      %7819 = vmatprep.mubr.f32.mxu0 0.0
      %7820 = vmatmul.mubr.f32.gmra.mrb[0].mxu0 %v7646
      %v7821 = vpop.f32.mrb[0].mxu0
      %v7822 = vadd.f32 0.0, %v7821
      %v7823 = vpop.f32.mrb[0].mxu0
      %v7824 = vadd.f32 0.0, %v7823
      %7825 = vdwg.mxu0
      %v7827 = vsel %vm666, %v7351, 0
      %v7830 = vsel %vm666, %v7352, 0
      %v7833 = vsel %vm666, %v7353, 0
      %v7836 = vsel %vm666, %v7354, 0
      %7838 = vmatprep.subr.mxu0 %v7356
      %7839 = vmatpush1.msra.mxu0 %v7355
      %7840 = vmatprep.subr.mxu0 %v7360
      %7841 = vmatpush1.msra.mxu0 %v7359
      %7842 = vmatprep.subr.mxu0 %v7364
      %7843 = vmatpush1.msra.mxu0 %v7363
      %7844 = vmatprep.subr.mxu0 %v7368
      %7845 = vmatpush1.msra.mxu0 %v7367
      %7846 = vmatprep.subr.mxu0 %v7372
      %7847 = vmatpush1.msra.mxu0 %v7371
      %7848 = vmatprep.subr.mxu0 %v7376
      %7849 = vmatpush1.msra.mxu0 %v7375
      %7850 = vmatprep.subr.mxu0 %v7380
      %7851 = vmatpush1.msra.mxu0 %v7379
      %7852 = vmatprep.subr.mxu0 %v7384
      %7853 = vmatpush1.msra.mxu0 %v7383
      %7854 = vmatprep.subr.mxu0 %v7388
      %7855 = vmatpush1.msra.mxu0 %v7387
      %7856 = vmatprep.subr.mxu0 %v7392
      %7857 = vmatpush1.msra.mxu0 %v7391
      %7858 = vmatprep.subr.mxu0 %v7396
      %7859 = vmatpush1.msra.mxu0 %v7395
      %7860 = vmatprep.subr.mxu0 %v7400
      %7861 = vmatpush1.msra.mxu0 %v7399
      %7862 = vmatprep.subr.mxu0 0.0
      %7863 = vmatpush1.msra.mxu0 0.0
      %7864 = vmatprep.subr.mxu0 0.0
      %7865 = vmatpush1.msra.mxu0 0.0
      %7866 = vmatprep.subr.mxu0 0.0
      %7867 = vmatpush1.msra.mxu0 0.0
      %7868 = vmatprep.subr.mxu0 0.0
      %7869 = vmatpush1.msra.mxu0 0.0
      %7870 = vmatprep.subr.mxu0 0.0
      %7871 = vmatpush1.msra.mxu0 0.0
      %7872 = vmatprep.subr.mxu0 0.0
      %7873 = vmatpush1.msra.mxu0 0.0
      %7874 = vmatprep.subr.mxu0 0.0
      %7875 = vmatpush1.msra.mxu0 0.0
      %7876 = vmatprep.subr.mxu0 0.0
      %7877 = vmatpush1.msra.mxu0 0.0
      %7878 = vmatprep.subr.mxu0 0.0
      %7879 = vmatpush1.msra.mxu0 0.0
      %7880 = vmatprep.subr.mxu0 0.0
      %7881 = vmatpush1.msra.mxu0 0.0
      %7882 = vmatprep.subr.mxu0 0.0
      %7883 = vmatpush1.msra.mxu0 0.0
      %7884 = vmatprep.subr.mxu0 0.0
      %7885 = vmatpush1.msra.mxu0 0.0
      %7886 = vmatprep.subr.mxu0 0.0
      %7887 = vmatpush1.msra.mxu0 0.0
      %7888 = vmatprep.subr.mxu0 0.0
      %7889 = vmatpush1.msra.mxu0 0.0
      %7890 = vmatprep.subr.mxu0 0.0
      %7891 = vmatpush1.msra.mxu0 0.0
      %7892 = vmatprep.subr.mxu0 0.0
      %7893 = vmatpush1.msra.mxu0 0.0
      %7894 = vmatprep.subr.mxu0 0.0
      %7895 = vmatpush1.msra.mxu0 0.0
      %7896 = vmatprep.subr.mxu0 0.0
      %7897 = vmatpush1.msra.mxu0 0.0
      %7898 = vmatprep.subr.mxu0 0.0
      %7899 = vmatpush1.msra.mxu0 0.0
      %7900 = vmatprep.subr.mxu0 0.0
      %7901 = vmatpush1.msra.mxu0 0.0
      %7902 = vmatprep.mubr.f32.mxu0 0.0
      %7903 = vmatmul.mubr.f32.gmra.mrb[0].mxu0 %v7827
      %v7904 = vpop.f32.mrb[0].mxu0
      %v7905 = vadd.f32 %v7715, %v7904
      %v7906 = vpop.f32.mrb[0].mxu0
      %v7907 = vadd.f32 %v7717, %v7906
      %7908 = vmatprep.mubr.f32.mxu0 0.0
      %7909 = vmatmul.mubr.f32.gmra.mrb[0].mxu0 %v7830
      %v7910 = vpop.f32.mrb[0].mxu0
      %v7911 = vadd.f32 %v7721, %v7910
      %v7912 = vpop.f32.mrb[0].mxu0
      %v7913 = vadd.f32 %v7723, %v7912
      %7914 = vmatprep.mubr.f32.mxu0 0.0
      %7915 = vmatmul.mubr.f32.gmra.mrb[0].mxu0 %v7833
      %v7916 = vpop.f32.mrb[0].mxu0
      %v7917 = vadd.f32 %v7727, %v7916
      %v7918 = vpop.f32.mrb[0].mxu0
      %v7919 = vadd.f32 %v7729, %v7918
      %7920 = vmatprep.mubr.f32.mxu0 0.0
      %7921 = vmatmul.mubr.f32.gmra.mrb[0].mxu0 %v7836
      %v7922 = vpop.f32.mrb[0].mxu0
      %v7923 = vadd.f32 %v7733, %v7922
      %v7924 = vpop.f32.mrb[0].mxu0
      %v7925 = vadd.f32 %v7735, %v7924
      %7926 = vdwg.mxu0
      %7927 = vmatprep.subr.mxu0 %v7358
      %7928 = vmatpush1.msra.mxu0 %v7357
      %7929 = vmatprep.subr.mxu0 %v7362
      %7930 = vmatpush1.msra.mxu0 %v7361
      %7931 = vmatprep.subr.mxu0 %v7366
      %7932 = vmatpush1.msra.mxu0 %v7365
      %7933 = vmatprep.subr.mxu0 %v7370
      %7934 = vmatpush1.msra.mxu0 %v7369
      %7935 = vmatprep.subr.mxu0 %v7374
      %7936 = vmatpush1.msra.mxu0 %v7373
      %7937 = vmatprep.subr.mxu0 %v7378
      %7938 = vmatpush1.msra.mxu0 %v7377
      %7939 = vmatprep.subr.mxu0 %v7382
      %7940 = vmatpush1.msra.mxu0 %v7381
      %7941 = vmatprep.subr.mxu0 %v7386
      %7942 = vmatpush1.msra.mxu0 %v7385
      %7943 = vmatprep.subr.mxu0 %v7390
      %7944 = vmatpush1.msra.mxu0 %v7389
      %7945 = vmatprep.subr.mxu0 %v7394
      %7946 = vmatpush1.msra.mxu0 %v7393
      %7947 = vmatprep.subr.mxu0 %v7398
      %7948 = vmatpush1.msra.mxu0 %v7397
      %7949 = vmatprep.subr.mxu0 %v7402
      %7950 = vmatpush1.msra.mxu0 %v7401
      %7951 = vmatprep.subr.mxu0 0.0
      %7952 = vmatpush1.msra.mxu0 0.0
      %7953 = vmatprep.subr.mxu0 0.0
      %7954 = vmatpush1.msra.mxu0 0.0
      %7955 = vmatprep.subr.mxu0 0.0
      %7956 = vmatpush1.msra.mxu0 0.0
      %7957 = vmatprep.subr.mxu0 0.0
      %7958 = vmatpush1.msra.mxu0 0.0
      %7959 = vmatprep.subr.mxu0 0.0
      %7960 = vmatpush1.msra.mxu0 0.0
      %7961 = vmatprep.subr.mxu0 0.0
      %7962 = vmatpush1.msra.mxu0 0.0
      %7963 = vmatprep.subr.mxu0 0.0
      %7964 = vmatpush1.msra.mxu0 0.0
      %7965 = vmatprep.subr.mxu0 0.0
      %7966 = vmatpush1.msra.mxu0 0.0
      %7967 = vmatprep.subr.mxu0 0.0
      %7968 = vmatpush1.msra.mxu0 0.0
      %7969 = vmatprep.subr.mxu0 0.0
      %7970 = vmatpush1.msra.mxu0 0.0
      %7971 = vmatprep.subr.mxu0 0.0
      %7972 = vmatpush1.msra.mxu0 0.0
      %7973 = vmatprep.subr.mxu0 0.0
      %7974 = vmatpush1.msra.mxu0 0.0
      %7975 = vmatprep.subr.mxu0 0.0
      %7976 = vmatpush1.msra.mxu0 0.0
      %7977 = vmatprep.subr.mxu0 0.0
      %7978 = vmatpush1.msra.mxu0 0.0
      %7979 = vmatprep.subr.mxu0 0.0
      %7980 = vmatpush1.msra.mxu0 0.0
      %7981 = vmatprep.subr.mxu0 0.0
      %7982 = vmatpush1.msra.mxu0 0.0
      %7983 = vmatprep.subr.mxu0 0.0
      %7984 = vmatpush1.msra.mxu0 0.0
      %7985 = vmatprep.subr.mxu0 0.0
      %7986 = vmatpush1.msra.mxu0 0.0
      %7987 = vmatprep.subr.mxu0 0.0
      %7988 = vmatpush1.msra.mxu0 0.0
      %7989 = vmatprep.subr.mxu0 0.0
      %7990 = vmatpush1.msra.mxu0 0.0
      %7991 = vmatprep.mubr.f32.mxu0 0.0
      %7992 = vmatmul.mubr.f32.gmra.mrb[0].mxu0 %v7827
      %v7993 = vpop.f32.mrb[0].mxu0
      %v7994 = vadd.f32 %v7804, %v7993
      %v7995 = vpop.f32.mrb[0].mxu0
      %v7996 = vadd.f32 %v7806, %v7995
      %7997 = vmatprep.mubr.f32.mxu0 0.0
      %7998 = vmatmul.mubr.f32.gmra.mrb[0].mxu0 %v7830
      %v7999 = vpop.f32.mrb[0].mxu0
      %v8000 = vadd.f32 %v7810, %v7999
      %v8001 = vpop.f32.mrb[0].mxu0
      %v8002 = vadd.f32 %v7812, %v8001
      %8003 = vmatprep.mubr.f32.mxu0 0.0
      %8004 = vmatmul.mubr.f32.gmra.mrb[0].mxu0 %v7833
      %v8005 = vpop.f32.mrb[0].mxu0
      %v8006 = vadd.f32 %v7816, %v8005
      %v8007 = vpop.f32.mrb[0].mxu0
      %v8008 = vadd.f32 %v7818, %v8007
      %8009 = vmatprep.mubr.f32.mxu0 0.0
      %8010 = vmatmul.mubr.f32.gmra.mrb[0].mxu0 %v7836
      %v8011 = vpop.f32.mrb[0].mxu0
      %v8012 = vadd.f32 %v7822, %v8011
      %v8013 = vpop.f32.mrb[0].mxu0
      %v8014 = vadd.f32 %v7824, %v8013
      %8015 = vdwg.mxu0
      %s8016 = scalar_lea.vmem %s10, 64
      %v8017 = vld [vmem:[%s8016] sm:$0xff]
      %v8018 = vld [vmem:[%s8016 + $0x8] sm:$0xff]
      %v8019 = vld [vmem:[%s8016 + $0x10] sm:$0xff]
      %v8020 = vld [vmem:[%s8016 + $0x18] sm:$0xff]
      %v8021 = vld [vmem:[#allocation5] sm:$0xff]
      %v8022 = vld [vmem:[#allocation5 + $0x8] sm:$0xff]
      %v8023 = vld [vmem:[#allocation5 + $0x10] sm:$0xff]
      %v8024 = vld [vmem:[#allocation5 + $0x18] sm:$0xff]
      %v8025 = vld [vmem:[#allocation5 + $0x20] sm:$0xff]
      %v8026 = vld [vmem:[#allocation5 + $0x28] sm:$0xff]
      %v8027 = vld [vmem:[#allocation5 + $0x30] sm:$0xff]
      %v8028 = vld [vmem:[#allocation5 + $0x38] sm:$0xff]
      %v8029 = vld [vmem:[#allocation5 + $0x40] sm:$0xff]
      %v8030 = vld [vmem:[#allocation5 + $0x48] sm:$0xff]
      %v8031 = vld [vmem:[#allocation5 + $0x50] sm:$0xff]
      %v8032 = vld [vmem:[#allocation5 + $0x58] sm:$0xff]
      %v8033 = vld [vmem:[#allocation5 + $0x60] sm:$0xff]
      %v8034 = vld [vmem:[#allocation5 + $0x68] sm:$0xff]
      %v8035 = vld [vmem:[#allocation5 + $0x70] sm:$0xff]
      %v8036 = vld [vmem:[#allocation5 + $0x78] sm:$0xff]
      %v8037 = vld [vmem:[#allocation5 + $0x80] sm:$0xff]
      %v8038 = vld [vmem:[#allocation5 + $0x88] sm:$0xff]
      %v8039 = vld [vmem:[#allocation5 + $0x90] sm:$0xff]
      %v8040 = vld [vmem:[#allocation5 + $0x98] sm:$0xff]
      %v8041 = vld [vmem:[#allocation5 + $0xa0] sm:$0xff]
      %v8042 = vld [vmem:[#allocation5 + $0xa8] sm:$0xff]
      %v8043 = vld [vmem:[#allocation5 + $0xb0] sm:$0xff]
      %v8044 = vld [vmem:[#allocation5 + $0xb8] sm:$0xff]
      %v8045 = vld [vmem:[#allocation5 + $0xc0] sm:$0xff]
      %v8046 = vld [vmem:[#allocation5 + $0xc8] sm:$0xff]
      %v8047 = vld [vmem:[#allocation5 + $0xd0] sm:$0xff]
      %v8048 = vld [vmem:[#allocation5 + $0xd8] sm:$0xff]
      %v8049 = vld [vmem:[#allocation5 + $0xe0] sm:$0xff]
      %v8050 = vld [vmem:[#allocation5 + $0xe8] sm:$0xff]
      %v8051 = vld [vmem:[#allocation5 + $0xf0] sm:$0xff]
      %v8052 = vld [vmem:[#allocation5 + $0xf8] sm:$0xff]
      %v8053 = vld [vmem:[#allocation5 + $0x100] sm:$0xff]
      %v8054 = vld [vmem:[#allocation5 + $0x108] sm:$0xff]
      %v8055 = vld [vmem:[#allocation5 + $0x110] sm:$0xff]
      %v8056 = vld [vmem:[#allocation5 + $0x118] sm:$0xff]
      %v8057 = vld [vmem:[#allocation5 + $0x120] sm:$0xff]
      %v8058 = vld [vmem:[#allocation5 + $0x128] sm:$0xff]
      %v8059 = vld [vmem:[#allocation5 + $0x130] sm:$0xff]
      %v8060 = vld [vmem:[#allocation5 + $0x138] sm:$0xff]
      %v8061 = vld [vmem:[#allocation5 + $0x140] sm:$0xff]
      %v8062 = vld [vmem:[#allocation5 + $0x148] sm:$0xff]
      %v8063 = vld [vmem:[#allocation5 + $0x150] sm:$0xff]
      %v8064 = vld [vmem:[#allocation5 + $0x158] sm:$0xff]
      %v8065 = vld [vmem:[#allocation5 + $0x160] sm:$0xff]
      %v8066 = vld [vmem:[#allocation5 + $0x168] sm:$0xff]
      %v8067 = vld [vmem:[#allocation5 + $0x170] sm:$0xff]
      %v8068 = vld [vmem:[#allocation5 + $0x178] sm:$0xff]
      %v8069 = vld [vmem:[#allocation5 + $0x180] sm:$0xff]
      %v8070 = vld [vmem:[#allocation5 + $0x188] sm:$0xff]
      %v8071 = vld [vmem:[#allocation5 + $0x190] sm:$0xff]
      %v8072 = vld [vmem:[#allocation5 + $0x198] sm:$0xff]
      %v8073 = vld [vmem:[#allocation5 + $0x1a0] sm:$0xff]
      %v8074 = vld [vmem:[#allocation5 + $0x1a8] sm:$0xff]
      %v8075 = vld [vmem:[#allocation5 + $0x1b0] sm:$0xff]
      %v8076 = vld [vmem:[#allocation5 + $0x1b8] sm:$0xff]
      %v8077 = vld [vmem:[#allocation5 + $0x1c0] sm:$0xff]
      %v8078 = vld [vmem:[#allocation5 + $0x1c8] sm:$0xff]
      %v8079 = vld [vmem:[#allocation5 + $0x1d0] sm:$0xff]
      %v8080 = vld [vmem:[#allocation5 + $0x1d8] sm:$0xff]
      %8141 = vrot.lane.b32.xlu0 %v8021, 64
      %v8142 = vpop.permute.xlu0 %8141
      %8143 = vrot.lane.b32.xlu0 %v8022, 64
      %v8144 = vpop.permute.xlu0 %8143
      %8145 = vrot.lane.b32.xlu0 %v8023, 64
      %v8146 = vpop.permute.xlu0 %8145
      %8147 = vrot.lane.b32.xlu0 %v8024, 64
      %v8148 = vpop.permute.xlu0 %8147
      %8149 = vrot.lane.b32.xlu0 %v8025, 64
      %v8150 = vpop.permute.xlu0 %8149
      %8151 = vrot.lane.b32.xlu0 %v8026, 64
      %v8152 = vpop.permute.xlu0 %8151
      %8153 = vrot.lane.b32.xlu0 %v8027, 64
      %v8154 = vpop.permute.xlu0 %8153
      %8155 = vrot.lane.b32.xlu0 %v8028, 64
      %v8156 = vpop.permute.xlu0 %8155
      %8157 = vrot.lane.b32.xlu0 %v8029, 64
      %v8158 = vpop.permute.xlu0 %8157
      %8159 = vrot.lane.b32.xlu0 %v8030, 64
      %v8160 = vpop.permute.xlu0 %8159
      %8161 = vrot.lane.b32.xlu0 %v8031, 64
      %v8162 = vpop.permute.xlu0 %8161
      %8163 = vrot.lane.b32.xlu0 %v8032, 64
      %v8164 = vpop.permute.xlu0 %8163
      %8165 = vrot.lane.b32.xlu0 %v8033, 64
      %v8166 = vpop.permute.xlu0 %8165
      %8167 = vrot.lane.b32.xlu0 %v8034, 64
      %v8168 = vpop.permute.xlu0 %8167
      %8169 = vrot.lane.b32.xlu0 %v8035, 64
      %v8170 = vpop.permute.xlu0 %8169
      %8171 = vrot.lane.b32.xlu0 %v8036, 64
      %v8172 = vpop.permute.xlu0 %8171
      %8173 = vrot.lane.b32.xlu0 %v8037, 64
      %v8174 = vpop.permute.xlu0 %8173
      %8175 = vrot.lane.b32.xlu0 %v8038, 64
      %v8176 = vpop.permute.xlu0 %8175
      %8177 = vrot.lane.b32.xlu0 %v8039, 64
      %v8178 = vpop.permute.xlu0 %8177
      %8179 = vrot.lane.b32.xlu0 %v8040, 64
      %v8180 = vpop.permute.xlu0 %8179
      %8181 = vrot.lane.b32.xlu0 %v8041, 64
      %v8182 = vpop.permute.xlu0 %8181
      %8183 = vrot.lane.b32.xlu0 %v8042, 64
      %v8184 = vpop.permute.xlu0 %8183
      %8185 = vrot.lane.b32.xlu0 %v8043, 64
      %v8186 = vpop.permute.xlu0 %8185
      %8187 = vrot.lane.b32.xlu0 %v8044, 64
      %v8188 = vpop.permute.xlu0 %8187
      %8189 = vrot.lane.b32.xlu0 %v8045, 64
      %v8190 = vpop.permute.xlu0 %8189
      %8191 = vrot.lane.b32.xlu0 %v8046, 64
      %v8192 = vpop.permute.xlu0 %8191
      %8193 = vrot.lane.b32.xlu0 %v8047, 64
      %v8194 = vpop.permute.xlu0 %8193
      %8195 = vrot.lane.b32.xlu0 %v8048, 64
      %v8196 = vpop.permute.xlu0 %8195
      %8197 = vrot.lane.b32.xlu0 %v8049, 64
      %v8198 = vpop.permute.xlu0 %8197
      %8199 = vrot.lane.b32.xlu0 %v8050, 64
      %v8200 = vpop.permute.xlu0 %8199
      %8201 = vrot.lane.b32.xlu0 %v8051, 64
      %v8202 = vpop.permute.xlu0 %8201
      %8203 = vrot.lane.b32.xlu0 %v8052, 64
      %v8204 = vpop.permute.xlu0 %8203
      %8205 = vrot.lane.b32.xlu0 %v8053, 64
      %v8206 = vpop.permute.xlu0 %8205
      %8207 = vrot.lane.b32.xlu0 %v8054, 64
      %v8208 = vpop.permute.xlu0 %8207
      %8209 = vrot.lane.b32.xlu0 %v8055, 64
      %v8210 = vpop.permute.xlu0 %8209
      %8211 = vrot.lane.b32.xlu0 %v8056, 64
      %v8212 = vpop.permute.xlu0 %8211
      %8213 = vrot.lane.b32.xlu0 %v8057, 64
      %v8214 = vpop.permute.xlu0 %8213
      %8215 = vrot.lane.b32.xlu0 %v8058, 64
      %v8216 = vpop.permute.xlu0 %8215
      %8217 = vrot.lane.b32.xlu0 %v8059, 64
      %v8218 = vpop.permute.xlu0 %8217
      %8219 = vrot.lane.b32.xlu0 %v8060, 64
      %v8220 = vpop.permute.xlu0 %8219
      %8221 = vrot.lane.b32.xlu0 %v8061, 64
      %v8222 = vpop.permute.xlu0 %8221
      %8223 = vrot.lane.b32.xlu0 %v8062, 64
      %v8224 = vpop.permute.xlu0 %8223
      %8225 = vrot.lane.b32.xlu0 %v8063, 64
      %v8226 = vpop.permute.xlu0 %8225
      %8227 = vrot.lane.b32.xlu0 %v8064, 64
      %v8228 = vpop.permute.xlu0 %8227
      %8229 = vrot.lane.b32.xlu0 %v8065, 64
      %v8230 = vpop.permute.xlu0 %8229
      %8231 = vrot.lane.b32.xlu0 %v8066, 64
      %v8232 = vpop.permute.xlu0 %8231
      %8233 = vrot.lane.b32.xlu0 %v8067, 64
      %v8234 = vpop.permute.xlu0 %8233
      %8235 = vrot.lane.b32.xlu0 %v8068, 64
      %v8236 = vpop.permute.xlu0 %8235
      %8237 = vrot.lane.b32.xlu0 %v8069, 64
      %v8238 = vpop.permute.xlu0 %8237
      %8239 = vrot.lane.b32.xlu0 %v8070, 64
      %v8240 = vpop.permute.xlu0 %8239
      %8241 = vrot.lane.b32.xlu0 %v8071, 64
      %v8242 = vpop.permute.xlu0 %8241
      %8243 = vrot.lane.b32.xlu0 %v8072, 64
      %v8244 = vpop.permute.xlu0 %8243
      %8245 = vrot.lane.b32.xlu0 %v8073, 64
      %v8246 = vpop.permute.xlu0 %8245
      %8247 = vrot.lane.b32.xlu0 %v8074, 64
      %v8248 = vpop.permute.xlu0 %8247
      %8249 = vrot.lane.b32.xlu0 %v8075, 64
      %v8250 = vpop.permute.xlu0 %8249
      %8251 = vrot.lane.b32.xlu0 %v8076, 64
      %v8252 = vpop.permute.xlu0 %8251
      %8253 = vrot.lane.b32.xlu0 %v8077, 64
      %v8254 = vpop.permute.xlu0 %8253
      %8255 = vrot.lane.b32.xlu0 %v8078, 64
      %v8256 = vpop.permute.xlu0 %8255
      %8257 = vrot.lane.b32.xlu0 %v8079, 64
      %v8258 = vpop.permute.xlu0 %8257
      %8259 = vrot.lane.b32.xlu0 %v8080, 64
      %v8260 = vpop.permute.xlu0 %8259
      %v8261 = vsel %vm717, %v8142, %v8144
      %v8262 = vsel %vm717, %v8144, %v8146
      %v8263 = vsel %vm717, %v8146, %v8148
      %v8264 = vsel %vm717, %v8148, %v8150
      %v8265 = vsel %vm717, %v8152, %v8154
      %v8266 = vsel %vm717, %v8154, %v8156
      %v8267 = vsel %vm717, %v8156, %v8158
      %v8268 = vsel %vm717, %v8158, %v8160
      %v8269 = vsel %vm717, %v8162, %v8164
      %v8270 = vsel %vm717, %v8164, %v8166
      %v8271 = vsel %vm717, %v8166, %v8168
      %v8272 = vsel %vm717, %v8168, %v8170
      %v8273 = vsel %vm717, %v8172, %v8174
      %v8274 = vsel %vm717, %v8174, %v8176
      %v8275 = vsel %vm717, %v8176, %v8178
      %v8276 = vsel %vm717, %v8178, %v8180
      %v8277 = vsel %vm717, %v8182, %v8184
      %v8278 = vsel %vm717, %v8184, %v8186
      %v8279 = vsel %vm717, %v8186, %v8188
      %v8280 = vsel %vm717, %v8188, %v8190
      %v8281 = vsel %vm717, %v8192, %v8194
      %v8282 = vsel %vm717, %v8194, %v8196
      %v8283 = vsel %vm717, %v8196, %v8198
      %v8284 = vsel %vm717, %v8198, %v8200
      %v8285 = vsel %vm717, %v8202, %v8204
      %v8286 = vsel %vm717, %v8204, %v8206
      %v8287 = vsel %vm717, %v8206, %v8208
      %v8288 = vsel %vm717, %v8208, %v8210
      %v8289 = vsel %vm717, %v8212, %v8214
      %v8290 = vsel %vm717, %v8214, %v8216
      %v8291 = vsel %vm717, %v8216, %v8218
      %v8292 = vsel %vm717, %v8218, %v8220
      %v8293 = vsel %vm717, %v8222, %v8224
      %v8294 = vsel %vm717, %v8224, %v8226
      %v8295 = vsel %vm717, %v8226, %v8228
      %v8296 = vsel %vm717, %v8228, %v8230
      %v8297 = vsel %vm717, %v8232, %v8234
      %v8298 = vsel %vm717, %v8234, %v8236
      %v8299 = vsel %vm717, %v8236, %v8238
      %v8300 = vsel %vm717, %v8238, %v8240
      %v8301 = vsel %vm717, %v8242, %v8244
      %v8302 = vsel %vm717, %v8244, %v8246
      %v8303 = vsel %vm717, %v8246, %v8248
      %v8304 = vsel %vm717, %v8248, %v8250
      %v8305 = vsel %vm717, %v8252, %v8254
      %v8306 = vsel %vm717, %v8254, %v8256
      %v8307 = vsel %vm717, %v8256, %v8258
      %v8308 = vsel %vm717, %v8258, %v8260
      %v8358 = vsel %vm666, %v8017, 0
      %v8361 = vsel %vm666, %v8018, 0
      %v8364 = vsel %vm666, %v8019, 0
      %v8367 = vsel %vm666, %v8020, 0
      %8369 = vmatprep.subr.mxu0 %v8262
      %8370 = vmatpush1.msra.mxu0 %v8261
      %8371 = vmatprep.subr.mxu0 %v8266
      %8372 = vmatpush1.msra.mxu0 %v8265
      %8373 = vmatprep.subr.mxu0 %v8270
      %8374 = vmatpush1.msra.mxu0 %v8269
      %8375 = vmatprep.subr.mxu0 %v8274
      %8376 = vmatpush1.msra.mxu0 %v8273
      %8377 = vmatprep.subr.mxu0 %v8278
      %8378 = vmatpush1.msra.mxu0 %v8277
      %8379 = vmatprep.subr.mxu0 %v8282
      %8380 = vmatpush1.msra.mxu0 %v8281
      %8381 = vmatprep.subr.mxu0 %v8286
      %8382 = vmatpush1.msra.mxu0 %v8285
      %8383 = vmatprep.subr.mxu0 %v8290
      %8384 = vmatpush1.msra.mxu0 %v8289
      %8385 = vmatprep.subr.mxu0 %v8294
      %8386 = vmatpush1.msra.mxu0 %v8293
      %8387 = vmatprep.subr.mxu0 %v8298
      %8388 = vmatpush1.msra.mxu0 %v8297
      %8389 = vmatprep.subr.mxu0 %v8302
      %8390 = vmatpush1.msra.mxu0 %v8301
      %8391 = vmatprep.subr.mxu0 %v8306
      %8392 = vmatpush1.msra.mxu0 %v8305
      %8393 = vmatprep.subr.mxu0 0.0
      %8394 = vmatpush1.msra.mxu0 0.0
      %8395 = vmatprep.subr.mxu0 0.0
      %8396 = vmatpush1.msra.mxu0 0.0
      %8397 = vmatprep.subr.mxu0 0.0
      %8398 = vmatpush1.msra.mxu0 0.0
      %8399 = vmatprep.subr.mxu0 0.0
      %8400 = vmatpush1.msra.mxu0 0.0
      %8401 = vmatprep.subr.mxu0 0.0
      %8402 = vmatpush1.msra.mxu0 0.0
      %8403 = vmatprep.subr.mxu0 0.0
      %8404 = vmatpush1.msra.mxu0 0.0
      %8405 = vmatprep.subr.mxu0 0.0
      %8406 = vmatpush1.msra.mxu0 0.0
      %8407 = vmatprep.subr.mxu0 0.0
      %8408 = vmatpush1.msra.mxu0 0.0
      %8409 = vmatprep.subr.mxu0 0.0
      %8410 = vmatpush1.msra.mxu0 0.0
      %8411 = vmatprep.subr.mxu0 0.0
      %8412 = vmatpush1.msra.mxu0 0.0
      %8413 = vmatprep.subr.mxu0 0.0
      %8414 = vmatpush1.msra.mxu0 0.0
      %8415 = vmatprep.subr.mxu0 0.0
      %8416 = vmatpush1.msra.mxu0 0.0
      %8417 = vmatprep.subr.mxu0 0.0
      %8418 = vmatpush1.msra.mxu0 0.0
      %8419 = vmatprep.subr.mxu0 0.0
      %8420 = vmatpush1.msra.mxu0 0.0
      %8421 = vmatprep.subr.mxu0 0.0
      %8422 = vmatpush1.msra.mxu0 0.0
      %8423 = vmatprep.subr.mxu0 0.0
      %8424 = vmatpush1.msra.mxu0 0.0
      %8425 = vmatprep.subr.mxu0 0.0
      %8426 = vmatpush1.msra.mxu0 0.0
      %8427 = vmatprep.subr.mxu0 0.0
      %8428 = vmatpush1.msra.mxu0 0.0
      %8429 = vmatprep.subr.mxu0 0.0
      %8430 = vmatpush1.msra.mxu0 0.0
      %8431 = vmatprep.subr.mxu0 0.0
      %8432 = vmatpush1.msra.mxu0 0.0
      %8433 = vmatprep.mubr.f32.mxu0 0.0
      %8434 = vmatmul.mubr.f32.gmra.mrb[0].mxu0 %v8358
      %v8435 = vpop.f32.mrb[0].mxu0
      %v8436 = vadd.f32 0.0, %v8435
      %v8437 = vpop.f32.mrb[0].mxu0
      %v8438 = vadd.f32 0.0, %v8437
      %8439 = vmatprep.mubr.f32.mxu0 0.0
      %8440 = vmatmul.mubr.f32.gmra.mrb[0].mxu0 %v8361
      %v8441 = vpop.f32.mrb[0].mxu0
      %v8442 = vadd.f32 0.0, %v8441
      %v8443 = vpop.f32.mrb[0].mxu0
      %v8444 = vadd.f32 0.0, %v8443
      %8445 = vmatprep.mubr.f32.mxu0 0.0
      %8446 = vmatmul.mubr.f32.gmra.mrb[0].mxu0 %v8364
      %v8447 = vpop.f32.mrb[0].mxu0
      %v8448 = vadd.f32 0.0, %v8447
      %v8449 = vpop.f32.mrb[0].mxu0
      %v8450 = vadd.f32 0.0, %v8449
      %8451 = vmatprep.mubr.f32.mxu0 0.0
      %8452 = vmatmul.mubr.f32.gmra.mrb[0].mxu0 %v8367
      %v8453 = vpop.f32.mrb[0].mxu0
      %v8454 = vadd.f32 0.0, %v8453
      %v8455 = vpop.f32.mrb[0].mxu0
      %v8456 = vadd.f32 0.0, %v8455
      %8457 = vdwg.mxu0
      %8458 = vmatprep.subr.mxu0 %v8264
      %8459 = vmatpush1.msra.mxu0 %v8263
      %8460 = vmatprep.subr.mxu0 %v8268
      %8461 = vmatpush1.msra.mxu0 %v8267
      %8462 = vmatprep.subr.mxu0 %v8272
      %8463 = vmatpush1.msra.mxu0 %v8271
      %8464 = vmatprep.subr.mxu0 %v8276
      %8465 = vmatpush1.msra.mxu0 %v8275
      %8466 = vmatprep.subr.mxu0 %v8280
      %8467 = vmatpush1.msra.mxu0 %v8279
      %8468 = vmatprep.subr.mxu0 %v8284
      %8469 = vmatpush1.msra.mxu0 %v8283
      %8470 = vmatprep.subr.mxu0 %v8288
      %8471 = vmatpush1.msra.mxu0 %v8287
      %8472 = vmatprep.subr.mxu0 %v8292
      %8473 = vmatpush1.msra.mxu0 %v8291
      %8474 = vmatprep.subr.mxu0 %v8296
      %8475 = vmatpush1.msra.mxu0 %v8295
      %8476 = vmatprep.subr.mxu0 %v8300
      %8477 = vmatpush1.msra.mxu0 %v8299
      %8478 = vmatprep.subr.mxu0 %v8304
      %8479 = vmatpush1.msra.mxu0 %v8303
      %8480 = vmatprep.subr.mxu0 %v8308
      %8481 = vmatpush1.msra.mxu0 %v8307
      %8482 = vmatprep.subr.mxu0 0.0
      %8483 = vmatpush1.msra.mxu0 0.0
      %8484 = vmatprep.subr.mxu0 0.0
      %8485 = vmatpush1.msra.mxu0 0.0
      %8486 = vmatprep.subr.mxu0 0.0
      %8487 = vmatpush1.msra.mxu0 0.0
      %8488 = vmatprep.subr.mxu0 0.0
      %8489 = vmatpush1.msra.mxu0 0.0
      %8490 = vmatprep.subr.mxu0 0.0
      %8491 = vmatpush1.msra.mxu0 0.0
      %8492 = vmatprep.subr.mxu0 0.0
      %8493 = vmatpush1.msra.mxu0 0.0
      %8494 = vmatprep.subr.mxu0 0.0
      %8495 = vmatpush1.msra.mxu0 0.0
      %8496 = vmatprep.subr.mxu0 0.0
      %8497 = vmatpush1.msra.mxu0 0.0
      %8498 = vmatprep.subr.mxu0 0.0
      %8499 = vmatpush1.msra.mxu0 0.0
      %8500 = vmatprep.subr.mxu0 0.0
      %8501 = vmatpush1.msra.mxu0 0.0
      %8502 = vmatprep.subr.mxu0 0.0
      %8503 = vmatpush1.msra.mxu0 0.0
      %8504 = vmatprep.subr.mxu0 0.0
      %8505 = vmatpush1.msra.mxu0 0.0
      %8506 = vmatprep.subr.mxu0 0.0
      %8507 = vmatpush1.msra.mxu0 0.0
      %8508 = vmatprep.subr.mxu0 0.0
      %8509 = vmatpush1.msra.mxu0 0.0
      %8510 = vmatprep.subr.mxu0 0.0
      %8511 = vmatpush1.msra.mxu0 0.0
      %8512 = vmatprep.subr.mxu0 0.0
      %8513 = vmatpush1.msra.mxu0 0.0
      %8514 = vmatprep.subr.mxu0 0.0
      %8515 = vmatpush1.msra.mxu0 0.0
      %8516 = vmatprep.subr.mxu0 0.0
      %8517 = vmatpush1.msra.mxu0 0.0
      %8518 = vmatprep.subr.mxu0 0.0
      %8519 = vmatpush1.msra.mxu0 0.0
      %8520 = vmatprep.subr.mxu0 0.0
      %8521 = vmatpush1.msra.mxu0 0.0
      %8522 = vmatprep.mubr.f32.mxu0 0.0
      %8523 = vmatmul.mubr.f32.gmra.mrb[0].mxu0 %v8358
      %v8524 = vpop.f32.mrb[0].mxu0
      %v8525 = vadd.f32 0.0, %v8524
      %v8526 = vpop.f32.mrb[0].mxu0
      %v8527 = vadd.f32 0.0, %v8526
      %8528 = vmatprep.mubr.f32.mxu0 0.0
      %8529 = vmatmul.mubr.f32.gmra.mrb[0].mxu0 %v8361
      %v8530 = vpop.f32.mrb[0].mxu0
      %v8531 = vadd.f32 0.0, %v8530
      %v8532 = vpop.f32.mrb[0].mxu0
      %v8533 = vadd.f32 0.0, %v8532
      %8534 = vmatprep.mubr.f32.mxu0 0.0
      %8535 = vmatmul.mubr.f32.gmra.mrb[0].mxu0 %v8364
      %v8536 = vpop.f32.mrb[0].mxu0
      %v8537 = vadd.f32 0.0, %v8536
      %v8538 = vpop.f32.mrb[0].mxu0
      %v8539 = vadd.f32 0.0, %v8538
      %8540 = vmatprep.mubr.f32.mxu0 0.0
      %8541 = vmatmul.mubr.f32.gmra.mrb[0].mxu0 %v8367
      %v8542 = vpop.f32.mrb[0].mxu0
      %v8543 = vadd.f32 0.0, %v8542
      %v8544 = vpop.f32.mrb[0].mxu0
      %v8545 = vadd.f32 0.0, %v8544
      %8546 = vdwg.mxu0
      %v8547 = vadd.f32 %v7905, %v8436
      %v8548 = vadd.f32 %v7907, %v8438
      %v8549 = vadd.f32 %v7994, %v8525
      %v8550 = vadd.f32 %v7996, %v8527
      %v8551 = vadd.f32 %v7911, %v8442
      %v8552 = vadd.f32 %v7913, %v8444
      %v8553 = vadd.f32 %v8000, %v8531
      %v8554 = vadd.f32 %v8002, %v8533
      %v8555 = vadd.f32 %v7917, %v8448
      %v8556 = vadd.f32 %v7919, %v8450
      %v8557 = vadd.f32 %v8006, %v8537
      %v8558 = vadd.f32 %v8008, %v8539
      %v8559 = vadd.f32 %v7923, %v8454
      %v8560 = vadd.f32 %v7925, %v8456
      %v8561 = vadd.f32 %v8012, %v8543
      %v8562 = vadd.f32 %v8014, %v8545
      %v8563 = vld [vmem:[%s11] sm:$0xff]
      %v8564 = vld [vmem:[%s11 + $0x8] sm:$0xff]
      %v8565 = vld [vmem:[%s11 + $0x10] sm:$0xff]
      %v8566 = vld [vmem:[%s11 + $0x18] sm:$0xff]
      %8568 = vset.pattern.permute.xlu0 0
      %8569 = vperm.xlu0 %8568, %v8563
      %v8570 = vpop.permute.xlu0 %8569
      %8573 = vset.pattern.permute.xlu0 0
      %8574 = vperm.xlu0 %8573, %v8564
      %v8575 = vpop.permute.xlu0 %8574
      %8578 = vset.pattern.permute.xlu0 0
      %8579 = vperm.xlu0 %8578, %v8565
      %v8580 = vpop.permute.xlu0 %8579
      %8583 = vset.pattern.permute.xlu0 0
      %8584 = vperm.xlu0 %8583, %v8566
      %v8585 = vpop.permute.xlu0 %8584
      %v8587 = vadd.f32 %v8547, %v8570
      %v8588 = vadd.f32 %v8548, %v8570
      %v8589 = vadd.f32 %v8549, %v8570
      %v8590 = vadd.f32 %v8550, %v8570
      %v8591 = vadd.f32 %v8551, %v8575
      %v8592 = vadd.f32 %v8552, %v8575
      %v8593 = vadd.f32 %v8553, %v8575
      %v8594 = vadd.f32 %v8554, %v8575
      %v8595 = vadd.f32 %v8555, %v8580
      %v8596 = vadd.f32 %v8556, %v8580
      %v8597 = vadd.f32 %v8557, %v8580
      %v8598 = vadd.f32 %v8558, %v8580
      %v8599 = vadd.f32 %v8559, %v8585
      %v8600 = vadd.f32 %v8560, %v8585
      %v8601 = vadd.f32 %v8561, %v8585
      %v8602 = vadd.f32 %v8562, %v8585
      %v8603 = vmax.f32 %v8587, 0.0
      %v8604 = vmax.f32 %v8588, 0.0
      %v8605 = vmax.f32 %v8589, 0.0
      %v8606 = vmax.f32 %v8590, 0.0
      %v8607 = vmax.f32 %v8591, 0.0
      %v8608 = vmax.f32 %v8592, 0.0
      %v8609 = vmax.f32 %v8593, 0.0
      %v8610 = vmax.f32 %v8594, 0.0
      %v8611 = vmax.f32 %v8595, 0.0
      %v8612 = vmax.f32 %v8596, 0.0
      %v8613 = vmax.f32 %v8597, 0.0
      %v8614 = vmax.f32 %v8598, 0.0
      %v8615 = vmax.f32 %v8599, 0.0
      %v8616 = vmax.f32 %v8600, 0.0
      %v8617 = vmax.f32 %v8601, 0.0
      %v8618 = vmax.f32 %v8602, 0.0
      %v8619 = vld [vmem:[%s12] sm:$0xff]
      %v8620 = vld [vmem:[%s12 + $0x8] sm:$0xff]
      %v8621 = vld [vmem:[%s12 + $0x10] sm:$0xff]
      %v8622 = vld [vmem:[%s12 + $0x18] sm:$0xff]
      %v8623 = vld [vmem:[%s12 + $0x20] sm:$0xff]
      %v8624 = vld [vmem:[%s12 + $0x28] sm:$0xff]
      %v8625 = vld [vmem:[%s12 + $0x30] sm:$0xff]
      %v8626 = vld [vmem:[%s12 + $0x38] sm:$0xff]
      %v8627 = vld [vmem:[%s13] sm:$0xff]
      %v8628 = vld [vmem:[%s13 + $0x8] sm:$0xff]
      %v8629 = vld [vmem:[%s13 + $0x10] sm:$0xff]
      %v8630 = vld [vmem:[%s13 + $0x18] sm:$0xff]
      %v8631 = vld [vmem:[%s13 + $0x20] sm:$0xff]
      %v8632 = vld [vmem:[%s13 + $0x28] sm:$0xff]
      %v8633 = vld [vmem:[%s13 + $0x30] sm:$0xff]
      %v8634 = vld [vmem:[%s13 + $0x38] sm:$0xff]
      %v8636 = vsel %vm963, %v8627, 0
      %v8639 = vsel %vm963, %v8628, 0
      %v8642 = vsel %vm963, %v8629, 0
      %v8645 = vsel %vm963, %v8630, 0
      %v8648 = vsel %vm963, %v8631, 0
      %v8651 = vsel %vm963, %v8632, 0
      %v8654 = vsel %vm963, %v8633, 0
      %v8657 = vsel %vm963, %v8634, 0
      %8659 = vmatprep.subr.mxu0 %v8604
      %8660 = vmatpush1.msra.mxu0 %v8603
      %8661 = vmatprep.subr.mxu0 %v8608
      %8662 = vmatpush1.msra.mxu0 %v8607
      %8663 = vmatprep.subr.mxu0 %v8612
      %8664 = vmatpush1.msra.mxu0 %v8611
      %8665 = vmatprep.subr.mxu0 %v8616
      %8666 = vmatpush1.msra.mxu0 %v8615
      %8667 = vmatprep.subr.mxu0 0.0
      %8668 = vmatpush1.msra.mxu0 0.0
      %8669 = vmatprep.subr.mxu0 0.0
      %8670 = vmatpush1.msra.mxu0 0.0
      %8671 = vmatprep.subr.mxu0 0.0
      %8672 = vmatpush1.msra.mxu0 0.0
      %8673 = vmatprep.subr.mxu0 0.0
      %8674 = vmatpush1.msra.mxu0 0.0
      %8675 = vmatprep.subr.mxu0 0.0
      %8676 = vmatpush1.msra.mxu0 0.0
      %8677 = vmatprep.subr.mxu0 0.0
      %8678 = vmatpush1.msra.mxu0 0.0
      %8679 = vmatprep.subr.mxu0 0.0
      %8680 = vmatpush1.msra.mxu0 0.0
      %8681 = vmatprep.subr.mxu0 0.0
      %8682 = vmatpush1.msra.mxu0 0.0
      %8683 = vmatprep.subr.mxu0 0.0
      %8684 = vmatpush1.msra.mxu0 0.0
      %8685 = vmatprep.subr.mxu0 0.0
      %8686 = vmatpush1.msra.mxu0 0.0
      %8687 = vmatprep.subr.mxu0 0.0
      %8688 = vmatpush1.msra.mxu0 0.0
      %8689 = vmatprep.subr.mxu0 0.0
      %8690 = vmatpush1.msra.mxu0 0.0
      %8691 = vmatprep.subr.mxu0 0.0
      %8692 = vmatpush1.msra.mxu0 0.0
      %8693 = vmatprep.subr.mxu0 0.0
      %8694 = vmatpush1.msra.mxu0 0.0
      %8695 = vmatprep.subr.mxu0 0.0
      %8696 = vmatpush1.msra.mxu0 0.0
      %8697 = vmatprep.subr.mxu0 0.0
      %8698 = vmatpush1.msra.mxu0 0.0
      %8699 = vmatprep.subr.mxu0 0.0
      %8700 = vmatpush1.msra.mxu0 0.0
      %8701 = vmatprep.subr.mxu0 0.0
      %8702 = vmatpush1.msra.mxu0 0.0
      %8703 = vmatprep.subr.mxu0 0.0
      %8704 = vmatpush1.msra.mxu0 0.0
      %8705 = vmatprep.subr.mxu0 0.0
      %8706 = vmatpush1.msra.mxu0 0.0
      %8707 = vmatprep.subr.mxu0 0.0
      %8708 = vmatpush1.msra.mxu0 0.0
      %8709 = vmatprep.subr.mxu0 0.0
      %8710 = vmatpush1.msra.mxu0 0.0
      %8711 = vmatprep.subr.mxu0 0.0
      %8712 = vmatpush1.msra.mxu0 0.0
      %8713 = vmatprep.subr.mxu0 0.0
      %8714 = vmatpush1.msra.mxu0 0.0
      %8715 = vmatprep.subr.mxu0 0.0
      %8716 = vmatpush1.msra.mxu0 0.0
      %8717 = vmatprep.subr.mxu0 0.0
      %8718 = vmatpush1.msra.mxu0 0.0
      %8719 = vmatprep.subr.mxu0 0.0
      %8720 = vmatpush1.msra.mxu0 0.0
      %8721 = vmatprep.subr.mxu0 0.0
      %8722 = vmatpush1.msra.mxu0 0.0
      %8723 = vmatprep.mubr.f32.mxu0 0.0
      %8724 = vmatmul.mubr.f32.gmra.mrb[0].mxu0 %v8636
      %v8725 = vpop.f32.mrb[0].mxu0
      %v8726 = vadd.f32 0.0, %v8725
      %v8727 = vpop.f32.mrb[0].mxu0
      %v8728 = vadd.f32 0.0, %v8727
      %8729 = vmatprep.mubr.f32.mxu0 0.0
      %8730 = vmatmul.mubr.f32.gmra.mrb[0].mxu0 %v8639
      %v8731 = vpop.f32.mrb[0].mxu0
      %v8732 = vadd.f32 0.0, %v8731
      %v8733 = vpop.f32.mrb[0].mxu0
      %v8734 = vadd.f32 0.0, %v8733
      %8735 = vmatprep.mubr.f32.mxu0 0.0
      %8736 = vmatmul.mubr.f32.gmra.mrb[0].mxu0 %v8642
      %v8737 = vpop.f32.mrb[0].mxu0
      %v8738 = vadd.f32 0.0, %v8737
      %v8739 = vpop.f32.mrb[0].mxu0
      %v8740 = vadd.f32 0.0, %v8739
      %8741 = vmatprep.mubr.f32.mxu0 0.0
      %8742 = vmatmul.mubr.f32.gmra.mrb[0].mxu0 %v8645
      %v8743 = vpop.f32.mrb[0].mxu0
      %v8744 = vadd.f32 0.0, %v8743
      %v8745 = vpop.f32.mrb[0].mxu0
      %v8746 = vadd.f32 0.0, %v8745
      %8747 = vmatprep.mubr.f32.mxu0 0.0
      %8748 = vmatmul.mubr.f32.gmra.mrb[0].mxu0 %v8648
      %v8749 = vpop.f32.mrb[0].mxu0
      %v8750 = vadd.f32 0.0, %v8749
      %v8751 = vpop.f32.mrb[0].mxu0
      %v8752 = vadd.f32 0.0, %v8751
      %8753 = vmatprep.mubr.f32.mxu0 0.0
      %8754 = vmatmul.mubr.f32.gmra.mrb[0].mxu0 %v8651
      %v8755 = vpop.f32.mrb[0].mxu0
      %v8756 = vadd.f32 0.0, %v8755
      %v8757 = vpop.f32.mrb[0].mxu0
      %v8758 = vadd.f32 0.0, %v8757
      %8759 = vmatprep.mubr.f32.mxu0 0.0
      %8760 = vmatmul.mubr.f32.gmra.mrb[0].mxu0 %v8654
      %v8761 = vpop.f32.mrb[0].mxu0
      %v8762 = vadd.f32 0.0, %v8761
      %v8763 = vpop.f32.mrb[0].mxu0
      %v8764 = vadd.f32 0.0, %v8763
      %8765 = vmatprep.mubr.f32.mxu0 0.0
      %8766 = vmatmul.mubr.f32.gmra.mrb[0].mxu0 %v8657
      %v8767 = vpop.f32.mrb[0].mxu0
      %v8768 = vadd.f32 0.0, %v8767
      %v8769 = vpop.f32.mrb[0].mxu0
      %v8770 = vadd.f32 0.0, %v8769
      %8771 = vdwg.mxu0
      %8772 = vmatprep.subr.mxu0 %v8606
      %8773 = vmatpush1.msra.mxu0 %v8605
      %8774 = vmatprep.subr.mxu0 %v8610
      %8775 = vmatpush1.msra.mxu0 %v8609
      %8776 = vmatprep.subr.mxu0 %v8614
      %8777 = vmatpush1.msra.mxu0 %v8613
      %8778 = vmatprep.subr.mxu0 %v8618
      %8779 = vmatpush1.msra.mxu0 %v8617
      %8780 = vmatprep.subr.mxu0 0.0
      %8781 = vmatpush1.msra.mxu0 0.0
      %8782 = vmatprep.subr.mxu0 0.0
      %8783 = vmatpush1.msra.mxu0 0.0
      %8784 = vmatprep.subr.mxu0 0.0
      %8785 = vmatpush1.msra.mxu0 0.0
      %8786 = vmatprep.subr.mxu0 0.0
      %8787 = vmatpush1.msra.mxu0 0.0
      %8788 = vmatprep.subr.mxu0 0.0
      %8789 = vmatpush1.msra.mxu0 0.0
      %8790 = vmatprep.subr.mxu0 0.0
      %8791 = vmatpush1.msra.mxu0 0.0
      %8792 = vmatprep.subr.mxu0 0.0
      %8793 = vmatpush1.msra.mxu0 0.0
      %8794 = vmatprep.subr.mxu0 0.0
      %8795 = vmatpush1.msra.mxu0 0.0
      %8796 = vmatprep.subr.mxu0 0.0
      %8797 = vmatpush1.msra.mxu0 0.0
      %8798 = vmatprep.subr.mxu0 0.0
      %8799 = vmatpush1.msra.mxu0 0.0
      %8800 = vmatprep.subr.mxu0 0.0
      %8801 = vmatpush1.msra.mxu0 0.0
      %8802 = vmatprep.subr.mxu0 0.0
      %8803 = vmatpush1.msra.mxu0 0.0
      %8804 = vmatprep.subr.mxu0 0.0
      %8805 = vmatpush1.msra.mxu0 0.0
      %8806 = vmatprep.subr.mxu0 0.0
      %8807 = vmatpush1.msra.mxu0 0.0
      %8808 = vmatprep.subr.mxu0 0.0
      %8809 = vmatpush1.msra.mxu0 0.0
      %8810 = vmatprep.subr.mxu0 0.0
      %8811 = vmatpush1.msra.mxu0 0.0
      %8812 = vmatprep.subr.mxu0 0.0
      %8813 = vmatpush1.msra.mxu0 0.0
      %8814 = vmatprep.subr.mxu0 0.0
      %8815 = vmatpush1.msra.mxu0 0.0
      %8816 = vmatprep.subr.mxu0 0.0
      %8817 = vmatpush1.msra.mxu0 0.0
      %8818 = vmatprep.subr.mxu0 0.0
      %8819 = vmatpush1.msra.mxu0 0.0
      %8820 = vmatprep.subr.mxu0 0.0
      %8821 = vmatpush1.msra.mxu0 0.0
      %8822 = vmatprep.subr.mxu0 0.0
      %8823 = vmatpush1.msra.mxu0 0.0
      %8824 = vmatprep.subr.mxu0 0.0
      %8825 = vmatpush1.msra.mxu0 0.0
      %8826 = vmatprep.subr.mxu0 0.0
      %8827 = vmatpush1.msra.mxu0 0.0
      %8828 = vmatprep.subr.mxu0 0.0
      %8829 = vmatpush1.msra.mxu0 0.0
      %8830 = vmatprep.subr.mxu0 0.0
      %8831 = vmatpush1.msra.mxu0 0.0
      %8832 = vmatprep.subr.mxu0 0.0
      %8833 = vmatpush1.msra.mxu0 0.0
      %8834 = vmatprep.subr.mxu0 0.0
      %8835 = vmatpush1.msra.mxu0 0.0
      %8836 = vmatprep.mubr.f32.mxu0 0.0
      %8837 = vmatmul.mubr.f32.gmra.mrb[0].mxu0 %v8636
      %v8838 = vpop.f32.mrb[0].mxu0
      %v8839 = vadd.f32 0.0, %v8838
      %v8840 = vpop.f32.mrb[0].mxu0
      %v8841 = vadd.f32 0.0, %v8840
      %8842 = vmatprep.mubr.f32.mxu0 0.0
      %8843 = vmatmul.mubr.f32.gmra.mrb[0].mxu0 %v8639
      %v8844 = vpop.f32.mrb[0].mxu0
      %v8845 = vadd.f32 0.0, %v8844
      %v8846 = vpop.f32.mrb[0].mxu0
      %v8847 = vadd.f32 0.0, %v8846
      %8848 = vmatprep.mubr.f32.mxu0 0.0
      %8849 = vmatmul.mubr.f32.gmra.mrb[0].mxu0 %v8642
      %v8850 = vpop.f32.mrb[0].mxu0
      %v8851 = vadd.f32 0.0, %v8850
      %v8852 = vpop.f32.mrb[0].mxu0
      %v8853 = vadd.f32 0.0, %v8852
      %8854 = vmatprep.mubr.f32.mxu0 0.0
      %8855 = vmatmul.mubr.f32.gmra.mrb[0].mxu0 %v8645
      %v8856 = vpop.f32.mrb[0].mxu0
      %v8857 = vadd.f32 0.0, %v8856
      %v8858 = vpop.f32.mrb[0].mxu0
      %v8859 = vadd.f32 0.0, %v8858
      %8860 = vmatprep.mubr.f32.mxu0 0.0
      %8861 = vmatmul.mubr.f32.gmra.mrb[0].mxu0 %v8648
      %v8862 = vpop.f32.mrb[0].mxu0
      %v8863 = vadd.f32 0.0, %v8862
      %v8864 = vpop.f32.mrb[0].mxu0
      %v8865 = vadd.f32 0.0, %v8864
      %8866 = vmatprep.mubr.f32.mxu0 0.0
      %8867 = vmatmul.mubr.f32.gmra.mrb[0].mxu0 %v8651
      %v8868 = vpop.f32.mrb[0].mxu0
      %v8869 = vadd.f32 0.0, %v8868
      %v8870 = vpop.f32.mrb[0].mxu0
      %v8871 = vadd.f32 0.0, %v8870
      %8872 = vmatprep.mubr.f32.mxu0 0.0
      %8873 = vmatmul.mubr.f32.gmra.mrb[0].mxu0 %v8654
      %v8874 = vpop.f32.mrb[0].mxu0
      %v8875 = vadd.f32 0.0, %v8874
      %v8876 = vpop.f32.mrb[0].mxu0
      %v8877 = vadd.f32 0.0, %v8876
      %8878 = vmatprep.mubr.f32.mxu0 0.0
      %8879 = vmatmul.mubr.f32.gmra.mrb[0].mxu0 %v8657
      %v8880 = vpop.f32.mrb[0].mxu0
      %v8881 = vadd.f32 0.0, %v8880
      %v8882 = vpop.f32.mrb[0].mxu0
      %v8883 = vadd.f32 0.0, %v8882
      %8884 = vdwg.mxu0
      %vm8885 = vcmask 130048
      %v8887 = vsel %vm8885, %v8619, 0
      %v8890 = vsel %vm8885, %v8620, 0
      %v8893 = vsel %vm8885, %v8621, 0
      %v8896 = vsel %vm8885, %v8622, 0
      %v8899 = vsel %vm8885, %v8623, 0
      %v8902 = vsel %vm8885, %v8624, 0
      %v8905 = vsel %vm8885, %v8625, 0
      %v8908 = vsel %vm8885, %v8626, 0
      %8910 = vmatprep.subr.mxu0 %v6537
      %8911 = vmatpush1.msra.mxu0 %v6536
      %8912 = vmatprep.subr.mxu0 %v6541
      %8913 = vmatpush1.msra.mxu0 %v6540
      %8914 = vmatprep.subr.mxu0 0.0
      %8915 = vmatpush1.msra.mxu0 0.0
      %8916 = vmatprep.subr.mxu0 0.0
      %8917 = vmatpush1.msra.mxu0 0.0
      %8918 = vmatprep.subr.mxu0 0.0
      %8919 = vmatpush1.msra.mxu0 0.0
      %8920 = vmatprep.subr.mxu0 0.0
      %8921 = vmatpush1.msra.mxu0 0.0
      %8922 = vmatprep.subr.mxu0 0.0
      %8923 = vmatpush1.msra.mxu0 0.0
      %8924 = vmatprep.subr.mxu0 0.0
      %8925 = vmatpush1.msra.mxu0 0.0
      %8926 = vmatprep.subr.mxu0 0.0
      %8927 = vmatpush1.msra.mxu0 0.0
      %8928 = vmatprep.subr.mxu0 0.0
      %8929 = vmatpush1.msra.mxu0 0.0
      %8930 = vmatprep.subr.mxu0 0.0
      %8931 = vmatpush1.msra.mxu0 0.0
      %8932 = vmatprep.subr.mxu0 0.0
      %8933 = vmatpush1.msra.mxu0 0.0
      %8934 = vmatprep.subr.mxu0 0.0
      %8935 = vmatpush1.msra.mxu0 0.0
      %8936 = vmatprep.subr.mxu0 0.0
      %8937 = vmatpush1.msra.mxu0 0.0
      %8938 = vmatprep.subr.mxu0 0.0
      %8939 = vmatpush1.msra.mxu0 0.0
      %8940 = vmatprep.subr.mxu0 0.0
      %8941 = vmatpush1.msra.mxu0 0.0
      %8942 = vmatprep.subr.mxu0 0.0
      %8943 = vmatpush1.msra.mxu0 0.0
      %8944 = vmatprep.subr.mxu0 0.0
      %8945 = vmatpush1.msra.mxu0 0.0
      %8946 = vmatprep.subr.mxu0 0.0
      %8947 = vmatpush1.msra.mxu0 0.0
      %8948 = vmatprep.subr.mxu0 0.0
      %8949 = vmatpush1.msra.mxu0 0.0
      %8950 = vmatprep.subr.mxu0 0.0
      %8951 = vmatpush1.msra.mxu0 0.0
      %8952 = vmatprep.subr.mxu0 0.0
      %8953 = vmatpush1.msra.mxu0 0.0
      %8954 = vmatprep.subr.mxu0 0.0
      %8955 = vmatpush1.msra.mxu0 0.0
      %8956 = vmatprep.subr.mxu0 0.0
      %8957 = vmatpush1.msra.mxu0 0.0
      %8958 = vmatprep.subr.mxu0 0.0
      %8959 = vmatpush1.msra.mxu0 0.0
      %8960 = vmatprep.subr.mxu0 0.0
      %8961 = vmatpush1.msra.mxu0 0.0
      %8962 = vmatprep.subr.mxu0 0.0
      %8963 = vmatpush1.msra.mxu0 0.0
      %8964 = vmatprep.subr.mxu0 0.0
      %8965 = vmatpush1.msra.mxu0 0.0
      %8966 = vmatprep.subr.mxu0 0.0
      %8967 = vmatpush1.msra.mxu0 0.0
      %8968 = vmatprep.subr.mxu0 0.0
      %8969 = vmatpush1.msra.mxu0 0.0
      %8970 = vmatprep.subr.mxu0 0.0
      %8971 = vmatpush1.msra.mxu0 0.0
      %8972 = vmatprep.subr.mxu0 0.0
      %8973 = vmatpush1.msra.mxu0 0.0
      %8974 = vmatprep.mubr.f32.mxu0 0.0
      %8975 = vmatmul.mubr.f32.gmra.mrb[0].mxu0 %v8887
      %v8976 = vpop.f32.mrb[0].mxu0
      %v8977 = vadd.f32 %v8726, %v8976
      %v8978 = vpop.f32.mrb[0].mxu0
      %v8979 = vadd.f32 %v8728, %v8978
      %8980 = vmatprep.mubr.f32.mxu0 0.0
      %8981 = vmatmul.mubr.f32.gmra.mrb[0].mxu0 %v8890
      %v8982 = vpop.f32.mrb[0].mxu0
      %v8983 = vadd.f32 %v8732, %v8982
      %v8984 = vpop.f32.mrb[0].mxu0
      %v8985 = vadd.f32 %v8734, %v8984
      %8986 = vmatprep.mubr.f32.mxu0 0.0
      %8987 = vmatmul.mubr.f32.gmra.mrb[0].mxu0 %v8893
      %v8988 = vpop.f32.mrb[0].mxu0
      %v8989 = vadd.f32 %v8738, %v8988
      %v8990 = vpop.f32.mrb[0].mxu0
      %v8991 = vadd.f32 %v8740, %v8990
      %8992 = vmatprep.mubr.f32.mxu0 0.0
      %8993 = vmatmul.mubr.f32.gmra.mrb[0].mxu0 %v8896
      %v8994 = vpop.f32.mrb[0].mxu0
      %v8995 = vadd.f32 %v8744, %v8994
      %v8996 = vpop.f32.mrb[0].mxu0
      %v8997 = vadd.f32 %v8746, %v8996
      %8998 = vmatprep.mubr.f32.mxu0 0.0
      %8999 = vmatmul.mubr.f32.gmra.mrb[0].mxu0 %v8899
      %v9000 = vpop.f32.mrb[0].mxu0
      %v9001 = vadd.f32 %v8750, %v9000
      %v9002 = vpop.f32.mrb[0].mxu0
      %v9003 = vadd.f32 %v8752, %v9002
      %9004 = vmatprep.mubr.f32.mxu0 0.0
      %9005 = vmatmul.mubr.f32.gmra.mrb[0].mxu0 %v8902
      %v9006 = vpop.f32.mrb[0].mxu0
      %v9007 = vadd.f32 %v8756, %v9006
      %v9008 = vpop.f32.mrb[0].mxu0
      %v9009 = vadd.f32 %v8758, %v9008
      %9010 = vmatprep.mubr.f32.mxu0 0.0
      %9011 = vmatmul.mubr.f32.gmra.mrb[0].mxu0 %v8905
      %v9012 = vpop.f32.mrb[0].mxu0
      %v9013 = vadd.f32 %v8762, %v9012
      %v9014 = vpop.f32.mrb[0].mxu0
      %v9015 = vadd.f32 %v8764, %v9014
      %9016 = vmatprep.mubr.f32.mxu0 0.0
      %9017 = vmatmul.mubr.f32.gmra.mrb[0].mxu0 %v8908
      %v9018 = vpop.f32.mrb[0].mxu0
      %v9019 = vadd.f32 %v8768, %v9018
      %v9020 = vpop.f32.mrb[0].mxu0
      %v9021 = vadd.f32 %v8770, %v9020
      %9022 = vdwg.mxu0
      %9023 = vmatprep.subr.mxu0 %v6539
      %9024 = vmatpush1.msra.mxu0 %v6538
      %9025 = vmatprep.subr.mxu0 %v6543
      %9026 = vmatpush1.msra.mxu0 %v6542
      %9027 = vmatprep.subr.mxu0 0.0
      %9028 = vmatpush1.msra.mxu0 0.0
      %9029 = vmatprep.subr.mxu0 0.0
      %9030 = vmatpush1.msra.mxu0 0.0
      %9031 = vmatprep.subr.mxu0 0.0
      %9032 = vmatpush1.msra.mxu0 0.0
      %9033 = vmatprep.subr.mxu0 0.0
      %9034 = vmatpush1.msra.mxu0 0.0
      %9035 = vmatprep.subr.mxu0 0.0
      %9036 = vmatpush1.msra.mxu0 0.0
      %9037 = vmatprep.subr.mxu0 0.0
      %9038 = vmatpush1.msra.mxu0 0.0
      %9039 = vmatprep.subr.mxu0 0.0
      %9040 = vmatpush1.msra.mxu0 0.0
      %9041 = vmatprep.subr.mxu0 0.0
      %9042 = vmatpush1.msra.mxu0 0.0
      %9043 = vmatprep.subr.mxu0 0.0
      %9044 = vmatpush1.msra.mxu0 0.0
      %9045 = vmatprep.subr.mxu0 0.0
      %9046 = vmatpush1.msra.mxu0 0.0
      %9047 = vmatprep.subr.mxu0 0.0
      %9048 = vmatpush1.msra.mxu0 0.0
      %9049 = vmatprep.subr.mxu0 0.0
      %9050 = vmatpush1.msra.mxu0 0.0
      %9051 = vmatprep.subr.mxu0 0.0
      %9052 = vmatpush1.msra.mxu0 0.0
      %9053 = vmatprep.subr.mxu0 0.0
      %9054 = vmatpush1.msra.mxu0 0.0
      %9055 = vmatprep.subr.mxu0 0.0
      %9056 = vmatpush1.msra.mxu0 0.0
      %9057 = vmatprep.subr.mxu0 0.0
      %9058 = vmatpush1.msra.mxu0 0.0
      %9059 = vmatprep.subr.mxu0 0.0
      %9060 = vmatpush1.msra.mxu0 0.0
      %9061 = vmatprep.subr.mxu0 0.0
      %9062 = vmatpush1.msra.mxu0 0.0
      %9063 = vmatprep.subr.mxu0 0.0
      %9064 = vmatpush1.msra.mxu0 0.0
      %9065 = vmatprep.subr.mxu0 0.0
      %9066 = vmatpush1.msra.mxu0 0.0
      %9067 = vmatprep.subr.mxu0 0.0
      %9068 = vmatpush1.msra.mxu0 0.0
      %9069 = vmatprep.subr.mxu0 0.0
      %9070 = vmatpush1.msra.mxu0 0.0
      %9071 = vmatprep.subr.mxu0 0.0
      %9072 = vmatpush1.msra.mxu0 0.0
      %9073 = vmatprep.subr.mxu0 0.0
      %9074 = vmatpush1.msra.mxu0 0.0
      %9075 = vmatprep.subr.mxu0 0.0
      %9076 = vmatpush1.msra.mxu0 0.0
      %9077 = vmatprep.subr.mxu0 0.0
      %9078 = vmatpush1.msra.mxu0 0.0
      %9079 = vmatprep.subr.mxu0 0.0
      %9080 = vmatpush1.msra.mxu0 0.0
      %9081 = vmatprep.subr.mxu0 0.0
      %9082 = vmatpush1.msra.mxu0 0.0
      %9083 = vmatprep.subr.mxu0 0.0
      %9084 = vmatpush1.msra.mxu0 0.0
      %9085 = vmatprep.subr.mxu0 0.0
      %9086 = vmatpush1.msra.mxu0 0.0
      %9087 = vmatprep.mubr.f32.mxu0 0.0
      %9088 = vmatmul.mubr.f32.gmra.mrb[0].mxu0 %v8887
      %v9089 = vpop.f32.mrb[0].mxu0
      %v9090 = vadd.f32 %v8839, %v9089
      %v9091 = vpop.f32.mrb[0].mxu0
      %v9092 = vadd.f32 %v8841, %v9091
      %9093 = vmatprep.mubr.f32.mxu0 0.0
      %9094 = vmatmul.mubr.f32.gmra.mrb[0].mxu0 %v8890
      %v9095 = vpop.f32.mrb[0].mxu0
      %v9096 = vadd.f32 %v8845, %v9095
      %v9097 = vpop.f32.mrb[0].mxu0
      %v9098 = vadd.f32 %v8847, %v9097
      %9099 = vmatprep.mubr.f32.mxu0 0.0
      %9100 = vmatmul.mubr.f32.gmra.mrb[0].mxu0 %v8893
      %v9101 = vpop.f32.mrb[0].mxu0
      %v9102 = vadd.f32 %v8851, %v9101
      %v9103 = vpop.f32.mrb[0].mxu0
      %v9104 = vadd.f32 %v8853, %v9103
      %9105 = vmatprep.mubr.f32.mxu0 0.0
      %9106 = vmatmul.mubr.f32.gmra.mrb[0].mxu0 %v8896
      %v9107 = vpop.f32.mrb[0].mxu0
      %v9108 = vadd.f32 %v8857, %v9107
      %v9109 = vpop.f32.mrb[0].mxu0
      %v9110 = vadd.f32 %v8859, %v9109
      %9111 = vmatprep.mubr.f32.mxu0 0.0
      %9112 = vmatmul.mubr.f32.gmra.mrb[0].mxu0 %v8899
      %v9113 = vpop.f32.mrb[0].mxu0
      %v9114 = vadd.f32 %v8863, %v9113
      %v9115 = vpop.f32.mrb[0].mxu0
      %v9116 = vadd.f32 %v8865, %v9115
      %9117 = vmatprep.mubr.f32.mxu0 0.0
      %9118 = vmatmul.mubr.f32.gmra.mrb[0].mxu0 %v8902
      %v9119 = vpop.f32.mrb[0].mxu0
      %v9120 = vadd.f32 %v8869, %v9119
      %v9121 = vpop.f32.mrb[0].mxu0
      %v9122 = vadd.f32 %v8871, %v9121
      %9123 = vmatprep.mubr.f32.mxu0 0.0
      %9124 = vmatmul.mubr.f32.gmra.mrb[0].mxu0 %v8905
      %v9125 = vpop.f32.mrb[0].mxu0
      %v9126 = vadd.f32 %v8875, %v9125
      %v9127 = vpop.f32.mrb[0].mxu0
      %v9128 = vadd.f32 %v8877, %v9127
      %9129 = vmatprep.mubr.f32.mxu0 0.0
      %9130 = vmatmul.mubr.f32.gmra.mrb[0].mxu0 %v8908
      %v9131 = vpop.f32.mrb[0].mxu0
      %v9132 = vadd.f32 %v8881, %v9131
      %v9133 = vpop.f32.mrb[0].mxu0
      %v9134 = vadd.f32 %v8883, %v9133
      %9135 = vdwg.mxu0
      %v9136 = vld [vmem:[%s14] sm:$0xff]
      %v9137 = vld [vmem:[%s14 + $0x8] sm:$0xff]
      %v9138 = vld [vmem:[%s14 + $0x10] sm:$0xff]
      %v9139 = vld [vmem:[%s14 + $0x18] sm:$0xff]
      %v9140 = vld [vmem:[%s14 + $0x20] sm:$0xff]
      %v9141 = vld [vmem:[%s14 + $0x28] sm:$0xff]
      %v9142 = vld [vmem:[%s14 + $0x30] sm:$0xff]
      %v9143 = vld [vmem:[%s14 + $0x38] sm:$0xff]
      %9145 = vset.pattern.permute.xlu0 0
      %9146 = vperm.xlu0 %9145, %v9136
      %v9147 = vpop.permute.xlu0 %9146
      %9150 = vset.pattern.permute.xlu0 0
      %9151 = vperm.xlu0 %9150, %v9137
      %v9152 = vpop.permute.xlu0 %9151
      %9155 = vset.pattern.permute.xlu0 0
      %9156 = vperm.xlu0 %9155, %v9138
      %v9157 = vpop.permute.xlu0 %9156
      %9160 = vset.pattern.permute.xlu0 0
      %9161 = vperm.xlu0 %9160, %v9139
      %v9162 = vpop.permute.xlu0 %9161
      %9165 = vset.pattern.permute.xlu0 0
      %9166 = vperm.xlu0 %9165, %v9140
      %v9167 = vpop.permute.xlu0 %9166
      %9170 = vset.pattern.permute.xlu0 0
      %9171 = vperm.xlu0 %9170, %v9141
      %v9172 = vpop.permute.xlu0 %9171
      %9175 = vset.pattern.permute.xlu0 0
      %9176 = vperm.xlu0 %9175, %v9142
      %v9177 = vpop.permute.xlu0 %9176
      %9180 = vset.pattern.permute.xlu0 0
      %9181 = vperm.xlu0 %9180, %v9143
      %v9182 = vpop.permute.xlu0 %9181
      %v9184 = vadd.f32 %v8977, %v9147
      %v9185 = vadd.f32 %v8979, %v9147
      %v9186 = vadd.f32 %v9090, %v9147
      %v9187 = vadd.f32 %v9092, %v9147
      %v9188 = vadd.f32 %v8983, %v9152
      %v9189 = vadd.f32 %v8985, %v9152
      %v9190 = vadd.f32 %v9096, %v9152
      %v9191 = vadd.f32 %v9098, %v9152
      %v9192 = vadd.f32 %v8989, %v9157
      %v9193 = vadd.f32 %v8991, %v9157
      %v9194 = vadd.f32 %v9102, %v9157
      %v9195 = vadd.f32 %v9104, %v9157
      %v9196 = vadd.f32 %v8995, %v9162
      %v9197 = vadd.f32 %v8997, %v9162
      %v9198 = vadd.f32 %v9108, %v9162
      %v9199 = vadd.f32 %v9110, %v9162
      %v9200 = vadd.f32 %v9001, %v9167
      %v9201 = vadd.f32 %v9003, %v9167
      %v9202 = vadd.f32 %v9114, %v9167
      %v9203 = vadd.f32 %v9116, %v9167
      %v9204 = vadd.f32 %v9007, %v9172
      %v9205 = vadd.f32 %v9009, %v9172
      %v9206 = vadd.f32 %v9120, %v9172
      %v9207 = vadd.f32 %v9122, %v9172
      %v9208 = vadd.f32 %v9013, %v9177
      %v9209 = vadd.f32 %v9015, %v9177
      %v9210 = vadd.f32 %v9126, %v9177
      %v9211 = vadd.f32 %v9128, %v9177
      %v9212 = vadd.f32 %v9019, %v9182
      %v9213 = vadd.f32 %v9021, %v9182
      %v9214 = vadd.f32 %v9132, %v9182
      %v9215 = vadd.f32 %v9134, %v9182
      %v9216 = vmax.f32 %v9184, 0.0
      %v9217 = vmax.f32 %v9185, 0.0
      %v9218 = vmax.f32 %v9186, 0.0
      %v9219 = vmax.f32 %v9187, 0.0
      %v9220 = vmax.f32 %v9188, 0.0
      %v9221 = vmax.f32 %v9189, 0.0
      %v9222 = vmax.f32 %v9190, 0.0
      %v9223 = vmax.f32 %v9191, 0.0
      %v9224 = vmax.f32 %v9192, 0.0
      %v9225 = vmax.f32 %v9193, 0.0
      %v9226 = vmax.f32 %v9194, 0.0
      %v9227 = vmax.f32 %v9195, 0.0
      %v9228 = vmax.f32 %v9196, 0.0
      %v9229 = vmax.f32 %v9197, 0.0
      %v9230 = vmax.f32 %v9198, 0.0
      %v9231 = vmax.f32 %v9199, 0.0
      %v9232 = vmax.f32 %v9200, 0.0
      %v9233 = vmax.f32 %v9201, 0.0
      %v9234 = vmax.f32 %v9202, 0.0
      %v9235 = vmax.f32 %v9203, 0.0
      %v9236 = vmax.f32 %v9204, 0.0
      %v9237 = vmax.f32 %v9205, 0.0
      %v9238 = vmax.f32 %v9206, 0.0
      %v9239 = vmax.f32 %v9207, 0.0
      %v9240 = vmax.f32 %v9208, 0.0
      %v9241 = vmax.f32 %v9209, 0.0
      %v9242 = vmax.f32 %v9210, 0.0
      %v9243 = vmax.f32 %v9211, 0.0
      %v9244 = vmax.f32 %v9212, 0.0
      %v9245 = vmax.f32 %v9213, 0.0
      %v9246 = vmax.f32 %v9214, 0.0
      %v9247 = vmax.f32 %v9215, 0.0
      %9248 = vst [vmem:[%s568] sm:$0xff] %v9216
      %9249 = vst [vmem:[%s568 + $0x8] sm:$0xff] %v9217
      %9250 = vst [vmem:[%s568 + $0x10] sm:$0xff] %v9218
      %9251 = vst.msk [vmem:[%s568 + $0x18] sm:$0xff] %vm666, %v9219
      %9252 = vst [vmem:[%s568 + $0x20] sm:$0xff] %v9220
      %9253 = vst [vmem:[%s568 + $0x28] sm:$0xff] %v9221
      %9254 = vst [vmem:[%s568 + $0x30] sm:$0xff] %v9222
      %9255 = vst.msk [vmem:[%s568 + $0x38] sm:$0xff] %vm666, %v9223
      %9256 = vst [vmem:[%s568 + $0x40] sm:$0xff] %v9224
      %9257 = vst [vmem:[%s568 + $0x48] sm:$0xff] %v9225
      %9258 = vst [vmem:[%s568 + $0x50] sm:$0xff] %v9226
      %9259 = vst.msk [vmem:[%s568 + $0x58] sm:$0xff] %vm666, %v9227
      %9260 = vst [vmem:[%s568 + $0x60] sm:$0xff] %v9228
      %9261 = vst [vmem:[%s568 + $0x68] sm:$0xff] %v9229
      %9262 = vst [vmem:[%s568 + $0x70] sm:$0xff] %v9230
      %9263 = vst.msk [vmem:[%s568 + $0x78] sm:$0xff] %vm666, %v9231
      %9264 = vst [vmem:[%s568 + $0x80] sm:$0xff] %v9232
      %9265 = vst [vmem:[%s568 + $0x88] sm:$0xff] %v9233
      %9266 = vst [vmem:[%s568 + $0x90] sm:$0xff] %v9234
      %9267 = vst.msk [vmem:[%s568 + $0x98] sm:$0xff] %vm666, %v9235
      %9268 = vst [vmem:[%s568 + $0xa0] sm:$0xff] %v9236
      %9269 = vst [vmem:[%s568 + $0xa8] sm:$0xff] %v9237
      %9270 = vst [vmem:[%s568 + $0xb0] sm:$0xff] %v9238
      %9271 = vst.msk [vmem:[%s568 + $0xb8] sm:$0xff] %vm666, %v9239
      %9272 = vst [vmem:[%s568 + $0xc0] sm:$0xff] %v9240
      %9273 = vst [vmem:[%s568 + $0xc8] sm:$0xff] %v9241
      %9274 = vst [vmem:[%s568 + $0xd0] sm:$0xff] %v9242
      %9275 = vst.msk [vmem:[%s568 + $0xd8] sm:$0xff] %vm666, %v9243
      %9276 = vst [vmem:[%s568 + $0xe0] sm:$0xff] %v9244
      %9277 = vst [vmem:[%s568 + $0xe8] sm:$0xff] %v9245
      %9278 = vst [vmem:[%s568 + $0xf0] sm:$0xff] %v9246
      %9279 = vst.msk [vmem:[%s568 + $0xf8] sm:$0xff] %vm666, %v9247
      %9280 = vst [vmem:[%s568 + $0x100] sm:$0xff] %v569
      %9281 = vst [vmem:[%s568 + $0x108] sm:$0xff] %v570
      %9282 = vst [vmem:[%s568 + $0x110] sm:$0xff] %v571
      %9283 = vst.msk [vmem:[%s568 + $0x118] sm:$0xff] %vm666, %v572
      %9284 = vst [vmem:[%s568 + $0x120] sm:$0xff] %v573
      %9285 = vst [vmem:[%s568 + $0x128] sm:$0xff] %v574
      %9286 = vst [vmem:[%s568 + $0x130] sm:$0xff] %v575
      %9287 = vst.msk [vmem:[%s568 + $0x138] sm:$0xff] %vm666, %v576
      %9288 = vst [vmem:[%s568 + $0x140] sm:$0xff] %v577
      %9289 = vst [vmem:[%s568 + $0x148] sm:$0xff] %v578
      %9290 = vst [vmem:[%s568 + $0x150] sm:$0xff] %v579
      %9291 = vst.msk [vmem:[%s568 + $0x158] sm:$0xff] %vm666, %v580
      %9292 = vst [vmem:[%s568 + $0x160] sm:$0xff] %v581
      %9293 = vst [vmem:[%s568 + $0x168] sm:$0xff] %v582
      %9294 = vst [vmem:[%s568 + $0x170] sm:$0xff] %v583
      %9295 = vst.msk [vmem:[%s568 + $0x178] sm:$0xff] %vm666, %v584
      %9296 = vst [vmem:[%s568 + $0x180] sm:$0xff] %v585
      %9297 = vst [vmem:[%s568 + $0x188] sm:$0xff] %v586
      %9298 = vst [vmem:[%s568 + $0x190] sm:$0xff] %v587
      %9299 = vst.msk [vmem:[%s568 + $0x198] sm:$0xff] %vm666, %v588
      %9300 = vst [vmem:[%s568 + $0x1a0] sm:$0xff] %v589
      %9301 = vst [vmem:[%s568 + $0x1a8] sm:$0xff] %v590
      %9302 = vst [vmem:[%s568 + $0x1b0] sm:$0xff] %v591
      %9303 = vst.msk [vmem:[%s568 + $0x1b8] sm:$0xff] %vm666, %v592
      %9304 = vst [vmem:[%s568 + $0x1c0] sm:$0xff] %v593
      %9305 = vst [vmem:[%s568 + $0x1c8] sm:$0xff] %v594
      %9306 = vst [vmem:[%s568 + $0x1d0] sm:$0xff] %v595
      %9307 = vst.msk [vmem:[%s568 + $0x1d8] sm:$0xff] %vm666, %v596
      %9308 = vst [vmem:[%s568 + $0x1e0] sm:$0xff] %v597
      %9309 = vst [vmem:[%s568 + $0x1e8] sm:$0xff] %v598
      %9310 = vst [vmem:[%s568 + $0x1f0] sm:$0xff] %v599
      %9311 = vst.msk [vmem:[%s568 + $0x1f8] sm:$0xff] %vm666, %v600
      %p9312 = scmp.lt.s32.totalorder %s28, 1
      %s9313 = scalar_select %p9312, %s28, 1
      %s9314 = smul.addr %s9313, 64
      %s9315 = smul.addr %s9314, 8
      %s9316 = scalar_lea.vmem %s17, %s9315
      // Predicated region
      $region89: #{forward.1} parent=87 // pred_check
        %p9317 = pneg %p413
      $region90: #{forward.1} parent=87 // pred_check_branch
        %9319 = sbr.rel (%p9317) target = $region92
      $region91: #{forward.1} parent=87 // pred_region
        _
      $region92: #{forward.1} parent=87 // pred_fallthru
        _
    $region88: #{forward.1} parent=5 // pred_fallthru
      _
    %p9320 = scmp.le.s32.totalorder 2, %s23
    // Predicated region
    $region93: #{forward.1} parent=5 // pred_check
      %p9321 = pneg %p9320
    $region94: #{forward.1} parent=5 // pred_check_branch
      %9323 = sbr.rel (%p9321) target = $region96
    $region95: #{forward.1} parent=5 // pred_region
      %s9324 = ssub.s32 %s23, 2
      // Predicated region
      $region97: #{forward.1} parent=95 // pred_check
        %p9325 = pneg %p419
      $region98: #{forward.1} parent=95 // pred_check_branch
        %9327 = sbr.rel (%p9325) target = $region100
      $region99: #{forward.1} parent=95 // pred_region
        %p9328 = scmp.lt.s32.totalorder %s29, 1
        %s9329 = scalar_select %p9328, %s29, 1
        %s9330 = smul.addr %s9329, 64
        %s9331 = smul.addr %s9330, 8
        %s9332 = scalar_lea.vmem %s17, %s9331
      $region100: #{forward.1} parent=95 // pred_fallthru
        _
    $region96: #{forward.1} parent=5 // pred_fallthru
      _
  $region6: #{forward.1} parent=0 // loop_footer
    %s27 = sadd.s32 1, %s23
  $region7: #{forward.1} parent=0 // loop_footer_branch
    %22 = sbr.rel target = $region3
  $region8: #{forward.1} parent=0 // loop_exit
    _

</llo_original>
